<compile_context>
chip_gen: v6e
topology: v6e:2x2x1
jax: 0.10.0
libtpu: 0.0.40
codegen_flags: <defaults>
</compile_context>

<pallas_src>
import jax
import jax.numpy as jnp
from jax.experimental import pallas as pl
from jax.experimental.pallas import tpu as pltpu

HIDDEN = 32
N_HEADS = 4
HEAD_DIM = HIDDEN // N_HEADS
INTERMEDIATE = 4 * HIDDEN          # 128
N_LAYERS = 4
LAST_K = 4                         # "last 4 hidden states"
VOCAB = 64
MAX_POS = 16
LN_EPS = 1e-12

H_PAD = 128                        # lane-dense padded hidden dim

assert INTERMEDIATE == H_PAD       # slab packing assumes 128-wide rows
assert 3 * HIDDEN <= H_PAD         # fused QKV fits one 128-lane slab
assert N_LAYERS >= LAST_K


# ----------------------------------------------------------------------------
# small math helpers
# ----------------------------------------------------------------------------
def _layer_norm_ref(x, g, b):
    """Plain-JAX LayerNorm over the (real) last dim. Used by the reference."""
    mu = jnp.mean(x, axis=-1, keepdims=True)
    var = jnp.mean((x - mu) ** 2, axis=-1, keepdims=True)
    return (x - mu) * jax.lax.rsqrt(var + LN_EPS) * g + b


def _ln_padded(x, g, b):
    """LayerNorm over the real HIDDEN dims of a zero-padded (..., H_PAD) tile.

    Requires padded lanes of x to be exactly zero (maintained by construction);
    gamma/beta are zero on padded lanes so the padding stays zero on output.
    """
    inv_n = 1.0 / HIDDEN
    mu = jnp.sum(x, axis=-1, keepdims=True) * inv_n
    var = jnp.sum(x * x, axis=-1, keepdims=True) * inv_n - mu * mu
    var = jnp.maximum(var, 0.0)
    return (x - mu) * jax.lax.rsqrt(var + LN_EPS) * g + b


def _erf(x):
    # Abramowitz & Stegun 7.1.26 polynomial erf, |abs err| < ~1e-3 with the
    # approximate (EUP) reciprocal — divide moved off the VALU per review.
    a1, a2, a3, a4, a5 = 0.254829592, -0.284496736, 1.421413741, -1.453152027, 1.061405429
    pc = 0.3275911
    sgn = jnp.where(x < 0.0, -1.0, 1.0)
    ax = jnp.abs(x)
    t = pl.reciprocal(1.0 + pc * ax, approx=True)
    poly = ((((a5 * t + a4) * t + a3) * t + a2) * t + a1) * t
    return sgn * (1.0 - poly * jnp.exp(-ax * ax))


def _gelu_exact(x):
    # erf-based BERT GELU (same semantics as F.gelu / jax.nn.gelu(approximate=False)).
    return 0.5 * x * (1.0 + _erf(x * 0.7071067811865476))


# ----------------------------------------------------------------------------
# Fused Pallas kernel: ids/mask in -> embeddings -> 4 layers -> mean(last 4)
# One grid step per batch block (BB examples); all weights resident in VMEM.
# ----------------------------------------------------------------------------
def gloss_encoder_kernel(ids_ref, mask_ref, wemb_ref, pemb_ref, evec_ref,
                         wqkv_ref, wo_ref, w1_ref, w2_ref, vec_ref, out_ref):
    BB, S = ids_ref.shape
    M = BB * S

    # ---- fused embeddings: one-hot gather (MXU) + position add + LayerNorm ----
    ids = ids_ref[...]                                             # (BB, S) int32
    onehot = (ids[:, :, None] ==
              jax.lax.broadcasted_iota(jnp.int32, (BB, S, VOCAB), 2)
              ).astype(jnp.float32)                                # (BB, S, VOCAB)
    x = jnp.einsum("bsv,vh->bsh", onehot, wemb_ref[...],
                   preferred_element_type=jnp.float32)             # (BB, S, H_PAD)
    x = x + pemb_ref[0:S, :][None, :, :]
    x = x.reshape(M, H_PAD)
    x = _ln_padded(x, evec_ref[0:1, :], evec_ref[1:2, :])          # padded lanes stay 0

    # ---- additive key mask built in-kernel (only the S real keys exist) ----
    neg = ((1.0 - mask_ref[...]) * (-1e9))[:, None, :]             # (BB, 1, S)

    acc = jnp.zeros_like(x)                                        # mean-of-last-4 accumulator

    for l in range(N_LAYERS):                                      # static unroll; weights resident
        wqkv = wqkv_ref[l]                                         # (H_PAD, 128) bf16, cols [Q|K|V|0]
        wo = wo_ref[l]                                             # (HIDDEN, H_PAD) bf16
        w1 = w1_ref[l]                                             # (H_PAD, INTER)  bf16
        w2 = w2_ref[l]                                             # (INTER, H_PAD)  bf16
        vec = vec_ref[l]                                           # (8, H_PAD)      f32
        bqkv, bo, b1, b2 = vec[0:1], vec[1:2], vec[2:3], vec[3:4]
        ln1g, ln1b, ln2g, ln2b = vec[4:5], vec[5:6], vec[6:7], vec[7:8]

        # ---- ONE full-width QKV projection: (M,128) x (128,128), bf16 MXU ----
        qkv = jnp.dot(x.astype(jnp.bfloat16), wqkv,
                      preferred_element_type=jnp.float32) + bqkv   # (M, H_PAD)
        qkv = qkv.reshape(BB, S, H_PAD)

        # ---- attention: static head loop, batched over the BB batch block ----
        # (1/sqrt(head_dim) is folded into Wq/bq at pack time.)
        ctx_heads = []
        for h in range(N_HEADS):
            lo = h * HEAD_DIM
            qh = qkv[:, :, lo:lo + HEAD_DIM]                                     # (BB, S, HD)
            kh = qkv[:, :, HIDDEN + lo:HIDDEN + lo + HEAD_DIM]
            vh = qkv[:, :, 2 * HIDDEN + lo:2 * HIDDEN + lo + HEAD_DIM]
            sc = jnp.einsum("bqd,bkd->bqk",
                            qh.astype(jnp.bfloat16), kh.astype(jnp.bfloat16),
                            preferred_element_type=jnp.float32)                  # (BB, S, S)
            sc = sc + neg
            sc = sc - jnp.max(sc, axis=-1, keepdims=True)
            p = jnp.exp(sc)
            p = p * pl.reciprocal(jnp.sum(p, axis=-1, keepdims=True), approx=True)
            ctx_heads.append(jnp.einsum("bqk,bkd->bqd",
                                        p.astype(jnp.bfloat16), vh.astype(jnp.bfloat16),
                                        preferred_element_type=jnp.float32))     # (BB, S, HD)

        # ---- single K=32 output projection (head reduction fused into the matmul) ----
        ctx = jnp.concatenate(ctx_heads, axis=-1).reshape(M, HIDDEN)             # (M, 32)
        attn = jnp.dot(ctx.astype(jnp.bfloat16), wo,
                       preferred_element_type=jnp.float32) + bo                  # (M, H_PAD)

        h1 = _ln_padded(x + attn, ln1g, ln1b)

        # ---- FFN ----
        z = jnp.dot(h1.astype(jnp.bfloat16), w1,
                    preferred_element_type=jnp.float32) + b1
        z = _gelu_exact(z)
        z = jnp.dot(z.astype(jnp.bfloat16), w2,
                    preferred_element_type=jnp.float32) + b2
        x = _ln_padded(h1 + z, ln2g, ln2b)

        if l >= N_LAYERS - LAST_K:                                 # accumulate last-4 hidden states
            acc = acc + x

    out_ref[...] = (acc * (1.0 / LAST_K)).reshape(BB, S, H_PAD).astype(out_ref.dtype)


def _const_spec(a):
    nd = a.ndim
    return pl.BlockSpec(a.shape, lambda g, nd=nd: (0,) * nd)


def _pick_batch_block(B, S):
    """Pick BB so M = BB*S ~ 256 rows (fills MXU rows; amortizes grid-step overhead)."""
    target = max(1, 256 // max(S, 1))
    if B <= target:
        return B                            # single grid step covers the whole batch
    return max(8, (target // 8) * 8)        # multiple of 8 so blocks tile the padded batch;
                                            # B > BB keeps >=2 grid steps (v7x megacore)


def gloss_forward_pallas(ids, mask, packed, bb):
    """ids: (B_pad, S) int32; mask: (B_pad, S) f32; B_pad a multiple of bb."""
    B_pad, S = ids.shape
    wemb, pemb, evec, wqkv, wo, w1, w2, vec = packed
    in_specs = [
        pl.BlockSpec((bb, S), lambda g: (g, 0)),
        pl.BlockSpec((bb, S), lambda g: (g, 0)),
        _const_spec(wemb), _const_spec(pemb), _const_spec(evec),
        _const_spec(wqkv), _const_spec(wo), _const_spec(w1),
        _const_spec(w2), _const_spec(vec),
    ]
    return pl.pallas_call(
        gloss_encoder_kernel,
        out_shape=jax.ShapeDtypeStruct((B_pad, S, H_PAD), jnp.float32),
        grid=(B_pad // bb,),
        in_specs=in_specs,
        out_specs=pl.BlockSpec((bb, S, H_PAD), lambda g: (g, 0, 0)),
        compiler_params=pltpu.CompilerParams(dimension_semantics=("parallel",)),
    )(ids, mask, wemb, pemb, evec, wqkv, wo, w1, w2, vec)


# ----------------------------------------------------------------------------
# Deterministic synthetic parameters (BERT-style shapes) + packing.
# ----------------------------------------------------------------------------
def init_params(key):
    n_keys = 4 + N_LAYERS * 6
    keys = iter(jax.random.split(key, n_keys))

    def dense(k, fan_in, fan_out):
        return jax.random.normal(k, (fan_in, fan_out), jnp.float32) * 0.02

    params = {
        "word_emb": jax.random.normal(next(keys), (VOCAB, HIDDEN), jnp.float32) * 0.02,
        "pos_emb": jax.random.normal(next(keys), (MAX_POS, HIDDEN), jnp.float32) * 0.02,
        "emb_ln_g": jnp.ones((HIDDEN,), jnp.float32),
        "emb_ln_b": jnp.zeros((HIDDEN,), jnp.float32),
        "layers": [],
    }
    _ = next(keys), next(keys)  # keep split count stable / deterministic

    for _layer in range(N_LAYERS):
        lp = {
            "wq": dense(next(keys), HIDDEN, HIDDEN),
            "bq": jnp.zeros((1, HIDDEN), jnp.float32),
            "wk": dense(next(keys), HIDDEN, HIDDEN),
            "bk": jnp.zeros((1, HIDDEN), jnp.float32),
            "wv": dense(next(keys), HIDDEN, HIDDEN),
            "bv": jnp.zeros((1, HIDDEN), jnp.float32),
            "wo": dense(next(keys), HIDDEN, HIDDEN),
            "bo": jnp.zeros((1, HIDDEN), jnp.float32),
            "ln1_g": jnp.ones((1, HIDDEN), jnp.float32),
            "ln1_b": jnp.zeros((1, HIDDEN), jnp.float32),
            "w1": dense(next(keys), HIDDEN, INTERMEDIATE),
            "b1": jnp.zeros((1, INTERMEDIATE), jnp.float32),
            "w2": dense(next(keys), INTERMEDIATE, HIDDEN),
            "b2": jnp.zeros((1, HIDDEN), jnp.float32),
            "ln2_g": jnp.ones((1, HIDDEN), jnp.float32),
            "ln2_b": jnp.zeros((1, HIDDEN), jnp.float32),
        }
        params["layers"].append(lp)
    return params


def pack_params(params):
    """Pack weights into lane-dense (zero-padded), layer-stacked VMEM slabs."""
    def pad_row(v):                          # (1,H)/(H,) -> (H_PAD,)
        v = v.reshape(-1)
        return jnp.pad(v, (0, H_PAD - v.shape[0]))

    def pad_cols(a):
        return jnp.pad(a, ((0, 0), (0, H_PAD - a.shape[1])))

    wemb = pad_cols(params["word_emb"]).astype(jnp.float32)        # (VOCAB, 128)
    pemb = pad_cols(params["pos_emb"]).astype(jnp.float32)         # (MAX_POS, 128)
    evec = jnp.stack([pad_row(params["emb_ln_g"]), pad_row(params["emb_ln_b"])]
                     + [jnp.zeros((H_PAD,), jnp.float32)] * 6, axis=0)  # (8, 128)

    scale = 1.0 / (HEAD_DIM ** 0.5)          # fold attention scale into Wq / bq
    wqkv_l, wo_l, w1_l, w2_l, vec_l = [], [], [], [], []
    for lp in params["layers"]:
        wqkv2d = jnp.concatenate([lp["wq"] * scale, lp["wk"], lp["wv"]], axis=1)  # (32, 96)
        wqkv2d = jnp.pad(wqkv2d, ((0, H_PAD - HIDDEN), (0, H_PAD - 3 * HIDDEN)))
        wqkv_l.append(wqkv2d.astype(jnp.bfloat16))                                # (128, 128)
        wo_l.append(jnp.pad(lp["wo"], ((0, 0), (0, H_PAD - HIDDEN))).astype(jnp.bfloat16))
        w1_l.append(jnp.pad(lp["w1"], ((0, H_PAD - HIDDEN), (0, 0))).astype(jnp.bfloat16))
        w2_l.append(jnp.pad(lp["w2"], ((0, 0), (0, H_PAD - HIDDEN))).astype(jnp.bfloat16))
        bqkv = jnp.concatenate([lp["bq"].reshape(-1) * scale,
                                lp["bk"].reshape(-1), lp["bv"].reshape(-1)])      # (96,)
        vec_l.append(jnp.stack([
            jnp.pad(bqkv, (0, H_PAD - 3 * HIDDEN)),
            pad_row(lp["bo"]), lp["b1"].reshape(-1), pad_row(lp["b2"]),
            pad_row(lp["ln1_g"]), pad_row(lp["ln1_b"]),
            pad_row(lp["ln2_g"]), pad_row(lp["ln2_b"])], axis=0))                 # (8, 128)
    return (wemb, pemb, evec, jnp.stack(wqkv_l), jnp.stack(wo_l),
            jnp.stack(w1_l), jnp.stack(w2_l), jnp.stack(vec_l))


# ----------------------------------------------------------------------------
# GlossEncoder forward (unfrozen path), Pallas-backed.
# ----------------------------------------------------------------------------
class GlossEncoderPallas:
    def __init__(self, params, freeze_gloss=False):
        self.params = params
        self.is_frozen = freeze_gloss   # only the unfrozen semantics implemented
        self.packed = pack_params(params)

    def __call__(self, input_ids, attn_mask):
        B, S = input_ids.shape
        bb = _pick_batch_block(B, S)
        b_pad = -(-B // bb) * bb
        ids = input_ids.astype(jnp.int32)
        mask = attn_mask.astype(jnp.float32)
        if b_pad > B:                    # pad batch so grid tiles exactly; rows discarded below
            ids = jnp.pad(ids, ((0, b_pad - B), (0, 0)))
            mask = jnp.pad(mask, ((0, b_pad - B), (0, 0)), constant_values=1.0)

        out = gloss_forward_pallas(ids, mask, self.packed, bb)[:B, :, :HIDDEN]

        # --- gloss_output[:, :, :].squeeze(dim=1): no-op unless S == 1 ---
        if out.shape[1] == 1:
            out = jnp.squeeze(out, axis=1)
        return out


# ----------------------------------------------------------------------------
# Pure-JAX reference (f32 everywhere) for a correctness check.
# ----------------------------------------------------------------------------
def reference_forward(params, input_ids, attn_mask):
    p = params
    B, S = input_ids.shape
    x = p["word_emb"][input_ids] + p["pos_emb"][:S][None, :, :]
    x = _layer_norm_ref(x.astype(jnp.float32), p["emb_ln_g"], p["emb_ln_b"])
    neg = (1.0 - attn_mask.astype(jnp.float32)) * (-1e9)             # (B, S)
    hidden_states = [x]
    for lp in p["layers"]:
        q = x @ lp["wq"] + lp["bq"]
        k = x @ lp["wk"] + lp["bk"]
        v = x @ lp["wv"] + lp["bv"]
        ctx = []
        for h in range(N_HEADS):
            sl = slice(h * HEAD_DIM, (h + 1) * HEAD_DIM)
            sc = jnp.einsum("bqd,bkd->bqk", q[..., sl], k[..., sl]) / (HEAD_DIM ** 0.5)
            sc = sc + neg[:, None, :]
            pz = jax.nn.softmax(sc, axis=-1)
            ctx.append(jnp.einsum("bqk,bkd->bqd", pz, v[..., sl]))
        ctx = jnp.concatenate(ctx, axis=-1)
        attn = ctx @ lp["wo"] + lp["bo"]
        h1 = _layer_norm_ref(x + attn, lp["ln1_g"], lp["ln1_b"])
        z = h1 @ lp["w1"] + lp["b1"]
        z = jax.nn.gelu(z, approximate=False)
        z = z @ lp["w2"] + lp["b2"]
        x = _layer_norm_ref(h1 + z, lp["ln2_g"], lp["ln2_b"])
        hidden_states.append(x)
    out = jnp.mean(jnp.stack(hidden_states[-LAST_K:], axis=0), axis=0)
    if out.shape[1] == 1:
        out = jnp.squeeze(out, axis=1)
    return out


if __name__ == "__main__":
    key = jax.random.PRNGKey(0)
    pkey, ikey = jax.random.split(key)
    params = init_params(pkey)

    B, S = 2, 8
    input_ids = jax.random.randint(ikey, (B, S), 0, VOCAB)
    attn_mask = jnp.ones((B, S), dtype=jnp.float32)
    attn_mask = attn_mask.at[1, 6:].set(0.0)        # mask padding tokens in example 1

    encoder = GlossEncoderPallas(params, freeze_gloss=False)
    out = encoder(input_ids, attn_mask)
    jax.block_until_ready(out)

    assert out.shape == (B, S, HIDDEN), out.shape
    assert bool(jnp.all(jnp.isfinite(out)))

    # Correctness vs. pure-JAX f32 reference (kernel uses bf16 MXU operands,
    # approx EUP reciprocal in softmax/GELU).
    ref = reference_forward(params, input_ids, attn_mask)
    assert bool(jnp.allclose(out, ref, rtol=5e-2, atol=5e-2)), (
        float(jnp.max(jnp.abs(out - ref))))

    print("KERNEL_OK")
</pallas_src>

<mosaic_0001>
module attributes {stable_mosaic.version = 11 : i64} {
  func.func @gloss_encoder_kernel(%arg0: i32, %arg1: memref<2x8xi32, #tpu.memory_space<vmem>>, %arg2: memref<2x8xf32, #tpu.memory_space<vmem>>, %arg3: memref<64x128xf32, #tpu.memory_space<vmem>>, %arg4: memref<16x128xf32, #tpu.memory_space<vmem>>, %arg5: memref<8x128xf32, #tpu.memory_space<vmem>>, %arg6: memref<4x128x128xbf16, #tpu.memory_space<vmem>>, %arg7: memref<4x32x128xbf16, #tpu.memory_space<vmem>>, %arg8: memref<4x128x128xbf16, #tpu.memory_space<vmem>>, %arg9: memref<4x128x128xbf16, #tpu.memory_space<vmem>>, %arg10: memref<4x8x128xf32, #tpu.memory_space<vmem>>, %arg11: memref<2x8x128xf32, #tpu.memory_space<vmem>>) attributes {dimension_semantics = [#tpu.dimension_semantics<parallel>], iteration_bounds = array<i64: 1>, scalar_prefetch = 0 : i64, scratch_operands = 0 : i64, tpu.core_type = #tpu.core_type<tc>, window_params = [{transform_indices = @transform_0, window_bounds = array<i64: 2, 8>}, {transform_indices = @transform_1, window_bounds = array<i64: 2, 8>}, {pipeline_mode = #tpu.pipeline_mode<synchronous>, transform_indices = @transform_2, window_bounds = array<i64: 64, 128>}, {pipeline_mode = #tpu.pipeline_mode<synchronous>, transform_indices = @transform_3, window_bounds = array<i64: 16, 128>}, {pipeline_mode = #tpu.pipeline_mode<synchronous>, transform_indices = @transform_4, window_bounds = array<i64: 8, 128>}, {pipeline_mode = #tpu.pipeline_mode<synchronous>, transform_indices = @transform_5, window_bounds = array<i64: 4, 128, 128>}, {pipeline_mode = #tpu.pipeline_mode<synchronous>, transform_indices = @transform_6, window_bounds = array<i64: 4, 32, 128>}, {pipeline_mode = #tpu.pipeline_mode<synchronous>, transform_indices = @transform_7, window_bounds = array<i64: 4, 128, 128>}, {pipeline_mode = #tpu.pipeline_mode<synchronous>, transform_indices = @transform_8, window_bounds = array<i64: 4, 128, 128>}, {pipeline_mode = #tpu.pipeline_mode<synchronous>, transform_indices = @transform_9, window_bounds = array<i64: 4, 8, 128>}, {transform_indices = @transform_10, window_bounds = array<i64: 2, 8, 128>}]} {
    %c0 = arith.constant 0 : index
    %c0_0 = arith.constant 0 : index
    %0 = vector.load %arg1[%c0, %c0_0] : memref<2x8xi32, #tpu.memory_space<vmem>>, vector<2x8xi32>
    %1 = vector.shape_cast %0 : vector<2x8xi32> to vector<2x8x1xi32>
    %2 = tpu.iota {dimensions = array<i32: 2>} : vector<2x8x64xi32>
    %3 = vector.broadcast %1 : vector<2x8x1xi32> to vector<2x8x64xi32>
    %4 = arith.cmpi eq, %3, %2 : vector<2x8x64xi32>
    %5 = arith.extui %4 : vector<2x8x64xi1> to vector<2x8x64xi32>
    %6 = arith.sitofp %5 : vector<2x8x64xi32> to vector<2x8x64xf32>
    %c0_1 = arith.constant 0 : index
    %c0_2 = arith.constant 0 : index
    %7 = vector.load %arg3[%c0_1, %c0_2] : memref<64x128xf32, #tpu.memory_space<vmem>>, vector<64x128xf32>
    "tpu.trace_start"() <{level = 10 : i32, message = "bsv,vh->bsh"}> : () -> ()
    %cst = arith.constant dense<0.000000e+00> : vector<2x8x128xf32>
    %8 = tpu.matmul %6, %7, %cst {dimension_numbers = #tpu.dot_dimension_numbers<[2], [0], [0, 1], [1], [0, 0, 0, 1, 1, 1], [], []>} : vector<2x8x64xf32>, vector<64x128xf32>, vector<2x8x128xf32> -> vector<2x8x128xf32>
    "tpu.trace_stop"() : () -> ()
    %c0_3 = arith.constant 0 : index
    %c0_4 = arith.constant 0 : index
    %9 = vector.load %arg4[%c0_3, %c0_4] : memref<16x128xf32, #tpu.memory_space<vmem>>, vector<8x128xf32>
    %10 = vector.shape_cast %9 : vector<8x128xf32> to vector<1x8x128xf32>
    %11 = vector.broadcast %10 : vector<1x8x128xf32> to vector<2x8x128xf32>
    %12 = arith.addf %8, %11 : vector<2x8x128xf32>
    %13 = vector.shape_cast %12 : vector<2x8x128xf32> to vector<16x128xf32>
    %c0_5 = arith.constant 0 : index
    %c0_6 = arith.constant 0 : index
    %14 = vector.load %arg5[%c0_5, %c0_6] : memref<8x128xf32, #tpu.memory_space<vmem>>, vector<1x128xf32>
    %c1 = arith.constant 1 : index
    %c0_7 = arith.constant 0 : index
    %15 = vector.load %arg5[%c1, %c0_7] : memref<8x128xf32, #tpu.memory_space<vmem>>, vector<1x128xf32>
    %cst_8 = arith.constant dense<0.000000e+00> : vector<16xf32>
    %16 = vector.multi_reduction <add>, %13, %cst_8 [1] : vector<16x128xf32> to vector<16xf32>
    %17 = vector.shape_cast %16 : vector<16xf32> to vector<16x1xf32>
    %cst_9 = arith.constant 3.125000e-02 : f32
    %18 = vector.broadcast %cst_9 : f32 to vector<16x1xf32>
    %19 = arith.mulf %17, %18 : vector<16x1xf32>
    %20 = arith.mulf %13, %13 : vector<16x128xf32>
    %cst_10 = arith.constant dense<0.000000e+00> : vector<16xf32>
    %21 = vector.multi_reduction <add>, %20, %cst_10 [1] : vector<16x128xf32> to vector<16xf32>
    %22 = vector.shape_cast %21 : vector<16xf32> to vector<16x1xf32>
    %cst_11 = arith.constant 3.125000e-02 : f32
    %23 = vector.broadcast %cst_11 : f32 to vector<16x1xf32>
    %24 = arith.mulf %22, %23 : vector<16x1xf32>
    %25 = arith.mulf %19, %19 : vector<16x1xf32>
    %26 = arith.subf %24, %25 : vector<16x1xf32>
    %cst_12 = arith.constant 0.000000e+00 : f32
    %27 = vector.broadcast %cst_12 : f32 to vector<16x1xf32>
    %28 = arith.maximumf %26, %27 : vector<16x1xf32>
    %29 = vector.broadcast %19 : vector<16x1xf32> to vector<16x128xf32>
    %30 = arith.subf %13, %29 : vector<16x128xf32>
    %cst_13 = arith.constant 9.99999996E-13 : f32
    %31 = vector.broadcast %cst_13 : f32 to vector<16x1xf32>
    %32 = arith.addf %28, %31 : vector<16x1xf32>
    %33 = math.rsqrt %32 : vector<16x1xf32>
    %34 = vector.broadcast %33 : vector<16x1xf32> to vector<16x128xf32>
    %35 = arith.mulf %30, %34 : vector<16x128xf32>
    %36 = vector.broadcast %14 : vector<1x128xf32> to vector<16x128xf32>
    %37 = arith.mulf %35, %36 : vector<16x128xf32>
    %38 = vector.broadcast %15 : vector<1x128xf32> to vector<16x128xf32>
    %39 = arith.addf %37, %38 : vector<16x128xf32>
    %c0_14 = arith.constant 0 : index
    %c0_15 = arith.constant 0 : index
    %40 = vector.load %arg2[%c0_14, %c0_15] : memref<2x8xf32, #tpu.memory_space<vmem>>, vector<2x8xf32>
    %cst_16 = arith.constant 1.000000e+00 : f32
    %41 = vector.broadcast %cst_16 : f32 to vector<2x8xf32>
    %42 = arith.subf %41, %40 : vector<2x8xf32>
    %cst_17 = arith.constant -1.000000e+09 : f32
    %43 = vector.broadcast %cst_17 : f32 to vector<2x8xf32>
    %44 = arith.mulf %42, %43 : vector<2x8xf32>
    %45 = vector.shape_cast %44 : vector<2x8xf32> to vector<2x1x8xf32>
    %cst_18 = arith.constant 0.000000e+00 : f32
    %46 = vector.broadcast %cst_18 : f32 to vector<16x128xf32>
    %c0_19 = arith.constant 0 : index
    %c0_20 = arith.constant 0 : index
    %c0_21 = arith.constant 0 : index
    %47 = vector.load %arg6[%c0_19, %c0_20, %c0_21] : memref<4x128x128xbf16, #tpu.memory_space<vmem>>, vector<1x128x128xbf16>
    %48 = vector.shape_cast %47 : vector<1x128x128xbf16> to vector<128x128xbf16>
    %c0_22 = arith.constant 0 : index
    %c0_23 = arith.constant 0 : index
    %c0_24 = arith.constant 0 : index
    %49 = vector.load %arg7[%c0_22, %c0_23, %c0_24] : memref<4x32x128xbf16, #tpu.memory_space<vmem>>, vector<1x32x128xbf16>
    %50 = vector.shape_cast %49 : vector<1x32x128xbf16> to vector<32x128xbf16>
    %c0_25 = arith.constant 0 : index
    %c0_26 = arith.constant 0 : index
    %c0_27 = arith.constant 0 : index
    %51 = vector.load %arg8[%c0_25, %c0_26, %c0_27] : memref<4x128x128xbf16, #tpu.memory_space<vmem>>, vector<1x128x128xbf16>
    %52 = vector.shape_cast %51 : vector<1x128x128xbf16> to vector<128x128xbf16>
    %c0_28 = arith.constant 0 : index
    %c0_29 = arith.constant 0 : index
    %c0_30 = arith.constant 0 : index
    %53 = vector.load %arg9[%c0_28, %c0_29, %c0_30] : memref<4x128x128xbf16, #tpu.memory_space<vmem>>, vector<1x128x128xbf16>
    %54 = vector.shape_cast %53 : vector<1x128x128xbf16> to vector<128x128xbf16>
    %c0_31 = arith.constant 0 : index
    %c0_32 = arith.constant 0 : index
    %c0_33 = arith.constant 0 : index
    %55 = vector.load %arg10[%c0_31, %c0_32, %c0_33] : memref<4x8x128xf32, #tpu.memory_space<vmem>>, vector<1x8x128xf32>
    %56 = vector.shape_cast %55 : vector<1x8x128xf32> to vector<8x128xf32>
    %57 = vector.extract_strided_slice %56 {offsets = [0, 0], sizes = [1, 128], strides = [1, 1]} : vector<8x128xf32> to vector<1x128xf32>
    %58 = vector.extract_strided_slice %56 {offsets = [1, 0], sizes = [1, 128], strides = [1, 1]} : vector<8x128xf32> to vector<1x128xf32>
    %59 = vector.extract_strided_slice %56 {offsets = [2, 0], sizes = [1, 128], strides = [1, 1]} : vector<8x128xf32> to vector<1x128xf32>
    %60 = vector.extract_strided_slice %56 {offsets = [3, 0], sizes = [1, 128], strides = [1, 1]} : vector<8x128xf32> to vector<1x128xf32>
    %61 = vector.extract_strided_slice %56 {offsets = [4, 0], sizes = [1, 128], strides = [1, 1]} : vector<8x128xf32> to vector<1x128xf32>
    %62 = vector.extract_strided_slice %56 {offsets = [5, 0], sizes = [1, 128], strides = [1, 1]} : vector<8x128xf32> to vector<1x128xf32>
    %63 = vector.extract_strided_slice %56 {offsets = [6, 0], sizes = [1, 128], strides = [1, 1]} : vector<8x128xf32> to vector<1x128xf32>
    %64 = vector.extract_strided_slice %56 {offsets = [7, 0], sizes = [1, 128], strides = [1, 1]} : vector<8x128xf32> to vector<1x128xf32>
    %65 = arith.truncf %39 : vector<16x128xf32> to vector<16x128xbf16>
    %cst_34 = arith.constant dense<0.000000e+00> : vector<16x128xf32>
    %66 = tpu.matmul %65, %48, %cst_34 {dimension_numbers = #tpu.dot_dimension_numbers<[1], [0], [0], [1], [0, 0, 1, 1], [], []>} : vector<16x128xbf16>, vector<128x128xbf16>, vector<16x128xf32> -> vector<16x128xf32>
    %67 = vector.broadcast %57 : vector<1x128xf32> to vector<16x128xf32>
    %68 = arith.addf %66, %67 : vector<16x128xf32>
    %69 = vector.shape_cast %68 : vector<16x128xf32> to vector<2x8x128xf32>
    %70 = vector.extract_strided_slice %69 {offsets = [0, 0, 0], sizes = [2, 8, 8], strides = [1, 1, 1]} : vector<2x8x128xf32> to vector<2x8x8xf32>
    %71 = vector.extract_strided_slice %69 {offsets = [0, 0, 32], sizes = [2, 8, 8], strides = [1, 1, 1]} : vector<2x8x128xf32> to vector<2x8x8xf32>
    %72 = vector.extract_strided_slice %69 {offsets = [0, 0, 64], sizes = [2, 8, 8], strides = [1, 1, 1]} : vector<2x8x128xf32> to vector<2x8x8xf32>
    %73 = arith.truncf %70 : vector<2x8x8xf32> to vector<2x8x8xbf16>
    %74 = arith.truncf %71 : vector<2x8x8xf32> to vector<2x8x8xbf16>
    "tpu.trace_start"() <{level = 10 : i32, message = "bqd,bkd->bqk"}> : () -> ()
    %cst_35 = arith.constant dense<0.000000e+00> : vector<2x8x8xf32>
    %75 = tpu.matmul %73, %74, %cst_35 {dimension_numbers = #tpu.dot_dimension_numbers<[2], [2], [1], [1], [0, 0, 0, 1, 1, 1], [0], [0]>} : vector<2x8x8xbf16>, vector<2x8x8xbf16>, vector<2x8x8xf32> -> vector<2x8x8xf32>
    "tpu.trace_stop"() : () -> ()
    %76 = vector.broadcast %45 : vector<2x1x8xf32> to vector<2x8x8xf32>
    %77 = arith.addf %75, %76 : vector<2x8x8xf32>
    %cst_36 = arith.constant dense<0xFF800000> : vector<2x8xf32>
    %78 = vector.multi_reduction <maximumf>, %77, %cst_36 [2] : vector<2x8x8xf32> to vector<2x8xf32>
    %79 = vector.shape_cast %78 : vector<2x8xf32> to vector<2x8x1xf32>
    %80 = vector.broadcast %79 : vector<2x8x1xf32> to vector<2x8x8xf32>
    %81 = arith.subf %77, %80 : vector<2x8x8xf32>
    %82 = math.exp %81 : vector<2x8x8xf32>
    %cst_37 = arith.constant dense<0.000000e+00> : vector<2x8xf32>
    %83 = vector.multi_reduction <add>, %82, %cst_37 [2] : vector<2x8x8xf32> to vector<2x8xf32>
    %84 = vector.shape_cast %83 : vector<2x8xf32> to vector<2x8x1xf32>
    %85 = tpu.reciprocal %84 {approx = true} : vector<2x8x1xf32> -> vector<2x8x1xf32>
    %86 = vector.broadcast %85 : vector<2x8x1xf32> to vector<2x8x8xf32>
    %87 = arith.mulf %82, %86 : vector<2x8x8xf32>
    %88 = arith.truncf %87 : vector<2x8x8xf32> to vector<2x8x8xbf16>
    %89 = arith.truncf %72 : vector<2x8x8xf32> to vector<2x8x8xbf16>
    "tpu.trace_start"() <{level = 10 : i32, message = "bqk,bkd->bqd"}> : () -> ()
    %cst_38 = arith.constant dense<0.000000e+00> : vector<2x8x8xf32>
    %90 = tpu.matmul %88, %89, %cst_38 {dimension_numbers = #tpu.dot_dimension_numbers<[2], [1], [1], [2], [0, 0, 0, 1, 1, 2], [0], [0]>} : vector<2x8x8xbf16>, vector<2x8x8xbf16>, vector<2x8x8xf32> -> vector<2x8x8xf32>
    "tpu.trace_stop"() : () -> ()
    %91 = vector.extract_strided_slice %69 {offsets = [0, 0, 8], sizes = [2, 8, 8], strides = [1, 1, 1]} : vector<2x8x128xf32> to vector<2x8x8xf32>
    %92 = vector.extract_strided_slice %69 {offsets = [0, 0, 40], sizes = [2, 8, 8], strides = [1, 1, 1]} : vector<2x8x128xf32> to vector<2x8x8xf32>
    %93 = vector.extract_strided_slice %69 {offsets = [0, 0, 72], sizes = [2, 8, 8], strides = [1, 1, 1]} : vector<2x8x128xf32> to vector<2x8x8xf32>
    %94 = arith.truncf %91 : vector<2x8x8xf32> to vector<2x8x8xbf16>
    %95 = arith.truncf %92 : vector<2x8x8xf32> to vector<2x8x8xbf16>
    "tpu.trace_start"() <{level = 10 : i32, message = "bqd,bkd->bqk"}> : () -> ()
    %cst_39 = arith.constant dense<0.000000e+00> : vector<2x8x8xf32>
    %96 = tpu.matmul %94, %95, %cst_39 {dimension_numbers = #tpu.dot_dimension_numbers<[2], [2], [1], [1], [0, 0, 0, 1, 1, 1], [0], [0]>} : vector<2x8x8xbf16>, vector<2x8x8xbf16>, vector<2x8x8xf32> -> vector<2x8x8xf32>
    "tpu.trace_stop"() : () -> ()
    %97 = vector.broadcast %45 : vector<2x1x8xf32> to vector<2x8x8xf32>
    %98 = arith.addf %96, %97 : vector<2x8x8xf32>
    %cst_40 = arith.constant dense<0xFF800000> : vector<2x8xf32>
    %99 = vector.multi_reduction <maximumf>, %98, %cst_40 [2] : vector<2x8x8xf32> to vector<2x8xf32>
    %100 = vector.shape_cast %99 : vector<2x8xf32> to vector<2x8x1xf32>
    %101 = vector.broadcast %100 : vector<2x8x1xf32> to vector<2x8x8xf32>
    %102 = arith.subf %98, %101 : vector<2x8x8xf32>
    %103 = math.exp %102 : vector<2x8x8xf32>
    %cst_41 = arith.constant dense<0.000000e+00> : vector<2x8xf32>
    %104 = vector.multi_reduction <add>, %103, %cst_41 [2] : vector<2x8x8xf32> to vector<2x8xf32>
    %105 = vector.shape_cast %104 : vector<2x8xf32> to vector<2x8x1xf32>
    %106 = tpu.reciprocal %105 {approx = true} : vector<2x8x1xf32> -> vector<2x8x1xf32>
    %107 = vector.broadcast %106 : vector<2x8x1xf32> to vector<2x8x8xf32>
    %108 = arith.mulf %103, %107 : vector<2x8x8xf32>
    %109 = arith.truncf %108 : vector<2x8x8xf32> to vector<2x8x8xbf16>
    %110 = arith.truncf %93 : vector<2x8x8xf32> to vector<2x8x8xbf16>
    "tpu.trace_start"() <{level = 10 : i32, message = "bqk,bkd->bqd"}> : () -> ()
    %cst_42 = arith.constant dense<0.000000e+00> : vector<2x8x8xf32>
    %111 = tpu.matmul %109, %110, %cst_42 {dimension_numbers = #tpu.dot_dimension_numbers<[2], [1], [1], [2], [0, 0, 0, 1, 1, 2], [0], [0]>} : vector<2x8x8xbf16>, vector<2x8x8xbf16>, vector<2x8x8xf32> -> vector<2x8x8xf32>
    "tpu.trace_stop"() : () -> ()
    %112 = vector.extract_strided_slice %69 {offsets = [0, 0, 16], sizes = [2, 8, 8], strides = [1, 1, 1]} : vector<2x8x128xf32> to vector<2x8x8xf32>
    %113 = vector.extract_strided_slice %69 {offsets = [0, 0, 48], sizes = [2, 8, 8], strides = [1, 1, 1]} : vector<2x8x128xf32> to vector<2x8x8xf32>
    %114 = vector.extract_strided_slice %69 {offsets = [0, 0, 80], sizes = [2, 8, 8], strides = [1, 1, 1]} : vector<2x8x128xf32> to vector<2x8x8xf32>
    %115 = arith.truncf %112 : vector<2x8x8xf32> to vector<2x8x8xbf16>
    %116 = arith.truncf %113 : vector<2x8x8xf32> to vector<2x8x8xbf16>
    "tpu.trace_start"() <{level = 10 : i32, message = "bqd,bkd->bqk"}> : () -> ()
    %cst_43 = arith.constant dense<0.000000e+00> : vector<2x8x8xf32>
    %117 = tpu.matmul %115, %116, %cst_43 {dimension_numbers = #tpu.dot_dimension_numbers<[2], [2], [1], [1], [0, 0, 0, 1, 1, 1], [0], [0]>} : vector<2x8x8xbf16>, vector<2x8x8xbf16>, vector<2x8x8xf32> -> vector<2x8x8xf32>
    "tpu.trace_stop"() : () -> ()
    %118 = vector.broadcast %45 : vector<2x1x8xf32> to vector<2x8x8xf32>
    %119 = arith.addf %117, %118 : vector<2x8x8xf32>
    %cst_44 = arith.constant dense<0xFF800000> : vector<2x8xf32>
    %120 = vector.multi_reduction <maximumf>, %119, %cst_44 [2] : vector<2x8x8xf32> to vector<2x8xf32>
    %121 = vector.shape_cast %120 : vector<2x8xf32> to vector<2x8x1xf32>
    %122 = vector.broadcast %121 : vector<2x8x1xf32> to vector<2x8x8xf32>
    %123 = arith.subf %119, %122 : vector<2x8x8xf32>
    %124 = math.exp %123 : vector<2x8x8xf32>
    %cst_45 = arith.constant dense<0.000000e+00> : vector<2x8xf32>
    %125 = vector.multi_reduction <add>, %124, %cst_45 [2] : vector<2x8x8xf32> to vector<2x8xf32>
    %126 = vector.shape_cast %125 : vector<2x8xf32> to vector<2x8x1xf32>
    %127 = tpu.reciprocal %126 {approx = true} : vector<2x8x1xf32> -> vector<2x8x1xf32>
    %128 = vector.broadcast %127 : vector<2x8x1xf32> to vector<2x8x8xf32>
    %129 = arith.mulf %124, %128 : vector<2x8x8xf32>
    %130 = arith.truncf %129 : vector<2x8x8xf32> to vector<2x8x8xbf16>
    %131 = arith.truncf %114 : vector<2x8x8xf32> to vector<2x8x8xbf16>
    "tpu.trace_start"() <{level = 10 : i32, message = "bqk,bkd->bqd"}> : () -> ()
    %cst_46 = arith.constant dense<0.000000e+00> : vector<2x8x8xf32>
    %132 = tpu.matmul %130, %131, %cst_46 {dimension_numbers = #tpu.dot_dimension_numbers<[2], [1], [1], [2], [0, 0, 0, 1, 1, 2], [0], [0]>} : vector<2x8x8xbf16>, vector<2x8x8xbf16>, vector<2x8x8xf32> -> vector<2x8x8xf32>
    "tpu.trace_stop"() : () -> ()
    %133 = vector.extract_strided_slice %69 {offsets = [0, 0, 24], sizes = [2, 8, 8], strides = [1, 1, 1]} : vector<2x8x128xf32> to vector<2x8x8xf32>
    %134 = vector.extract_strided_slice %69 {offsets = [0, 0, 56], sizes = [2, 8, 8], strides = [1, 1, 1]} : vector<2x8x128xf32> to vector<2x8x8xf32>
    %135 = vector.extract_strided_slice %69 {offsets = [0, 0, 88], sizes = [2, 8, 8], strides = [1, 1, 1]} : vector<2x8x128xf32> to vector<2x8x8xf32>
    %136 = arith.truncf %133 : vector<2x8x8xf32> to vector<2x8x8xbf16>
    %137 = arith.truncf %134 : vector<2x8x8xf32> to vector<2x8x8xbf16>
    "tpu.trace_start"() <{level = 10 : i32, message = "bqd,bkd->bqk"}> : () -> ()
    %cst_47 = arith.constant dense<0.000000e+00> : vector<2x8x8xf32>
    %138 = tpu.matmul %136, %137, %cst_47 {dimension_numbers = #tpu.dot_dimension_numbers<[2], [2], [1], [1], [0, 0, 0, 1, 1, 1], [0], [0]>} : vector<2x8x8xbf16>, vector<2x8x8xbf16>, vector<2x8x8xf32> -> vector<2x8x8xf32>
    "tpu.trace_stop"() : () -> ()
    %139 = vector.broadcast %45 : vector<2x1x8xf32> to vector<2x8x8xf32>
    %140 = arith.addf %138, %139 : vector<2x8x8xf32>
    %cst_48 = arith.constant dense<0xFF800000> : vector<2x8xf32>
    %141 = vector.multi_reduction <maximumf>, %140, %cst_48 [2] : vector<2x8x8xf32> to vector<2x8xf32>
    %142 = vector.shape_cast %141 : vector<2x8xf32> to vector<2x8x1xf32>
    %143 = vector.broadcast %142 : vector<2x8x1xf32> to vector<2x8x8xf32>
    %144 = arith.subf %140, %143 : vector<2x8x8xf32>
    %145 = math.exp %144 : vector<2x8x8xf32>
    %cst_49 = arith.constant dense<0.000000e+00> : vector<2x8xf32>
    %146 = vector.multi_reduction <add>, %145, %cst_49 [2] : vector<2x8x8xf32> to vector<2x8xf32>
    %147 = vector.shape_cast %146 : vector<2x8xf32> to vector<2x8x1xf32>
    %148 = tpu.reciprocal %147 {approx = true} : vector<2x8x1xf32> -> vector<2x8x1xf32>
    %149 = vector.broadcast %148 : vector<2x8x1xf32> to vector<2x8x8xf32>
    %150 = arith.mulf %145, %149 : vector<2x8x8xf32>
    %151 = arith.truncf %150 : vector<2x8x8xf32> to vector<2x8x8xbf16>
    %152 = arith.truncf %135 : vector<2x8x8xf32> to vector<2x8x8xbf16>
    "tpu.trace_start"() <{level = 10 : i32, message = "bqk,bkd->bqd"}> : () -> ()
    %cst_50 = arith.constant dense<0.000000e+00> : vector<2x8x8xf32>
    %153 = tpu.matmul %151, %152, %cst_50 {dimension_numbers = #tpu.dot_dimension_numbers<[2], [1], [1], [2], [0, 0, 0, 1, 1, 2], [0], [0]>} : vector<2x8x8xbf16>, vector<2x8x8xbf16>, vector<2x8x8xf32> -> vector<2x8x8xf32>
    "tpu.trace_stop"() : () -> ()
    %154 = tpu.concatenate %90, %111, %132, %153 in 2 : vector<2x8x8xf32>, vector<2x8x8xf32>, vector<2x8x8xf32>, vector<2x8x8xf32> -> vector<2x8x32xf32>
    %155 = vector.shape_cast %154 : vector<2x8x32xf32> to vector<16x32xf32>
    %156 = arith.truncf %155 : vector<16x32xf32> to vector<16x32xbf16>
    %cst_51 = arith.constant dense<0.000000e+00> : vector<16x128xf32>
    %157 = tpu.matmul %156, %50, %cst_51 {dimension_numbers = #tpu.dot_dimension_numbers<[1], [0], [0], [1], [0, 0, 1, 1], [], []>} : vector<16x32xbf16>, vector<32x128xbf16>, vector<16x128xf32> -> vector<16x128xf32>
    %158 = vector.broadcast %58 : vector<1x128xf32> to vector<16x128xf32>
    %159 = arith.addf %157, %158 : vector<16x128xf32>
    %160 = arith.addf %39, %159 : vector<16x128xf32>
    %cst_52 = arith.constant dense<0.000000e+00> : vector<16xf32>
    %161 = vector.multi_reduction <add>, %160, %cst_52 [1] : vector<16x128xf32> to vector<16xf32>
    %162 = vector.shape_cast %161 : vector<16xf32> to vector<16x1xf32>
    %cst_53 = arith.constant 3.125000e-02 : f32
    %163 = vector.broadcast %cst_53 : f32 to vector<16x1xf32>
    %164 = arith.mulf %162, %163 : vector<16x1xf32>
    %165 = arith.mulf %160, %160 : vector<16x128xf32>
    %cst_54 = arith.constant dense<0.000000e+00> : vector<16xf32>
    %166 = vector.multi_reduction <add>, %165, %cst_54 [1] : vector<16x128xf32> to vector<16xf32>
    %167 = vector.shape_cast %166 : vector<16xf32> to vector<16x1xf32>
    %cst_55 = arith.constant 3.125000e-02 : f32
    %168 = vector.broadcast %cst_55 : f32 to vector<16x1xf32>
    %169 = arith.mulf %167, %168 : vector<16x1xf32>
    %170 = arith.mulf %164, %164 : vector<16x1xf32>
    %171 = arith.subf %169, %170 : vector<16x1xf32>
    %cst_56 = arith.constant 0.000000e+00 : f32
    %172 = vector.broadcast %cst_56 : f32 to vector<16x1xf32>
    %173 = arith.maximumf %171, %172 : vector<16x1xf32>
    %174 = vector.broadcast %164 : vector<16x1xf32> to vector<16x128xf32>
    %175 = arith.subf %160, %174 : vector<16x128xf32>
    %cst_57 = arith.constant 9.99999996E-13 : f32
    %176 = vector.broadcast %cst_57 : f32 to vector<16x1xf32>
    %177 = arith.addf %173, %176 : vector<16x1xf32>
    %178 = math.rsqrt %177 : vector<16x1xf32>
    %179 = vector.broadcast %178 : vector<16x1xf32> to vector<16x128xf32>
    %180 = arith.mulf %175, %179 : vector<16x128xf32>
    %181 = vector.broadcast %61 : vector<1x128xf32> to vector<16x128xf32>
    %182 = arith.mulf %180, %181 : vector<16x128xf32>
    %183 = vector.broadcast %62 : vector<1x128xf32> to vector<16x128xf32>
    %184 = arith.addf %182, %183 : vector<16x128xf32>
    %185 = arith.truncf %184 : vector<16x128xf32> to vector<16x128xbf16>
    %cst_58 = arith.constant dense<0.000000e+00> : vector<16x128xf32>
    %186 = tpu.matmul %185, %52, %cst_58 {dimension_numbers = #tpu.dot_dimension_numbers<[1], [0], [0], [1], [0, 0, 1, 1], [], []>} : vector<16x128xbf16>, vector<128x128xbf16>, vector<16x128xf32> -> vector<16x128xf32>
    %187 = vector.broadcast %59 : vector<1x128xf32> to vector<16x128xf32>
    %188 = arith.addf %186, %187 : vector<16x128xf32>
    %cst_59 = arith.constant 5.000000e-01 : f32
    %189 = vector.broadcast %cst_59 : f32 to vector<16x128xf32>
    %190 = arith.mulf %189, %188 : vector<16x128xf32>
    %cst_60 = arith.constant 0.707106769 : f32
    %191 = vector.broadcast %cst_60 : f32 to vector<16x128xf32>
    %192 = arith.mulf %188, %191 : vector<16x128xf32>
    %cst_61 = arith.constant 0.000000e+00 : f32
    %193 = vector.broadcast %cst_61 : f32 to vector<16x128xf32>
    %194 = arith.cmpf olt, %192, %193 : vector<16x128xf32>
    %cst_62 = arith.constant -1.000000e+00 : f32
    %cst_63 = arith.constant 1.000000e+00 : f32
    %195 = vector.broadcast %cst_62 : f32 to vector<16x128xf32>
    %196 = vector.broadcast %cst_63 : f32 to vector<16x128xf32>
    %197 = arith.select %194, %195, %196 : vector<16x128xi1>, vector<16x128xf32>
    %198 = math.absf %192 : vector<16x128xf32>
    %cst_64 = arith.constant 0.327591091 : f32
    %199 = vector.broadcast %cst_64 : f32 to vector<16x128xf32>
    %200 = arith.mulf %199, %198 : vector<16x128xf32>
    %cst_65 = arith.constant 1.000000e+00 : f32
    %201 = vector.broadcast %cst_65 : f32 to vector<16x128xf32>
    %202 = arith.addf %201, %200 : vector<16x128xf32>
    %203 = tpu.reciprocal %202 {approx = true} : vector<16x128xf32> -> vector<16x128xf32>
    %cst_66 = arith.constant 1.06140542 : f32
    %204 = vector.broadcast %cst_66 : f32 to vector<16x128xf32>
    %205 = arith.mulf %204, %203 : vector<16x128xf32>
    %cst_67 = arith.constant -1.45315206 : f32
    %206 = vector.broadcast %cst_67 : f32 to vector<16x128xf32>
    %207 = arith.addf %205, %206 : vector<16x128xf32>
    %208 = arith.mulf %207, %203 : vector<16x128xf32>
    %cst_68 = arith.constant 1.42141378 : f32
    %209 = vector.broadcast %cst_68 : f32 to vector<16x128xf32>
    %210 = arith.addf %208, %209 : vector<16x128xf32>
    %211 = arith.mulf %210, %203 : vector<16x128xf32>
    %cst_69 = arith.constant -0.284496725 : f32
    %212 = vector.broadcast %cst_69 : f32 to vector<16x128xf32>
    %213 = arith.addf %211, %212 : vector<16x128xf32>
    %214 = arith.mulf %213, %203 : vector<16x128xf32>
    %cst_70 = arith.constant 0.254829586 : f32
    %215 = vector.broadcast %cst_70 : f32 to vector<16x128xf32>
    %216 = arith.addf %214, %215 : vector<16x128xf32>
    %217 = arith.mulf %216, %203 : vector<16x128xf32>
    %cst_71 = arith.constant 0.000000e+00 : f32
    %218 = vector.broadcast %cst_71 : f32 to vector<16x128xf32>
    %219 = arith.subf %218, %198 : vector<16x128xf32>
    %220 = arith.mulf %219, %198 : vector<16x128xf32>
    %221 = math.exp %220 : vector<16x128xf32>
    %222 = arith.mulf %217, %221 : vector<16x128xf32>
    %cst_72 = arith.constant 1.000000e+00 : f32
    %223 = vector.broadcast %cst_72 : f32 to vector<16x128xf32>
    %224 = arith.subf %223, %222 : vector<16x128xf32>
    %225 = arith.mulf %197, %224 : vector<16x128xf32>
    %cst_73 = arith.constant 1.000000e+00 : f32
    %226 = vector.broadcast %cst_73 : f32 to vector<16x128xf32>
    %227 = arith.addf %226, %225 : vector<16x128xf32>
    %228 = arith.mulf %190, %227 : vector<16x128xf32>
    %229 = arith.truncf %228 : vector<16x128xf32> to vector<16x128xbf16>
    %cst_74 = arith.constant dense<0.000000e+00> : vector<16x128xf32>
    %230 = tpu.matmul %229, %54, %cst_74 {dimension_numbers = #tpu.dot_dimension_numbers<[1], [0], [0], [1], [0, 0, 1, 1], [], []>} : vector<16x128xbf16>, vector<128x128xbf16>, vector<16x128xf32> -> vector<16x128xf32>
    %231 = vector.broadcast %60 : vector<1x128xf32> to vector<16x128xf32>
    %232 = arith.addf %230, %231 : vector<16x128xf32>
    %233 = arith.addf %184, %232 : vector<16x128xf32>
    %cst_75 = arith.constant dense<0.000000e+00> : vector<16xf32>
    %234 = vector.multi_reduction <add>, %233, %cst_75 [1] : vector<16x128xf32> to vector<16xf32>
    %235 = vector.shape_cast %234 : vector<16xf32> to vector<16x1xf32>
    %cst_76 = arith.constant 3.125000e-02 : f32
    %236 = vector.broadcast %cst_76 : f32 to vector<16x1xf32>
    %237 = arith.mulf %235, %236 : vector<16x1xf32>
    %238 = arith.mulf %233, %233 : vector<16x128xf32>
    %cst_77 = arith.constant dense<0.000000e+00> : vector<16xf32>
    %239 = vector.multi_reduction <add>, %238, %cst_77 [1] : vector<16x128xf32> to vector<16xf32>
    %240 = vector.shape_cast %239 : vector<16xf32> to vector<16x1xf32>
    %cst_78 = arith.constant 3.125000e-02 : f32
    %241 = vector.broadcast %cst_78 : f32 to vector<16x1xf32>
    %242 = arith.mulf %240, %241 : vector<16x1xf32>
    %243 = arith.mulf %237, %237 : vector<16x1xf32>
    %244 = arith.subf %242, %243 : vector<16x1xf32>
    %cst_79 = arith.constant 0.000000e+00 : f32
    %245 = vector.broadcast %cst_79 : f32 to vector<16x1xf32>
    %246 = arith.maximumf %244, %245 : vector<16x1xf32>
    %247 = vector.broadcast %237 : vector<16x1xf32> to vector<16x128xf32>
    %248 = arith.subf %233, %247 : vector<16x128xf32>
    %cst_80 = arith.constant 9.99999996E-13 : f32
    %249 = vector.broadcast %cst_80 : f32 to vector<16x1xf32>
    %250 = arith.addf %246, %249 : vector<16x1xf32>
    %251 = math.rsqrt %250 : vector<16x1xf32>
    %252 = vector.broadcast %251 : vector<16x1xf32> to vector<16x128xf32>
    %253 = arith.mulf %248, %252 : vector<16x128xf32>
    %254 = vector.broadcast %63 : vector<1x128xf32> to vector<16x128xf32>
    %255 = arith.mulf %253, %254 : vector<16x128xf32>
    %256 = vector.broadcast %64 : vector<1x128xf32> to vector<16x128xf32>
    %257 = arith.addf %255, %256 : vector<16x128xf32>
    %258 = arith.addf %46, %257 : vector<16x128xf32>
    %c1_81 = arith.constant 1 : index
    %c0_82 = arith.constant 0 : index
    %c0_83 = arith.constant 0 : index
    %259 = vector.load %arg6[%c1_81, %c0_82, %c0_83] : memref<4x128x128xbf16, #tpu.memory_space<vmem>>, vector<1x128x128xbf16>
    %260 = vector.shape_cast %259 : vector<1x128x128xbf16> to vector<128x128xbf16>
    %c1_84 = arith.constant 1 : index
    %c0_85 = arith.constant 0 : index
    %c0_86 = arith.constant 0 : index
    %261 = vector.load %arg7[%c1_84, %c0_85, %c0_86] : memref<4x32x128xbf16, #tpu.memory_space<vmem>>, vector<1x32x128xbf16>
    %262 = vector.shape_cast %261 : vector<1x32x128xbf16> to vector<32x128xbf16>
    %c1_87 = arith.constant 1 : index
    %c0_88 = arith.constant 0 : index
    %c0_89 = arith.constant 0 : index
    %263 = vector.load %arg8[%c1_87, %c0_88, %c0_89] : memref<4x128x128xbf16, #tpu.memory_space<vmem>>, vector<1x128x128xbf16>
    %264 = vector.shape_cast %263 : vector<1x128x128xbf16> to vector<128x128xbf16>
    %c1_90 = arith.constant 1 : index
    %c0_91 = arith.constant 0 : index
    %c0_92 = arith.constant 0 : index
    %265 = vector.load %arg9[%c1_90, %c0_91, %c0_92] : memref<4x128x128xbf16, #tpu.memory_space<vmem>>, vector<1x128x128xbf16>
    %266 = vector.shape_cast %265 : vector<1x128x128xbf16> to vector<128x128xbf16>
    %c1_93 = arith.constant 1 : index
    %c0_94 = arith.constant 0 : index
    %c0_95 = arith.constant 0 : index
    %267 = vector.load %arg10[%c1_93, %c0_94, %c0_95] : memref<4x8x128xf32, #tpu.memory_space<vmem>>, vector<1x8x128xf32>
    %268 = vector.shape_cast %267 : vector<1x8x128xf32> to vector<8x128xf32>
    %269 = vector.extract_strided_slice %268 {offsets = [0, 0], sizes = [1, 128], strides = [1, 1]} : vector<8x128xf32> to vector<1x128xf32>
    %270 = vector.extract_strided_slice %268 {offsets = [1, 0], sizes = [1, 128], strides = [1, 1]} : vector<8x128xf32> to vector<1x128xf32>
    %271 = vector.extract_strided_slice %268 {offsets = [2, 0], sizes = [1, 128], strides = [1, 1]} : vector<8x128xf32> to vector<1x128xf32>
    %272 = vector.extract_strided_slice %268 {offsets = [3, 0], sizes = [1, 128], strides = [1, 1]} : vector<8x128xf32> to vector<1x128xf32>
    %273 = vector.extract_strided_slice %268 {offsets = [4, 0], sizes = [1, 128], strides = [1, 1]} : vector<8x128xf32> to vector<1x128xf32>
    %274 = vector.extract_strided_slice %268 {offsets = [5, 0], sizes = [1, 128], strides = [1, 1]} : vector<8x128xf32> to vector<1x128xf32>
    %275 = vector.extract_strided_slice %268 {offsets = [6, 0], sizes = [1, 128], strides = [1, 1]} : vector<8x128xf32> to vector<1x128xf32>
    %276 = vector.extract_strided_slice %268 {offsets = [7, 0], sizes = [1, 128], strides = [1, 1]} : vector<8x128xf32> to vector<1x128xf32>
    %277 = arith.truncf %257 : vector<16x128xf32> to vector<16x128xbf16>
    %cst_96 = arith.constant dense<0.000000e+00> : vector<16x128xf32>
    %278 = tpu.matmul %277, %260, %cst_96 {dimension_numbers = #tpu.dot_dimension_numbers<[1], [0], [0], [1], [0, 0, 1, 1], [], []>} : vector<16x128xbf16>, vector<128x128xbf16>, vector<16x128xf32> -> vector<16x128xf32>
    %279 = vector.broadcast %269 : vector<1x128xf32> to vector<16x128xf32>
    %280 = arith.addf %278, %279 : vector<16x128xf32>
    %281 = vector.shape_cast %280 : vector<16x128xf32> to vector<2x8x128xf32>
    %282 = vector.extract_strided_slice %281 {offsets = [0, 0, 0], sizes = [2, 8, 8], strides = [1, 1, 1]} : vector<2x8x128xf32> to vector<2x8x8xf32>
    %283 = vector.extract_strided_slice %281 {offsets = [0, 0, 32], sizes = [2, 8, 8], strides = [1, 1, 1]} : vector<2x8x128xf32> to vector<2x8x8xf32>
    %284 = vector.extract_strided_slice %281 {offsets = [0, 0, 64], sizes = [2, 8, 8], strides = [1, 1, 1]} : vector<2x8x128xf32> to vector<2x8x8xf32>
    %285 = arith.truncf %282 : vector<2x8x8xf32> to vector<2x8x8xbf16>
    %286 = arith.truncf %283 : vector<2x8x8xf32> to vector<2x8x8xbf16>
    "tpu.trace_start"() <{level = 10 : i32, message = "bqd,bkd->bqk"}> : () -> ()
    %cst_97 = arith.constant dense<0.000000e+00> : vector<2x8x8xf32>
    %287 = tpu.matmul %285, %286, %cst_97 {dimension_numbers = #tpu.dot_dimension_numbers<[2], [2], [1], [1], [0, 0, 0, 1, 1, 1], [0], [0]>} : vector<2x8x8xbf16>, vector<2x8x8xbf16>, vector<2x8x8xf32> -> vector<2x8x8xf32>
    "tpu.trace_stop"() : () -> ()
    %288 = vector.broadcast %45 : vector<2x1x8xf32> to vector<2x8x8xf32>
    %289 = arith.addf %287, %288 : vector<2x8x8xf32>
    %cst_98 = arith.constant dense<0xFF800000> : vector<2x8xf32>
    %290 = vector.multi_reduction <maximumf>, %289, %cst_98 [2] : vector<2x8x8xf32> to vector<2x8xf32>
    %291 = vector.shape_cast %290 : vector<2x8xf32> to vector<2x8x1xf32>
    %292 = vector.broadcast %291 : vector<2x8x1xf32> to vector<2x8x8xf32>
    %293 = arith.subf %289, %292 : vector<2x8x8xf32>
    %294 = math.exp %293 : vector<2x8x8xf32>
    %cst_99 = arith.constant dense<0.000000e+00> : vector<2x8xf32>
    %295 = vector.multi_reduction <add>, %294, %cst_99 [2] : vector<2x8x8xf32> to vector<2x8xf32>
    %296 = vector.shape_cast %295 : vector<2x8xf32> to vector<2x8x1xf32>
    %297 = tpu.reciprocal %296 {approx = true} : vector<2x8x1xf32> -> vector<2x8x1xf32>
    %298 = vector.broadcast %297 : vector<2x8x1xf32> to vector<2x8x8xf32>
    %299 = arith.mulf %294, %298 : vector<2x8x8xf32>
    %300 = arith.truncf %299 : vector<2x8x8xf32> to vector<2x8x8xbf16>
    %301 = arith.truncf %284 : vector<2x8x8xf32> to vector<2x8x8xbf16>
    "tpu.trace_start"() <{level = 10 : i32, message = "bqk,bkd->bqd"}> : () -> ()
    %cst_100 = arith.constant dense<0.000000e+00> : vector<2x8x8xf32>
    %302 = tpu.matmul %300, %301, %cst_100 {dimension_numbers = #tpu.dot_dimension_numbers<[2], [1], [1], [2], [0, 0, 0, 1, 1, 2], [0], [0]>} : vector<2x8x8xbf16>, vector<2x8x8xbf16>, vector<2x8x8xf32> -> vector<2x8x8xf32>
    "tpu.trace_stop"() : () -> ()
    %303 = vector.extract_strided_slice %281 {offsets = [0, 0, 8], sizes = [2, 8, 8], strides = [1, 1, 1]} : vector<2x8x128xf32> to vector<2x8x8xf32>
    %304 = vector.extract_strided_slice %281 {offsets = [0, 0, 40], sizes = [2, 8, 8], strides = [1, 1, 1]} : vector<2x8x128xf32> to vector<2x8x8xf32>
    %305 = vector.extract_strided_slice %281 {offsets = [0, 0, 72], sizes = [2, 8, 8], strides = [1, 1, 1]} : vector<2x8x128xf32> to vector<2x8x8xf32>
    %306 = arith.truncf %303 : vector<2x8x8xf32> to vector<2x8x8xbf16>
    %307 = arith.truncf %304 : vector<2x8x8xf32> to vector<2x8x8xbf16>
    "tpu.trace_start"() <{level = 10 : i32, message = "bqd,bkd->bqk"}> : () -> ()
    %cst_101 = arith.constant dense<0.000000e+00> : vector<2x8x8xf32>
    %308 = tpu.matmul %306, %307, %cst_101 {dimension_numbers = #tpu.dot_dimension_numbers<[2], [2], [1], [1], [0, 0, 0, 1, 1, 1], [0], [0]>} : vector<2x8x8xbf16>, vector<2x8x8xbf16>, vector<2x8x8xf32> -> vector<2x8x8xf32>
    "tpu.trace_stop"() : () -> ()
    %309 = vector.broadcast %45 : vector<2x1x8xf32> to vector<2x8x8xf32>
    %310 = arith.addf %308, %309 : vector<2x8x8xf32>
    %cst_102 = arith.constant dense<0xFF800000> : vector<2x8xf32>
    %311 = vector.multi_reduction <maximumf>, %310, %cst_102 [2] : vector<2x8x8xf32> to vector<2x8xf32>
    %312 = vector.shape_cast %311 : vector<2x8xf32> to vector<2x8x1xf32>
    %313 = vector.broadcast %312 : vector<2x8x1xf32> to vector<2x8x8xf32>
    %314 = arith.subf %310, %313 : vector<2x8x8xf32>
    %315 = math.exp %314 : vector<2x8x8xf32>
    %cst_103 = arith.constant dense<0.000000e+00> : vector<2x8xf32>
    %316 = vector.multi_reduction <add>, %315, %cst_103 [2] : vector<2x8x8xf32> to vector<2x8xf32>
    %317 = vector.shape_cast %316 : vector<2x8xf32> to vector<2x8x1xf32>
    %318 = tpu.reciprocal %317 {approx = true} : vector<2x8x1xf32> -> vector<2x8x1xf32>
    %319 = vector.broadcast %318 : vector<2x8x1xf32> to vector<2x8x8xf32>
    %320 = arith.mulf %315, %319 : vector<2x8x8xf32>
    %321 = arith.truncf %320 : vector<2x8x8xf32> to vector<2x8x8xbf16>
    %322 = arith.truncf %305 : vector<2x8x8xf32> to vector<2x8x8xbf16>
    "tpu.trace_start"() <{level = 10 : i32, message = "bqk,bkd->bqd"}> : () -> ()
    %cst_104 = arith.constant dense<0.000000e+00> : vector<2x8x8xf32>
    %323 = tpu.matmul %321, %322, %cst_104 {dimension_numbers = #tpu.dot_dimension_numbers<[2], [1], [1], [2], [0, 0, 0, 1, 1, 2], [0], [0]>} : vector<2x8x8xbf16>, vector<2x8x8xbf16>, vector<2x8x8xf32> -> vector<2x8x8xf32>
    "tpu.trace_stop"() : () -> ()
    %324 = vector.extract_strided_slice %281 {offsets = [0, 0, 16], sizes = [2, 8, 8], strides = [1, 1, 1]} : vector<2x8x128xf32> to vector<2x8x8xf32>
    %325 = vector.extract_strided_slice %281 {offsets = [0, 0, 48], sizes = [2, 8, 8], strides = [1, 1, 1]} : vector<2x8x128xf32> to vector<2x8x8xf32>
    %326 = vector.extract_strided_slice %281 {offsets = [0, 0, 80], sizes = [2, 8, 8], strides = [1, 1, 1]} : vector<2x8x128xf32> to vector<2x8x8xf32>
    %327 = arith.truncf %324 : vector<2x8x8xf32> to vector<2x8x8xbf16>
    %328 = arith.truncf %325 : vector<2x8x8xf32> to vector<2x8x8xbf16>
    "tpu.trace_start"() <{level = 10 : i32, message = "bqd,bkd->bqk"}> : () -> ()
    %cst_105 = arith.constant dense<0.000000e+00> : vector<2x8x8xf32>
    %329 = tpu.matmul %327, %328, %cst_105 {dimension_numbers = #tpu.dot_dimension_numbers<[2], [2], [1], [1], [0, 0, 0, 1, 1, 1], [0], [0]>} : vector<2x8x8xbf16>, vector<2x8x8xbf16>, vector<2x8x8xf32> -> vector<2x8x8xf32>
    "tpu.trace_stop"() : () -> ()
    %330 = vector.broadcast %45 : vector<2x1x8xf32> to vector<2x8x8xf32>
    %331 = arith.addf %329, %330 : vector<2x8x8xf32>
    %cst_106 = arith.constant dense<0xFF800000> : vector<2x8xf32>
    %332 = vector.multi_reduction <maximumf>, %331, %cst_106 [2] : vector<2x8x8xf32> to vector<2x8xf32>
    %333 = vector.shape_cast %332 : vector<2x8xf32> to vector<2x8x1xf32>
    %334 = vector.broadcast %333 : vector<2x8x1xf32> to vector<2x8x8xf32>
    %335 = arith.subf %331, %334 : vector<2x8x8xf32>
    %336 = math.exp %335 : vector<2x8x8xf32>
    %cst_107 = arith.constant dense<0.000000e+00> : vector<2x8xf32>
    %337 = vector.multi_reduction <add>, %336, %cst_107 [2] : vector<2x8x8xf32> to vector<2x8xf32>
    %338 = vector.shape_cast %337 : vector<2x8xf32> to vector<2x8x1xf32>
    %339 = tpu.reciprocal %338 {approx = true} : vector<2x8x1xf32> -> vector<2x8x1xf32>
    %340 = vector.broadcast %339 : vector<2x8x1xf32> to vector<2x8x8xf32>
    %341 = arith.mulf %336, %340 : vector<2x8x8xf32>
    %342 = arith.truncf %341 : vector<2x8x8xf32> to vector<2x8x8xbf16>
    %343 = arith.truncf %326 : vector<2x8x8xf32> to vector<2x8x8xbf16>
    "tpu.trace_start"() <{level = 10 : i32, message = "bqk,bkd->bqd"}> : () -> ()
    %cst_108 = arith.constant dense<0.000000e+00> : vector<2x8x8xf32>
    %344 = tpu.matmul %342, %343, %cst_108 {dimension_numbers = #tpu.dot_dimension_numbers<[2], [1], [1], [2], [0, 0, 0, 1, 1, 2], [0], [0]>} : vector<2x8x8xbf16>, vector<2x8x8xbf16>, vector<2x8x8xf32> -> vector<2x8x8xf32>
    "tpu.trace_stop"() : () -> ()
    %345 = vector.extract_strided_slice %281 {offsets = [0, 0, 24], sizes = [2, 8, 8], strides = [1, 1, 1]} : vector<2x8x128xf32> to vector<2x8x8xf32>
    %346 = vector.extract_strided_slice %281 {offsets = [0, 0, 56], sizes = [2, 8, 8], strides = [1, 1, 1]} : vector<2x8x128xf32> to vector<2x8x8xf32>
    %347 = vector.extract_strided_slice %281 {offsets = [0, 0, 88], sizes = [2, 8, 8], strides = [1, 1, 1]} : vector<2x8x128xf32> to vector<2x8x8xf32>
    %348 = arith.truncf %345 : vector<2x8x8xf32> to vector<2x8x8xbf16>
    %349 = arith.truncf %346 : vector<2x8x8xf32> to vector<2x8x8xbf16>
    "tpu.trace_start"() <{level = 10 : i32, message = "bqd,bkd->bqk"}> : () -> ()
    %cst_109 = arith.constant dense<0.000000e+00> : vector<2x8x8xf32>
    %350 = tpu.matmul %348, %349, %cst_109 {dimension_numbers = #tpu.dot_dimension_numbers<[2], [2], [1], [1], [0, 0, 0, 1, 1, 1], [0], [0]>} : vector<2x8x8xbf16>, vector<2x8x8xbf16>, vector<2x8x8xf32> -> vector<2x8x8xf32>
    "tpu.trace_stop"() : () -> ()
    %351 = vector.broadcast %45 : vector<2x1x8xf32> to vector<2x8x8xf32>
    %352 = arith.addf %350, %351 : vector<2x8x8xf32>
    %cst_110 = arith.constant dense<0xFF800000> : vector<2x8xf32>
    %353 = vector.multi_reduction <maximumf>, %352, %cst_110 [2] : vector<2x8x8xf32> to vector<2x8xf32>
    %354 = vector.shape_cast %353 : vector<2x8xf32> to vector<2x8x1xf32>
    %355 = vector.broadcast %354 : vector<2x8x1xf32> to vector<2x8x8xf32>
    %356 = arith.subf %352, %355 : vector<2x8x8xf32>
    %357 = math.exp %356 : vector<2x8x8xf32>
    %cst_111 = arith.constant dense<0.000000e+00> : vector<2x8xf32>
    %358 = vector.multi_reduction <add>, %357, %cst_111 [2] : vector<2x8x8xf32> to vector<2x8xf32>
    %359 = vector.shape_cast %358 : vector<2x8xf32> to vector<2x8x1xf32>
    %360 = tpu.reciprocal %359 {approx = true} : vector<2x8x1xf32> -> vector<2x8x1xf32>
    %361 = vector.broadcast %360 : vector<2x8x1xf32> to vector<2x8x8xf32>
    %362 = arith.mulf %357, %361 : vector<2x8x8xf32>
    %363 = arith.truncf %362 : vector<2x8x8xf32> to vector<2x8x8xbf16>
    %364 = arith.truncf %347 : vector<2x8x8xf32> to vector<2x8x8xbf16>
    "tpu.trace_start"() <{level = 10 : i32, message = "bqk,bkd->bqd"}> : () -> ()
    %cst_112 = arith.constant dense<0.000000e+00> : vector<2x8x8xf32>
    %365 = tpu.matmul %363, %364, %cst_112 {dimension_numbers = #tpu.dot_dimension_numbers<[2], [1], [1], [2], [0, 0, 0, 1, 1, 2], [0], [0]>} : vector<2x8x8xbf16>, vector<2x8x8xbf16>, vector<2x8x8xf32> -> vector<2x8x8xf32>
    "tpu.trace_stop"() : () -> ()
    %366 = tpu.concatenate %302, %323, %344, %365 in 2 : vector<2x8x8xf32>, vector<2x8x8xf32>, vector<2x8x8xf32>, vector<2x8x8xf32> -> vector<2x8x32xf32>
    %367 = vector.shape_cast %366 : vector<2x8x32xf32> to vector<16x32xf32>
    %368 = arith.truncf %367 : vector<16x32xf32> to vector<16x32xbf16>
    %cst_113 = arith.constant dense<0.000000e+00> : vector<16x128xf32>
    %369 = tpu.matmul %368, %262, %cst_113 {dimension_numbers = #tpu.dot_dimension_numbers<[1], [0], [0], [1], [0, 0, 1, 1], [], []>} : vector<16x32xbf16>, vector<32x128xbf16>, vector<16x128xf32> -> vector<16x128xf32>
    %370 = vector.broadcast %270 : vector<1x128xf32> to vector<16x128xf32>
    %371 = arith.addf %369, %370 : vector<16x128xf32>
    %372 = arith.addf %257, %371 : vector<16x128xf32>
    %cst_114 = arith.constant dense<0.000000e+00> : vector<16xf32>
    %373 = vector.multi_reduction <add>, %372, %cst_114 [1] : vector<16x128xf32> to vector<16xf32>
    %374 = vector.shape_cast %373 : vector<16xf32> to vector<16x1xf32>
    %cst_115 = arith.constant 3.125000e-02 : f32
    %375 = vector.broadcast %cst_115 : f32 to vector<16x1xf32>
    %376 = arith.mulf %374, %375 : vector<16x1xf32>
    %377 = arith.mulf %372, %372 : vector<16x128xf32>
    %cst_116 = arith.constant dense<0.000000e+00> : vector<16xf32>
    %378 = vector.multi_reduction <add>, %377, %cst_116 [1] : vector<16x128xf32> to vector<16xf32>
    %379 = vector.shape_cast %378 : vector<16xf32> to vector<16x1xf32>
    %cst_117 = arith.constant 3.125000e-02 : f32
    %380 = vector.broadcast %cst_117 : f32 to vector<16x1xf32>
    %381 = arith.mulf %379, %380 : vector<16x1xf32>
    %382 = arith.mulf %376, %376 : vector<16x1xf32>
    %383 = arith.subf %381, %382 : vector<16x1xf32>
    %cst_118 = arith.constant 0.000000e+00 : f32
    %384 = vector.broadcast %cst_118 : f32 to vector<16x1xf32>
    %385 = arith.maximumf %383, %384 : vector<16x1xf32>
    %386 = vector.broadcast %376 : vector<16x1xf32> to vector<16x128xf32>
    %387 = arith.subf %372, %386 : vector<16x128xf32>
    %cst_119 = arith.constant 9.99999996E-13 : f32
    %388 = vector.broadcast %cst_119 : f32 to vector<16x1xf32>
    %389 = arith.addf %385, %388 : vector<16x1xf32>
    %390 = math.rsqrt %389 : vector<16x1xf32>
    %391 = vector.broadcast %390 : vector<16x1xf32> to vector<16x128xf32>
    %392 = arith.mulf %387, %391 : vector<16x128xf32>
    %393 = vector.broadcast %273 : vector<1x128xf32> to vector<16x128xf32>
    %394 = arith.mulf %392, %393 : vector<16x128xf32>
    %395 = vector.broadcast %274 : vector<1x128xf32> to vector<16x128xf32>
    %396 = arith.addf %394, %395 : vector<16x128xf32>
    %397 = arith.truncf %396 : vector<16x128xf32> to vector<16x128xbf16>
    %cst_120 = arith.constant dense<0.000000e+00> : vector<16x128xf32>
    %398 = tpu.matmul %397, %264, %cst_120 {dimension_numbers = #tpu.dot_dimension_numbers<[1], [0], [0], [1], [0, 0, 1, 1], [], []>} : vector<16x128xbf16>, vector<128x128xbf16>, vector<16x128xf32> -> vector<16x128xf32>
    %399 = vector.broadcast %271 : vector<1x128xf32> to vector<16x128xf32>
    %400 = arith.addf %398, %399 : vector<16x128xf32>
    %cst_121 = arith.constant 5.000000e-01 : f32
    %401 = vector.broadcast %cst_121 : f32 to vector<16x128xf32>
    %402 = arith.mulf %401, %400 : vector<16x128xf32>
    %cst_122 = arith.constant 0.707106769 : f32
    %403 = vector.broadcast %cst_122 : f32 to vector<16x128xf32>
    %404 = arith.mulf %400, %403 : vector<16x128xf32>
    %cst_123 = arith.constant 0.000000e+00 : f32
    %405 = vector.broadcast %cst_123 : f32 to vector<16x128xf32>
    %406 = arith.cmpf olt, %404, %405 : vector<16x128xf32>
    %cst_124 = arith.constant -1.000000e+00 : f32
    %cst_125 = arith.constant 1.000000e+00 : f32
    %407 = vector.broadcast %cst_124 : f32 to vector<16x128xf32>
    %408 = vector.broadcast %cst_125 : f32 to vector<16x128xf32>
    %409 = arith.select %406, %407, %408 : vector<16x128xi1>, vector<16x128xf32>
    %410 = math.absf %404 : vector<16x128xf32>
    %cst_126 = arith.constant 0.327591091 : f32
    %411 = vector.broadcast %cst_126 : f32 to vector<16x128xf32>
    %412 = arith.mulf %411, %410 : vector<16x128xf32>
    %cst_127 = arith.constant 1.000000e+00 : f32
    %413 = vector.broadcast %cst_127 : f32 to vector<16x128xf32>
    %414 = arith.addf %413, %412 : vector<16x128xf32>
    %415 = tpu.reciprocal %414 {approx = true} : vector<16x128xf32> -> vector<16x128xf32>
    %cst_128 = arith.constant 1.06140542 : f32
    %416 = vector.broadcast %cst_128 : f32 to vector<16x128xf32>
    %417 = arith.mulf %416, %415 : vector<16x128xf32>
    %cst_129 = arith.constant -1.45315206 : f32
    %418 = vector.broadcast %cst_129 : f32 to vector<16x128xf32>
    %419 = arith.addf %417, %418 : vector<16x128xf32>
    %420 = arith.mulf %419, %415 : vector<16x128xf32>
    %cst_130 = arith.constant 1.42141378 : f32
    %421 = vector.broadcast %cst_130 : f32 to vector<16x128xf32>
    %422 = arith.addf %420, %421 : vector<16x128xf32>
    %423 = arith.mulf %422, %415 : vector<16x128xf32>
    %cst_131 = arith.constant -0.284496725 : f32
    %424 = vector.broadcast %cst_131 : f32 to vector<16x128xf32>
    %425 = arith.addf %423, %424 : vector<16x128xf32>
    %426 = arith.mulf %425, %415 : vector<16x128xf32>
    %cst_132 = arith.constant 0.254829586 : f32
    %427 = vector.broadcast %cst_132 : f32 to vector<16x128xf32>
    %428 = arith.addf %426, %427 : vector<16x128xf32>
    %429 = arith.mulf %428, %415 : vector<16x128xf32>
    %cst_133 = arith.constant 0.000000e+00 : f32
    %430 = vector.broadcast %cst_133 : f32 to vector<16x128xf32>
    %431 = arith.subf %430, %410 : vector<16x128xf32>
    %432 = arith.mulf %431, %410 : vector<16x128xf32>
    %433 = math.exp %432 : vector<16x128xf32>
    %434 = arith.mulf %429, %433 : vector<16x128xf32>
    %cst_134 = arith.constant 1.000000e+00 : f32
    %435 = vector.broadcast %cst_134 : f32 to vector<16x128xf32>
    %436 = arith.subf %435, %434 : vector<16x128xf32>
    %437 = arith.mulf %409, %436 : vector<16x128xf32>
    %cst_135 = arith.constant 1.000000e+00 : f32
    %438 = vector.broadcast %cst_135 : f32 to vector<16x128xf32>
    %439 = arith.addf %438, %437 : vector<16x128xf32>
    %440 = arith.mulf %402, %439 : vector<16x128xf32>
    %441 = arith.truncf %440 : vector<16x128xf32> to vector<16x128xbf16>
    %cst_136 = arith.constant dense<0.000000e+00> : vector<16x128xf32>
    %442 = tpu.matmul %441, %266, %cst_136 {dimension_numbers = #tpu.dot_dimension_numbers<[1], [0], [0], [1], [0, 0, 1, 1], [], []>} : vector<16x128xbf16>, vector<128x128xbf16>, vector<16x128xf32> -> vector<16x128xf32>
    %443 = vector.broadcast %272 : vector<1x128xf32> to vector<16x128xf32>
    %444 = arith.addf %442, %443 : vector<16x128xf32>
    %445 = arith.addf %396, %444 : vector<16x128xf32>
    %cst_137 = arith.constant dense<0.000000e+00> : vector<16xf32>
    %446 = vector.multi_reduction <add>, %445, %cst_137 [1] : vector<16x128xf32> to vector<16xf32>
    %447 = vector.shape_cast %446 : vector<16xf32> to vector<16x1xf32>
    %cst_138 = arith.constant 3.125000e-02 : f32
    %448 = vector.broadcast %cst_138 : f32 to vector<16x1xf32>
    %449 = arith.mulf %447, %448 : vector<16x1xf32>
    %450 = arith.mulf %445, %445 : vector<16x128xf32>
    %cst_139 = arith.constant dense<0.000000e+00> : vector<16xf32>
    %451 = vector.multi_reduction <add>, %450, %cst_139 [1] : vector<16x128xf32> to vector<16xf32>
    %452 = vector.shape_cast %451 : vector<16xf32> to vector<16x1xf32>
    %cst_140 = arith.constant 3.125000e-02 : f32
    %453 = vector.broadcast %cst_140 : f32 to vector<16x1xf32>
    %454 = arith.mulf %452, %453 : vector<16x1xf32>
    %455 = arith.mulf %449, %449 : vector<16x1xf32>
    %456 = arith.subf %454, %455 : vector<16x1xf32>
    %cst_141 = arith.constant 0.000000e+00 : f32
    %457 = vector.broadcast %cst_141 : f32 to vector<16x1xf32>
    %458 = arith.maximumf %456, %457 : vector<16x1xf32>
    %459 = vector.broadcast %449 : vector<16x1xf32> to vector<16x128xf32>
    %460 = arith.subf %445, %459 : vector<16x128xf32>
    %cst_142 = arith.constant 9.99999996E-13 : f32
    %461 = vector.broadcast %cst_142 : f32 to vector<16x1xf32>
    %462 = arith.addf %458, %461 : vector<16x1xf32>
    %463 = math.rsqrt %462 : vector<16x1xf32>
    %464 = vector.broadcast %463 : vector<16x1xf32> to vector<16x128xf32>
    %465 = arith.mulf %460, %464 : vector<16x128xf32>
    %466 = vector.broadcast %275 : vector<1x128xf32> to vector<16x128xf32>
    %467 = arith.mulf %465, %466 : vector<16x128xf32>
    %468 = vector.broadcast %276 : vector<1x128xf32> to vector<16x128xf32>
    %469 = arith.addf %467, %468 : vector<16x128xf32>
    %470 = arith.addf %258, %469 : vector<16x128xf32>
    %c2 = arith.constant 2 : index
    %c0_143 = arith.constant 0 : index
    %c0_144 = arith.constant 0 : index
    %471 = vector.load %arg6[%c2, %c0_143, %c0_144] : memref<4x128x128xbf16, #tpu.memory_space<vmem>>, vector<1x128x128xbf16>
    %472 = vector.shape_cast %471 : vector<1x128x128xbf16> to vector<128x128xbf16>
    %c2_145 = arith.constant 2 : index
    %c0_146 = arith.constant 0 : index
    %c0_147 = arith.constant 0 : index
    %473 = vector.load %arg7[%c2_145, %c0_146, %c0_147] : memref<4x32x128xbf16, #tpu.memory_space<vmem>>, vector<1x32x128xbf16>
    %474 = vector.shape_cast %473 : vector<1x32x128xbf16> to vector<32x128xbf16>
    %c2_148 = arith.constant 2 : index
    %c0_149 = arith.constant 0 : index
    %c0_150 = arith.constant 0 : index
    %475 = vector.load %arg8[%c2_148, %c0_149, %c0_150] : memref<4x128x128xbf16, #tpu.memory_space<vmem>>, vector<1x128x128xbf16>
    %476 = vector.shape_cast %475 : vector<1x128x128xbf16> to vector<128x128xbf16>
    %c2_151 = arith.constant 2 : index
    %c0_152 = arith.constant 0 : index
    %c0_153 = arith.constant 0 : index
    %477 = vector.load %arg9[%c2_151, %c0_152, %c0_153] : memref<4x128x128xbf16, #tpu.memory_space<vmem>>, vector<1x128x128xbf16>
    %478 = vector.shape_cast %477 : vector<1x128x128xbf16> to vector<128x128xbf16>
    %c2_154 = arith.constant 2 : index
    %c0_155 = arith.constant 0 : index
    %c0_156 = arith.constant 0 : index
    %479 = vector.load %arg10[%c2_154, %c0_155, %c0_156] : memref<4x8x128xf32, #tpu.memory_space<vmem>>, vector<1x8x128xf32>
    %480 = vector.shape_cast %479 : vector<1x8x128xf32> to vector<8x128xf32>
    %481 = vector.extract_strided_slice %480 {offsets = [0, 0], sizes = [1, 128], strides = [1, 1]} : vector<8x128xf32> to vector<1x128xf32>
    %482 = vector.extract_strided_slice %480 {offsets = [1, 0], sizes = [1, 128], strides = [1, 1]} : vector<8x128xf32> to vector<1x128xf32>
    %483 = vector.extract_strided_slice %480 {offsets = [2, 0], sizes = [1, 128], strides = [1, 1]} : vector<8x128xf32> to vector<1x128xf32>
    %484 = vector.extract_strided_slice %480 {offsets = [3, 0], sizes = [1, 128], strides = [1, 1]} : vector<8x128xf32> to vector<1x128xf32>
    %485 = vector.extract_strided_slice %480 {offsets = [4, 0], sizes = [1, 128], strides = [1, 1]} : vector<8x128xf32> to vector<1x128xf32>
    %486 = vector.extract_strided_slice %480 {offsets = [5, 0], sizes = [1, 128], strides = [1, 1]} : vector<8x128xf32> to vector<1x128xf32>
    %487 = vector.extract_strided_slice %480 {offsets = [6, 0], sizes = [1, 128], strides = [1, 1]} : vector<8x128xf32> to vector<1x128xf32>
    %488 = vector.extract_strided_slice %480 {offsets = [7, 0], sizes = [1, 128], strides = [1, 1]} : vector<8x128xf32> to vector<1x128xf32>
    %489 = arith.truncf %469 : vector<16x128xf32> to vector<16x128xbf16>
    %cst_157 = arith.constant dense<0.000000e+00> : vector<16x128xf32>
    %490 = tpu.matmul %489, %472, %cst_157 {dimension_numbers = #tpu.dot_dimension_numbers<[1], [0], [0], [1], [0, 0, 1, 1], [], []>} : vector<16x128xbf16>, vector<128x128xbf16>, vector<16x128xf32> -> vector<16x128xf32>
    %491 = vector.broadcast %481 : vector<1x128xf32> to vector<16x128xf32>
    %492 = arith.addf %490, %491 : vector<16x128xf32>
    %493 = vector.shape_cast %492 : vector<16x128xf32> to vector<2x8x128xf32>
    %494 = vector.extract_strided_slice %493 {offsets = [0, 0, 0], sizes = [2, 8, 8], strides = [1, 1, 1]} : vector<2x8x128xf32> to vector<2x8x8xf32>
    %495 = vector.extract_strided_slice %493 {offsets = [0, 0, 32], sizes = [2, 8, 8], strides = [1, 1, 1]} : vector<2x8x128xf32> to vector<2x8x8xf32>
    %496 = vector.extract_strided_slice %493 {offsets = [0, 0, 64], sizes = [2, 8, 8], strides = [1, 1, 1]} : vector<2x8x128xf32> to vector<2x8x8xf32>
    %497 = arith.truncf %494 : vector<2x8x8xf32> to vector<2x8x8xbf16>
    %498 = arith.truncf %495 : vector<2x8x8xf32> to vector<2x8x8xbf16>
    "tpu.trace_start"() <{level = 10 : i32, message = "bqd,bkd->bqk"}> : () -> ()
    %cst_158 = arith.constant dense<0.000000e+00> : vector<2x8x8xf32>
    %499 = tpu.matmul %497, %498, %cst_158 {dimension_numbers = #tpu.dot_dimension_numbers<[2], [2], [1], [1], [0, 0, 0, 1, 1, 1], [0], [0]>} : vector<2x8x8xbf16>, vector<2x8x8xbf16>, vector<2x8x8xf32> -> vector<2x8x8xf32>
    "tpu.trace_stop"() : () -> ()
    %500 = vector.broadcast %45 : vector<2x1x8xf32> to vector<2x8x8xf32>
    %501 = arith.addf %499, %500 : vector<2x8x8xf32>
    %cst_159 = arith.constant dense<0xFF800000> : vector<2x8xf32>
    %502 = vector.multi_reduction <maximumf>, %501, %cst_159 [2] : vector<2x8x8xf32> to vector<2x8xf32>
    %503 = vector.shape_cast %502 : vector<2x8xf32> to vector<2x8x1xf32>
    %504 = vector.broadcast %503 : vector<2x8x1xf32> to vector<2x8x8xf32>
    %505 = arith.subf %501, %504 : vector<2x8x8xf32>
    %506 = math.exp %505 : vector<2x8x8xf32>
    %cst_160 = arith.constant dense<0.000000e+00> : vector<2x8xf32>
    %507 = vector.multi_reduction <add>, %506, %cst_160 [2] : vector<2x8x8xf32> to vector<2x8xf32>
    %508 = vector.shape_cast %507 : vector<2x8xf32> to vector<2x8x1xf32>
    %509 = tpu.reciprocal %508 {approx = true} : vector<2x8x1xf32> -> vector<2x8x1xf32>
    %510 = vector.broadcast %509 : vector<2x8x1xf32> to vector<2x8x8xf32>
    %511 = arith.mulf %506, %510 : vector<2x8x8xf32>
    %512 = arith.truncf %511 : vector<2x8x8xf32> to vector<2x8x8xbf16>
    %513 = arith.truncf %496 : vector<2x8x8xf32> to vector<2x8x8xbf16>
    "tpu.trace_start"() <{level = 10 : i32, message = "bqk,bkd->bqd"}> : () -> ()
    %cst_161 = arith.constant dense<0.000000e+00> : vector<2x8x8xf32>
    %514 = tpu.matmul %512, %513, %cst_161 {dimension_numbers = #tpu.dot_dimension_numbers<[2], [1], [1], [2], [0, 0, 0, 1, 1, 2], [0], [0]>} : vector<2x8x8xbf16>, vector<2x8x8xbf16>, vector<2x8x8xf32> -> vector<2x8x8xf32>
    "tpu.trace_stop"() : () -> ()
    %515 = vector.extract_strided_slice %493 {offsets = [0, 0, 8], sizes = [2, 8, 8], strides = [1, 1, 1]} : vector<2x8x128xf32> to vector<2x8x8xf32>
    %516 = vector.extract_strided_slice %493 {offsets = [0, 0, 40], sizes = [2, 8, 8], strides = [1, 1, 1]} : vector<2x8x128xf32> to vector<2x8x8xf32>
    %517 = vector.extract_strided_slice %493 {offsets = [0, 0, 72], sizes = [2, 8, 8], strides = [1, 1, 1]} : vector<2x8x128xf32> to vector<2x8x8xf32>
    %518 = arith.truncf %515 : vector<2x8x8xf32> to vector<2x8x8xbf16>
    %519 = arith.truncf %516 : vector<2x8x8xf32> to vector<2x8x8xbf16>
    "tpu.trace_start"() <{level = 10 : i32, message = "bqd,bkd->bqk"}> : () -> ()
    %cst_162 = arith.constant dense<0.000000e+00> : vector<2x8x8xf32>
    %520 = tpu.matmul %518, %519, %cst_162 {dimension_numbers = #tpu.dot_dimension_numbers<[2], [2], [1], [1], [0, 0, 0, 1, 1, 1], [0], [0]>} : vector<2x8x8xbf16>, vector<2x8x8xbf16>, vector<2x8x8xf32> -> vector<2x8x8xf32>
    "tpu.trace_stop"() : () -> ()
    %521 = vector.broadcast %45 : vector<2x1x8xf32> to vector<2x8x8xf32>
    %522 = arith.addf %520, %521 : vector<2x8x8xf32>
    %cst_163 = arith.constant dense<0xFF800000> : vector<2x8xf32>
    %523 = vector.multi_reduction <maximumf>, %522, %cst_163 [2] : vector<2x8x8xf32> to vector<2x8xf32>
    %524 = vector.shape_cast %523 : vector<2x8xf32> to vector<2x8x1xf32>
    %525 = vector.broadcast %524 : vector<2x8x1xf32> to vector<2x8x8xf32>
    %526 = arith.subf %522, %525 : vector<2x8x8xf32>
    %527 = math.exp %526 : vector<2x8x8xf32>
    %cst_164 = arith.constant dense<0.000000e+00> : vector<2x8xf32>
    %528 = vector.multi_reduction <add>, %527, %cst_164 [2] : vector<2x8x8xf32> to vector<2x8xf32>
    %529 = vector.shape_cast %528 : vector<2x8xf32> to vector<2x8x1xf32>
    %530 = tpu.reciprocal %529 {approx = true} : vector<2x8x1xf32> -> vector<2x8x1xf32>
    %531 = vector.broadcast %530 : vector<2x8x1xf32> to vector<2x8x8xf32>
    %532 = arith.mulf %527, %531 : vector<2x8x8xf32>
    %533 = arith.truncf %532 : vector<2x8x8xf32> to vector<2x8x8xbf16>
    %534 = arith.truncf %517 : vector<2x8x8xf32> to vector<2x8x8xbf16>
    "tpu.trace_start"() <{level = 10 : i32, message = "bqk,bkd->bqd"}> : () -> ()
    %cst_165 = arith.constant dense<0.000000e+00> : vector<2x8x8xf32>
    %535 = tpu.matmul %533, %534, %cst_165 {dimension_numbers = #tpu.dot_dimension_numbers<[2], [1], [1], [2], [0, 0, 0, 1, 1, 2], [0], [0]>} : vector<2x8x8xbf16>, vector<2x8x8xbf16>, vector<2x8x8xf32> -> vector<2x8x8xf32>
    "tpu.trace_stop"() : () -> ()
    %536 = vector.extract_strided_slice %493 {offsets = [0, 0, 16], sizes = [2, 8, 8], strides = [1, 1, 1]} : vector<2x8x128xf32> to vector<2x8x8xf32>
    %537 = vector.extract_strided_slice %493 {offsets = [0, 0, 48], sizes = [2, 8, 8], strides = [1, 1, 1]} : vector<2x8x128xf32> to vector<2x8x8xf32>
    %538 = vector.extract_strided_slice %493 {offsets = [0, 0, 80], sizes = [2, 8, 8], strides = [1, 1, 1]} : vector<2x8x128xf32> to vector<2x8x8xf32>
    %539 = arith.truncf %536 : vector<2x8x8xf32> to vector<2x8x8xbf16>
    %540 = arith.truncf %537 : vector<2x8x8xf32> to vector<2x8x8xbf16>
    "tpu.trace_start"() <{level = 10 : i32, message = "bqd,bkd->bqk"}> : () -> ()
    %cst_166 = arith.constant dense<0.000000e+00> : vector<2x8x8xf32>
    %541 = tpu.matmul %539, %540, %cst_166 {dimension_numbers = #tpu.dot_dimension_numbers<[2], [2], [1], [1], [0, 0, 0, 1, 1, 1], [0], [0]>} : vector<2x8x8xbf16>, vector<2x8x8xbf16>, vector<2x8x8xf32> -> vector<2x8x8xf32>
    "tpu.trace_stop"() : () -> ()
    %542 = vector.broadcast %45 : vector<2x1x8xf32> to vector<2x8x8xf32>
    %543 = arith.addf %541, %542 : vector<2x8x8xf32>
    %cst_167 = arith.constant dense<0xFF800000> : vector<2x8xf32>
    %544 = vector.multi_reduction <maximumf>, %543, %cst_167 [2] : vector<2x8x8xf32> to vector<2x8xf32>
    %545 = vector.shape_cast %544 : vector<2x8xf32> to vector<2x8x1xf32>
    %546 = vector.broadcast %545 : vector<2x8x1xf32> to vector<2x8x8xf32>
    %547 = arith.subf %543, %546 : vector<2x8x8xf32>
    %548 = math.exp %547 : vector<2x8x8xf32>
    %cst_168 = arith.constant dense<0.000000e+00> : vector<2x8xf32>
    %549 = vector.multi_reduction <add>, %548, %cst_168 [2] : vector<2x8x8xf32> to vector<2x8xf32>
    %550 = vector.shape_cast %549 : vector<2x8xf32> to vector<2x8x1xf32>
    %551 = tpu.reciprocal %550 {approx = true} : vector<2x8x1xf32> -> vector<2x8x1xf32>
    %552 = vector.broadcast %551 : vector<2x8x1xf32> to vector<2x8x8xf32>
    %553 = arith.mulf %548, %552 : vector<2x8x8xf32>
    %554 = arith.truncf %553 : vector<2x8x8xf32> to vector<2x8x8xbf16>
    %555 = arith.truncf %538 : vector<2x8x8xf32> to vector<2x8x8xbf16>
    "tpu.trace_start"() <{level = 10 : i32, message = "bqk,bkd->bqd"}> : () -> ()
    %cst_169 = arith.constant dense<0.000000e+00> : vector<2x8x8xf32>
    %556 = tpu.matmul %554, %555, %cst_169 {dimension_numbers = #tpu.dot_dimension_numbers<[2], [1], [1], [2], [0, 0, 0, 1, 1, 2], [0], [0]>} : vector<2x8x8xbf16>, vector<2x8x8xbf16>, vector<2x8x8xf32> -> vector<2x8x8xf32>
    "tpu.trace_stop"() : () -> ()
    %557 = vector.extract_strided_slice %493 {offsets = [0, 0, 24], sizes = [2, 8, 8], strides = [1, 1, 1]} : vector<2x8x128xf32> to vector<2x8x8xf32>
    %558 = vector.extract_strided_slice %493 {offsets = [0, 0, 56], sizes = [2, 8, 8], strides = [1, 1, 1]} : vector<2x8x128xf32> to vector<2x8x8xf32>
    %559 = vector.extract_strided_slice %493 {offsets = [0, 0, 88], sizes = [2, 8, 8], strides = [1, 1, 1]} : vector<2x8x128xf32> to vector<2x8x8xf32>
    %560 = arith.truncf %557 : vector<2x8x8xf32> to vector<2x8x8xbf16>
    %561 = arith.truncf %558 : vector<2x8x8xf32> to vector<2x8x8xbf16>
    "tpu.trace_start"() <{level = 10 : i32, message = "bqd,bkd->bqk"}> : () -> ()
    %cst_170 = arith.constant dense<0.000000e+00> : vector<2x8x8xf32>
    %562 = tpu.matmul %560, %561, %cst_170 {dimension_numbers = #tpu.dot_dimension_numbers<[2], [2], [1], [1], [0, 0, 0, 1, 1, 1], [0], [0]>} : vector<2x8x8xbf16>, vector<2x8x8xbf16>, vector<2x8x8xf32> -> vector<2x8x8xf32>
    "tpu.trace_stop"() : () -> ()
    %563 = vector.broadcast %45 : vector<2x1x8xf32> to vector<2x8x8xf32>
    %564 = arith.addf %562, %563 : vector<2x8x8xf32>
    %cst_171 = arith.constant dense<0xFF800000> : vector<2x8xf32>
    %565 = vector.multi_reduction <maximumf>, %564, %cst_171 [2] : vector<2x8x8xf32> to vector<2x8xf32>
    %566 = vector.shape_cast %565 : vector<2x8xf32> to vector<2x8x1xf32>
    %567 = vector.broadcast %566 : vector<2x8x1xf32> to vector<2x8x8xf32>
    %568 = arith.subf %564, %567 : vector<2x8x8xf32>
    %569 = math.exp %568 : vector<2x8x8xf32>
    %cst_172 = arith.constant dense<0.000000e+00> : vector<2x8xf32>
    %570 = vector.multi_reduction <add>, %569, %cst_172 [2] : vector<2x8x8xf32> to vector<2x8xf32>
    %571 = vector.shape_cast %570 : vector<2x8xf32> to vector<2x8x1xf32>
    %572 = tpu.reciprocal %571 {approx = true} : vector<2x8x1xf32> -> vector<2x8x1xf32>
    %573 = vector.broadcast %572 : vector<2x8x1xf32> to vector<2x8x8xf32>
    %574 = arith.mulf %569, %573 : vector<2x8x8xf32>
    %575 = arith.truncf %574 : vector<2x8x8xf32> to vector<2x8x8xbf16>
    %576 = arith.truncf %559 : vector<2x8x8xf32> to vector<2x8x8xbf16>
    "tpu.trace_start"() <{level = 10 : i32, message = "bqk,bkd->bqd"}> : () -> ()
    %cst_173 = arith.constant dense<0.000000e+00> : vector<2x8x8xf32>
    %577 = tpu.matmul %575, %576, %cst_173 {dimension_numbers = #tpu.dot_dimension_numbers<[2], [1], [1], [2], [0, 0, 0, 1, 1, 2], [0], [0]>} : vector<2x8x8xbf16>, vector<2x8x8xbf16>, vector<2x8x8xf32> -> vector<2x8x8xf32>
    "tpu.trace_stop"() : () -> ()
    %578 = tpu.concatenate %514, %535, %556, %577 in 2 : vector<2x8x8xf32>, vector<2x8x8xf32>, vector<2x8x8xf32>, vector<2x8x8xf32> -> vector<2x8x32xf32>
    %579 = vector.shape_cast %578 : vector<2x8x32xf32> to vector<16x32xf32>
    %580 = arith.truncf %579 : vector<16x32xf32> to vector<16x32xbf16>
    %cst_174 = arith.constant dense<0.000000e+00> : vector<16x128xf32>
    %581 = tpu.matmul %580, %474, %cst_174 {dimension_numbers = #tpu.dot_dimension_numbers<[1], [0], [0], [1], [0, 0, 1, 1], [], []>} : vector<16x32xbf16>, vector<32x128xbf16>, vector<16x128xf32> -> vector<16x128xf32>
    %582 = vector.broadcast %482 : vector<1x128xf32> to vector<16x128xf32>
    %583 = arith.addf %581, %582 : vector<16x128xf32>
    %584 = arith.addf %469, %583 : vector<16x128xf32>
    %cst_175 = arith.constant dense<0.000000e+00> : vector<16xf32>
    %585 = vector.multi_reduction <add>, %584, %cst_175 [1] : vector<16x128xf32> to vector<16xf32>
    %586 = vector.shape_cast %585 : vector<16xf32> to vector<16x1xf32>
    %cst_176 = arith.constant 3.125000e-02 : f32
    %587 = vector.broadcast %cst_176 : f32 to vector<16x1xf32>
    %588 = arith.mulf %586, %587 : vector<16x1xf32>
    %589 = arith.mulf %584, %584 : vector<16x128xf32>
    %cst_177 = arith.constant dense<0.000000e+00> : vector<16xf32>
    %590 = vector.multi_reduction <add>, %589, %cst_177 [1] : vector<16x128xf32> to vector<16xf32>
    %591 = vector.shape_cast %590 : vector<16xf32> to vector<16x1xf32>
    %cst_178 = arith.constant 3.125000e-02 : f32
    %592 = vector.broadcast %cst_178 : f32 to vector<16x1xf32>
    %593 = arith.mulf %591, %592 : vector<16x1xf32>
    %594 = arith.mulf %588, %588 : vector<16x1xf32>
    %595 = arith.subf %593, %594 : vector<16x1xf32>
    %cst_179 = arith.constant 0.000000e+00 : f32
    %596 = vector.broadcast %cst_179 : f32 to vector<16x1xf32>
    %597 = arith.maximumf %595, %596 : vector<16x1xf32>
    %598 = vector.broadcast %588 : vector<16x1xf32> to vector<16x128xf32>
    %599 = arith.subf %584, %598 : vector<16x128xf32>
    %cst_180 = arith.constant 9.99999996E-13 : f32
    %600 = vector.broadcast %cst_180 : f32 to vector<16x1xf32>
    %601 = arith.addf %597, %600 : vector<16x1xf32>
    %602 = math.rsqrt %601 : vector<16x1xf32>
    %603 = vector.broadcast %602 : vector<16x1xf32> to vector<16x128xf32>
    %604 = arith.mulf %599, %603 : vector<16x128xf32>
    %605 = vector.broadcast %485 : vector<1x128xf32> to vector<16x128xf32>
    %606 = arith.mulf %604, %605 : vector<16x128xf32>
    %607 = vector.broadcast %486 : vector<1x128xf32> to vector<16x128xf32>
    %608 = arith.addf %606, %607 : vector<16x128xf32>
    %609 = arith.truncf %608 : vector<16x128xf32> to vector<16x128xbf16>
    %cst_181 = arith.constant dense<0.000000e+00> : vector<16x128xf32>
    %610 = tpu.matmul %609, %476, %cst_181 {dimension_numbers = #tpu.dot_dimension_numbers<[1], [0], [0], [1], [0, 0, 1, 1], [], []>} : vector<16x128xbf16>, vector<128x128xbf16>, vector<16x128xf32> -> vector<16x128xf32>
    %611 = vector.broadcast %483 : vector<1x128xf32> to vector<16x128xf32>
    %612 = arith.addf %610, %611 : vector<16x128xf32>
    %cst_182 = arith.constant 5.000000e-01 : f32
    %613 = vector.broadcast %cst_182 : f32 to vector<16x128xf32>
    %614 = arith.mulf %613, %612 : vector<16x128xf32>
    %cst_183 = arith.constant 0.707106769 : f32
    %615 = vector.broadcast %cst_183 : f32 to vector<16x128xf32>
    %616 = arith.mulf %612, %615 : vector<16x128xf32>
    %cst_184 = arith.constant 0.000000e+00 : f32
    %617 = vector.broadcast %cst_184 : f32 to vector<16x128xf32>
    %618 = arith.cmpf olt, %616, %617 : vector<16x128xf32>
    %cst_185 = arith.constant -1.000000e+00 : f32
    %cst_186 = arith.constant 1.000000e+00 : f32
    %619 = vector.broadcast %cst_185 : f32 to vector<16x128xf32>
    %620 = vector.broadcast %cst_186 : f32 to vector<16x128xf32>
    %621 = arith.select %618, %619, %620 : vector<16x128xi1>, vector<16x128xf32>
    %622 = math.absf %616 : vector<16x128xf32>
    %cst_187 = arith.constant 0.327591091 : f32
    %623 = vector.broadcast %cst_187 : f32 to vector<16x128xf32>
    %624 = arith.mulf %623, %622 : vector<16x128xf32>
    %cst_188 = arith.constant 1.000000e+00 : f32
    %625 = vector.broadcast %cst_188 : f32 to vector<16x128xf32>
    %626 = arith.addf %625, %624 : vector<16x128xf32>
    %627 = tpu.reciprocal %626 {approx = true} : vector<16x128xf32> -> vector<16x128xf32>
    %cst_189 = arith.constant 1.06140542 : f32
    %628 = vector.broadcast %cst_189 : f32 to vector<16x128xf32>
    %629 = arith.mulf %628, %627 : vector<16x128xf32>
    %cst_190 = arith.constant -1.45315206 : f32
    %630 = vector.broadcast %cst_190 : f32 to vector<16x128xf32>
    %631 = arith.addf %629, %630 : vector<16x128xf32>
    %632 = arith.mulf %631, %627 : vector<16x128xf32>
    %cst_191 = arith.constant 1.42141378 : f32
    %633 = vector.broadcast %cst_191 : f32 to vector<16x128xf32>
    %634 = arith.addf %632, %633 : vector<16x128xf32>
    %635 = arith.mulf %634, %627 : vector<16x128xf32>
    %cst_192 = arith.constant -0.284496725 : f32
    %636 = vector.broadcast %cst_192 : f32 to vector<16x128xf32>
    %637 = arith.addf %635, %636 : vector<16x128xf32>
    %638 = arith.mulf %637, %627 : vector<16x128xf32>
    %cst_193 = arith.constant 0.254829586 : f32
    %639 = vector.broadcast %cst_193 : f32 to vector<16x128xf32>
    %640 = arith.addf %638, %639 : vector<16x128xf32>
    %641 = arith.mulf %640, %627 : vector<16x128xf32>
    %cst_194 = arith.constant 0.000000e+00 : f32
    %642 = vector.broadcast %cst_194 : f32 to vector<16x128xf32>
    %643 = arith.subf %642, %622 : vector<16x128xf32>
    %644 = arith.mulf %643, %622 : vector<16x128xf32>
    %645 = math.exp %644 : vector<16x128xf32>
    %646 = arith.mulf %641, %645 : vector<16x128xf32>
    %cst_195 = arith.constant 1.000000e+00 : f32
    %647 = vector.broadcast %cst_195 : f32 to vector<16x128xf32>
    %648 = arith.subf %647, %646 : vector<16x128xf32>
    %649 = arith.mulf %621, %648 : vector<16x128xf32>
    %cst_196 = arith.constant 1.000000e+00 : f32
    %650 = vector.broadcast %cst_196 : f32 to vector<16x128xf32>
    %651 = arith.addf %650, %649 : vector<16x128xf32>
    %652 = arith.mulf %614, %651 : vector<16x128xf32>
    %653 = arith.truncf %652 : vector<16x128xf32> to vector<16x128xbf16>
    %cst_197 = arith.constant dense<0.000000e+00> : vector<16x128xf32>
    %654 = tpu.matmul %653, %478, %cst_197 {dimension_numbers = #tpu.dot_dimension_numbers<[1], [0], [0], [1], [0, 0, 1, 1], [], []>} : vector<16x128xbf16>, vector<128x128xbf16>, vector<16x128xf32> -> vector<16x128xf32>
    %655 = vector.broadcast %484 : vector<1x128xf32> to vector<16x128xf32>
    %656 = arith.addf %654, %655 : vector<16x128xf32>
    %657 = arith.addf %608, %656 : vector<16x128xf32>
    %cst_198 = arith.constant dense<0.000000e+00> : vector<16xf32>
    %658 = vector.multi_reduction <add>, %657, %cst_198 [1] : vector<16x128xf32> to vector<16xf32>
    %659 = vector.shape_cast %658 : vector<16xf32> to vector<16x1xf32>
    %cst_199 = arith.constant 3.125000e-02 : f32
    %660 = vector.broadcast %cst_199 : f32 to vector<16x1xf32>
    %661 = arith.mulf %659, %660 : vector<16x1xf32>
    %662 = arith.mulf %657, %657 : vector<16x128xf32>
    %cst_200 = arith.constant dense<0.000000e+00> : vector<16xf32>
    %663 = vector.multi_reduction <add>, %662, %cst_200 [1] : vector<16x128xf32> to vector<16xf32>
    %664 = vector.shape_cast %663 : vector<16xf32> to vector<16x1xf32>
    %cst_201 = arith.constant 3.125000e-02 : f32
    %665 = vector.broadcast %cst_201 : f32 to vector<16x1xf32>
    %666 = arith.mulf %664, %665 : vector<16x1xf32>
    %667 = arith.mulf %661, %661 : vector<16x1xf32>
    %668 = arith.subf %666, %667 : vector<16x1xf32>
    %cst_202 = arith.constant 0.000000e+00 : f32
    %669 = vector.broadcast %cst_202 : f32 to vector<16x1xf32>
    %670 = arith.maximumf %668, %669 : vector<16x1xf32>
    %671 = vector.broadcast %661 : vector<16x1xf32> to vector<16x128xf32>
    %672 = arith.subf %657, %671 : vector<16x128xf32>
    %cst_203 = arith.constant 9.99999996E-13 : f32
    %673 = vector.broadcast %cst_203 : f32 to vector<16x1xf32>
    %674 = arith.addf %670, %673 : vector<16x1xf32>
    %675 = math.rsqrt %674 : vector<16x1xf32>
    %676 = vector.broadcast %675 : vector<16x1xf32> to vector<16x128xf32>
    %677 = arith.mulf %672, %676 : vector<16x128xf32>
    %678 = vector.broadcast %487 : vector<1x128xf32> to vector<16x128xf32>
    %679 = arith.mulf %677, %678 : vector<16x128xf32>
    %680 = vector.broadcast %488 : vector<1x128xf32> to vector<16x128xf32>
    %681 = arith.addf %679, %680 : vector<16x128xf32>
    %682 = arith.addf %470, %681 : vector<16x128xf32>
    %c3 = arith.constant 3 : index
    %c0_204 = arith.constant 0 : index
    %c0_205 = arith.constant 0 : index
    %683 = vector.load %arg6[%c3, %c0_204, %c0_205] : memref<4x128x128xbf16, #tpu.memory_space<vmem>>, vector<1x128x128xbf16>
    %684 = vector.shape_cast %683 : vector<1x128x128xbf16> to vector<128x128xbf16>
    %c3_206 = arith.constant 3 : index
    %c0_207 = arith.constant 0 : index
    %c0_208 = arith.constant 0 : index
    %685 = vector.load %arg7[%c3_206, %c0_207, %c0_208] : memref<4x32x128xbf16, #tpu.memory_space<vmem>>, vector<1x32x128xbf16>
    %686 = vector.shape_cast %685 : vector<1x32x128xbf16> to vector<32x128xbf16>
    %c3_209 = arith.constant 3 : index
    %c0_210 = arith.constant 0 : index
    %c0_211 = arith.constant 0 : index
    %687 = vector.load %arg8[%c3_209, %c0_210, %c0_211] : memref<4x128x128xbf16, #tpu.memory_space<vmem>>, vector<1x128x128xbf16>
    %688 = vector.shape_cast %687 : vector<1x128x128xbf16> to vector<128x128xbf16>
    %c3_212 = arith.constant 3 : index
    %c0_213 = arith.constant 0 : index
    %c0_214 = arith.constant 0 : index
    %689 = vector.load %arg9[%c3_212, %c0_213, %c0_214] : memref<4x128x128xbf16, #tpu.memory_space<vmem>>, vector<1x128x128xbf16>
    %690 = vector.shape_cast %689 : vector<1x128x128xbf16> to vector<128x128xbf16>
    %c3_215 = arith.constant 3 : index
    %c0_216 = arith.constant 0 : index
    %c0_217 = arith.constant 0 : index
    %691 = vector.load %arg10[%c3_215, %c0_216, %c0_217] : memref<4x8x128xf32, #tpu.memory_space<vmem>>, vector<1x8x128xf32>
    %692 = vector.shape_cast %691 : vector<1x8x128xf32> to vector<8x128xf32>
    %693 = vector.extract_strided_slice %692 {offsets = [0, 0], sizes = [1, 128], strides = [1, 1]} : vector<8x128xf32> to vector<1x128xf32>
    %694 = vector.extract_strided_slice %692 {offsets = [1, 0], sizes = [1, 128], strides = [1, 1]} : vector<8x128xf32> to vector<1x128xf32>
    %695 = vector.extract_strided_slice %692 {offsets = [2, 0], sizes = [1, 128], strides = [1, 1]} : vector<8x128xf32> to vector<1x128xf32>
    %696 = vector.extract_strided_slice %692 {offsets = [3, 0], sizes = [1, 128], strides = [1, 1]} : vector<8x128xf32> to vector<1x128xf32>
    %697 = vector.extract_strided_slice %692 {offsets = [4, 0], sizes = [1, 128], strides = [1, 1]} : vector<8x128xf32> to vector<1x128xf32>
    %698 = vector.extract_strided_slice %692 {offsets = [5, 0], sizes = [1, 128], strides = [1, 1]} : vector<8x128xf32> to vector<1x128xf32>
    %699 = vector.extract_strided_slice %692 {offsets = [6, 0], sizes = [1, 128], strides = [1, 1]} : vector<8x128xf32> to vector<1x128xf32>
    %700 = vector.extract_strided_slice %692 {offsets = [7, 0], sizes = [1, 128], strides = [1, 1]} : vector<8x128xf32> to vector<1x128xf32>
    %701 = arith.truncf %681 : vector<16x128xf32> to vector<16x128xbf16>
    %cst_218 = arith.constant dense<0.000000e+00> : vector<16x128xf32>
    %702 = tpu.matmul %701, %684, %cst_218 {dimension_numbers = #tpu.dot_dimension_numbers<[1], [0], [0], [1], [0, 0, 1, 1], [], []>} : vector<16x128xbf16>, vector<128x128xbf16>, vector<16x128xf32> -> vector<16x128xf32>
    %703 = vector.broadcast %693 : vector<1x128xf32> to vector<16x128xf32>
    %704 = arith.addf %702, %703 : vector<16x128xf32>
    %705 = vector.shape_cast %704 : vector<16x128xf32> to vector<2x8x128xf32>
    %706 = vector.extract_strided_slice %705 {offsets = [0, 0, 0], sizes = [2, 8, 8], strides = [1, 1, 1]} : vector<2x8x128xf32> to vector<2x8x8xf32>
    %707 = vector.extract_strided_slice %705 {offsets = [0, 0, 32], sizes = [2, 8, 8], strides = [1, 1, 1]} : vector<2x8x128xf32> to vector<2x8x8xf32>
    %708 = vector.extract_strided_slice %705 {offsets = [0, 0, 64], sizes = [2, 8, 8], strides = [1, 1, 1]} : vector<2x8x128xf32> to vector<2x8x8xf32>
    %709 = arith.truncf %706 : vector<2x8x8xf32> to vector<2x8x8xbf16>
    %710 = arith.truncf %707 : vector<2x8x8xf32> to vector<2x8x8xbf16>
    "tpu.trace_start"() <{level = 10 : i32, message = "bqd,bkd->bqk"}> : () -> ()
    %cst_219 = arith.constant dense<0.000000e+00> : vector<2x8x8xf32>
    %711 = tpu.matmul %709, %710, %cst_219 {dimension_numbers = #tpu.dot_dimension_numbers<[2], [2], [1], [1], [0, 0, 0, 1, 1, 1], [0], [0]>} : vector<2x8x8xbf16>, vector<2x8x8xbf16>, vector<2x8x8xf32> -> vector<2x8x8xf32>
    "tpu.trace_stop"() : () -> ()
    %712 = vector.broadcast %45 : vector<2x1x8xf32> to vector<2x8x8xf32>
    %713 = arith.addf %711, %712 : vector<2x8x8xf32>
    %cst_220 = arith.constant dense<0xFF800000> : vector<2x8xf32>
    %714 = vector.multi_reduction <maximumf>, %713, %cst_220 [2] : vector<2x8x8xf32> to vector<2x8xf32>
    %715 = vector.shape_cast %714 : vector<2x8xf32> to vector<2x8x1xf32>
    %716 = vector.broadcast %715 : vector<2x8x1xf32> to vector<2x8x8xf32>
    %717 = arith.subf %713, %716 : vector<2x8x8xf32>
    %718 = math.exp %717 : vector<2x8x8xf32>
    %cst_221 = arith.constant dense<0.000000e+00> : vector<2x8xf32>
    %719 = vector.multi_reduction <add>, %718, %cst_221 [2] : vector<2x8x8xf32> to vector<2x8xf32>
    %720 = vector.shape_cast %719 : vector<2x8xf32> to vector<2x8x1xf32>
    %721 = tpu.reciprocal %720 {approx = true} : vector<2x8x1xf32> -> vector<2x8x1xf32>
    %722 = vector.broadcast %721 : vector<2x8x1xf32> to vector<2x8x8xf32>
    %723 = arith.mulf %718, %722 : vector<2x8x8xf32>
    %724 = arith.truncf %723 : vector<2x8x8xf32> to vector<2x8x8xbf16>
    %725 = arith.truncf %708 : vector<2x8x8xf32> to vector<2x8x8xbf16>
    "tpu.trace_start"() <{level = 10 : i32, message = "bqk,bkd->bqd"}> : () -> ()
    %cst_222 = arith.constant dense<0.000000e+00> : vector<2x8x8xf32>
    %726 = tpu.matmul %724, %725, %cst_222 {dimension_numbers = #tpu.dot_dimension_numbers<[2], [1], [1], [2], [0, 0, 0, 1, 1, 2], [0], [0]>} : vector<2x8x8xbf16>, vector<2x8x8xbf16>, vector<2x8x8xf32> -> vector<2x8x8xf32>
    "tpu.trace_stop"() : () -> ()
    %727 = vector.extract_strided_slice %705 {offsets = [0, 0, 8], sizes = [2, 8, 8], strides = [1, 1, 1]} : vector<2x8x128xf32> to vector<2x8x8xf32>
    %728 = vector.extract_strided_slice %705 {offsets = [0, 0, 40], sizes = [2, 8, 8], strides = [1, 1, 1]} : vector<2x8x128xf32> to vector<2x8x8xf32>
    %729 = vector.extract_strided_slice %705 {offsets = [0, 0, 72], sizes = [2, 8, 8], strides = [1, 1, 1]} : vector<2x8x128xf32> to vector<2x8x8xf32>
    %730 = arith.truncf %727 : vector<2x8x8xf32> to vector<2x8x8xbf16>
    %731 = arith.truncf %728 : vector<2x8x8xf32> to vector<2x8x8xbf16>
    "tpu.trace_start"() <{level = 10 : i32, message = "bqd,bkd->bqk"}> : () -> ()
    %cst_223 = arith.constant dense<0.000000e+00> : vector<2x8x8xf32>
    %732 = tpu.matmul %730, %731, %cst_223 {dimension_numbers = #tpu.dot_dimension_numbers<[2], [2], [1], [1], [0, 0, 0, 1, 1, 1], [0], [0]>} : vector<2x8x8xbf16>, vector<2x8x8xbf16>, vector<2x8x8xf32> -> vector<2x8x8xf32>
    "tpu.trace_stop"() : () -> ()
    %733 = vector.broadcast %45 : vector<2x1x8xf32> to vector<2x8x8xf32>
    %734 = arith.addf %732, %733 : vector<2x8x8xf32>
    %cst_224 = arith.constant dense<0xFF800000> : vector<2x8xf32>
    %735 = vector.multi_reduction <maximumf>, %734, %cst_224 [2] : vector<2x8x8xf32> to vector<2x8xf32>
    %736 = vector.shape_cast %735 : vector<2x8xf32> to vector<2x8x1xf32>
    %737 = vector.broadcast %736 : vector<2x8x1xf32> to vector<2x8x8xf32>
    %738 = arith.subf %734, %737 : vector<2x8x8xf32>
    %739 = math.exp %738 : vector<2x8x8xf32>
    %cst_225 = arith.constant dense<0.000000e+00> : vector<2x8xf32>
    %740 = vector.multi_reduction <add>, %739, %cst_225 [2] : vector<2x8x8xf32> to vector<2x8xf32>
    %741 = vector.shape_cast %740 : vector<2x8xf32> to vector<2x8x1xf32>
    %742 = tpu.reciprocal %741 {approx = true} : vector<2x8x1xf32> -> vector<2x8x1xf32>
    %743 = vector.broadcast %742 : vector<2x8x1xf32> to vector<2x8x8xf32>
    %744 = arith.mulf %739, %743 : vector<2x8x8xf32>
    %745 = arith.truncf %744 : vector<2x8x8xf32> to vector<2x8x8xbf16>
    %746 = arith.truncf %729 : vector<2x8x8xf32> to vector<2x8x8xbf16>
    "tpu.trace_start"() <{level = 10 : i32, message = "bqk,bkd->bqd"}> : () -> ()
    %cst_226 = arith.constant dense<0.000000e+00> : vector<2x8x8xf32>
    %747 = tpu.matmul %745, %746, %cst_226 {dimension_numbers = #tpu.dot_dimension_numbers<[2], [1], [1], [2], [0, 0, 0, 1, 1, 2], [0], [0]>} : vector<2x8x8xbf16>, vector<2x8x8xbf16>, vector<2x8x8xf32> -> vector<2x8x8xf32>
    "tpu.trace_stop"() : () -> ()
    %748 = vector.extract_strided_slice %705 {offsets = [0, 0, 16], sizes = [2, 8, 8], strides = [1, 1, 1]} : vector<2x8x128xf32> to vector<2x8x8xf32>
    %749 = vector.extract_strided_slice %705 {offsets = [0, 0, 48], sizes = [2, 8, 8], strides = [1, 1, 1]} : vector<2x8x128xf32> to vector<2x8x8xf32>
    %750 = vector.extract_strided_slice %705 {offsets = [0, 0, 80], sizes = [2, 8, 8], strides = [1, 1, 1]} : vector<2x8x128xf32> to vector<2x8x8xf32>
    %751 = arith.truncf %748 : vector<2x8x8xf32> to vector<2x8x8xbf16>
    %752 = arith.truncf %749 : vector<2x8x8xf32> to vector<2x8x8xbf16>
    "tpu.trace_start"() <{level = 10 : i32, message = "bqd,bkd->bqk"}> : () -> ()
    %cst_227 = arith.constant dense<0.000000e+00> : vector<2x8x8xf32>
    %753 = tpu.matmul %751, %752, %cst_227 {dimension_numbers = #tpu.dot_dimension_numbers<[2], [2], [1], [1], [0, 0, 0, 1, 1, 1], [0], [0]>} : vector<2x8x8xbf16>, vector<2x8x8xbf16>, vector<2x8x8xf32> -> vector<2x8x8xf32>
    "tpu.trace_stop"() : () -> ()
    %754 = vector.broadcast %45 : vector<2x1x8xf32> to vector<2x8x8xf32>
    %755 = arith.addf %753, %754 : vector<2x8x8xf32>
    %cst_228 = arith.constant dense<0xFF800000> : vector<2x8xf32>
    %756 = vector.multi_reduction <maximumf>, %755, %cst_228 [2] : vector<2x8x8xf32> to vector<2x8xf32>
    %757 = vector.shape_cast %756 : vector<2x8xf32> to vector<2x8x1xf32>
    %758 = vector.broadcast %757 : vector<2x8x1xf32> to vector<2x8x8xf32>
    %759 = arith.subf %755, %758 : vector<2x8x8xf32>
    %760 = math.exp %759 : vector<2x8x8xf32>
    %cst_229 = arith.constant dense<0.000000e+00> : vector<2x8xf32>
    %761 = vector.multi_reduction <add>, %760, %cst_229 [2] : vector<2x8x8xf32> to vector<2x8xf32>
    %762 = vector.shape_cast %761 : vector<2x8xf32> to vector<2x8x1xf32>
    %763 = tpu.reciprocal %762 {approx = true} : vector<2x8x1xf32> -> vector<2x8x1xf32>
    %764 = vector.broadcast %763 : vector<2x8x1xf32> to vector<2x8x8xf32>
    %765 = arith.mulf %760, %764 : vector<2x8x8xf32>
    %766 = arith.truncf %765 : vector<2x8x8xf32> to vector<2x8x8xbf16>
    %767 = arith.truncf %750 : vector<2x8x8xf32> to vector<2x8x8xbf16>
    "tpu.trace_start"() <{level = 10 : i32, message = "bqk,bkd->bqd"}> : () -> ()
    %cst_230 = arith.constant dense<0.000000e+00> : vector<2x8x8xf32>
    %768 = tpu.matmul %766, %767, %cst_230 {dimension_numbers = #tpu.dot_dimension_numbers<[2], [1], [1], [2], [0, 0, 0, 1, 1, 2], [0], [0]>} : vector<2x8x8xbf16>, vector<2x8x8xbf16>, vector<2x8x8xf32> -> vector<2x8x8xf32>
    "tpu.trace_stop"() : () -> ()
    %769 = vector.extract_strided_slice %705 {offsets = [0, 0, 24], sizes = [2, 8, 8], strides = [1, 1, 1]} : vector<2x8x128xf32> to vector<2x8x8xf32>
    %770 = vector.extract_strided_slice %705 {offsets = [0, 0, 56], sizes = [2, 8, 8], strides = [1, 1, 1]} : vector<2x8x128xf32> to vector<2x8x8xf32>
    %771 = vector.extract_strided_slice %705 {offsets = [0, 0, 88], sizes = [2, 8, 8], strides = [1, 1, 1]} : vector<2x8x128xf32> to vector<2x8x8xf32>
    %772 = arith.truncf %769 : vector<2x8x8xf32> to vector<2x8x8xbf16>
    %773 = arith.truncf %770 : vector<2x8x8xf32> to vector<2x8x8xbf16>
    "tpu.trace_start"() <{level = 10 : i32, message = "bqd,bkd->bqk"}> : () -> ()
    %cst_231 = arith.constant dense<0.000000e+00> : vector<2x8x8xf32>
    %774 = tpu.matmul %772, %773, %cst_231 {dimension_numbers = #tpu.dot_dimension_numbers<[2], [2], [1], [1], [0, 0, 0, 1, 1, 1], [0], [0]>} : vector<2x8x8xbf16>, vector<2x8x8xbf16>, vector<2x8x8xf32> -> vector<2x8x8xf32>
    "tpu.trace_stop"() : () -> ()
    %775 = vector.broadcast %45 : vector<2x1x8xf32> to vector<2x8x8xf32>
    %776 = arith.addf %774, %775 : vector<2x8x8xf32>
    %cst_232 = arith.constant dense<0xFF800000> : vector<2x8xf32>
    %777 = vector.multi_reduction <maximumf>, %776, %cst_232 [2] : vector<2x8x8xf32> to vector<2x8xf32>
    %778 = vector.shape_cast %777 : vector<2x8xf32> to vector<2x8x1xf32>
    %779 = vector.broadcast %778 : vector<2x8x1xf32> to vector<2x8x8xf32>
    %780 = arith.subf %776, %779 : vector<2x8x8xf32>
    %781 = math.exp %780 : vector<2x8x8xf32>
    %cst_233 = arith.constant dense<0.000000e+00> : vector<2x8xf32>
    %782 = vector.multi_reduction <add>, %781, %cst_233 [2] : vector<2x8x8xf32> to vector<2x8xf32>
    %783 = vector.shape_cast %782 : vector<2x8xf32> to vector<2x8x1xf32>
    %784 = tpu.reciprocal %783 {approx = true} : vector<2x8x1xf32> -> vector<2x8x1xf32>
    %785 = vector.broadcast %784 : vector<2x8x1xf32> to vector<2x8x8xf32>
    %786 = arith.mulf %781, %785 : vector<2x8x8xf32>
    %787 = arith.truncf %786 : vector<2x8x8xf32> to vector<2x8x8xbf16>
    %788 = arith.truncf %771 : vector<2x8x8xf32> to vector<2x8x8xbf16>
    "tpu.trace_start"() <{level = 10 : i32, message = "bqk,bkd->bqd"}> : () -> ()
    %cst_234 = arith.constant dense<0.000000e+00> : vector<2x8x8xf32>
    %789 = tpu.matmul %787, %788, %cst_234 {dimension_numbers = #tpu.dot_dimension_numbers<[2], [1], [1], [2], [0, 0, 0, 1, 1, 2], [0], [0]>} : vector<2x8x8xbf16>, vector<2x8x8xbf16>, vector<2x8x8xf32> -> vector<2x8x8xf32>
    "tpu.trace_stop"() : () -> ()
    %790 = tpu.concatenate %726, %747, %768, %789 in 2 : vector<2x8x8xf32>, vector<2x8x8xf32>, vector<2x8x8xf32>, vector<2x8x8xf32> -> vector<2x8x32xf32>
    %791 = vector.shape_cast %790 : vector<2x8x32xf32> to vector<16x32xf32>
    %792 = arith.truncf %791 : vector<16x32xf32> to vector<16x32xbf16>
    %cst_235 = arith.constant dense<0.000000e+00> : vector<16x128xf32>
    %793 = tpu.matmul %792, %686, %cst_235 {dimension_numbers = #tpu.dot_dimension_numbers<[1], [0], [0], [1], [0, 0, 1, 1], [], []>} : vector<16x32xbf16>, vector<32x128xbf16>, vector<16x128xf32> -> vector<16x128xf32>
    %794 = vector.broadcast %694 : vector<1x128xf32> to vector<16x128xf32>
    %795 = arith.addf %793, %794 : vector<16x128xf32>
    %796 = arith.addf %681, %795 : vector<16x128xf32>
    %cst_236 = arith.constant dense<0.000000e+00> : vector<16xf32>
    %797 = vector.multi_reduction <add>, %796, %cst_236 [1] : vector<16x128xf32> to vector<16xf32>
    %798 = vector.shape_cast %797 : vector<16xf32> to vector<16x1xf32>
    %cst_237 = arith.constant 3.125000e-02 : f32
    %799 = vector.broadcast %cst_237 : f32 to vector<16x1xf32>
    %800 = arith.mulf %798, %799 : vector<16x1xf32>
    %801 = arith.mulf %796, %796 : vector<16x128xf32>
    %cst_238 = arith.constant dense<0.000000e+00> : vector<16xf32>
    %802 = vector.multi_reduction <add>, %801, %cst_238 [1] : vector<16x128xf32> to vector<16xf32>
    %803 = vector.shape_cast %802 : vector<16xf32> to vector<16x1xf32>
    %cst_239 = arith.constant 3.125000e-02 : f32
    %804 = vector.broadcast %cst_239 : f32 to vector<16x1xf32>
    %805 = arith.mulf %803, %804 : vector<16x1xf32>
    %806 = arith.mulf %800, %800 : vector<16x1xf32>
    %807 = arith.subf %805, %806 : vector<16x1xf32>
    %cst_240 = arith.constant 0.000000e+00 : f32
    %808 = vector.broadcast %cst_240 : f32 to vector<16x1xf32>
    %809 = arith.maximumf %807, %808 : vector<16x1xf32>
    %810 = vector.broadcast %800 : vector<16x1xf32> to vector<16x128xf32>
    %811 = arith.subf %796, %810 : vector<16x128xf32>
    %cst_241 = arith.constant 9.99999996E-13 : f32
    %812 = vector.broadcast %cst_241 : f32 to vector<16x1xf32>
    %813 = arith.addf %809, %812 : vector<16x1xf32>
    %814 = math.rsqrt %813 : vector<16x1xf32>
    %815 = vector.broadcast %814 : vector<16x1xf32> to vector<16x128xf32>
    %816 = arith.mulf %811, %815 : vector<16x128xf32>
    %817 = vector.broadcast %697 : vector<1x128xf32> to vector<16x128xf32>
    %818 = arith.mulf %816, %817 : vector<16x128xf32>
    %819 = vector.broadcast %698 : vector<1x128xf32> to vector<16x128xf32>
    %820 = arith.addf %818, %819 : vector<16x128xf32>
    %821 = arith.truncf %820 : vector<16x128xf32> to vector<16x128xbf16>
    %cst_242 = arith.constant dense<0.000000e+00> : vector<16x128xf32>
    %822 = tpu.matmul %821, %688, %cst_242 {dimension_numbers = #tpu.dot_dimension_numbers<[1], [0], [0], [1], [0, 0, 1, 1], [], []>} : vector<16x128xbf16>, vector<128x128xbf16>, vector<16x128xf32> -> vector<16x128xf32>
    %823 = vector.broadcast %695 : vector<1x128xf32> to vector<16x128xf32>
    %824 = arith.addf %822, %823 : vector<16x128xf32>
    %cst_243 = arith.constant 5.000000e-01 : f32
    %825 = vector.broadcast %cst_243 : f32 to vector<16x128xf32>
    %826 = arith.mulf %825, %824 : vector<16x128xf32>
    %cst_244 = arith.constant 0.707106769 : f32
    %827 = vector.broadcast %cst_244 : f32 to vector<16x128xf32>
    %828 = arith.mulf %824, %827 : vector<16x128xf32>
    %cst_245 = arith.constant 0.000000e+00 : f32
    %829 = vector.broadcast %cst_245 : f32 to vector<16x128xf32>
    %830 = arith.cmpf olt, %828, %829 : vector<16x128xf32>
    %cst_246 = arith.constant -1.000000e+00 : f32
    %cst_247 = arith.constant 1.000000e+00 : f32
    %831 = vector.broadcast %cst_246 : f32 to vector<16x128xf32>
    %832 = vector.broadcast %cst_247 : f32 to vector<16x128xf32>
    %833 = arith.select %830, %831, %832 : vector<16x128xi1>, vector<16x128xf32>
    %834 = math.absf %828 : vector<16x128xf32>
    %cst_248 = arith.constant 0.327591091 : f32
    %835 = vector.broadcast %cst_248 : f32 to vector<16x128xf32>
    %836 = arith.mulf %835, %834 : vector<16x128xf32>
    %cst_249 = arith.constant 1.000000e+00 : f32
    %837 = vector.broadcast %cst_249 : f32 to vector<16x128xf32>
    %838 = arith.addf %837, %836 : vector<16x128xf32>
    %839 = tpu.reciprocal %838 {approx = true} : vector<16x128xf32> -> vector<16x128xf32>
    %cst_250 = arith.constant 1.06140542 : f32
    %840 = vector.broadcast %cst_250 : f32 to vector<16x128xf32>
    %841 = arith.mulf %840, %839 : vector<16x128xf32>
    %cst_251 = arith.constant -1.45315206 : f32
    %842 = vector.broadcast %cst_251 : f32 to vector<16x128xf32>
    %843 = arith.addf %841, %842 : vector<16x128xf32>
    %844 = arith.mulf %843, %839 : vector<16x128xf32>
    %cst_252 = arith.constant 1.42141378 : f32
    %845 = vector.broadcast %cst_252 : f32 to vector<16x128xf32>
    %846 = arith.addf %844, %845 : vector<16x128xf32>
    %847 = arith.mulf %846, %839 : vector<16x128xf32>
    %cst_253 = arith.constant -0.284496725 : f32
    %848 = vector.broadcast %cst_253 : f32 to vector<16x128xf32>
    %849 = arith.addf %847, %848 : vector<16x128xf32>
    %850 = arith.mulf %849, %839 : vector<16x128xf32>
    %cst_254 = arith.constant 0.254829586 : f32
    %851 = vector.broadcast %cst_254 : f32 to vector<16x128xf32>
    %852 = arith.addf %850, %851 : vector<16x128xf32>
    %853 = arith.mulf %852, %839 : vector<16x128xf32>
    %cst_255 = arith.constant 0.000000e+00 : f32
    %854 = vector.broadcast %cst_255 : f32 to vector<16x128xf32>
    %855 = arith.subf %854, %834 : vector<16x128xf32>
    %856 = arith.mulf %855, %834 : vector<16x128xf32>
    %857 = math.exp %856 : vector<16x128xf32>
    %858 = arith.mulf %853, %857 : vector<16x128xf32>
    %cst_256 = arith.constant 1.000000e+00 : f32
    %859 = vector.broadcast %cst_256 : f32 to vector<16x128xf32>
    %860 = arith.subf %859, %858 : vector<16x128xf32>
    %861 = arith.mulf %833, %860 : vector<16x128xf32>
    %cst_257 = arith.constant 1.000000e+00 : f32
    %862 = vector.broadcast %cst_257 : f32 to vector<16x128xf32>
    %863 = arith.addf %862, %861 : vector<16x128xf32>
    %864 = arith.mulf %826, %863 : vector<16x128xf32>
    %865 = arith.truncf %864 : vector<16x128xf32> to vector<16x128xbf16>
    %cst_258 = arith.constant dense<0.000000e+00> : vector<16x128xf32>
    %866 = tpu.matmul %865, %690, %cst_258 {dimension_numbers = #tpu.dot_dimension_numbers<[1], [0], [0], [1], [0, 0, 1, 1], [], []>} : vector<16x128xbf16>, vector<128x128xbf16>, vector<16x128xf32> -> vector<16x128xf32>
    %867 = vector.broadcast %696 : vector<1x128xf32> to vector<16x128xf32>
    %868 = arith.addf %866, %867 : vector<16x128xf32>
    %869 = arith.addf %820, %868 : vector<16x128xf32>
    %cst_259 = arith.constant dense<0.000000e+00> : vector<16xf32>
    %870 = vector.multi_reduction <add>, %869, %cst_259 [1] : vector<16x128xf32> to vector<16xf32>
    %871 = vector.shape_cast %870 : vector<16xf32> to vector<16x1xf32>
    %cst_260 = arith.constant 3.125000e-02 : f32
    %872 = vector.broadcast %cst_260 : f32 to vector<16x1xf32>
    %873 = arith.mulf %871, %872 : vector<16x1xf32>
    %874 = arith.mulf %869, %869 : vector<16x128xf32>
    %cst_261 = arith.constant dense<0.000000e+00> : vector<16xf32>
    %875 = vector.multi_reduction <add>, %874, %cst_261 [1] : vector<16x128xf32> to vector<16xf32>
    %876 = vector.shape_cast %875 : vector<16xf32> to vector<16x1xf32>
    %cst_262 = arith.constant 3.125000e-02 : f32
    %877 = vector.broadcast %cst_262 : f32 to vector<16x1xf32>
    %878 = arith.mulf %876, %877 : vector<16x1xf32>
    %879 = arith.mulf %873, %873 : vector<16x1xf32>
    %880 = arith.subf %878, %879 : vector<16x1xf32>
    %cst_263 = arith.constant 0.000000e+00 : f32
    %881 = vector.broadcast %cst_263 : f32 to vector<16x1xf32>
    %882 = arith.maximumf %880, %881 : vector<16x1xf32>
    %883 = vector.broadcast %873 : vector<16x1xf32> to vector<16x128xf32>
    %884 = arith.subf %869, %883 : vector<16x128xf32>
    %cst_264 = arith.constant 9.99999996E-13 : f32
    %885 = vector.broadcast %cst_264 : f32 to vector<16x1xf32>
    %886 = arith.addf %882, %885 : vector<16x1xf32>
    %887 = math.rsqrt %886 : vector<16x1xf32>
    %888 = vector.broadcast %887 : vector<16x1xf32> to vector<16x128xf32>
    %889 = arith.mulf %884, %888 : vector<16x128xf32>
    %890 = vector.broadcast %699 : vector<1x128xf32> to vector<16x128xf32>
    %891 = arith.mulf %889, %890 : vector<16x128xf32>
    %892 = vector.broadcast %700 : vector<1x128xf32> to vector<16x128xf32>
    %893 = arith.addf %891, %892 : vector<16x128xf32>
    %894 = arith.addf %682, %893 : vector<16x128xf32>
    %cst_265 = arith.constant 2.500000e-01 : f32
    %895 = vector.broadcast %cst_265 : f32 to vector<16x128xf32>
    %896 = arith.mulf %894, %895 : vector<16x128xf32>
    %897 = vector.shape_cast %896 : vector<16x128xf32> to vector<2x8x128xf32>
    %c0_266 = arith.constant 0 : index
    %c0_267 = arith.constant 0 : index
    %c0_268 = arith.constant 0 : index
    %898 = vector.load %arg11[%c0_266, %c0_267, %c0_268] : memref<2x8x128xf32, #tpu.memory_space<vmem>>, vector<2x8x128xf32>
    tpu.vector_store %arg11[%c0_266, %c0_267, %c0_268], %897 {strides = array<i32>} : memref<2x8x128xf32, #tpu.memory_space<vmem>>, vector<2x8x128xf32>,
    return
  }
  func.func @transform_0(%arg0: i32) -> (i32, i32) {
    %c0_i32 = arith.constant 0 : i32
    %c0_i32_0 = arith.constant 0 : i32
    return %arg0, %c0_i32 : i32, i32
  }
  func.func @transform_1(%arg0: i32) -> (i32, i32) {
    %c0_i32 = arith.constant 0 : i32
    %c0_i32_0 = arith.constant 0 : i32
    return %arg0, %c0_i32 : i32, i32
  }
  func.func @transform_2(%arg0: i32) -> (i32, i32) {
    %c0_i32 = arith.constant 0 : i32
    %c0_i32_0 = arith.constant 0 : i32
    %c0_i32_1 = arith.constant 0 : i32
    return %c0_i32, %c0_i32_0 : i32, i32
  }
  func.func @transform_3(%arg0: i32) -> (i32, i32) {
    %c0_i32 = arith.constant 0 : i32
    %c0_i32_0 = arith.constant 0 : i32
    %c0_i32_1 = arith.constant 0 : i32
    return %c0_i32, %c0_i32_0 : i32, i32
  }
  func.func @transform_4(%arg0: i32) -> (i32, i32) {
    %c0_i32 = arith.constant 0 : i32
    %c0_i32_0 = arith.constant 0 : i32
    %c0_i32_1 = arith.constant 0 : i32
    return %c0_i32, %c0_i32_0 : i32, i32
  }
  func.func @transform_5(%arg0: i32) -> (i32, i32, i32) {
    %c0_i32 = arith.constant 0 : i32
    %c0_i32_0 = arith.constant 0 : i32
    %c0_i32_1 = arith.constant 0 : i32
    %c0_i32_2 = arith.constant 0 : i32
    return %c0_i32, %c0_i32_0, %c0_i32_1 : i32, i32, i32
  }
  func.func @transform_6(%arg0: i32) -> (i32, i32, i32) {
    %c0_i32 = arith.constant 0 : i32
    %c0_i32_0 = arith.constant 0 : i32
    %c0_i32_1 = arith.constant 0 : i32
    %c0_i32_2 = arith.constant 0 : i32
    return %c0_i32, %c0_i32_0, %c0_i32_1 : i32, i32, i32
  }
  func.func @transform_7(%arg0: i32) -> (i32, i32, i32) {
    %c0_i32 = arith.constant 0 : i32
    %c0_i32_0 = arith.constant 0 : i32
    %c0_i32_1 = arith.constant 0 : i32
    %c0_i32_2 = arith.constant 0 : i32
    return %c0_i32, %c0_i32_0, %c0_i32_1 : i32, i32, i32
  }
  func.func @transform_8(%arg0: i32) -> (i32, i32, i32) {
    %c0_i32 = arith.constant 0 : i32
    %c0_i32_0 = arith.constant 0 : i32
    %c0_i32_1 = arith.constant 0 : i32
    %c0_i32_2 = arith.constant 0 : i32
    return %c0_i32, %c0_i32_0, %c0_i32_1 : i32, i32, i32
  }
  func.func @transform_9(%arg0: i32) -> (i32, i32, i32) {
    %c0_i32 = arith.constant 0 : i32
    %c0_i32_0 = arith.constant 0 : i32
    %c0_i32_1 = arith.constant 0 : i32
    %c0_i32_2 = arith.constant 0 : i32
    return %c0_i32, %c0_i32_0, %c0_i32_1 : i32, i32, i32
  }
  func.func @transform_10(%arg0: i32) -> (i32, i32, i32) {
    %c0_i32 = arith.constant 0 : i32
    %c0_i32_0 = arith.constant 0 : i32
    %c0_i32_1 = arith.constant 0 : i32
    return %arg0, %c0_i32, %c0_i32_0 : i32, i32, i32
  }
}

</mosaic_0001>

<llo_original>
// kernel: tpu_custom_call.1
$region0: #{tpu_custom_call.1}
  #allocation0 [shape = 'u32[]', space=smem, size = 0x4, offset = 0x4, fixed_abs, tag = 'smem constant byte address 0x4 - core index']
  #allocation1 [shape = 'u32[144,128]{1,0:T(1,128)}', space=vmem, size = 0x12000, scoped, tag = 'internal scratch']
  %s0 = inlined_call_operand.hbm [shape: s32[2,8], index: 0, kind: input, shape index: {}]
  %s1 = inlined_call_operand.hbm [shape: f32[2,8], index: 1, kind: input, shape index: {}]
  %s2 = inlined_call_operand.hbm [shape: f32[64,128], index: 2, kind: input, shape index: {}]
  %s3 = inlined_call_operand.hbm [shape: f32[16,128], index: 3, kind: input, shape index: {}]
  %s4 = inlined_call_operand.hbm [shape: f32[8,128], index: 4, kind: input, shape index: {}]
  %s5 = inlined_call_operand.hbm [shape: bf16[4,128,128], index: 5, kind: input, shape index: {}]
  %s6 = inlined_call_operand.hbm [shape: bf16[4,32,128], index: 6, kind: input, shape index: {}]
  %s7 = inlined_call_operand.hbm [shape: bf16[4,128,128], index: 7, kind: input, shape index: {}]
  %s8 = inlined_call_operand.hbm [shape: bf16[4,128,128], index: 8, kind: input, shape index: {}]
  %s9 = inlined_call_operand.hbm [shape: f32[4,8,128], index: 9, kind: input, shape index: {}]
  %s10 = inlined_call_operand.hbm [shape: f32[2,8,128], index: 10, kind: output, shape index: {}]
  %s11 = sld [smem:[#allocation0]]
  $region90: #{tpu_custom_call.1} parent=0
    _
  %s13 = ssub.s32 1, %s11
  %s14 = scalar_select 0, %s13, %s11
  $region1: #{tpu_custom_call.1} parent=0
    #allocation2 [shape = 'u8[1024]{0}', space=vmem, size = 0x400, scoped, tag = 'input window, operand 0, single buffered']
    #allocation3 [shape = 's32[1]{0}', space=sflag, size = 0x4, scoped, tag = 'scoped memory for tpu_custom_call.1']
    #allocation4 [shape = 's32[1]{0}', space=sflag, size = 0x4, scoped, tag = 'scoped memory for tpu_custom_call.1']
    #allocation5 [shape = 'u8[1024]{0}', space=vmem, size = 0x400, scoped, tag = 'input window, operand 1, single buffered']
    #allocation6 [shape = 's32[1]{0}', space=sflag, size = 0x4, scoped, tag = 'scoped memory for tpu_custom_call.1']
    #allocation7 [shape = 'u8[32768]{0}', space=vmem, size = 0x8000, scoped, tag = 'input window, operand 2, single buffered']
    #allocation8 [shape = 'u8[8192]{0}', space=vmem, size = 0x2000, scoped, tag = 'input window, operand 3, single buffered']
    #allocation9 [shape = 's32[1]{0}', space=sflag, size = 0x4, scoped, tag = 'scoped memory for tpu_custom_call.1']
    #allocation10 [shape = 'u8[4096]{0}', space=vmem, size = 0x1000, scoped, tag = 'input window, operand 4, single buffered']
    #allocation11 [shape = 'u8[131072]{0}', space=vmem, size = 0x20000, scoped, tag = 'input window, operand 5, single buffered']
    #allocation12 [shape = 's32[1]{0}', space=sflag, size = 0x4, scoped, tag = 'scoped memory for tpu_custom_call.1']
    #allocation13 [shape = 'u8[32768]{0}', space=vmem, size = 0x8000, scoped, tag = 'input window, operand 6, single buffered']
    #allocation14 [shape = 'u8[131072]{0}', space=vmem, size = 0x20000, scoped, tag = 'input window, operand 7, single buffered']
    #allocation15 [shape = 's32[1]{0}', space=sflag, size = 0x4, scoped, tag = 'scoped memory for tpu_custom_call.1']
    #allocation16 [shape = 'u8[131072]{0}', space=vmem, size = 0x20000, scoped, tag = 'input window, operand 8, single buffered']
    #allocation17 [shape = 'u8[16384]{0}', space=vmem, size = 0x4000, scoped, tag = 'input window, operand 9, single buffered']
    #allocation18 [shape = 's32[1]{0}', space=sflag, size = 0x4, scoped, tag = 'scoped memory for tpu_custom_call.1']
    #allocation19 [shape = 'u8[8192]{0}', space=vmem, size = 0x2000, scoped, tag = 'output window, operand 0, single buffered']
    %15 = vsyncpa [#allocation3], 0
    %16 = vsyncpa [#allocation6], 0
    %17 = vsyncpa [#allocation9], 0
    %18 = vsyncpa [#allocation12], 0
    %19 = vsyncpa [#allocation15], 0
    %20 = vsyncpa [#allocation18], 0
    %21 = vsyncpa [#allocation4], 0
    // Predicated region
    $region2: #{tpu_custom_call.1} parent=1 // pred_check
      _
    $region3: #{tpu_custom_call.1} parent=1 // pred_check_branch
      %23 = sbr.rel (0) target = $region5
    $region4: #{tpu_custom_call.1} parent=1 // pred_region
      %s25 = ssub.s32 32, 32
      %26 = vsyncadd [#allocation3], %s25
      %s28 = sshll.u32 [#allocation2], 4
      %s29 = int_to_ptr.vmem [resolvable:$true] %s28
      %31 = dma.hbm_to_vmem [thread:$0]  %s0, 32, %s29, [#allocation3]
    $region5: #{tpu_custom_call.1} parent=1 // pred_fallthru
      _
    // Predicated region
    $region6: #{tpu_custom_call.1} parent=1 // pred_check
      _
    $region7: #{tpu_custom_call.1} parent=1 // pred_check_branch
      %33 = sbr.rel (0) target = $region9
    $region8: #{tpu_custom_call.1} parent=1 // pred_region
      %s35 = ssub.s32 32, 32
      %36 = vsyncadd [#allocation6], %s35
      %s38 = sshll.u32 [#allocation5], 4
      %s39 = int_to_ptr.vmem [resolvable:$true] %s38
      %41 = dma.hbm_to_vmem [thread:$0]  %s1, 32, %s39, [#allocation6]
    $region9: #{tpu_custom_call.1} parent=1 // pred_fallthru
      _
    // Predicated region
    $region10: #{tpu_custom_call.1} parent=1 // pred_check
      _
    $region11: #{tpu_custom_call.1} parent=1 // pred_check_branch
      %43 = sbr.rel (0) target = $region13
    $region12: #{tpu_custom_call.1} parent=1 // pred_region
      %s45 = ssub.s32 1024, 1024
      %46 = vsyncadd [#allocation6], %s45
      %s47 = sshll.u32 [#allocation7], 4
      %s48 = int_to_ptr.vmem [resolvable:$true] %s47
      %53 = dma.hbm_to_vmem [thread:$0]  %s2, 1024, %s48, [#allocation6], 128, 128, 8
    $region13: #{tpu_custom_call.1} parent=1 // pred_fallthru
      _
    // Predicated region
    $region14: #{tpu_custom_call.1} parent=1 // pred_check
      _
    $region15: #{tpu_custom_call.1} parent=1 // pred_check_branch
      %55 = sbr.rel (0) target = $region17
    $region16: #{tpu_custom_call.1} parent=1 // pred_region
      %s57 = ssub.s32 256, 256
      %58 = vsyncadd [#allocation9], %s57
      %s59 = sshll.u32 [#allocation8], 4
      %s60 = int_to_ptr.vmem [resolvable:$true] %s59
      %65 = dma.hbm_to_vmem [thread:$0]  %s3, 256, %s60, [#allocation9], 128, 128, 8
    $region17: #{tpu_custom_call.1} parent=1 // pred_fallthru
      _
    // Predicated region
    $region18: #{tpu_custom_call.1} parent=1 // pred_check
      _
    $region19: #{tpu_custom_call.1} parent=1 // pred_check_branch
      %67 = sbr.rel (0) target = $region21
    $region20: #{tpu_custom_call.1} parent=1 // pred_region
      %s69 = ssub.s32 128, 128
      %70 = vsyncadd [#allocation9], %s69
      %s72 = sshll.u32 [#allocation10], 4
      %s73 = int_to_ptr.vmem [resolvable:$true] %s72
      %75 = dma.hbm_to_vmem [thread:$0]  %s4, 128, %s73, [#allocation9]
    $region21: #{tpu_custom_call.1} parent=1 // pred_fallthru
      _
    // Predicated region
    $region22: #{tpu_custom_call.1} parent=1 // pred_check
      _
    $region23: #{tpu_custom_call.1} parent=1 // pred_check_branch
      %77 = sbr.rel (0) target = $region25
    $region24: #{tpu_custom_call.1} parent=1 // pred_region
      %s79 = ssub.s32 4096, 4096
      %80 = vsyncadd [#allocation12], %s79
      %s81 = sshll.u32 [#allocation11], 4
      %s82 = int_to_ptr.vmem [resolvable:$true] %s81
      %87 = dma.hbm_to_vmem [thread:$0]  %s5, 4096, %s82, [#allocation12], 64, 64, 4
    $region25: #{tpu_custom_call.1} parent=1 // pred_fallthru
      _
    // Predicated region
    $region26: #{tpu_custom_call.1} parent=1 // pred_check
      _
    $region27: #{tpu_custom_call.1} parent=1 // pred_check_branch
      %89 = sbr.rel (0) target = $region29
    $region28: #{tpu_custom_call.1} parent=1 // pred_region
      %s91 = ssub.s32 1024, 1024
      %92 = vsyncadd [#allocation12], %s91
      %s93 = sshll.u32 [#allocation13], 4
      %s94 = int_to_ptr.vmem [resolvable:$true] %s93
      %99 = dma.hbm_to_vmem [thread:$0]  %s6, 1024, %s94, [#allocation12], 64, 64, 4
    $region29: #{tpu_custom_call.1} parent=1 // pred_fallthru
      _
    // Predicated region
    $region30: #{tpu_custom_call.1} parent=1 // pred_check
      _
    $region31: #{tpu_custom_call.1} parent=1 // pred_check_branch
      %101 = sbr.rel (0) target = $region33
    $region32: #{tpu_custom_call.1} parent=1 // pred_region
      %s103 = ssub.s32 4096, 4096
      %104 = vsyncadd [#allocation15], %s103
      %s105 = sshll.u32 [#allocation14], 4
      %s106 = int_to_ptr.vmem [resolvable:$true] %s105
      %111 = dma.hbm_to_vmem [thread:$0]  %s7, 4096, %s106, [#allocation15], 64, 64, 4
    $region33: #{tpu_custom_call.1} parent=1 // pred_fallthru
      _
    // Predicated region
    $region34: #{tpu_custom_call.1} parent=1 // pred_check
      _
    $region35: #{tpu_custom_call.1} parent=1 // pred_check_branch
      %113 = sbr.rel (0) target = $region37
    $region36: #{tpu_custom_call.1} parent=1 // pred_region
      %s115 = ssub.s32 4096, 4096
      %116 = vsyncadd [#allocation15], %s115
      %s117 = sshll.u32 [#allocation16], 4
      %s118 = int_to_ptr.vmem [resolvable:$true] %s117
      %123 = dma.hbm_to_vmem [thread:$0]  %s8, 4096, %s118, [#allocation15], 64, 64, 4
    $region37: #{tpu_custom_call.1} parent=1 // pred_fallthru
      _
    // Predicated region
    $region38: #{tpu_custom_call.1} parent=1 // pred_check
      _
    $region39: #{tpu_custom_call.1} parent=1 // pred_check_branch
      %125 = sbr.rel (0) target = $region41
    $region40: #{tpu_custom_call.1} parent=1 // pred_region
      %s127 = ssub.s32 512, 512
      %128 = vsyncadd [#allocation18], %s127
      %s129 = sshll.u32 [#allocation17], 4
      %s130 = int_to_ptr.vmem [resolvable:$true] %s129
      %135 = dma.hbm_to_vmem [thread:$0]  %s9, 512, %s130, [#allocation18], 128, 128, 8
    $region41: #{tpu_custom_call.1} parent=1 // pred_fallthru
      _
    // Predicated region
    $region42: #{tpu_custom_call.1} parent=1 // pred_check
      _
    $region43: #{tpu_custom_call.1} parent=1 // pred_check_branch
      %137 = sbr.rel (0) target = $region45
    $region44: #{tpu_custom_call.1} parent=1 // pred_region
      %138 = dma.done [#allocation3], 32
    $region45: #{tpu_custom_call.1} parent=1 // pred_fallthru
      _
    // Predicated region
    $region46: #{tpu_custom_call.1} parent=1 // pred_check
      _
    $region47: #{tpu_custom_call.1} parent=1 // pred_check_branch
      %140 = sbr.rel (0) target = $region49
    $region48: #{tpu_custom_call.1} parent=1 // pred_region
      %141 = dma.done [#allocation6], 32
    $region49: #{tpu_custom_call.1} parent=1 // pred_fallthru
      _
    // Predicated region
    $region50: #{tpu_custom_call.1} parent=1 // pred_check
      _
    $region51: #{tpu_custom_call.1} parent=1 // pred_check_branch
      %143 = sbr.rel (0) target = $region53
    $region52: #{tpu_custom_call.1} parent=1 // pred_region
      %144 = dma.done [#allocation6], 1024
    $region53: #{tpu_custom_call.1} parent=1 // pred_fallthru
      _
    // Predicated region
    $region54: #{tpu_custom_call.1} parent=1 // pred_check
      _
    $region55: #{tpu_custom_call.1} parent=1 // pred_check_branch
      %146 = sbr.rel (0) target = $region57
    $region56: #{tpu_custom_call.1} parent=1 // pred_region
      %147 = dma.done [#allocation9], 256
    $region57: #{tpu_custom_call.1} parent=1 // pred_fallthru
      _
    // Predicated region
    $region58: #{tpu_custom_call.1} parent=1 // pred_check
      _
    $region59: #{tpu_custom_call.1} parent=1 // pred_check_branch
      %149 = sbr.rel (0) target = $region61
    $region60: #{tpu_custom_call.1} parent=1 // pred_region
      %150 = dma.done [#allocation9], 128
    $region61: #{tpu_custom_call.1} parent=1 // pred_fallthru
      _
    // Predicated region
    $region62: #{tpu_custom_call.1} parent=1 // pred_check
      _
    $region63: #{tpu_custom_call.1} parent=1 // pred_check_branch
      %152 = sbr.rel (0) target = $region65
    $region64: #{tpu_custom_call.1} parent=1 // pred_region
      %153 = dma.done [#allocation12], 4096
    $region65: #{tpu_custom_call.1} parent=1 // pred_fallthru
      _
    // Predicated region
    $region66: #{tpu_custom_call.1} parent=1 // pred_check
      _
    $region67: #{tpu_custom_call.1} parent=1 // pred_check_branch
      %155 = sbr.rel (0) target = $region69
    $region68: #{tpu_custom_call.1} parent=1 // pred_region
      %156 = dma.done [#allocation12], 1024
    $region69: #{tpu_custom_call.1} parent=1 // pred_fallthru
      _
    // Predicated region
    $region70: #{tpu_custom_call.1} parent=1 // pred_check
      _
    $region71: #{tpu_custom_call.1} parent=1 // pred_check_branch
      %158 = sbr.rel (0) target = $region73
    $region72: #{tpu_custom_call.1} parent=1 // pred_region
      %159 = dma.done [#allocation15], 4096
    $region73: #{tpu_custom_call.1} parent=1 // pred_fallthru
      _
    // Predicated region
    $region74: #{tpu_custom_call.1} parent=1 // pred_check
      _
    $region75: #{tpu_custom_call.1} parent=1 // pred_check_branch
      %161 = sbr.rel (0) target = $region77
    $region76: #{tpu_custom_call.1} parent=1 // pred_region
      %162 = dma.done [#allocation15], 4096
    $region77: #{tpu_custom_call.1} parent=1 // pred_fallthru
      _
    // Predicated region
    $region78: #{tpu_custom_call.1} parent=1 // pred_check
      _
    $region79: #{tpu_custom_call.1} parent=1 // pred_check_branch
      %164 = sbr.rel (0) target = $region81
    $region80: #{tpu_custom_call.1} parent=1 // pred_region
      %165 = dma.done [#allocation18], 512
    $region81: #{tpu_custom_call.1} parent=1 // pred_fallthru
      _
    %v167 = vld [vmem:[#allocation2] sm:$0x3]
    %v168 = vlaneseq
    %v169 = vshrl.u32 %v168, 7
    %v170 = vsub.s32 0, %v169
    %v171 = vrot.slane %v167, %v170
    %173 = vbcast.lane.b32.xlu0 %v171, 256
    %v174 = vpop.permute.xlu0 %173
    %v175 = vlaneseq
    %v176 = vshrl.u32 %v175, 7
    %v177 = vsub.s32 1, %v176
    %v178 = vrot.slane %v167, %v177
    %180 = vbcast.lane.b32.xlu0 %v178, 256
    %v181 = vpop.permute.xlu0 %180
    %v182 = vlaneseq
    %v183 = vand.u32 %v182, 127
    %vm184 = vcmp.eq.s32.totalorder %v174, %v183
    %vm185 = vcmp.eq.s32.totalorder %v181, %v183
    %v186 = vsel %vm184, 1, 0
    %v187 = vsel %vm185, 1, 0
    %v188 = vcvt.s32.f32 %v186
    %v189 = vcvt.s32.f32 %v187
    %v190 = vld [vmem:[#allocation7] sm:$0xff]
    %v191 = vld [vmem:[#allocation7 + $0x8] sm:$0xff]
    %v192 = vld [vmem:[#allocation7 + $0x10] sm:$0xff]
    %v193 = vld [vmem:[#allocation7 + $0x18] sm:$0xff]
    %v194 = vld [vmem:[#allocation7 + $0x20] sm:$0xff]
    %v195 = vld [vmem:[#allocation7 + $0x28] sm:$0xff]
    %v196 = vld [vmem:[#allocation7 + $0x30] sm:$0xff]
    %v197 = vld [vmem:[#allocation7 + $0x38] sm:$0xff]
    %v198 = vld [vmem:[#allocation8] sm:$0xff]
    %vm199 = vcmask 523264
    %v201 = vsel %vm199, %v188, 0
    %v204 = vsel %vm199, %v189, 0
    %206 = vmatprep.subr.mxu0 0.0
    %207 = vmatpush1.msra.mxu0 0.0
    %208 = vmatprep.subr.mxu0 0.0
    %209 = vmatpush1.msra.mxu0 0.0
    %210 = vmatprep.subr.mxu0 0.0
    %211 = vmatpush1.msra.mxu0 0.0
    %212 = vmatprep.subr.mxu0 0.0
    %213 = vmatpush1.msra.mxu0 0.0
    %214 = vmatprep.subr.mxu0 0.0
    %215 = vmatpush1.msra.mxu0 0.0
    %216 = vmatprep.subr.mxu0 0.0
    %217 = vmatpush1.msra.mxu0 0.0
    %218 = vmatprep.subr.mxu0 0.0
    %219 = vmatpush1.msra.mxu0 0.0
    %220 = vmatprep.subr.mxu0 0.0
    %221 = vmatpush1.msra.mxu0 0.0
    %222 = vmatprep.subr.mxu0 0.0
    %223 = vmatpush1.msra.mxu0 %v197
    %224 = vmatprep.subr.mxu0 0.0
    %225 = vmatpush1.msra.mxu0 %v196
    %226 = vmatprep.subr.mxu0 0.0
    %227 = vmatpush1.msra.mxu0 %v195
    %228 = vmatprep.subr.mxu0 0.0
    %229 = vmatpush1.msra.mxu0 %v194
    %230 = vmatprep.subr.mxu0 0.0
    %231 = vmatpush1.msra.mxu0 %v193
    %232 = vmatprep.subr.mxu0 0.0
    %233 = vmatpush1.msra.mxu0 %v192
    %234 = vmatprep.subr.mxu0 0.0
    %235 = vmatpush1.msra.mxu0 %v191
    %236 = vmatprep.subr.mxu0 0.0
    %237 = vmatpush1.msra.mxu0 %v190
    %238 = vmatprep.subr.mxu0 0.0
    %239 = vmatpush2.msra.mxu0 0.0
    %240 = vmatprep.subr.mxu0 0.0
    %241 = vmatpush2.msra.mxu0 0.0
    %242 = vmatprep.subr.mxu0 0.0
    %243 = vmatpush2.msra.mxu0 0.0
    %244 = vmatprep.subr.mxu0 0.0
    %245 = vmatpush2.msra.mxu0 0.0
    %246 = vmatprep.subr.mxu0 0.0
    %247 = vmatpush2.msra.mxu0 0.0
    %248 = vmatprep.subr.mxu0 0.0
    %249 = vmatpush2.msra.mxu0 0.0
    %250 = vmatprep.subr.mxu0 0.0
    %251 = vmatpush2.msra.mxu0 0.0
    %252 = vmatprep.subr.mxu0 0.0
    %253 = vmatpush2.msra.mxu0 0.0
    %254 = vmatprep.subr.mxu0 0.0
    %255 = vmatpush2.msra.mxu0 0.0
    %256 = vmatprep.subr.mxu0 0.0
    %257 = vmatpush2.msra.mxu0 0.0
    %258 = vmatprep.subr.mxu0 0.0
    %259 = vmatpush2.msra.mxu0 0.0
    %260 = vmatprep.subr.mxu0 0.0
    %261 = vmatpush2.msra.mxu0 0.0
    %262 = vmatprep.subr.mxu0 0.0
    %263 = vmatpush2.msra.mxu0 0.0
    %264 = vmatprep.subr.mxu0 0.0
    %265 = vmatpush2.msra.mxu0 0.0
    %266 = vmatprep.subr.mxu0 0.0
    %267 = vmatpush2.msra.mxu0 0.0
    %268 = vmatprep.subr.mxu0 0.0
    %269 = vmatpush2.msra.mxu0 0.0
    %270 = vmatprep.mubr.f32.mxu0 0.0
    %271 = vmatmul.mubr.f32.gmra.mxu0 %v201
    %v272 = vpop.f32.mrf.mxu0
    %v273 = vadd.f32 %v198, %v272
    %v274 = vpop.f32.mrf.mxu0
    %275 = vmatprep.mubr.f32.mxu0 0.0
    %276 = vmatmul.mubr.f32.gmra.mxu0 %v204
    %v277 = vpop.f32.mrf.mxu0
    %v278 = vadd.f32 %v198, %v277
    %v279 = vpop.f32.mrf.mxu0
    %280 = vdwg.mxu0
    %v281 = vld [vmem:[#allocation10] sm:$0x1]
    %v282 = vld [vmem:[#allocation10 + $0x1] sm:$0x1]
    %283 = vadd.xlane.f32.xlu0 %v273
    %v284 = vpop.xlane.xlu0 %283
    %285 = vadd.xlane.f32.xlu0 %v278
    %v286 = vpop.xlane.xlu0 %285
    %v287 = vmul.f32 %v284, 0.03125
    %v288 = vmul.f32 %v286, 0.03125
    %v289 = vmul.f32 %v273, %v273
    %v290 = vmul.f32 %v278, %v278
    %291 = vadd.xlane.f32.xlu0 %v289
    %v292 = vpop.xlane.xlu0 %291
    %293 = vadd.xlane.f32.xlu0 %v290
    %v294 = vpop.xlane.xlu0 %293
    %v295 = vmul.f32 %v292, 0.03125
    %v296 = vmul.f32 %v294, 0.03125
    %v297 = vmul.f32 %v287, %v287
    %v298 = vmul.f32 %v288, %v288
    %v299 = vsub.f32 %v295, %v297
    %v300 = vsub.f32 %v296, %v298
    %v301 = vmax.f32 %v299, 0.0
    %v302 = vmax.f32 %v300, 0.0
    %v303 = vsub.f32 %v273, %v287
    %v304 = vsub.f32 %v278, %v288
    %v305 = vadd.f32 %v301, 1e-12
    %v306 = vadd.f32 %v302, 1e-12
    %v307 = vrsqrt.pop %v305
    %v308 = vrsqrt.pop %v306
    %v309 = vmul.f32 %v303, %v307
    %v310 = vmul.f32 %v304, %v308
    %v311 = vlaneseq
    %v312 = vshrl.u32 %v311, 7
    %v313 = vsub.s32 0, %v312
    %v314 = vrot.slane %v281, %v313
    %v315 = vmul.f32 %v309, %v314
    %v316 = vmul.f32 %v310, %v314
    %v317 = vlaneseq
    %v318 = vshrl.u32 %v317, 7
    %v319 = vsub.s32 0, %v318
    %v320 = vrot.slane %v282, %v319
    %v321 = vadd.f32 %v315, %v320
    %v322 = vadd.f32 %v316, %v320
    %v323 = vld [vmem:[#allocation5] sm:$0x3]
    %v324 = vsub.f32 1.0, %v323
    %v325 = vmul.f32 %v324, -1e+09
    %v328 = vunpack.c.l.s4 1966171168
    %v329 = vunpack.c.0.s8 %v328
    %v330 = vlaneseq
    %v331 = vshrl.u32 %v330, 7
    %v332 = vsub.s32 %v329, %v331
    %v333 = vrot.slane %v325, %v332
    %v334 = vcombine.high %v333, %v333
    %v336 = vunpack.c.l.s4 1966171168
    %v337 = vunpack.c.0.s8 %v336
    %v338 = vlaneseq
    %v339 = vshrl.u32 %v338, 7
    %v340 = vsub.s32 %v337, %v339
    %v341 = vrot.slane %v333, %v340
    %v343 = vunpack.c.l.s4 1966171168
    %v344 = vunpack.c.0.s8 %v343
    %v345 = vlaneseq
    %v346 = vshrl.u32 %v345, 7
    %v347 = vsub.s32 %v344, %v346
    %v348 = vrot.slane %v334, %v347
    %v349 = vld [vmem:[#allocation11] sm:$0xf]
    %v350 = vld [vmem:[#allocation11 + $0x4] sm:$0xf]
    %v351 = vld [vmem:[#allocation11 + $0x8] sm:$0xf]
    %v352 = vld [vmem:[#allocation11 + $0xc] sm:$0xf]
    %v353 = vld [vmem:[#allocation11 + $0x10] sm:$0xf]
    %v354 = vld [vmem:[#allocation11 + $0x14] sm:$0xf]
    %v355 = vld [vmem:[#allocation11 + $0x18] sm:$0xf]
    %v356 = vld [vmem:[#allocation11 + $0x1c] sm:$0xf]
    %v357 = vld [vmem:[#allocation11 + $0x20] sm:$0xf]
    %v358 = vld [vmem:[#allocation11 + $0x24] sm:$0xf]
    %v359 = vld [vmem:[#allocation11 + $0x28] sm:$0xf]
    %v360 = vld [vmem:[#allocation11 + $0x2c] sm:$0xf]
    %v361 = vld [vmem:[#allocation11 + $0x30] sm:$0xf]
    %v362 = vld [vmem:[#allocation11 + $0x34] sm:$0xf]
    %v363 = vld [vmem:[#allocation11 + $0x38] sm:$0xf]
    %v364 = vld [vmem:[#allocation11 + $0x3c] sm:$0xf]
    %v365 = vld [vmem:[#allocation13] sm:$0xf]
    %v366 = vld [vmem:[#allocation13 + $0x4] sm:$0xf]
    %v367 = vld [vmem:[#allocation13 + $0x8] sm:$0xf]
    %v368 = vld [vmem:[#allocation13 + $0xc] sm:$0xf]
    %v369 = vld [vmem:[#allocation14] sm:$0xf]
    %v370 = vld [vmem:[#allocation14 + $0x4] sm:$0xf]
    %v371 = vld [vmem:[#allocation14 + $0x8] sm:$0xf]
    %v372 = vld [vmem:[#allocation14 + $0xc] sm:$0xf]
    %v373 = vld [vmem:[#allocation14 + $0x10] sm:$0xf]
    %v374 = vld [vmem:[#allocation14 + $0x14] sm:$0xf]
    %v375 = vld [vmem:[#allocation14 + $0x18] sm:$0xf]
    %v376 = vld [vmem:[#allocation14 + $0x1c] sm:$0xf]
    %v377 = vld [vmem:[#allocation14 + $0x20] sm:$0xf]
    %v378 = vld [vmem:[#allocation14 + $0x24] sm:$0xf]
    %v379 = vld [vmem:[#allocation14 + $0x28] sm:$0xf]
    %v380 = vld [vmem:[#allocation14 + $0x2c] sm:$0xf]
    %v381 = vld [vmem:[#allocation14 + $0x30] sm:$0xf]
    %v382 = vld [vmem:[#allocation14 + $0x34] sm:$0xf]
    %v383 = vld [vmem:[#allocation14 + $0x38] sm:$0xf]
    %v384 = vld [vmem:[#allocation14 + $0x3c] sm:$0xf]
    %v385 = vld [vmem:[#allocation16] sm:$0xf]
    %v386 = vld [vmem:[#allocation16 + $0x4] sm:$0xf]
    %v387 = vld [vmem:[#allocation16 + $0x8] sm:$0xf]
    %v388 = vld [vmem:[#allocation16 + $0xc] sm:$0xf]
    %v389 = vld [vmem:[#allocation16 + $0x10] sm:$0xf]
    %v390 = vld [vmem:[#allocation16 + $0x14] sm:$0xf]
    %v391 = vld [vmem:[#allocation16 + $0x18] sm:$0xf]
    %v392 = vld [vmem:[#allocation16 + $0x1c] sm:$0xf]
    %v393 = vld [vmem:[#allocation16 + $0x20] sm:$0xf]
    %v394 = vld [vmem:[#allocation16 + $0x24] sm:$0xf]
    %v395 = vld [vmem:[#allocation16 + $0x28] sm:$0xf]
    %v396 = vld [vmem:[#allocation16 + $0x2c] sm:$0xf]
    %v397 = vld [vmem:[#allocation16 + $0x30] sm:$0xf]
    %v398 = vld [vmem:[#allocation16 + $0x34] sm:$0xf]
    %v399 = vld [vmem:[#allocation16 + $0x38] sm:$0xf]
    %v400 = vld [vmem:[#allocation16 + $0x3c] sm:$0xf]
    %v401 = vld [vmem:[#allocation17] sm:$0xff]
    %v402 = vpack.c.bf16 %v322, %v321
    %v403 = vlaneseq
    %v404 = vshrl.u32 %v403, 7
    %v405 = vsub.s32 0, %v404
    %v406 = vrot.slane %v401, %v405
    %v423 = vunpack.c.l.b16 %v349
    %v424 = vunpack.c.l.b16 %v350
    %v425 = vunpack.c.l.b16 %v351
    %v426 = vunpack.c.l.b16 %v352
    %v427 = vunpack.c.l.b16 %v353
    %v428 = vunpack.c.l.b16 %v354
    %v429 = vunpack.c.l.b16 %v355
    %v430 = vunpack.c.l.b16 %v356
    %v431 = vunpack.c.l.b16 %v357
    %v432 = vunpack.c.l.b16 %v358
    %v433 = vunpack.c.l.b16 %v359
    %v434 = vunpack.c.l.b16 %v360
    %v435 = vunpack.c.l.b16 %v361
    %v436 = vunpack.c.l.b16 %v362
    %v437 = vunpack.c.l.b16 %v363
    %v438 = vunpack.c.l.b16 %v364
    %v439 = vpack.c.b16 %v424, %v423
    %v440 = vpack.c.b16 %v426, %v425
    %v441 = vpack.c.b16 %v428, %v427
    %v442 = vpack.c.b16 %v430, %v429
    %v443 = vpack.c.b16 %v432, %v431
    %v444 = vpack.c.b16 %v434, %v433
    %v445 = vpack.c.b16 %v436, %v435
    %v446 = vpack.c.b16 %v438, %v437
    %455 = vmatprep.subr.bf16.mxu0 0
    %456 = vmatpush1.bf16.msra.mxu0 %v446
    %457 = vmatprep.subr.bf16.mxu0 0
    %458 = vmatpush1.bf16.msra.mxu0 %v445
    %459 = vmatprep.subr.bf16.mxu0 0
    %460 = vmatpush1.bf16.msra.mxu0 %v444
    %461 = vmatprep.subr.bf16.mxu0 0
    %462 = vmatpush1.bf16.msra.mxu0 %v443
    %463 = vmatprep.subr.bf16.mxu0 0
    %464 = vmatpush1.bf16.msra.mxu0 %v442
    %465 = vmatprep.subr.bf16.mxu0 0
    %466 = vmatpush1.bf16.msra.mxu0 %v441
    %467 = vmatprep.subr.bf16.mxu0 0
    %468 = vmatpush1.bf16.msra.mxu0 %v440
    %469 = vmatprep.subr.bf16.mxu0 0
    %470 = vmatpush1.bf16.msra.mxu0 %v439
    %471 = vmatprep.subr.bf16.mxu0 0
    %472 = vmatpush2.bf16.msra.mxu0 0
    %473 = vmatprep.subr.bf16.mxu0 0
    %474 = vmatpush2.bf16.msra.mxu0 0
    %475 = vmatprep.subr.bf16.mxu0 0
    %476 = vmatpush2.bf16.msra.mxu0 0
    %477 = vmatprep.subr.bf16.mxu0 0
    %478 = vmatpush2.bf16.msra.mxu0 0
    %479 = vmatprep.subr.bf16.mxu0 0
    %480 = vmatpush2.bf16.msra.mxu0 0
    %481 = vmatprep.subr.bf16.mxu0 0
    %482 = vmatpush2.bf16.msra.mxu0 0
    %483 = vmatprep.subr.bf16.mxu0 0
    %484 = vmatpush2.bf16.msra.mxu0 0
    %485 = vmatprep.subr.bf16.mxu0 0
    %486 = vmatpush2.bf16.msra.mxu0 0
    %487 = vmatprep.mubr.bf16.mxu0 0
    %488 = vmatmul.mubr.bf16.gmra.mxu0 %v402
    %v489 = vpop.f32.mrf.mxu0
    %v490 = vadd.f32 %v406, %v489
    %v491 = vpop.f32.mrf.mxu0
    %v492 = vpop.f32.mrf.mxu0
    %v493 = vadd.f32 %v406, %v492
    %v494 = vpop.f32.mrf.mxu0
    %495 = vdwg.mxu0
    %v496 = vpack.c.bf16 %v490, %v490
    %v497 = vpack.c.bf16 %v493, %v493
    %v498 = vlaneseq
    %v499 = vshrl.u32 %v498, 7
    %v500 = vsub.s32 0, %v499
    %v501 = vrot.slane %v341, %v500
    %v502 = vlaneseq
    %v503 = vshrl.u32 %v502, 7
    %v504 = vsub.s32 0, %v503
    %v505 = vrot.slane %v348, %v504
    %509 = vrot.lane.b32.xlu0 %v496, 96
    %v510 = vpop.permute.xlu0 %509
    %vm511 = vcmask 64512
    %v513 = vsel %vm511, %v496, 0
    %v516 = vsel %vm511, %v510, 0
    %518 = vmatprep.subr.bf16.mxu0 0
    %519 = vmatpush1.bf16.xpose.msra.mxu0 0
    %520 = vmatprep.subr.bf16.mxu0 0
    %521 = vmatpush1.bf16.xpose.msra.mxu0 0
    %522 = vmatprep.subr.bf16.mxu0 0
    %523 = vmatpush1.bf16.xpose.msra.mxu0 0
    %524 = vmatprep.subr.bf16.mxu0 0
    %525 = vmatpush1.bf16.xpose.msra.mxu0 0
    %526 = vmatprep.subr.bf16.mxu0 0
    %527 = vmatpush1.bf16.xpose.msra.mxu0 0
    %528 = vmatprep.subr.bf16.mxu0 0
    %529 = vmatpush1.bf16.xpose.msra.mxu0 0
    %530 = vmatprep.subr.bf16.mxu0 0
    %531 = vmatpush1.bf16.xpose.msra.mxu0 0
    %532 = vmatprep.subr.bf16.mxu0 0
    %533 = vmatpush1.bf16.xpose.msra.mxu0 %v516
    %534 = vmatprep.subr.bf16.mxu0 0
    %535 = vmatpush2.bf16.xpose.msra.mxu0 0
    %536 = vmatprep.subr.bf16.mxu0 0
    %537 = vmatpush2.bf16.xpose.msra.mxu0 0
    %538 = vmatprep.subr.bf16.mxu0 0
    %539 = vmatpush2.bf16.xpose.msra.mxu0 0
    %540 = vmatprep.subr.bf16.mxu0 0
    %541 = vmatpush2.bf16.xpose.msra.mxu0 0
    %542 = vmatprep.subr.bf16.mxu0 0
    %543 = vmatpush2.bf16.xpose.msra.mxu0 0
    %544 = vmatprep.subr.bf16.mxu0 0
    %545 = vmatpush2.bf16.xpose.msra.mxu0 0
    %546 = vmatprep.subr.bf16.mxu0 0
    %547 = vmatpush2.bf16.xpose.msra.mxu0 0
    %548 = vmatprep.subr.bf16.mxu0 0
    %549 = vmatpush2.bf16.xpose.msra.mxu0 0
    %550 = vmatprep.mubr.bf16.mxu0 0
    %551 = vmatmul.mubr.bf16.gmra.mxu0 %v513
    %v552 = vpop.f32.mrf.mxu0
    %v553 = vadd.f32 %v501, %v552
    %v554 = vpop.f32.mrf.mxu0
    %v555 = vpop.f32.mrf.mxu0
    %v556 = vpop.f32.mrf.mxu0
    %557 = vdwg.mxu0
    %559 = vrot.lane.b32.xlu0 %v497, 96
    %v560 = vpop.permute.xlu0 %559
    %v562 = vsel %vm511, %v497, 0
    %v565 = vsel %vm511, %v560, 0
    %567 = vmatprep.subr.bf16.mxu0 0
    %568 = vmatpush1.bf16.xpose.msra.mxu0 0
    %569 = vmatprep.subr.bf16.mxu0 0
    %570 = vmatpush1.bf16.xpose.msra.mxu0 0
    %571 = vmatprep.subr.bf16.mxu0 0
    %572 = vmatpush1.bf16.xpose.msra.mxu0 0
    %573 = vmatprep.subr.bf16.mxu0 0
    %574 = vmatpush1.bf16.xpose.msra.mxu0 0
    %575 = vmatprep.subr.bf16.mxu0 0
    %576 = vmatpush1.bf16.xpose.msra.mxu0 0
    %577 = vmatprep.subr.bf16.mxu0 0
    %578 = vmatpush1.bf16.xpose.msra.mxu0 0
    %579 = vmatprep.subr.bf16.mxu0 0
    %580 = vmatpush1.bf16.xpose.msra.mxu0 0
    %581 = vmatprep.subr.bf16.mxu0 0
    %582 = vmatpush1.bf16.xpose.msra.mxu0 %v565
    %583 = vmatprep.subr.bf16.mxu0 0
    %584 = vmatpush2.bf16.xpose.msra.mxu0 0
    %585 = vmatprep.subr.bf16.mxu0 0
    %586 = vmatpush2.bf16.xpose.msra.mxu0 0
    %587 = vmatprep.subr.bf16.mxu0 0
    %588 = vmatpush2.bf16.xpose.msra.mxu0 0
    %589 = vmatprep.subr.bf16.mxu0 0
    %590 = vmatpush2.bf16.xpose.msra.mxu0 0
    %591 = vmatprep.subr.bf16.mxu0 0
    %592 = vmatpush2.bf16.xpose.msra.mxu0 0
    %593 = vmatprep.subr.bf16.mxu0 0
    %594 = vmatpush2.bf16.xpose.msra.mxu0 0
    %595 = vmatprep.subr.bf16.mxu0 0
    %596 = vmatpush2.bf16.xpose.msra.mxu0 0
    %597 = vmatprep.subr.bf16.mxu0 0
    %598 = vmatpush2.bf16.xpose.msra.mxu0 0
    %599 = vmatprep.mubr.bf16.mxu0 0
    %600 = vmatmul.mubr.bf16.gmra.mxu0 %v562
    %v601 = vpop.f32.mrf.mxu0
    %v602 = vadd.f32 %v505, %v601
    %v603 = vpop.f32.mrf.mxu0
    %v604 = vpop.f32.mrf.mxu0
    %v605 = vpop.f32.mrf.mxu0
    %606 = vdwg.mxu0
    %v607 = vsel %vm511, %v553, -inf
    %608 = vmax.xlane.f32.xlu0 %v607
    %v609 = vpop.xlane.xlu0 %608
    %v610 = vsel %vm511, %v602, -inf
    %611 = vmax.xlane.f32.xlu0 %v610
    %v612 = vpop.xlane.xlu0 %611
    %v613 = vsub.f32 %v553, %v609
    %v614 = vsub.f32 %v602, %v612
    %v615 = vmul.f32 %v613, 1.442695
    %v616 = vpow.pop %v615
    %v617 = vmul.f32 %v614, 1.442695
    %v618 = vpow.pop %v617
    %v619 = vsel %vm511, %v616, 0.0
    %620 = vadd.xlane.f32.xlu0 %v619
    %v621 = vpop.xlane.xlu0 %620
    %v622 = vsel %vm511, %v618, 0.0
    %623 = vadd.xlane.f32.xlu0 %v622
    %v624 = vpop.xlane.xlu0 %623
    %v625 = vrcp.pop %v621
    %v626 = vrcp.pop %v624
    %v627 = vmul.f32 %v616, %v625
    %v628 = vmul.f32 %v618, %v626
    %v629 = vpack.c.bf16 %v627, %v627
    %v630 = vpack.c.bf16 %v628, %v628
    %631 = vrot.lane.b32.xlu0 %v496, 64
    %v632 = vpop.permute.xlu0 %631
    %v634 = vsel %vm511, %v629, 0
    %vm636 = vcmask 1043456
    %v638 = vsel %vm636, %v632, 0
    %640 = vmatprep.subr.bf16.mxu0 0
    %641 = vmatpush1.bf16.msra.mxu0 0
    %642 = vmatprep.subr.bf16.mxu0 0
    %643 = vmatpush1.bf16.msra.mxu0 0
    %644 = vmatprep.subr.bf16.mxu0 0
    %645 = vmatpush1.bf16.msra.mxu0 0
    %646 = vmatprep.subr.bf16.mxu0 0
    %647 = vmatpush1.bf16.msra.mxu0 0
    %648 = vmatprep.subr.bf16.mxu0 0
    %649 = vmatpush1.bf16.msra.mxu0 0
    %650 = vmatprep.subr.bf16.mxu0 0
    %651 = vmatpush1.bf16.msra.mxu0 0
    %652 = vmatprep.subr.bf16.mxu0 0
    %653 = vmatpush1.bf16.msra.mxu0 0
    %654 = vmatprep.subr.bf16.mxu0 0
    %655 = vmatpush1.bf16.msra.mxu0 %v638
    %656 = vmatprep.subr.bf16.mxu0 0
    %657 = vmatpush2.bf16.msra.mxu0 0
    %658 = vmatprep.subr.bf16.mxu0 0
    %659 = vmatpush2.bf16.msra.mxu0 0
    %660 = vmatprep.subr.bf16.mxu0 0
    %661 = vmatpush2.bf16.msra.mxu0 0
    %662 = vmatprep.subr.bf16.mxu0 0
    %663 = vmatpush2.bf16.msra.mxu0 0
    %664 = vmatprep.subr.bf16.mxu0 0
    %665 = vmatpush2.bf16.msra.mxu0 0
    %666 = vmatprep.subr.bf16.mxu0 0
    %667 = vmatpush2.bf16.msra.mxu0 0
    %668 = vmatprep.subr.bf16.mxu0 0
    %669 = vmatpush2.bf16.msra.mxu0 0
    %670 = vmatprep.subr.bf16.mxu0 0
    %671 = vmatpush2.bf16.msra.mxu0 0
    %672 = vmatprep.mubr.bf16.mxu0 0
    %673 = vmatmul.mubr.bf16.gmra.mxu0 %v634
    %v674 = vpop.f32.mrf.mxu0
    %v675 = vadd.f32 0.0, %v674
    %v676 = vpop.f32.mrf.mxu0
    %v677 = vpop.f32.mrf.mxu0
    %v678 = vpop.f32.mrf.mxu0
    %679 = vdwg.mxu0
    %680 = vrot.lane.b32.xlu0 %v497, 64
    %v681 = vpop.permute.xlu0 %680
    %v683 = vsel %vm511, %v630, 0
    %v686 = vsel %vm636, %v681, 0
    %688 = vmatprep.subr.bf16.mxu0 0
    %689 = vmatpush1.bf16.msra.mxu0 0
    %690 = vmatprep.subr.bf16.mxu0 0
    %691 = vmatpush1.bf16.msra.mxu0 0
    %692 = vmatprep.subr.bf16.mxu0 0
    %693 = vmatpush1.bf16.msra.mxu0 0
    %694 = vmatprep.subr.bf16.mxu0 0
    %695 = vmatpush1.bf16.msra.mxu0 0
    %696 = vmatprep.subr.bf16.mxu0 0
    %697 = vmatpush1.bf16.msra.mxu0 0
    %698 = vmatprep.subr.bf16.mxu0 0
    %699 = vmatpush1.bf16.msra.mxu0 0
    %700 = vmatprep.subr.bf16.mxu0 0
    %701 = vmatpush1.bf16.msra.mxu0 0
    %702 = vmatprep.subr.bf16.mxu0 0
    %703 = vmatpush1.bf16.msra.mxu0 %v686
    %704 = vmatprep.subr.bf16.mxu0 0
    %705 = vmatpush2.bf16.msra.mxu0 0
    %706 = vmatprep.subr.bf16.mxu0 0
    %707 = vmatpush2.bf16.msra.mxu0 0
    %708 = vmatprep.subr.bf16.mxu0 0
    %709 = vmatpush2.bf16.msra.mxu0 0
    %710 = vmatprep.subr.bf16.mxu0 0
    %711 = vmatpush2.bf16.msra.mxu0 0
    %712 = vmatprep.subr.bf16.mxu0 0
    %713 = vmatpush2.bf16.msra.mxu0 0
    %714 = vmatprep.subr.bf16.mxu0 0
    %715 = vmatpush2.bf16.msra.mxu0 0
    %716 = vmatprep.subr.bf16.mxu0 0
    %717 = vmatpush2.bf16.msra.mxu0 0
    %718 = vmatprep.subr.bf16.mxu0 0
    %719 = vmatpush2.bf16.msra.mxu0 0
    %720 = vmatprep.mubr.bf16.mxu0 0
    %721 = vmatmul.mubr.bf16.gmra.mxu0 %v683
    %v722 = vpop.f32.mrf.mxu0
    %v723 = vadd.f32 0.0, %v722
    %v724 = vpop.f32.mrf.mxu0
    %v725 = vpop.f32.mrf.mxu0
    %v726 = vpop.f32.mrf.mxu0
    %727 = vdwg.mxu0
    %728 = vrot.lane.b32.xlu0 %v496, 120
    %v729 = vpop.permute.xlu0 %728
    %730 = vrot.lane.b32.xlu0 %v496, 88
    %v731 = vpop.permute.xlu0 %730
    %v733 = vsel %vm511, %v729, 0
    %v736 = vsel %vm511, %v731, 0
    %738 = vmatprep.subr.bf16.mxu0 0
    %739 = vmatpush1.bf16.xpose.msra.mxu0 0
    %740 = vmatprep.subr.bf16.mxu0 0
    %741 = vmatpush1.bf16.xpose.msra.mxu0 0
    %742 = vmatprep.subr.bf16.mxu0 0
    %743 = vmatpush1.bf16.xpose.msra.mxu0 0
    %744 = vmatprep.subr.bf16.mxu0 0
    %745 = vmatpush1.bf16.xpose.msra.mxu0 0
    %746 = vmatprep.subr.bf16.mxu0 0
    %747 = vmatpush1.bf16.xpose.msra.mxu0 0
    %748 = vmatprep.subr.bf16.mxu0 0
    %749 = vmatpush1.bf16.xpose.msra.mxu0 0
    %750 = vmatprep.subr.bf16.mxu0 0
    %751 = vmatpush1.bf16.xpose.msra.mxu0 0
    %752 = vmatprep.subr.bf16.mxu0 0
    %753 = vmatpush1.bf16.xpose.msra.mxu0 %v736
    %754 = vmatprep.subr.bf16.mxu0 0
    %755 = vmatpush2.bf16.xpose.msra.mxu0 0
    %756 = vmatprep.subr.bf16.mxu0 0
    %757 = vmatpush2.bf16.xpose.msra.mxu0 0
    %758 = vmatprep.subr.bf16.mxu0 0
    %759 = vmatpush2.bf16.xpose.msra.mxu0 0
    %760 = vmatprep.subr.bf16.mxu0 0
    %761 = vmatpush2.bf16.xpose.msra.mxu0 0
    %762 = vmatprep.subr.bf16.mxu0 0
    %763 = vmatpush2.bf16.xpose.msra.mxu0 0
    %764 = vmatprep.subr.bf16.mxu0 0
    %765 = vmatpush2.bf16.xpose.msra.mxu0 0
    %766 = vmatprep.subr.bf16.mxu0 0
    %767 = vmatpush2.bf16.xpose.msra.mxu0 0
    %768 = vmatprep.subr.bf16.mxu0 0
    %769 = vmatpush2.bf16.xpose.msra.mxu0 0
    %770 = vmatprep.mubr.bf16.mxu0 0
    %771 = vmatmul.mubr.bf16.gmra.mxu0 %v733
    %v772 = vpop.f32.mrf.mxu0
    %v773 = vadd.f32 %v501, %v772
    %v774 = vpop.f32.mrf.mxu0
    %v775 = vpop.f32.mrf.mxu0
    %v776 = vpop.f32.mrf.mxu0
    %777 = vdwg.mxu0
    %778 = vrot.lane.b32.xlu0 %v497, 120
    %v779 = vpop.permute.xlu0 %778
    %780 = vrot.lane.b32.xlu0 %v497, 88
    %v781 = vpop.permute.xlu0 %780
    %v783 = vsel %vm511, %v779, 0
    %v786 = vsel %vm511, %v781, 0
    %788 = vmatprep.subr.bf16.mxu0 0
    %789 = vmatpush1.bf16.xpose.msra.mxu0 0
    %790 = vmatprep.subr.bf16.mxu0 0
    %791 = vmatpush1.bf16.xpose.msra.mxu0 0
    %792 = vmatprep.subr.bf16.mxu0 0
    %793 = vmatpush1.bf16.xpose.msra.mxu0 0
    %794 = vmatprep.subr.bf16.mxu0 0
    %795 = vmatpush1.bf16.xpose.msra.mxu0 0
    %796 = vmatprep.subr.bf16.mxu0 0
    %797 = vmatpush1.bf16.xpose.msra.mxu0 0
    %798 = vmatprep.subr.bf16.mxu0 0
    %799 = vmatpush1.bf16.xpose.msra.mxu0 0
    %800 = vmatprep.subr.bf16.mxu0 0
    %801 = vmatpush1.bf16.xpose.msra.mxu0 0
    %802 = vmatprep.subr.bf16.mxu0 0
    %803 = vmatpush1.bf16.xpose.msra.mxu0 %v786
    %804 = vmatprep.subr.bf16.mxu0 0
    %805 = vmatpush2.bf16.xpose.msra.mxu0 0
    %806 = vmatprep.subr.bf16.mxu0 0
    %807 = vmatpush2.bf16.xpose.msra.mxu0 0
    %808 = vmatprep.subr.bf16.mxu0 0
    %809 = vmatpush2.bf16.xpose.msra.mxu0 0
    %810 = vmatprep.subr.bf16.mxu0 0
    %811 = vmatpush2.bf16.xpose.msra.mxu0 0
    %812 = vmatprep.subr.bf16.mxu0 0
    %813 = vmatpush2.bf16.xpose.msra.mxu0 0
    %814 = vmatprep.subr.bf16.mxu0 0
    %815 = vmatpush2.bf16.xpose.msra.mxu0 0
    %816 = vmatprep.subr.bf16.mxu0 0
    %817 = vmatpush2.bf16.xpose.msra.mxu0 0
    %818 = vmatprep.subr.bf16.mxu0 0
    %819 = vmatpush2.bf16.xpose.msra.mxu0 0
    %820 = vmatprep.mubr.bf16.mxu0 0
    %821 = vmatmul.mubr.bf16.gmra.mxu0 %v783
    %v822 = vpop.f32.mrf.mxu0
    %v823 = vadd.f32 %v505, %v822
    %v824 = vpop.f32.mrf.mxu0
    %v825 = vpop.f32.mrf.mxu0
    %v826 = vpop.f32.mrf.mxu0
    %827 = vdwg.mxu0
    %v828 = vsel %vm511, %v773, -inf
    %829 = vmax.xlane.f32.xlu0 %v828
    %v830 = vpop.xlane.xlu0 %829
    %v831 = vsel %vm511, %v823, -inf
    %832 = vmax.xlane.f32.xlu0 %v831
    %v833 = vpop.xlane.xlu0 %832
    %v834 = vsub.f32 %v773, %v830
    %v835 = vsub.f32 %v823, %v833
    %v836 = vmul.f32 %v834, 1.442695
    %v837 = vpow.pop %v836
    %v838 = vmul.f32 %v835, 1.442695
    %v839 = vpow.pop %v838
    %v840 = vsel %vm511, %v837, 0.0
    %841 = vadd.xlane.f32.xlu0 %v840
    %v842 = vpop.xlane.xlu0 %841
    %v843 = vsel %vm511, %v839, 0.0
    %844 = vadd.xlane.f32.xlu0 %v843
    %v845 = vpop.xlane.xlu0 %844
    %v846 = vrcp.pop %v842
    %v847 = vrcp.pop %v845
    %v848 = vmul.f32 %v837, %v846
    %v849 = vmul.f32 %v839, %v847
    %v850 = vpack.c.bf16 %v848, %v848
    %v851 = vpack.c.bf16 %v849, %v849
    %852 = vrot.lane.b32.xlu0 %v496, 56
    %v853 = vpop.permute.xlu0 %852
    %v855 = vsel %vm511, %v850, 0
    %v858 = vsel %vm636, %v853, 0
    %860 = vmatprep.subr.bf16.mxu0 0
    %861 = vmatpush1.bf16.msra.mxu0 0
    %862 = vmatprep.subr.bf16.mxu0 0
    %863 = vmatpush1.bf16.msra.mxu0 0
    %864 = vmatprep.subr.bf16.mxu0 0
    %865 = vmatpush1.bf16.msra.mxu0 0
    %866 = vmatprep.subr.bf16.mxu0 0
    %867 = vmatpush1.bf16.msra.mxu0 0
    %868 = vmatprep.subr.bf16.mxu0 0
    %869 = vmatpush1.bf16.msra.mxu0 0
    %870 = vmatprep.subr.bf16.mxu0 0
    %871 = vmatpush1.bf16.msra.mxu0 0
    %872 = vmatprep.subr.bf16.mxu0 0
    %873 = vmatpush1.bf16.msra.mxu0 0
    %874 = vmatprep.subr.bf16.mxu0 0
    %875 = vmatpush1.bf16.msra.mxu0 %v858
    %876 = vmatprep.subr.bf16.mxu0 0
    %877 = vmatpush2.bf16.msra.mxu0 0
    %878 = vmatprep.subr.bf16.mxu0 0
    %879 = vmatpush2.bf16.msra.mxu0 0
    %880 = vmatprep.subr.bf16.mxu0 0
    %881 = vmatpush2.bf16.msra.mxu0 0
    %882 = vmatprep.subr.bf16.mxu0 0
    %883 = vmatpush2.bf16.msra.mxu0 0
    %884 = vmatprep.subr.bf16.mxu0 0
    %885 = vmatpush2.bf16.msra.mxu0 0
    %886 = vmatprep.subr.bf16.mxu0 0
    %887 = vmatpush2.bf16.msra.mxu0 0
    %888 = vmatprep.subr.bf16.mxu0 0
    %889 = vmatpush2.bf16.msra.mxu0 0
    %890 = vmatprep.subr.bf16.mxu0 0
    %891 = vmatpush2.bf16.msra.mxu0 0
    %892 = vmatprep.mubr.bf16.mxu0 0
    %893 = vmatmul.mubr.bf16.gmra.mxu0 %v855
    %v894 = vpop.f32.mrf.mxu0
    %v895 = vadd.f32 0.0, %v894
    %v896 = vpop.f32.mrf.mxu0
    %v897 = vpop.f32.mrf.mxu0
    %v898 = vpop.f32.mrf.mxu0
    %899 = vdwg.mxu0
    %900 = vrot.lane.b32.xlu0 %v497, 56
    %v901 = vpop.permute.xlu0 %900
    %v903 = vsel %vm511, %v851, 0
    %v906 = vsel %vm636, %v901, 0
    %908 = vmatprep.subr.bf16.mxu0 0
    %909 = vmatpush1.bf16.msra.mxu0 0
    %910 = vmatprep.subr.bf16.mxu0 0
    %911 = vmatpush1.bf16.msra.mxu0 0
    %912 = vmatprep.subr.bf16.mxu0 0
    %913 = vmatpush1.bf16.msra.mxu0 0
    %914 = vmatprep.subr.bf16.mxu0 0
    %915 = vmatpush1.bf16.msra.mxu0 0
    %916 = vmatprep.subr.bf16.mxu0 0
    %917 = vmatpush1.bf16.msra.mxu0 0
    %918 = vmatprep.subr.bf16.mxu0 0
    %919 = vmatpush1.bf16.msra.mxu0 0
    %920 = vmatprep.subr.bf16.mxu0 0
    %921 = vmatpush1.bf16.msra.mxu0 0
    %922 = vmatprep.subr.bf16.mxu0 0
    %923 = vmatpush1.bf16.msra.mxu0 %v906
    %924 = vmatprep.subr.bf16.mxu0 0
    %925 = vmatpush2.bf16.msra.mxu0 0
    %926 = vmatprep.subr.bf16.mxu0 0
    %927 = vmatpush2.bf16.msra.mxu0 0
    %928 = vmatprep.subr.bf16.mxu0 0
    %929 = vmatpush2.bf16.msra.mxu0 0
    %930 = vmatprep.subr.bf16.mxu0 0
    %931 = vmatpush2.bf16.msra.mxu0 0
    %932 = vmatprep.subr.bf16.mxu0 0
    %933 = vmatpush2.bf16.msra.mxu0 0
    %934 = vmatprep.subr.bf16.mxu0 0
    %935 = vmatpush2.bf16.msra.mxu0 0
    %936 = vmatprep.subr.bf16.mxu0 0
    %937 = vmatpush2.bf16.msra.mxu0 0
    %938 = vmatprep.subr.bf16.mxu0 0
    %939 = vmatpush2.bf16.msra.mxu0 0
    %940 = vmatprep.mubr.bf16.mxu0 0
    %941 = vmatmul.mubr.bf16.gmra.mxu0 %v903
    %v942 = vpop.f32.mrf.mxu0
    %v943 = vadd.f32 0.0, %v942
    %v944 = vpop.f32.mrf.mxu0
    %v945 = vpop.f32.mrf.mxu0
    %v946 = vpop.f32.mrf.mxu0
    %947 = vdwg.mxu0
    %948 = vrot.lane.b32.xlu0 %v496, 112
    %v949 = vpop.permute.xlu0 %948
    %950 = vrot.lane.b32.xlu0 %v496, 80
    %v951 = vpop.permute.xlu0 %950
    %v953 = vsel %vm511, %v949, 0
    %v956 = vsel %vm511, %v951, 0
    %958 = vmatprep.subr.bf16.mxu0 0
    %959 = vmatpush1.bf16.xpose.msra.mxu0 0
    %960 = vmatprep.subr.bf16.mxu0 0
    %961 = vmatpush1.bf16.xpose.msra.mxu0 0
    %962 = vmatprep.subr.bf16.mxu0 0
    %963 = vmatpush1.bf16.xpose.msra.mxu0 0
    %964 = vmatprep.subr.bf16.mxu0 0
    %965 = vmatpush1.bf16.xpose.msra.mxu0 0
    %966 = vmatprep.subr.bf16.mxu0 0
    %967 = vmatpush1.bf16.xpose.msra.mxu0 0
    %968 = vmatprep.subr.bf16.mxu0 0
    %969 = vmatpush1.bf16.xpose.msra.mxu0 0
    %970 = vmatprep.subr.bf16.mxu0 0
    %971 = vmatpush1.bf16.xpose.msra.mxu0 0
    %972 = vmatprep.subr.bf16.mxu0 0
    %973 = vmatpush1.bf16.xpose.msra.mxu0 %v956
    %974 = vmatprep.subr.bf16.mxu0 0
    %975 = vmatpush2.bf16.xpose.msra.mxu0 0
    %976 = vmatprep.subr.bf16.mxu0 0
    %977 = vmatpush2.bf16.xpose.msra.mxu0 0
    %978 = vmatprep.subr.bf16.mxu0 0
    %979 = vmatpush2.bf16.xpose.msra.mxu0 0
    %980 = vmatprep.subr.bf16.mxu0 0
    %981 = vmatpush2.bf16.xpose.msra.mxu0 0
    %982 = vmatprep.subr.bf16.mxu0 0
    %983 = vmatpush2.bf16.xpose.msra.mxu0 0
    %984 = vmatprep.subr.bf16.mxu0 0
    %985 = vmatpush2.bf16.xpose.msra.mxu0 0
    %986 = vmatprep.subr.bf16.mxu0 0
    %987 = vmatpush2.bf16.xpose.msra.mxu0 0
    %988 = vmatprep.subr.bf16.mxu0 0
    %989 = vmatpush2.bf16.xpose.msra.mxu0 0
    %990 = vmatprep.mubr.bf16.mxu0 0
    %991 = vmatmul.mubr.bf16.gmra.mxu0 %v953
    %v992 = vpop.f32.mrf.mxu0
    %v993 = vadd.f32 %v501, %v992
    %v994 = vpop.f32.mrf.mxu0
    %v995 = vpop.f32.mrf.mxu0
    %v996 = vpop.f32.mrf.mxu0
    %997 = vdwg.mxu0
    %998 = vrot.lane.b32.xlu0 %v497, 112
    %v999 = vpop.permute.xlu0 %998
    %1000 = vrot.lane.b32.xlu0 %v497, 80
    %v1001 = vpop.permute.xlu0 %1000
    %v1003 = vsel %vm511, %v999, 0
    %v1006 = vsel %vm511, %v1001, 0
    %1008 = vmatprep.subr.bf16.mxu0 0
    %1009 = vmatpush1.bf16.xpose.msra.mxu0 0
    %1010 = vmatprep.subr.bf16.mxu0 0
    %1011 = vmatpush1.bf16.xpose.msra.mxu0 0
    %1012 = vmatprep.subr.bf16.mxu0 0
    %1013 = vmatpush1.bf16.xpose.msra.mxu0 0
    %1014 = vmatprep.subr.bf16.mxu0 0
    %1015 = vmatpush1.bf16.xpose.msra.mxu0 0
    %1016 = vmatprep.subr.bf16.mxu0 0
    %1017 = vmatpush1.bf16.xpose.msra.mxu0 0
    %1018 = vmatprep.subr.bf16.mxu0 0
    %1019 = vmatpush1.bf16.xpose.msra.mxu0 0
    %1020 = vmatprep.subr.bf16.mxu0 0
    %1021 = vmatpush1.bf16.xpose.msra.mxu0 0
    %1022 = vmatprep.subr.bf16.mxu0 0
    %1023 = vmatpush1.bf16.xpose.msra.mxu0 %v1006
    %1024 = vmatprep.subr.bf16.mxu0 0
    %1025 = vmatpush2.bf16.xpose.msra.mxu0 0
    %1026 = vmatprep.subr.bf16.mxu0 0
    %1027 = vmatpush2.bf16.xpose.msra.mxu0 0
    %1028 = vmatprep.subr.bf16.mxu0 0
    %1029 = vmatpush2.bf16.xpose.msra.mxu0 0
    %1030 = vmatprep.subr.bf16.mxu0 0
    %1031 = vmatpush2.bf16.xpose.msra.mxu0 0
    %1032 = vmatprep.subr.bf16.mxu0 0
    %1033 = vmatpush2.bf16.xpose.msra.mxu0 0
    %1034 = vmatprep.subr.bf16.mxu0 0
    %1035 = vmatpush2.bf16.xpose.msra.mxu0 0
    %1036 = vmatprep.subr.bf16.mxu0 0
    %1037 = vmatpush2.bf16.xpose.msra.mxu0 0
    %1038 = vmatprep.subr.bf16.mxu0 0
    %1039 = vmatpush2.bf16.xpose.msra.mxu0 0
    %1040 = vmatprep.mubr.bf16.mxu0 0
    %1041 = vmatmul.mubr.bf16.gmra.mxu0 %v1003
    %v1042 = vpop.f32.mrf.mxu0
    %v1043 = vadd.f32 %v505, %v1042
    %v1044 = vpop.f32.mrf.mxu0
    %v1045 = vpop.f32.mrf.mxu0
    %v1046 = vpop.f32.mrf.mxu0
    %1047 = vdwg.mxu0
    %v1048 = vsel %vm511, %v993, -inf
    %1049 = vmax.xlane.f32.xlu0 %v1048
    %v1050 = vpop.xlane.xlu0 %1049
    %v1051 = vsel %vm511, %v1043, -inf
    %1052 = vmax.xlane.f32.xlu0 %v1051
    %v1053 = vpop.xlane.xlu0 %1052
    %v1054 = vsub.f32 %v993, %v1050
    %v1055 = vsub.f32 %v1043, %v1053
    %v1056 = vmul.f32 %v1054, 1.442695
    %v1057 = vpow.pop %v1056
    %v1058 = vmul.f32 %v1055, 1.442695
    %v1059 = vpow.pop %v1058
    %v1060 = vsel %vm511, %v1057, 0.0
    %1061 = vadd.xlane.f32.xlu0 %v1060
    %v1062 = vpop.xlane.xlu0 %1061
    %v1063 = vsel %vm511, %v1059, 0.0
    %1064 = vadd.xlane.f32.xlu0 %v1063
    %v1065 = vpop.xlane.xlu0 %1064
    %v1066 = vrcp.pop %v1062
    %v1067 = vrcp.pop %v1065
    %v1068 = vmul.f32 %v1057, %v1066
    %v1069 = vmul.f32 %v1059, %v1067
    %v1070 = vpack.c.bf16 %v1068, %v1068
    %v1071 = vpack.c.bf16 %v1069, %v1069
    %1072 = vrot.lane.b32.xlu0 %v496, 48
    %v1073 = vpop.permute.xlu0 %1072
    %v1075 = vsel %vm511, %v1070, 0
    %v1078 = vsel %vm636, %v1073, 0
    %1080 = vmatprep.subr.bf16.mxu0 0
    %1081 = vmatpush1.bf16.msra.mxu0 0
    %1082 = vmatprep.subr.bf16.mxu0 0
    %1083 = vmatpush1.bf16.msra.mxu0 0
    %1084 = vmatprep.subr.bf16.mxu0 0
    %1085 = vmatpush1.bf16.msra.mxu0 0
    %1086 = vmatprep.subr.bf16.mxu0 0
    %1087 = vmatpush1.bf16.msra.mxu0 0
    %1088 = vmatprep.subr.bf16.mxu0 0
    %1089 = vmatpush1.bf16.msra.mxu0 0
    %1090 = vmatprep.subr.bf16.mxu0 0
    %1091 = vmatpush1.bf16.msra.mxu0 0
    %1092 = vmatprep.subr.bf16.mxu0 0
    %1093 = vmatpush1.bf16.msra.mxu0 0
    %1094 = vmatprep.subr.bf16.mxu0 0
    %1095 = vmatpush1.bf16.msra.mxu0 %v1078
    %1096 = vmatprep.subr.bf16.mxu0 0
    %1097 = vmatpush2.bf16.msra.mxu0 0
    %1098 = vmatprep.subr.bf16.mxu0 0
    %1099 = vmatpush2.bf16.msra.mxu0 0
    %1100 = vmatprep.subr.bf16.mxu0 0
    %1101 = vmatpush2.bf16.msra.mxu0 0
    %1102 = vmatprep.subr.bf16.mxu0 0
    %1103 = vmatpush2.bf16.msra.mxu0 0
    %1104 = vmatprep.subr.bf16.mxu0 0
    %1105 = vmatpush2.bf16.msra.mxu0 0
    %1106 = vmatprep.subr.bf16.mxu0 0
    %1107 = vmatpush2.bf16.msra.mxu0 0
    %1108 = vmatprep.subr.bf16.mxu0 0
    %1109 = vmatpush2.bf16.msra.mxu0 0
    %1110 = vmatprep.subr.bf16.mxu0 0
    %1111 = vmatpush2.bf16.msra.mxu0 0
    %1112 = vmatprep.mubr.bf16.mxu0 0
    %1113 = vmatmul.mubr.bf16.gmra.mxu0 %v1075
    %v1114 = vpop.f32.mrf.mxu0
    %v1115 = vadd.f32 0.0, %v1114
    %v1116 = vpop.f32.mrf.mxu0
    %v1117 = vpop.f32.mrf.mxu0
    %v1118 = vpop.f32.mrf.mxu0
    %1119 = vdwg.mxu0
    %1120 = vrot.lane.b32.xlu0 %v497, 48
    %v1121 = vpop.permute.xlu0 %1120
    %v1123 = vsel %vm511, %v1071, 0
    %v1126 = vsel %vm636, %v1121, 0
    %1128 = vmatprep.subr.bf16.mxu0 0
    %1129 = vmatpush1.bf16.msra.mxu0 0
    %1130 = vmatprep.subr.bf16.mxu0 0
    %1131 = vmatpush1.bf16.msra.mxu0 0
    %1132 = vmatprep.subr.bf16.mxu0 0
    %1133 = vmatpush1.bf16.msra.mxu0 0
    %1134 = vmatprep.subr.bf16.mxu0 0
    %1135 = vmatpush1.bf16.msra.mxu0 0
    %1136 = vmatprep.subr.bf16.mxu0 0
    %1137 = vmatpush1.bf16.msra.mxu0 0
    %1138 = vmatprep.subr.bf16.mxu0 0
    %1139 = vmatpush1.bf16.msra.mxu0 0
    %1140 = vmatprep.subr.bf16.mxu0 0
    %1141 = vmatpush1.bf16.msra.mxu0 0
    %1142 = vmatprep.subr.bf16.mxu0 0
    %1143 = vmatpush1.bf16.msra.mxu0 %v1126
    %1144 = vmatprep.subr.bf16.mxu0 0
    %1145 = vmatpush2.bf16.msra.mxu0 0
    %1146 = vmatprep.subr.bf16.mxu0 0
    %1147 = vmatpush2.bf16.msra.mxu0 0
    %1148 = vmatprep.subr.bf16.mxu0 0
    %1149 = vmatpush2.bf16.msra.mxu0 0
    %1150 = vmatprep.subr.bf16.mxu0 0
    %1151 = vmatpush2.bf16.msra.mxu0 0
    %1152 = vmatprep.subr.bf16.mxu0 0
    %1153 = vmatpush2.bf16.msra.mxu0 0
    %1154 = vmatprep.subr.bf16.mxu0 0
    %1155 = vmatpush2.bf16.msra.mxu0 0
    %1156 = vmatprep.subr.bf16.mxu0 0
    %1157 = vmatpush2.bf16.msra.mxu0 0
    %1158 = vmatprep.subr.bf16.mxu0 0
    %1159 = vmatpush2.bf16.msra.mxu0 0
    %1160 = vmatprep.mubr.bf16.mxu0 0
    %1161 = vmatmul.mubr.bf16.gmra.mxu0 %v1123
    %v1162 = vpop.f32.mrf.mxu0
    %v1163 = vadd.f32 0.0, %v1162
    %v1164 = vpop.f32.mrf.mxu0
    %v1165 = vpop.f32.mrf.mxu0
    %v1166 = vpop.f32.mrf.mxu0
    %1167 = vdwg.mxu0
    %1168 = vrot.lane.b32.xlu0 %v496, 104
    %v1169 = vpop.permute.xlu0 %1168
    %1170 = vrot.lane.b32.xlu0 %v496, 72
    %v1171 = vpop.permute.xlu0 %1170
    %v1173 = vsel %vm511, %v1169, 0
    %v1176 = vsel %vm511, %v1171, 0
    %1178 = vmatprep.subr.bf16.mxu0 0
    %1179 = vmatpush1.bf16.xpose.msra.mxu0 0
    %1180 = vmatprep.subr.bf16.mxu0 0
    %1181 = vmatpush1.bf16.xpose.msra.mxu0 0
    %1182 = vmatprep.subr.bf16.mxu0 0
    %1183 = vmatpush1.bf16.xpose.msra.mxu0 0
    %1184 = vmatprep.subr.bf16.mxu0 0
    %1185 = vmatpush1.bf16.xpose.msra.mxu0 0
    %1186 = vmatprep.subr.bf16.mxu0 0
    %1187 = vmatpush1.bf16.xpose.msra.mxu0 0
    %1188 = vmatprep.subr.bf16.mxu0 0
    %1189 = vmatpush1.bf16.xpose.msra.mxu0 0
    %1190 = vmatprep.subr.bf16.mxu0 0
    %1191 = vmatpush1.bf16.xpose.msra.mxu0 0
    %1192 = vmatprep.subr.bf16.mxu0 0
    %1193 = vmatpush1.bf16.xpose.msra.mxu0 %v1176
    %1194 = vmatprep.subr.bf16.mxu0 0
    %1195 = vmatpush2.bf16.xpose.msra.mxu0 0
    %1196 = vmatprep.subr.bf16.mxu0 0
    %1197 = vmatpush2.bf16.xpose.msra.mxu0 0
    %1198 = vmatprep.subr.bf16.mxu0 0
    %1199 = vmatpush2.bf16.xpose.msra.mxu0 0
    %1200 = vmatprep.subr.bf16.mxu0 0
    %1201 = vmatpush2.bf16.xpose.msra.mxu0 0
    %1202 = vmatprep.subr.bf16.mxu0 0
    %1203 = vmatpush2.bf16.xpose.msra.mxu0 0
    %1204 = vmatprep.subr.bf16.mxu0 0
    %1205 = vmatpush2.bf16.xpose.msra.mxu0 0
    %1206 = vmatprep.subr.bf16.mxu0 0
    %1207 = vmatpush2.bf16.xpose.msra.mxu0 0
    %1208 = vmatprep.subr.bf16.mxu0 0
    %1209 = vmatpush2.bf16.xpose.msra.mxu0 0
    %1210 = vmatprep.mubr.bf16.mxu0 0
    %1211 = vmatmul.mubr.bf16.gmra.mxu0 %v1173
    %v1212 = vpop.f32.mrf.mxu0
    %v1213 = vadd.f32 %v501, %v1212
    %v1214 = vpop.f32.mrf.mxu0
    %v1215 = vpop.f32.mrf.mxu0
    %v1216 = vpop.f32.mrf.mxu0
    %1217 = vdwg.mxu0
    %1218 = vrot.lane.b32.xlu0 %v497, 104
    %v1219 = vpop.permute.xlu0 %1218
    %1220 = vrot.lane.b32.xlu0 %v497, 72
    %v1221 = vpop.permute.xlu0 %1220
    %v1223 = vsel %vm511, %v1219, 0
    %v1226 = vsel %vm511, %v1221, 0
    %1228 = vmatprep.subr.bf16.mxu0 0
    %1229 = vmatpush1.bf16.xpose.msra.mxu0 0
    %1230 = vmatprep.subr.bf16.mxu0 0
    %1231 = vmatpush1.bf16.xpose.msra.mxu0 0
    %1232 = vmatprep.subr.bf16.mxu0 0
    %1233 = vmatpush1.bf16.xpose.msra.mxu0 0
    %1234 = vmatprep.subr.bf16.mxu0 0
    %1235 = vmatpush1.bf16.xpose.msra.mxu0 0
    %1236 = vmatprep.subr.bf16.mxu0 0
    %1237 = vmatpush1.bf16.xpose.msra.mxu0 0
    %1238 = vmatprep.subr.bf16.mxu0 0
    %1239 = vmatpush1.bf16.xpose.msra.mxu0 0
    %1240 = vmatprep.subr.bf16.mxu0 0
    %1241 = vmatpush1.bf16.xpose.msra.mxu0 0
    %1242 = vmatprep.subr.bf16.mxu0 0
    %1243 = vmatpush1.bf16.xpose.msra.mxu0 %v1226
    %1244 = vmatprep.subr.bf16.mxu0 0
    %1245 = vmatpush2.bf16.xpose.msra.mxu0 0
    %1246 = vmatprep.subr.bf16.mxu0 0
    %1247 = vmatpush2.bf16.xpose.msra.mxu0 0
    %1248 = vmatprep.subr.bf16.mxu0 0
    %1249 = vmatpush2.bf16.xpose.msra.mxu0 0
    %1250 = vmatprep.subr.bf16.mxu0 0
    %1251 = vmatpush2.bf16.xpose.msra.mxu0 0
    %1252 = vmatprep.subr.bf16.mxu0 0
    %1253 = vmatpush2.bf16.xpose.msra.mxu0 0
    %1254 = vmatprep.subr.bf16.mxu0 0
    %1255 = vmatpush2.bf16.xpose.msra.mxu0 0
    %1256 = vmatprep.subr.bf16.mxu0 0
    %1257 = vmatpush2.bf16.xpose.msra.mxu0 0
    %1258 = vmatprep.subr.bf16.mxu0 0
    %1259 = vmatpush2.bf16.xpose.msra.mxu0 0
    %1260 = vmatprep.mubr.bf16.mxu0 0
    %1261 = vmatmul.mubr.bf16.gmra.mxu0 %v1223
    %v1262 = vpop.f32.mrf.mxu0
    %v1263 = vadd.f32 %v505, %v1262
    %v1264 = vpop.f32.mrf.mxu0
    %v1265 = vpop.f32.mrf.mxu0
    %v1266 = vpop.f32.mrf.mxu0
    %1267 = vdwg.mxu0
    %v1268 = vsel %vm511, %v1213, -inf
    %1269 = vmax.xlane.f32.xlu0 %v1268
    %v1270 = vpop.xlane.xlu0 %1269
    %v1271 = vsel %vm511, %v1263, -inf
    %1272 = vmax.xlane.f32.xlu0 %v1271
    %v1273 = vpop.xlane.xlu0 %1272
    %v1274 = vsub.f32 %v1213, %v1270
    %v1275 = vsub.f32 %v1263, %v1273
    %v1276 = vmul.f32 %v1274, 1.442695
    %v1277 = vpow.pop %v1276
    %v1278 = vmul.f32 %v1275, 1.442695
    %v1279 = vpow.pop %v1278
    %v1280 = vsel %vm511, %v1277, 0.0
    %1281 = vadd.xlane.f32.xlu0 %v1280
    %v1282 = vpop.xlane.xlu0 %1281
    %v1283 = vsel %vm511, %v1279, 0.0
    %1284 = vadd.xlane.f32.xlu0 %v1283
    %v1285 = vpop.xlane.xlu0 %1284
    %v1286 = vrcp.pop %v1282
    %v1287 = vrcp.pop %v1285
    %v1288 = vmul.f32 %v1277, %v1286
    %v1289 = vmul.f32 %v1279, %v1287
    %v1290 = vpack.c.bf16 %v1288, %v1288
    %v1291 = vpack.c.bf16 %v1289, %v1289
    %1292 = vrot.lane.b32.xlu0 %v496, 40
    %v1293 = vpop.permute.xlu0 %1292
    %v1295 = vsel %vm511, %v1290, 0
    %v1298 = vsel %vm636, %v1293, 0
    %1300 = vmatprep.subr.bf16.mxu0 0
    %1301 = vmatpush1.bf16.msra.mxu0 0
    %1302 = vmatprep.subr.bf16.mxu0 0
    %1303 = vmatpush1.bf16.msra.mxu0 0
    %1304 = vmatprep.subr.bf16.mxu0 0
    %1305 = vmatpush1.bf16.msra.mxu0 0
    %1306 = vmatprep.subr.bf16.mxu0 0
    %1307 = vmatpush1.bf16.msra.mxu0 0
    %1308 = vmatprep.subr.bf16.mxu0 0
    %1309 = vmatpush1.bf16.msra.mxu0 0
    %1310 = vmatprep.subr.bf16.mxu0 0
    %1311 = vmatpush1.bf16.msra.mxu0 0
    %1312 = vmatprep.subr.bf16.mxu0 0
    %1313 = vmatpush1.bf16.msra.mxu0 0
    %1314 = vmatprep.subr.bf16.mxu0 0
    %1315 = vmatpush1.bf16.msra.mxu0 %v1298
    %1316 = vmatprep.subr.bf16.mxu0 0
    %1317 = vmatpush2.bf16.msra.mxu0 0
    %1318 = vmatprep.subr.bf16.mxu0 0
    %1319 = vmatpush2.bf16.msra.mxu0 0
    %1320 = vmatprep.subr.bf16.mxu0 0
    %1321 = vmatpush2.bf16.msra.mxu0 0
    %1322 = vmatprep.subr.bf16.mxu0 0
    %1323 = vmatpush2.bf16.msra.mxu0 0
    %1324 = vmatprep.subr.bf16.mxu0 0
    %1325 = vmatpush2.bf16.msra.mxu0 0
    %1326 = vmatprep.subr.bf16.mxu0 0
    %1327 = vmatpush2.bf16.msra.mxu0 0
    %1328 = vmatprep.subr.bf16.mxu0 0
    %1329 = vmatpush2.bf16.msra.mxu0 0
    %1330 = vmatprep.subr.bf16.mxu0 0
    %1331 = vmatpush2.bf16.msra.mxu0 0
    %1332 = vmatprep.mubr.bf16.mxu0 0
    %1333 = vmatmul.mubr.bf16.gmra.mxu0 %v1295
    %v1334 = vpop.f32.mrf.mxu0
    %v1335 = vadd.f32 0.0, %v1334
    %v1336 = vpop.f32.mrf.mxu0
    %v1337 = vpop.f32.mrf.mxu0
    %v1338 = vpop.f32.mrf.mxu0
    %1339 = vdwg.mxu0
    %1340 = vrot.lane.b32.xlu0 %v497, 40
    %v1341 = vpop.permute.xlu0 %1340
    %v1343 = vsel %vm511, %v1291, 0
    %v1346 = vsel %vm636, %v1341, 0
    %1348 = vmatprep.subr.bf16.mxu0 0
    %1349 = vmatpush1.bf16.msra.mxu0 0
    %1350 = vmatprep.subr.bf16.mxu0 0
    %1351 = vmatpush1.bf16.msra.mxu0 0
    %1352 = vmatprep.subr.bf16.mxu0 0
    %1353 = vmatpush1.bf16.msra.mxu0 0
    %1354 = vmatprep.subr.bf16.mxu0 0
    %1355 = vmatpush1.bf16.msra.mxu0 0
    %1356 = vmatprep.subr.bf16.mxu0 0
    %1357 = vmatpush1.bf16.msra.mxu0 0
    %1358 = vmatprep.subr.bf16.mxu0 0
    %1359 = vmatpush1.bf16.msra.mxu0 0
    %1360 = vmatprep.subr.bf16.mxu0 0
    %1361 = vmatpush1.bf16.msra.mxu0 0
    %1362 = vmatprep.subr.bf16.mxu0 0
    %1363 = vmatpush1.bf16.msra.mxu0 %v1346
    %1364 = vmatprep.subr.bf16.mxu0 0
    %1365 = vmatpush2.bf16.msra.mxu0 0
    %1366 = vmatprep.subr.bf16.mxu0 0
    %1367 = vmatpush2.bf16.msra.mxu0 0
    %1368 = vmatprep.subr.bf16.mxu0 0
    %1369 = vmatpush2.bf16.msra.mxu0 0
    %1370 = vmatprep.subr.bf16.mxu0 0
    %1371 = vmatpush2.bf16.msra.mxu0 0
    %1372 = vmatprep.subr.bf16.mxu0 0
    %1373 = vmatpush2.bf16.msra.mxu0 0
    %1374 = vmatprep.subr.bf16.mxu0 0
    %1375 = vmatpush2.bf16.msra.mxu0 0
    %1376 = vmatprep.subr.bf16.mxu0 0
    %1377 = vmatpush2.bf16.msra.mxu0 0
    %1378 = vmatprep.subr.bf16.mxu0 0
    %1379 = vmatpush2.bf16.msra.mxu0 0
    %1380 = vmatprep.mubr.bf16.mxu0 0
    %1381 = vmatmul.mubr.bf16.gmra.mxu0 %v1343
    %v1382 = vpop.f32.mrf.mxu0
    %v1383 = vadd.f32 0.0, %v1382
    %v1384 = vpop.f32.mrf.mxu0
    %v1385 = vpop.f32.mrf.mxu0
    %v1386 = vpop.f32.mrf.mxu0
    %1387 = vdwg.mxu0
    %1390 = vrot.lane.b32.xlu0 %v895, 8
    %v1391 = vpop.permute.xlu0 %1390
    %1392 = vrot.lane.b32.xlu0 %v943, 8
    %v1393 = vpop.permute.xlu0 %1392
    %1398 = vrot.lane.b32.xlu0 %v1115, 16
    %v1399 = vpop.permute.xlu0 %1398
    %1400 = vrot.lane.b32.xlu0 %v1163, 16
    %v1401 = vpop.permute.xlu0 %1400
    %1406 = vrot.lane.b32.xlu0 %v1335, 24
    %v1407 = vpop.permute.xlu0 %1406
    %1408 = vrot.lane.b32.xlu0 %v1383, 24
    %v1409 = vpop.permute.xlu0 %1408
    %v1412 = vsel %vm511, %v675, %v1391
    %v1413 = vsel %vm511, %v723, %v1393
    %vm1414 = vcmask 130048
    %v1415 = vsel %vm1414, %v1412, %v1399
    %v1416 = vsel %vm1414, %v1413, %v1401
    %vm1417 = vcmask 195584
    %v1418 = vsel %vm1417, %v1415, %v1407
    %v1419 = vsel %vm1417, %v1416, %v1409
    %v1420 = vpack.c.bf16 %v1419, %v1418
    %v1421 = vlaneseq
    %v1422 = vshrl.u32 %v1421, 7
    %v1423 = vsub.s32 1, %v1422
    %v1424 = vrot.slane %v401, %v1423
    %v1429 = vunpack.c.l.b16 %v365
    %v1430 = vunpack.c.l.b16 %v366
    %v1431 = vunpack.c.l.b16 %v367
    %v1432 = vunpack.c.l.b16 %v368
    %v1433 = vpack.c.b16 %v1430, %v1429
    %v1434 = vpack.c.b16 %v1432, %v1431
    %vm1437 = vcmask 261120
    %v1439 = vsel %vm1437, %v1420, 0
    %1441 = vmatprep.subr.bf16.mxu0 0
    %1442 = vmatpush1.bf16.msra.mxu0 0
    %1443 = vmatprep.subr.bf16.mxu0 0
    %1444 = vmatpush1.bf16.msra.mxu0 0
    %1445 = vmatprep.subr.bf16.mxu0 0
    %1446 = vmatpush1.bf16.msra.mxu0 0
    %1447 = vmatprep.subr.bf16.mxu0 0
    %1448 = vmatpush1.bf16.msra.mxu0 0
    %1449 = vmatprep.subr.bf16.mxu0 0
    %1450 = vmatpush1.bf16.msra.mxu0 0
    %1451 = vmatprep.subr.bf16.mxu0 0
    %1452 = vmatpush1.bf16.msra.mxu0 0
    %1453 = vmatprep.subr.bf16.mxu0 0
    %1454 = vmatpush1.bf16.msra.mxu0 %v1434
    %1455 = vmatprep.subr.bf16.mxu0 0
    %1456 = vmatpush1.bf16.msra.mxu0 %v1433
    %1457 = vmatprep.subr.bf16.mxu0 0
    %1458 = vmatpush2.bf16.msra.mxu0 0
    %1459 = vmatprep.subr.bf16.mxu0 0
    %1460 = vmatpush2.bf16.msra.mxu0 0
    %1461 = vmatprep.subr.bf16.mxu0 0
    %1462 = vmatpush2.bf16.msra.mxu0 0
    %1463 = vmatprep.subr.bf16.mxu0 0
    %1464 = vmatpush2.bf16.msra.mxu0 0
    %1465 = vmatprep.subr.bf16.mxu0 0
    %1466 = vmatpush2.bf16.msra.mxu0 0
    %1467 = vmatprep.subr.bf16.mxu0 0
    %1468 = vmatpush2.bf16.msra.mxu0 0
    %1469 = vmatprep.subr.bf16.mxu0 0
    %1470 = vmatpush2.bf16.msra.mxu0 0
    %1471 = vmatprep.subr.bf16.mxu0 0
    %1472 = vmatpush2.bf16.msra.mxu0 0
    %1473 = vmatprep.mubr.bf16.mxu0 0
    %1474 = vmatmul.mubr.bf16.gmra.mxu0 %v1439
    %v1475 = vpop.f32.mrf.mxu0
    %v1476 = vadd.f32 %v1424, %v1475
    %v1477 = vpop.f32.mrf.mxu0
    %v1478 = vpop.f32.mrf.mxu0
    %v1479 = vadd.f32 %v1424, %v1478
    %v1480 = vpop.f32.mrf.mxu0
    %1481 = vdwg.mxu0
    %v1482 = vadd.f32 %v321, %v1476
    %v1483 = vadd.f32 %v322, %v1479
    %1484 = vadd.xlane.f32.xlu0 %v1482
    %v1485 = vpop.xlane.xlu0 %1484
    %1486 = vadd.xlane.f32.xlu0 %v1483
    %v1487 = vpop.xlane.xlu0 %1486
    %v1488 = vmul.f32 %v1485, 0.03125
    %v1489 = vmul.f32 %v1487, 0.03125
    %v1490 = vmul.f32 %v1482, %v1482
    %v1491 = vmul.f32 %v1483, %v1483
    %1492 = vadd.xlane.f32.xlu0 %v1490
    %v1493 = vpop.xlane.xlu0 %1492
    %1494 = vadd.xlane.f32.xlu0 %v1491
    %v1495 = vpop.xlane.xlu0 %1494
    %v1496 = vmul.f32 %v1493, 0.03125
    %v1497 = vmul.f32 %v1495, 0.03125
    %v1498 = vmul.f32 %v1488, %v1488
    %v1499 = vmul.f32 %v1489, %v1489
    %v1500 = vsub.f32 %v1496, %v1498
    %v1501 = vsub.f32 %v1497, %v1499
    %v1502 = vmax.f32 %v1500, 0.0
    %v1503 = vmax.f32 %v1501, 0.0
    %v1504 = vsub.f32 %v1482, %v1488
    %v1505 = vsub.f32 %v1483, %v1489
    %v1506 = vadd.f32 %v1502, 1e-12
    %v1507 = vadd.f32 %v1503, 1e-12
    %v1508 = vrsqrt.pop %v1506
    %v1509 = vrsqrt.pop %v1507
    %v1510 = vmul.f32 %v1504, %v1508
    %v1511 = vmul.f32 %v1505, %v1509
    %v1512 = vlaneseq
    %v1513 = vshrl.u32 %v1512, 7
    %v1514 = vsub.s32 4, %v1513
    %v1515 = vrot.slane %v401, %v1514
    %v1516 = vmul.f32 %v1510, %v1515
    %v1517 = vmul.f32 %v1511, %v1515
    %v1518 = vlaneseq
    %v1519 = vshrl.u32 %v1518, 7
    %v1520 = vsub.s32 5, %v1519
    %v1521 = vrot.slane %v401, %v1520
    %v1522 = vadd.f32 %v1516, %v1521
    %v1523 = vadd.f32 %v1517, %v1521
    %v1524 = vpack.c.bf16 %v1523, %v1522
    %v1525 = vlaneseq
    %v1526 = vshrl.u32 %v1525, 7
    %v1527 = vsub.s32 2, %v1526
    %v1528 = vrot.slane %v401, %v1527
    %v1545 = vunpack.c.l.b16 %v369
    %v1546 = vunpack.c.l.b16 %v370
    %v1547 = vunpack.c.l.b16 %v371
    %v1548 = vunpack.c.l.b16 %v372
    %v1549 = vunpack.c.l.b16 %v373
    %v1550 = vunpack.c.l.b16 %v374
    %v1551 = vunpack.c.l.b16 %v375
    %v1552 = vunpack.c.l.b16 %v376
    %v1553 = vunpack.c.l.b16 %v377
    %v1554 = vunpack.c.l.b16 %v378
    %v1555 = vunpack.c.l.b16 %v379
    %v1556 = vunpack.c.l.b16 %v380
    %v1557 = vunpack.c.l.b16 %v381
    %v1558 = vunpack.c.l.b16 %v382
    %v1559 = vunpack.c.l.b16 %v383
    %v1560 = vunpack.c.l.b16 %v384
    %v1561 = vpack.c.b16 %v1546, %v1545
    %v1562 = vpack.c.b16 %v1548, %v1547
    %v1563 = vpack.c.b16 %v1550, %v1549
    %v1564 = vpack.c.b16 %v1552, %v1551
    %v1565 = vpack.c.b16 %v1554, %v1553
    %v1566 = vpack.c.b16 %v1556, %v1555
    %v1567 = vpack.c.b16 %v1558, %v1557
    %v1568 = vpack.c.b16 %v1560, %v1559
    %1577 = vmatprep.subr.bf16.mxu0 0
    %1578 = vmatpush1.bf16.msra.mxu0 %v1568
    %1579 = vmatprep.subr.bf16.mxu0 0
    %1580 = vmatpush1.bf16.msra.mxu0 %v1567
    %1581 = vmatprep.subr.bf16.mxu0 0
    %1582 = vmatpush1.bf16.msra.mxu0 %v1566
    %1583 = vmatprep.subr.bf16.mxu0 0
    %1584 = vmatpush1.bf16.msra.mxu0 %v1565
    %1585 = vmatprep.subr.bf16.mxu0 0
    %1586 = vmatpush1.bf16.msra.mxu0 %v1564
    %1587 = vmatprep.subr.bf16.mxu0 0
    %1588 = vmatpush1.bf16.msra.mxu0 %v1563
    %1589 = vmatprep.subr.bf16.mxu0 0
    %1590 = vmatpush1.bf16.msra.mxu0 %v1562
    %1591 = vmatprep.subr.bf16.mxu0 0
    %1592 = vmatpush1.bf16.msra.mxu0 %v1561
    %1593 = vmatprep.subr.bf16.mxu0 0
    %1594 = vmatpush2.bf16.msra.mxu0 0
    %1595 = vmatprep.subr.bf16.mxu0 0
    %1596 = vmatpush2.bf16.msra.mxu0 0
    %1597 = vmatprep.subr.bf16.mxu0 0
    %1598 = vmatpush2.bf16.msra.mxu0 0
    %1599 = vmatprep.subr.bf16.mxu0 0
    %1600 = vmatpush2.bf16.msra.mxu0 0
    %1601 = vmatprep.subr.bf16.mxu0 0
    %1602 = vmatpush2.bf16.msra.mxu0 0
    %1603 = vmatprep.subr.bf16.mxu0 0
    %1604 = vmatpush2.bf16.msra.mxu0 0
    %1605 = vmatprep.subr.bf16.mxu0 0
    %1606 = vmatpush2.bf16.msra.mxu0 0
    %1607 = vmatprep.subr.bf16.mxu0 0
    %1608 = vmatpush2.bf16.msra.mxu0 0
    %1609 = vmatprep.mubr.bf16.mxu0 0
    %1610 = vmatmul.mubr.bf16.gmra.mxu0 %v1524
    %v1611 = vpop.f32.mrf.mxu0
    %v1612 = vadd.f32 %v1528, %v1611
    %v1613 = vpop.f32.mrf.mxu0
    %v1614 = vpop.f32.mrf.mxu0
    %v1615 = vadd.f32 %v1528, %v1614
    %v1616 = vpop.f32.mrf.mxu0
    %1617 = vdwg.mxu0
    %v1618 = vmul.f32 %v1612, 0.5
    %v1619 = vmul.f32 %v1615, 0.5
    %v1620 = vmul.f32 %v1612, 0.70710677
    %v1621 = vmul.f32 %v1615, 0.70710677
    %vm1622 = vcmp.lt.f32.partialorder %v1620, 0.0
    %vm1623 = vcmp.lt.f32.partialorder %v1621, 0.0
    %v1624 = vsel %vm1622, -1.0, 1.0
    %v1625 = vsel %vm1623, -1.0, 1.0
    %v1626 = vand.u32 2147483647, %v1620
    %v1627 = vand.u32 2147483647, %v1621
    %v1628 = vmul.f32 %v1626, 0.3275911
    %v1629 = vmul.f32 %v1627, 0.3275911
    %v1630 = vadd.f32 %v1628, 1.0
    %v1631 = vadd.f32 %v1629, 1.0
    %v1632 = vrcp.pop %v1630
    %v1633 = vrcp.pop %v1631
    %v1634 = vmul.f32 %v1632, 1.0614054
    %v1635 = vmul.f32 %v1633, 1.0614054
    %v1636 = vadd.f32 %v1634, -1.4531521
    %v1637 = vadd.f32 %v1635, -1.4531521
    %v1638 = vmul.f32 %v1636, %v1632
    %v1639 = vmul.f32 %v1637, %v1633
    %v1640 = vadd.f32 %v1638, 1.4214138
    %v1641 = vadd.f32 %v1639, 1.4214138
    %v1642 = vmul.f32 %v1640, %v1632
    %v1643 = vmul.f32 %v1641, %v1633
    %v1644 = vadd.f32 %v1642, -0.28449672
    %v1645 = vadd.f32 %v1643, -0.28449672
    %v1646 = vmul.f32 %v1644, %v1632
    %v1647 = vmul.f32 %v1645, %v1633
    %v1648 = vadd.f32 %v1646, 0.2548296
    %v1649 = vadd.f32 %v1647, 0.2548296
    %v1650 = vmul.f32 %v1648, %v1632
    %v1651 = vmul.f32 %v1649, %v1633
    %v1652 = vsub.f32 0.0, %v1626
    %v1653 = vsub.f32 0.0, %v1627
    %v1654 = vmul.f32 %v1652, %v1626
    %v1655 = vmul.f32 %v1653, %v1627
    %v1656 = vmul.f32 %v1654, 1.442695
    %v1657 = vpow.pop %v1656
    %v1658 = vmul.f32 %v1655, 1.442695
    %v1659 = vpow.pop %v1658
    %v1660 = vmul.f32 %v1650, %v1657
    %v1661 = vmul.f32 %v1651, %v1659
    %v1662 = vsub.f32 1.0, %v1660
    %v1663 = vsub.f32 1.0, %v1661
    %v1664 = vmul.f32 %v1624, %v1662
    %v1665 = vmul.f32 %v1625, %v1663
    %v1666 = vadd.f32 %v1664, 1.0
    %v1667 = vadd.f32 %v1665, 1.0
    %v1668 = vmul.f32 %v1618, %v1666
    %v1669 = vmul.f32 %v1619, %v1667
    %v1670 = vpack.c.bf16 %v1669, %v1668
    %v1671 = vlaneseq
    %v1672 = vshrl.u32 %v1671, 7
    %v1673 = vsub.s32 3, %v1672
    %v1674 = vrot.slane %v401, %v1673
    %v1691 = vunpack.c.l.b16 %v385
    %v1692 = vunpack.c.l.b16 %v386
    %v1693 = vunpack.c.l.b16 %v387
    %v1694 = vunpack.c.l.b16 %v388
    %v1695 = vunpack.c.l.b16 %v389
    %v1696 = vunpack.c.l.b16 %v390
    %v1697 = vunpack.c.l.b16 %v391
    %v1698 = vunpack.c.l.b16 %v392
    %v1699 = vunpack.c.l.b16 %v393
    %v1700 = vunpack.c.l.b16 %v394
    %v1701 = vunpack.c.l.b16 %v395
    %v1702 = vunpack.c.l.b16 %v396
    %v1703 = vunpack.c.l.b16 %v397
    %v1704 = vunpack.c.l.b16 %v398
    %v1705 = vunpack.c.l.b16 %v399
    %v1706 = vunpack.c.l.b16 %v400
    %v1707 = vpack.c.b16 %v1692, %v1691
    %v1708 = vpack.c.b16 %v1694, %v1693
    %v1709 = vpack.c.b16 %v1696, %v1695
    %v1710 = vpack.c.b16 %v1698, %v1697
    %v1711 = vpack.c.b16 %v1700, %v1699
    %v1712 = vpack.c.b16 %v1702, %v1701
    %v1713 = vpack.c.b16 %v1704, %v1703
    %v1714 = vpack.c.b16 %v1706, %v1705
    %1723 = vmatprep.subr.bf16.mxu0 0
    %1724 = vmatpush1.bf16.msra.mxu0 %v1714
    %1725 = vmatprep.subr.bf16.mxu0 0
    %1726 = vmatpush1.bf16.msra.mxu0 %v1713
    %1727 = vmatprep.subr.bf16.mxu0 0
    %1728 = vmatpush1.bf16.msra.mxu0 %v1712
    %1729 = vmatprep.subr.bf16.mxu0 0
    %1730 = vmatpush1.bf16.msra.mxu0 %v1711
    %1731 = vmatprep.subr.bf16.mxu0 0
    %1732 = vmatpush1.bf16.msra.mxu0 %v1710
    %1733 = vmatprep.subr.bf16.mxu0 0
    %1734 = vmatpush1.bf16.msra.mxu0 %v1709
    %1735 = vmatprep.subr.bf16.mxu0 0
    %1736 = vmatpush1.bf16.msra.mxu0 %v1708
    %1737 = vmatprep.subr.bf16.mxu0 0
    %1738 = vmatpush1.bf16.msra.mxu0 %v1707
    %1739 = vmatprep.subr.bf16.mxu0 0
    %1740 = vmatpush2.bf16.msra.mxu0 0
    %1741 = vmatprep.subr.bf16.mxu0 0
    %1742 = vmatpush2.bf16.msra.mxu0 0
    %1743 = vmatprep.subr.bf16.mxu0 0
    %1744 = vmatpush2.bf16.msra.mxu0 0
    %1745 = vmatprep.subr.bf16.mxu0 0
    %1746 = vmatpush2.bf16.msra.mxu0 0
    %1747 = vmatprep.subr.bf16.mxu0 0
    %1748 = vmatpush2.bf16.msra.mxu0 0
    %1749 = vmatprep.subr.bf16.mxu0 0
    %1750 = vmatpush2.bf16.msra.mxu0 0
    %1751 = vmatprep.subr.bf16.mxu0 0
    %1752 = vmatpush2.bf16.msra.mxu0 0
    %1753 = vmatprep.subr.bf16.mxu0 0
    %1754 = vmatpush2.bf16.msra.mxu0 0
    %1755 = vmatprep.mubr.bf16.mxu0 0
    %1756 = vmatmul.mubr.bf16.gmra.mxu0 %v1670
    %v1757 = vpop.f32.mrf.mxu0
    %v1758 = vadd.f32 %v1674, %v1757
    %v1759 = vpop.f32.mrf.mxu0
    %v1760 = vpop.f32.mrf.mxu0
    %v1761 = vadd.f32 %v1674, %v1760
    %v1762 = vpop.f32.mrf.mxu0
    %1763 = vdwg.mxu0
    %v1764 = vadd.f32 %v1522, %v1758
    %v1765 = vadd.f32 %v1523, %v1761
    %1766 = vadd.xlane.f32.xlu0 %v1764
    %v1767 = vpop.xlane.xlu0 %1766
    %1768 = vadd.xlane.f32.xlu0 %v1765
    %v1769 = vpop.xlane.xlu0 %1768
    %v1770 = vmul.f32 %v1767, 0.03125
    %v1771 = vmul.f32 %v1769, 0.03125
    %v1772 = vmul.f32 %v1764, %v1764
    %v1773 = vmul.f32 %v1765, %v1765
    %1774 = vadd.xlane.f32.xlu0 %v1772
    %v1775 = vpop.xlane.xlu0 %1774
    %1776 = vadd.xlane.f32.xlu0 %v1773
    %v1777 = vpop.xlane.xlu0 %1776
    %v1778 = vmul.f32 %v1775, 0.03125
    %v1779 = vmul.f32 %v1777, 0.03125
    %v1780 = vmul.f32 %v1770, %v1770
    %v1781 = vmul.f32 %v1771, %v1771
    %v1782 = vsub.f32 %v1778, %v1780
    %v1783 = vsub.f32 %v1779, %v1781
    %v1784 = vmax.f32 %v1782, 0.0
    %v1785 = vmax.f32 %v1783, 0.0
    %v1786 = vsub.f32 %v1764, %v1770
    %v1787 = vsub.f32 %v1765, %v1771
    %v1788 = vadd.f32 %v1784, 1e-12
    %v1789 = vadd.f32 %v1785, 1e-12
    %v1790 = vrsqrt.pop %v1788
    %v1791 = vrsqrt.pop %v1789
    %v1792 = vmul.f32 %v1786, %v1790
    %v1793 = vmul.f32 %v1787, %v1791
    %v1794 = vlaneseq
    %v1795 = vshrl.u32 %v1794, 7
    %v1796 = vsub.s32 6, %v1795
    %v1797 = vrot.slane %v401, %v1796
    %v1798 = vmul.f32 %v1792, %v1797
    %v1799 = vmul.f32 %v1793, %v1797
    %v1800 = vlaneseq
    %v1801 = vshrl.u32 %v1800, 7
    %v1802 = vsub.s32 7, %v1801
    %v1803 = vrot.slane %v401, %v1802
    %v1804 = vadd.f32 %v1798, %v1803
    %v1805 = vadd.f32 %v1799, %v1803
    %v1806 = vadd.f32 %v1804, 0.0
    %v1807 = vadd.f32 %v1805, 0.0
    %s1808 = scalar_lea.vmem [#allocation11], 64
    %v1809 = vld [vmem:[%s1808] sm:$0xf]
    %v1810 = vld [vmem:[%s1808 + $0x4] sm:$0xf]
    %v1811 = vld [vmem:[%s1808 + $0x8] sm:$0xf]
    %v1812 = vld [vmem:[%s1808 + $0xc] sm:$0xf]
    %v1813 = vld [vmem:[%s1808 + $0x10] sm:$0xf]
    %v1814 = vld [vmem:[%s1808 + $0x14] sm:$0xf]
    %v1815 = vld [vmem:[%s1808 + $0x18] sm:$0xf]
    %v1816 = vld [vmem:[%s1808 + $0x1c] sm:$0xf]
    %v1817 = vld [vmem:[%s1808 + $0x20] sm:$0xf]
    %v1818 = vld [vmem:[%s1808 + $0x24] sm:$0xf]
    %v1819 = vld [vmem:[%s1808 + $0x28] sm:$0xf]
    %v1820 = vld [vmem:[%s1808 + $0x2c] sm:$0xf]
    %v1821 = vld [vmem:[%s1808 + $0x30] sm:$0xf]
    %v1822 = vld [vmem:[%s1808 + $0x34] sm:$0xf]
    %v1823 = vld [vmem:[%s1808 + $0x38] sm:$0xf]
    %v1824 = vld [vmem:[%s1808 + $0x3c] sm:$0xf]
    %s1825 = scalar_lea.vmem [#allocation13], 16
    %v1826 = vld [vmem:[%s1825] sm:$0xf]
    %v1827 = vld [vmem:[%s1825 + $0x4] sm:$0xf]
    %v1828 = vld [vmem:[%s1825 + $0x8] sm:$0xf]
    %v1829 = vld [vmem:[%s1825 + $0xc] sm:$0xf]
    %s1830 = scalar_lea.vmem [#allocation14], 64
    %v1831 = vld [vmem:[%s1830] sm:$0xf]
    %v1832 = vld [vmem:[%s1830 + $0x4] sm:$0xf]
    %v1833 = vld [vmem:[%s1830 + $0x8] sm:$0xf]
    %v1834 = vld [vmem:[%s1830 + $0xc] sm:$0xf]
    %v1835 = vld [vmem:[%s1830 + $0x10] sm:$0xf]
    %v1836 = vld [vmem:[%s1830 + $0x14] sm:$0xf]
    %v1837 = vld [vmem:[%s1830 + $0x18] sm:$0xf]
    %v1838 = vld [vmem:[%s1830 + $0x1c] sm:$0xf]
    %v1839 = vld [vmem:[%s1830 + $0x20] sm:$0xf]
    %v1840 = vld [vmem:[%s1830 + $0x24] sm:$0xf]
    %v1841 = vld [vmem:[%s1830 + $0x28] sm:$0xf]
    %v1842 = vld [vmem:[%s1830 + $0x2c] sm:$0xf]
    %v1843 = vld [vmem:[%s1830 + $0x30] sm:$0xf]
    %v1844 = vld [vmem:[%s1830 + $0x34] sm:$0xf]
    %v1845 = vld [vmem:[%s1830 + $0x38] sm:$0xf]
    %v1846 = vld [vmem:[%s1830 + $0x3c] sm:$0xf]
    %s1847 = scalar_lea.vmem [#allocation16], 64
    %v1848 = vld [vmem:[%s1847] sm:$0xf]
    %v1849 = vld [vmem:[%s1847 + $0x4] sm:$0xf]
    %v1850 = vld [vmem:[%s1847 + $0x8] sm:$0xf]
    %v1851 = vld [vmem:[%s1847 + $0xc] sm:$0xf]
    %v1852 = vld [vmem:[%s1847 + $0x10] sm:$0xf]
    %v1853 = vld [vmem:[%s1847 + $0x14] sm:$0xf]
    %v1854 = vld [vmem:[%s1847 + $0x18] sm:$0xf]
    %v1855 = vld [vmem:[%s1847 + $0x1c] sm:$0xf]
    %v1856 = vld [vmem:[%s1847 + $0x20] sm:$0xf]
    %v1857 = vld [vmem:[%s1847 + $0x24] sm:$0xf]
    %v1858 = vld [vmem:[%s1847 + $0x28] sm:$0xf]
    %v1859 = vld [vmem:[%s1847 + $0x2c] sm:$0xf]
    %v1860 = vld [vmem:[%s1847 + $0x30] sm:$0xf]
    %v1861 = vld [vmem:[%s1847 + $0x34] sm:$0xf]
    %v1862 = vld [vmem:[%s1847 + $0x38] sm:$0xf]
    %v1863 = vld [vmem:[%s1847 + $0x3c] sm:$0xf]
    %s1864 = scalar_lea.vmem [#allocation17], 8
    %v1865 = vld [vmem:[%s1864] sm:$0xff]
    %v1866 = vpack.c.bf16 %v1805, %v1804
    %v1867 = vlaneseq
    %v1868 = vshrl.u32 %v1867, 7
    %v1869 = vsub.s32 0, %v1868
    %v1870 = vrot.slane %v1865, %v1869
    %v1887 = vunpack.c.l.b16 %v1809
    %v1888 = vunpack.c.l.b16 %v1810
    %v1889 = vunpack.c.l.b16 %v1811
    %v1890 = vunpack.c.l.b16 %v1812
    %v1891 = vunpack.c.l.b16 %v1813
    %v1892 = vunpack.c.l.b16 %v1814
    %v1893 = vunpack.c.l.b16 %v1815
    %v1894 = vunpack.c.l.b16 %v1816
    %v1895 = vunpack.c.l.b16 %v1817
    %v1896 = vunpack.c.l.b16 %v1818
    %v1897 = vunpack.c.l.b16 %v1819
    %v1898 = vunpack.c.l.b16 %v1820
    %v1899 = vunpack.c.l.b16 %v1821
    %v1900 = vunpack.c.l.b16 %v1822
    %v1901 = vunpack.c.l.b16 %v1823
    %v1902 = vunpack.c.l.b16 %v1824
    %v1903 = vpack.c.b16 %v1888, %v1887
    %v1904 = vpack.c.b16 %v1890, %v1889
    %v1905 = vpack.c.b16 %v1892, %v1891
    %v1906 = vpack.c.b16 %v1894, %v1893
    %v1907 = vpack.c.b16 %v1896, %v1895
    %v1908 = vpack.c.b16 %v1898, %v1897
    %v1909 = vpack.c.b16 %v1900, %v1899
    %v1910 = vpack.c.b16 %v1902, %v1901
    %1919 = vmatprep.subr.bf16.mxu0 0
    %1920 = vmatpush1.bf16.msra.mxu0 %v1910
    %1921 = vmatprep.subr.bf16.mxu0 0
    %1922 = vmatpush1.bf16.msra.mxu0 %v1909
    %1923 = vmatprep.subr.bf16.mxu0 0
    %1924 = vmatpush1.bf16.msra.mxu0 %v1908
    %1925 = vmatprep.subr.bf16.mxu0 0
    %1926 = vmatpush1.bf16.msra.mxu0 %v1907
    %1927 = vmatprep.subr.bf16.mxu0 0
    %1928 = vmatpush1.bf16.msra.mxu0 %v1906
    %1929 = vmatprep.subr.bf16.mxu0 0
    %1930 = vmatpush1.bf16.msra.mxu0 %v1905
    %1931 = vmatprep.subr.bf16.mxu0 0
    %1932 = vmatpush1.bf16.msra.mxu0 %v1904
    %1933 = vmatprep.subr.bf16.mxu0 0
    %1934 = vmatpush1.bf16.msra.mxu0 %v1903
    %1935 = vmatprep.subr.bf16.mxu0 0
    %1936 = vmatpush2.bf16.msra.mxu0 0
    %1937 = vmatprep.subr.bf16.mxu0 0
    %1938 = vmatpush2.bf16.msra.mxu0 0
    %1939 = vmatprep.subr.bf16.mxu0 0
    %1940 = vmatpush2.bf16.msra.mxu0 0
    %1941 = vmatprep.subr.bf16.mxu0 0
    %1942 = vmatpush2.bf16.msra.mxu0 0
    %1943 = vmatprep.subr.bf16.mxu0 0
    %1944 = vmatpush2.bf16.msra.mxu0 0
    %1945 = vmatprep.subr.bf16.mxu0 0
    %1946 = vmatpush2.bf16.msra.mxu0 0
    %1947 = vmatprep.subr.bf16.mxu0 0
    %1948 = vmatpush2.bf16.msra.mxu0 0
    %1949 = vmatprep.subr.bf16.mxu0 0
    %1950 = vmatpush2.bf16.msra.mxu0 0
    %1951 = vmatprep.mubr.bf16.mxu0 0
    %1952 = vmatmul.mubr.bf16.gmra.mxu0 %v1866
    %v1953 = vpop.f32.mrf.mxu0
    %v1954 = vadd.f32 %v1870, %v1953
    %v1955 = vpop.f32.mrf.mxu0
    %v1956 = vpop.f32.mrf.mxu0
    %v1957 = vadd.f32 %v1870, %v1956
    %v1958 = vpop.f32.mrf.mxu0
    %1959 = vdwg.mxu0
    %v1960 = vpack.c.bf16 %v1954, %v1954
    %v1961 = vpack.c.bf16 %v1957, %v1957
    %1963 = vrot.lane.b32.xlu0 %v1960, 96
    %v1964 = vpop.permute.xlu0 %1963
    %v1966 = vsel %vm511, %v1960, 0
    %v1969 = vsel %vm511, %v1964, 0
    %1971 = vmatprep.subr.bf16.mxu0 0
    %1972 = vmatpush1.bf16.xpose.msra.mxu0 0
    %1973 = vmatprep.subr.bf16.mxu0 0
    %1974 = vmatpush1.bf16.xpose.msra.mxu0 0
    %1975 = vmatprep.subr.bf16.mxu0 0
    %1976 = vmatpush1.bf16.xpose.msra.mxu0 0
    %1977 = vmatprep.subr.bf16.mxu0 0
    %1978 = vmatpush1.bf16.xpose.msra.mxu0 0
    %1979 = vmatprep.subr.bf16.mxu0 0
    %1980 = vmatpush1.bf16.xpose.msra.mxu0 0
    %1981 = vmatprep.subr.bf16.mxu0 0
    %1982 = vmatpush1.bf16.xpose.msra.mxu0 0
    %1983 = vmatprep.subr.bf16.mxu0 0
    %1984 = vmatpush1.bf16.xpose.msra.mxu0 0
    %1985 = vmatprep.subr.bf16.mxu0 0
    %1986 = vmatpush1.bf16.xpose.msra.mxu0 %v1969
    %1987 = vmatprep.subr.bf16.mxu0 0
    %1988 = vmatpush2.bf16.xpose.msra.mxu0 0
    %1989 = vmatprep.subr.bf16.mxu0 0
    %1990 = vmatpush2.bf16.xpose.msra.mxu0 0
    %1991 = vmatprep.subr.bf16.mxu0 0
    %1992 = vmatpush2.bf16.xpose.msra.mxu0 0
    %1993 = vmatprep.subr.bf16.mxu0 0
    %1994 = vmatpush2.bf16.xpose.msra.mxu0 0
    %1995 = vmatprep.subr.bf16.mxu0 0
    %1996 = vmatpush2.bf16.xpose.msra.mxu0 0
    %1997 = vmatprep.subr.bf16.mxu0 0
    %1998 = vmatpush2.bf16.xpose.msra.mxu0 0
    %1999 = vmatprep.subr.bf16.mxu0 0
    %2000 = vmatpush2.bf16.xpose.msra.mxu0 0
    %2001 = vmatprep.subr.bf16.mxu0 0
    %2002 = vmatpush2.bf16.xpose.msra.mxu0 0
    %2003 = vmatprep.mubr.bf16.mxu0 0
    %2004 = vmatmul.mubr.bf16.gmra.mxu0 %v1966
    %v2005 = vpop.f32.mrf.mxu0
    %v2006 = vadd.f32 %v501, %v2005
    %v2007 = vpop.f32.mrf.mxu0
    %v2008 = vpop.f32.mrf.mxu0
    %v2009 = vpop.f32.mrf.mxu0
    %2010 = vdwg.mxu0
    %2012 = vrot.lane.b32.xlu0 %v1961, 96
    %v2013 = vpop.permute.xlu0 %2012
    %v2015 = vsel %vm511, %v1961, 0
    %v2018 = vsel %vm511, %v2013, 0
    %2020 = vmatprep.subr.bf16.mxu0 0
    %2021 = vmatpush1.bf16.xpose.msra.mxu0 0
    %2022 = vmatprep.subr.bf16.mxu0 0
    %2023 = vmatpush1.bf16.xpose.msra.mxu0 0
    %2024 = vmatprep.subr.bf16.mxu0 0
    %2025 = vmatpush1.bf16.xpose.msra.mxu0 0
    %2026 = vmatprep.subr.bf16.mxu0 0
    %2027 = vmatpush1.bf16.xpose.msra.mxu0 0
    %2028 = vmatprep.subr.bf16.mxu0 0
    %2029 = vmatpush1.bf16.xpose.msra.mxu0 0
    %2030 = vmatprep.subr.bf16.mxu0 0
    %2031 = vmatpush1.bf16.xpose.msra.mxu0 0
    %2032 = vmatprep.subr.bf16.mxu0 0
    %2033 = vmatpush1.bf16.xpose.msra.mxu0 0
    %2034 = vmatprep.subr.bf16.mxu0 0
    %2035 = vmatpush1.bf16.xpose.msra.mxu0 %v2018
    %2036 = vmatprep.subr.bf16.mxu0 0
    %2037 = vmatpush2.bf16.xpose.msra.mxu0 0
    %2038 = vmatprep.subr.bf16.mxu0 0
    %2039 = vmatpush2.bf16.xpose.msra.mxu0 0
    %2040 = vmatprep.subr.bf16.mxu0 0
    %2041 = vmatpush2.bf16.xpose.msra.mxu0 0
    %2042 = vmatprep.subr.bf16.mxu0 0
    %2043 = vmatpush2.bf16.xpose.msra.mxu0 0
    %2044 = vmatprep.subr.bf16.mxu0 0
    %2045 = vmatpush2.bf16.xpose.msra.mxu0 0
    %2046 = vmatprep.subr.bf16.mxu0 0
    %2047 = vmatpush2.bf16.xpose.msra.mxu0 0
    %2048 = vmatprep.subr.bf16.mxu0 0
    %2049 = vmatpush2.bf16.xpose.msra.mxu0 0
    %2050 = vmatprep.subr.bf16.mxu0 0
    %2051 = vmatpush2.bf16.xpose.msra.mxu0 0
    %2052 = vmatprep.mubr.bf16.mxu0 0
    %2053 = vmatmul.mubr.bf16.gmra.mxu0 %v2015
    %v2054 = vpop.f32.mrf.mxu0
    %v2055 = vadd.f32 %v505, %v2054
    %v2056 = vpop.f32.mrf.mxu0
    %v2057 = vpop.f32.mrf.mxu0
    %v2058 = vpop.f32.mrf.mxu0
    %2059 = vdwg.mxu0
    %v2060 = vsel %vm511, %v2006, -inf
    %2061 = vmax.xlane.f32.xlu0 %v2060
    %v2062 = vpop.xlane.xlu0 %2061
    %v2063 = vsel %vm511, %v2055, -inf
    %2064 = vmax.xlane.f32.xlu0 %v2063
    %v2065 = vpop.xlane.xlu0 %2064
    %v2066 = vsub.f32 %v2006, %v2062
    %v2067 = vsub.f32 %v2055, %v2065
    %v2068 = vmul.f32 %v2066, 1.442695
    %v2069 = vpow.pop %v2068
    %v2070 = vmul.f32 %v2067, 1.442695
    %v2071 = vpow.pop %v2070
    %v2072 = vsel %vm511, %v2069, 0.0
    %2073 = vadd.xlane.f32.xlu0 %v2072
    %v2074 = vpop.xlane.xlu0 %2073
    %v2075 = vsel %vm511, %v2071, 0.0
    %2076 = vadd.xlane.f32.xlu0 %v2075
    %v2077 = vpop.xlane.xlu0 %2076
    %v2078 = vrcp.pop %v2074
    %v2079 = vrcp.pop %v2077
    %v2080 = vmul.f32 %v2069, %v2078
    %v2081 = vmul.f32 %v2071, %v2079
    %v2082 = vpack.c.bf16 %v2080, %v2080
    %v2083 = vpack.c.bf16 %v2081, %v2081
    %2084 = vrot.lane.b32.xlu0 %v1960, 64
    %v2085 = vpop.permute.xlu0 %2084
    %v2087 = vsel %vm511, %v2082, 0
    %v2090 = vsel %vm636, %v2085, 0
    %2092 = vmatprep.subr.bf16.mxu0 0
    %2093 = vmatpush1.bf16.msra.mxu0 0
    %2094 = vmatprep.subr.bf16.mxu0 0
    %2095 = vmatpush1.bf16.msra.mxu0 0
    %2096 = vmatprep.subr.bf16.mxu0 0
    %2097 = vmatpush1.bf16.msra.mxu0 0
    %2098 = vmatprep.subr.bf16.mxu0 0
    %2099 = vmatpush1.bf16.msra.mxu0 0
    %2100 = vmatprep.subr.bf16.mxu0 0
    %2101 = vmatpush1.bf16.msra.mxu0 0
    %2102 = vmatprep.subr.bf16.mxu0 0
    %2103 = vmatpush1.bf16.msra.mxu0 0
    %2104 = vmatprep.subr.bf16.mxu0 0
    %2105 = vmatpush1.bf16.msra.mxu0 0
    %2106 = vmatprep.subr.bf16.mxu0 0
    %2107 = vmatpush1.bf16.msra.mxu0 %v2090
    %2108 = vmatprep.subr.bf16.mxu0 0
    %2109 = vmatpush2.bf16.msra.mxu0 0
    %2110 = vmatprep.subr.bf16.mxu0 0
    %2111 = vmatpush2.bf16.msra.mxu0 0
    %2112 = vmatprep.subr.bf16.mxu0 0
    %2113 = vmatpush2.bf16.msra.mxu0 0
    %2114 = vmatprep.subr.bf16.mxu0 0
    %2115 = vmatpush2.bf16.msra.mxu0 0
    %2116 = vmatprep.subr.bf16.mxu0 0
    %2117 = vmatpush2.bf16.msra.mxu0 0
    %2118 = vmatprep.subr.bf16.mxu0 0
    %2119 = vmatpush2.bf16.msra.mxu0 0
    %2120 = vmatprep.subr.bf16.mxu0 0
    %2121 = vmatpush2.bf16.msra.mxu0 0
    %2122 = vmatprep.subr.bf16.mxu0 0
    %2123 = vmatpush2.bf16.msra.mxu0 0
    %2124 = vmatprep.mubr.bf16.mxu0 0
    %2125 = vmatmul.mubr.bf16.gmra.mxu0 %v2087
    %v2126 = vpop.f32.mrf.mxu0
    %v2127 = vadd.f32 0.0, %v2126
    %v2128 = vpop.f32.mrf.mxu0
    %v2129 = vpop.f32.mrf.mxu0
    %v2130 = vpop.f32.mrf.mxu0
    %2131 = vdwg.mxu0
    %2132 = vrot.lane.b32.xlu0 %v1961, 64
    %v2133 = vpop.permute.xlu0 %2132
    %v2135 = vsel %vm511, %v2083, 0
    %v2138 = vsel %vm636, %v2133, 0
    %2140 = vmatprep.subr.bf16.mxu0 0
    %2141 = vmatpush1.bf16.msra.mxu0 0
    %2142 = vmatprep.subr.bf16.mxu0 0
    %2143 = vmatpush1.bf16.msra.mxu0 0
    %2144 = vmatprep.subr.bf16.mxu0 0
    %2145 = vmatpush1.bf16.msra.mxu0 0
    %2146 = vmatprep.subr.bf16.mxu0 0
    %2147 = vmatpush1.bf16.msra.mxu0 0
    %2148 = vmatprep.subr.bf16.mxu0 0
    %2149 = vmatpush1.bf16.msra.mxu0 0
    %2150 = vmatprep.subr.bf16.mxu0 0
    %2151 = vmatpush1.bf16.msra.mxu0 0
    %2152 = vmatprep.subr.bf16.mxu0 0
    %2153 = vmatpush1.bf16.msra.mxu0 0
    %2154 = vmatprep.subr.bf16.mxu0 0
    %2155 = vmatpush1.bf16.msra.mxu0 %v2138
    %2156 = vmatprep.subr.bf16.mxu0 0
    %2157 = vmatpush2.bf16.msra.mxu0 0
    %2158 = vmatprep.subr.bf16.mxu0 0
    %2159 = vmatpush2.bf16.msra.mxu0 0
    %2160 = vmatprep.subr.bf16.mxu0 0
    %2161 = vmatpush2.bf16.msra.mxu0 0
    %2162 = vmatprep.subr.bf16.mxu0 0
    %2163 = vmatpush2.bf16.msra.mxu0 0
    %2164 = vmatprep.subr.bf16.mxu0 0
    %2165 = vmatpush2.bf16.msra.mxu0 0
    %2166 = vmatprep.subr.bf16.mxu0 0
    %2167 = vmatpush2.bf16.msra.mxu0 0
    %2168 = vmatprep.subr.bf16.mxu0 0
    %2169 = vmatpush2.bf16.msra.mxu0 0
    %2170 = vmatprep.subr.bf16.mxu0 0
    %2171 = vmatpush2.bf16.msra.mxu0 0
    %2172 = vmatprep.mubr.bf16.mxu0 0
    %2173 = vmatmul.mubr.bf16.gmra.mxu0 %v2135
    %v2174 = vpop.f32.mrf.mxu0
    %v2175 = vadd.f32 0.0, %v2174
    %v2176 = vpop.f32.mrf.mxu0
    %v2177 = vpop.f32.mrf.mxu0
    %v2178 = vpop.f32.mrf.mxu0
    %2179 = vdwg.mxu0
    %2180 = vrot.lane.b32.xlu0 %v1960, 120
    %v2181 = vpop.permute.xlu0 %2180
    %2182 = vrot.lane.b32.xlu0 %v1960, 88
    %v2183 = vpop.permute.xlu0 %2182
    %v2185 = vsel %vm511, %v2181, 0
    %v2188 = vsel %vm511, %v2183, 0
    %2190 = vmatprep.subr.bf16.mxu0 0
    %2191 = vmatpush1.bf16.xpose.msra.mxu0 0
    %2192 = vmatprep.subr.bf16.mxu0 0
    %2193 = vmatpush1.bf16.xpose.msra.mxu0 0
    %2194 = vmatprep.subr.bf16.mxu0 0
    %2195 = vmatpush1.bf16.xpose.msra.mxu0 0
    %2196 = vmatprep.subr.bf16.mxu0 0
    %2197 = vmatpush1.bf16.xpose.msra.mxu0 0
    %2198 = vmatprep.subr.bf16.mxu0 0
    %2199 = vmatpush1.bf16.xpose.msra.mxu0 0
    %2200 = vmatprep.subr.bf16.mxu0 0
    %2201 = vmatpush1.bf16.xpose.msra.mxu0 0
    %2202 = vmatprep.subr.bf16.mxu0 0
    %2203 = vmatpush1.bf16.xpose.msra.mxu0 0
    %2204 = vmatprep.subr.bf16.mxu0 0
    %2205 = vmatpush1.bf16.xpose.msra.mxu0 %v2188
    %2206 = vmatprep.subr.bf16.mxu0 0
    %2207 = vmatpush2.bf16.xpose.msra.mxu0 0
    %2208 = vmatprep.subr.bf16.mxu0 0
    %2209 = vmatpush2.bf16.xpose.msra.mxu0 0
    %2210 = vmatprep.subr.bf16.mxu0 0
    %2211 = vmatpush2.bf16.xpose.msra.mxu0 0
    %2212 = vmatprep.subr.bf16.mxu0 0
    %2213 = vmatpush2.bf16.xpose.msra.mxu0 0
    %2214 = vmatprep.subr.bf16.mxu0 0
    %2215 = vmatpush2.bf16.xpose.msra.mxu0 0
    %2216 = vmatprep.subr.bf16.mxu0 0
    %2217 = vmatpush2.bf16.xpose.msra.mxu0 0
    %2218 = vmatprep.subr.bf16.mxu0 0
    %2219 = vmatpush2.bf16.xpose.msra.mxu0 0
    %2220 = vmatprep.subr.bf16.mxu0 0
    %2221 = vmatpush2.bf16.xpose.msra.mxu0 0
    %2222 = vmatprep.mubr.bf16.mxu0 0
    %2223 = vmatmul.mubr.bf16.gmra.mxu0 %v2185
    %v2224 = vpop.f32.mrf.mxu0
    %v2225 = vadd.f32 %v501, %v2224
    %v2226 = vpop.f32.mrf.mxu0
    %v2227 = vpop.f32.mrf.mxu0
    %v2228 = vpop.f32.mrf.mxu0
    %2229 = vdwg.mxu0
    %2230 = vrot.lane.b32.xlu0 %v1961, 120
    %v2231 = vpop.permute.xlu0 %2230
    %2232 = vrot.lane.b32.xlu0 %v1961, 88
    %v2233 = vpop.permute.xlu0 %2232
    %v2235 = vsel %vm511, %v2231, 0
    %v2238 = vsel %vm511, %v2233, 0
    %2240 = vmatprep.subr.bf16.mxu0 0
    %2241 = vmatpush1.bf16.xpose.msra.mxu0 0
    %2242 = vmatprep.subr.bf16.mxu0 0
    %2243 = vmatpush1.bf16.xpose.msra.mxu0 0
    %2244 = vmatprep.subr.bf16.mxu0 0
    %2245 = vmatpush1.bf16.xpose.msra.mxu0 0
    %2246 = vmatprep.subr.bf16.mxu0 0
    %2247 = vmatpush1.bf16.xpose.msra.mxu0 0
    %2248 = vmatprep.subr.bf16.mxu0 0
    %2249 = vmatpush1.bf16.xpose.msra.mxu0 0
    %2250 = vmatprep.subr.bf16.mxu0 0
    %2251 = vmatpush1.bf16.xpose.msra.mxu0 0
    %2252 = vmatprep.subr.bf16.mxu0 0
    %2253 = vmatpush1.bf16.xpose.msra.mxu0 0
    %2254 = vmatprep.subr.bf16.mxu0 0
    %2255 = vmatpush1.bf16.xpose.msra.mxu0 %v2238
    %2256 = vmatprep.subr.bf16.mxu0 0
    %2257 = vmatpush2.bf16.xpose.msra.mxu0 0
    %2258 = vmatprep.subr.bf16.mxu0 0
    %2259 = vmatpush2.bf16.xpose.msra.mxu0 0
    %2260 = vmatprep.subr.bf16.mxu0 0
    %2261 = vmatpush2.bf16.xpose.msra.mxu0 0
    %2262 = vmatprep.subr.bf16.mxu0 0
    %2263 = vmatpush2.bf16.xpose.msra.mxu0 0
    %2264 = vmatprep.subr.bf16.mxu0 0
    %2265 = vmatpush2.bf16.xpose.msra.mxu0 0
    %2266 = vmatprep.subr.bf16.mxu0 0
    %2267 = vmatpush2.bf16.xpose.msra.mxu0 0
    %2268 = vmatprep.subr.bf16.mxu0 0
    %2269 = vmatpush2.bf16.xpose.msra.mxu0 0
    %2270 = vmatprep.subr.bf16.mxu0 0
    %2271 = vmatpush2.bf16.xpose.msra.mxu0 0
    %2272 = vmatprep.mubr.bf16.mxu0 0
    %2273 = vmatmul.mubr.bf16.gmra.mxu0 %v2235
    %v2274 = vpop.f32.mrf.mxu0
    %v2275 = vadd.f32 %v505, %v2274
    %v2276 = vpop.f32.mrf.mxu0
    %v2277 = vpop.f32.mrf.mxu0
    %v2278 = vpop.f32.mrf.mxu0
    %2279 = vdwg.mxu0
    %v2280 = vsel %vm511, %v2225, -inf
    %2281 = vmax.xlane.f32.xlu0 %v2280
    %v2282 = vpop.xlane.xlu0 %2281
    %v2283 = vsel %vm511, %v2275, -inf
    %2284 = vmax.xlane.f32.xlu0 %v2283
    %v2285 = vpop.xlane.xlu0 %2284
    %v2286 = vsub.f32 %v2225, %v2282
    %v2287 = vsub.f32 %v2275, %v2285
    %v2288 = vmul.f32 %v2286, 1.442695
    %v2289 = vpow.pop %v2288
    %v2290 = vmul.f32 %v2287, 1.442695
    %v2291 = vpow.pop %v2290
    %v2292 = vsel %vm511, %v2289, 0.0
    %2293 = vadd.xlane.f32.xlu0 %v2292
    %v2294 = vpop.xlane.xlu0 %2293
    %v2295 = vsel %vm511, %v2291, 0.0
    %2296 = vadd.xlane.f32.xlu0 %v2295
    %v2297 = vpop.xlane.xlu0 %2296
    %v2298 = vrcp.pop %v2294
    %v2299 = vrcp.pop %v2297
    %v2300 = vmul.f32 %v2289, %v2298
    %v2301 = vmul.f32 %v2291, %v2299
    %v2302 = vpack.c.bf16 %v2300, %v2300
    %v2303 = vpack.c.bf16 %v2301, %v2301
    %2304 = vrot.lane.b32.xlu0 %v1960, 56
    %v2305 = vpop.permute.xlu0 %2304
    %v2307 = vsel %vm511, %v2302, 0
    %v2310 = vsel %vm636, %v2305, 0
    %2312 = vmatprep.subr.bf16.mxu0 0
    %2313 = vmatpush1.bf16.msra.mxu0 0
    %2314 = vmatprep.subr.bf16.mxu0 0
    %2315 = vmatpush1.bf16.msra.mxu0 0
    %2316 = vmatprep.subr.bf16.mxu0 0
    %2317 = vmatpush1.bf16.msra.mxu0 0
    %2318 = vmatprep.subr.bf16.mxu0 0
    %2319 = vmatpush1.bf16.msra.mxu0 0
    %2320 = vmatprep.subr.bf16.mxu0 0
    %2321 = vmatpush1.bf16.msra.mxu0 0
    %2322 = vmatprep.subr.bf16.mxu0 0
    %2323 = vmatpush1.bf16.msra.mxu0 0
    %2324 = vmatprep.subr.bf16.mxu0 0
    %2325 = vmatpush1.bf16.msra.mxu0 0
    %2326 = vmatprep.subr.bf16.mxu0 0
    %2327 = vmatpush1.bf16.msra.mxu0 %v2310
    %2328 = vmatprep.subr.bf16.mxu0 0
    %2329 = vmatpush2.bf16.msra.mxu0 0
    %2330 = vmatprep.subr.bf16.mxu0 0
    %2331 = vmatpush2.bf16.msra.mxu0 0
    %2332 = vmatprep.subr.bf16.mxu0 0
    %2333 = vmatpush2.bf16.msra.mxu0 0
    %2334 = vmatprep.subr.bf16.mxu0 0
    %2335 = vmatpush2.bf16.msra.mxu0 0
    %2336 = vmatprep.subr.bf16.mxu0 0
    %2337 = vmatpush2.bf16.msra.mxu0 0
    %2338 = vmatprep.subr.bf16.mxu0 0
    %2339 = vmatpush2.bf16.msra.mxu0 0
    %2340 = vmatprep.subr.bf16.mxu0 0
    %2341 = vmatpush2.bf16.msra.mxu0 0
    %2342 = vmatprep.subr.bf16.mxu0 0
    %2343 = vmatpush2.bf16.msra.mxu0 0
    %2344 = vmatprep.mubr.bf16.mxu0 0
    %2345 = vmatmul.mubr.bf16.gmra.mxu0 %v2307
    %v2346 = vpop.f32.mrf.mxu0
    %v2347 = vadd.f32 0.0, %v2346
    %v2348 = vpop.f32.mrf.mxu0
    %v2349 = vpop.f32.mrf.mxu0
    %v2350 = vpop.f32.mrf.mxu0
    %2351 = vdwg.mxu0
    %2352 = vrot.lane.b32.xlu0 %v1961, 56
    %v2353 = vpop.permute.xlu0 %2352
    %v2355 = vsel %vm511, %v2303, 0
    %v2358 = vsel %vm636, %v2353, 0
    %2360 = vmatprep.subr.bf16.mxu0 0
    %2361 = vmatpush1.bf16.msra.mxu0 0
    %2362 = vmatprep.subr.bf16.mxu0 0
    %2363 = vmatpush1.bf16.msra.mxu0 0
    %2364 = vmatprep.subr.bf16.mxu0 0
    %2365 = vmatpush1.bf16.msra.mxu0 0
    %2366 = vmatprep.subr.bf16.mxu0 0
    %2367 = vmatpush1.bf16.msra.mxu0 0
    %2368 = vmatprep.subr.bf16.mxu0 0
    %2369 = vmatpush1.bf16.msra.mxu0 0
    %2370 = vmatprep.subr.bf16.mxu0 0
    %2371 = vmatpush1.bf16.msra.mxu0 0
    %2372 = vmatprep.subr.bf16.mxu0 0
    %2373 = vmatpush1.bf16.msra.mxu0 0
    %2374 = vmatprep.subr.bf16.mxu0 0
    %2375 = vmatpush1.bf16.msra.mxu0 %v2358
    %2376 = vmatprep.subr.bf16.mxu0 0
    %2377 = vmatpush2.bf16.msra.mxu0 0
    %2378 = vmatprep.subr.bf16.mxu0 0
    %2379 = vmatpush2.bf16.msra.mxu0 0
    %2380 = vmatprep.subr.bf16.mxu0 0
    %2381 = vmatpush2.bf16.msra.mxu0 0
    %2382 = vmatprep.subr.bf16.mxu0 0
    %2383 = vmatpush2.bf16.msra.mxu0 0
    %2384 = vmatprep.subr.bf16.mxu0 0
    %2385 = vmatpush2.bf16.msra.mxu0 0
    %2386 = vmatprep.subr.bf16.mxu0 0
    %2387 = vmatpush2.bf16.msra.mxu0 0
    %2388 = vmatprep.subr.bf16.mxu0 0
    %2389 = vmatpush2.bf16.msra.mxu0 0
    %2390 = vmatprep.subr.bf16.mxu0 0
    %2391 = vmatpush2.bf16.msra.mxu0 0
    %2392 = vmatprep.mubr.bf16.mxu0 0
    %2393 = vmatmul.mubr.bf16.gmra.mxu0 %v2355
    %v2394 = vpop.f32.mrf.mxu0
    %v2395 = vadd.f32 0.0, %v2394
    %v2396 = vpop.f32.mrf.mxu0
    %v2397 = vpop.f32.mrf.mxu0
    %v2398 = vpop.f32.mrf.mxu0
    %2399 = vdwg.mxu0
    %2400 = vrot.lane.b32.xlu0 %v1960, 112
    %v2401 = vpop.permute.xlu0 %2400
    %2402 = vrot.lane.b32.xlu0 %v1960, 80
    %v2403 = vpop.permute.xlu0 %2402
    %v2405 = vsel %vm511, %v2401, 0
    %v2408 = vsel %vm511, %v2403, 0
    %2410 = vmatprep.subr.bf16.mxu0 0
    %2411 = vmatpush1.bf16.xpose.msra.mxu0 0
    %2412 = vmatprep.subr.bf16.mxu0 0
    %2413 = vmatpush1.bf16.xpose.msra.mxu0 0
    %2414 = vmatprep.subr.bf16.mxu0 0
    %2415 = vmatpush1.bf16.xpose.msra.mxu0 0
    %2416 = vmatprep.subr.bf16.mxu0 0
    %2417 = vmatpush1.bf16.xpose.msra.mxu0 0
    %2418 = vmatprep.subr.bf16.mxu0 0
    %2419 = vmatpush1.bf16.xpose.msra.mxu0 0
    %2420 = vmatprep.subr.bf16.mxu0 0
    %2421 = vmatpush1.bf16.xpose.msra.mxu0 0
    %2422 = vmatprep.subr.bf16.mxu0 0
    %2423 = vmatpush1.bf16.xpose.msra.mxu0 0
    %2424 = vmatprep.subr.bf16.mxu0 0
    %2425 = vmatpush1.bf16.xpose.msra.mxu0 %v2408
    %2426 = vmatprep.subr.bf16.mxu0 0
    %2427 = vmatpush2.bf16.xpose.msra.mxu0 0
    %2428 = vmatprep.subr.bf16.mxu0 0
    %2429 = vmatpush2.bf16.xpose.msra.mxu0 0
    %2430 = vmatprep.subr.bf16.mxu0 0
    %2431 = vmatpush2.bf16.xpose.msra.mxu0 0
    %2432 = vmatprep.subr.bf16.mxu0 0
    %2433 = vmatpush2.bf16.xpose.msra.mxu0 0
    %2434 = vmatprep.subr.bf16.mxu0 0
    %2435 = vmatpush2.bf16.xpose.msra.mxu0 0
    %2436 = vmatprep.subr.bf16.mxu0 0
    %2437 = vmatpush2.bf16.xpose.msra.mxu0 0
    %2438 = vmatprep.subr.bf16.mxu0 0
    %2439 = vmatpush2.bf16.xpose.msra.mxu0 0
    %2440 = vmatprep.subr.bf16.mxu0 0
    %2441 = vmatpush2.bf16.xpose.msra.mxu0 0
    %2442 = vmatprep.mubr.bf16.mxu0 0
    %2443 = vmatmul.mubr.bf16.gmra.mxu0 %v2405
    %v2444 = vpop.f32.mrf.mxu0
    %v2445 = vadd.f32 %v501, %v2444
    %v2446 = vpop.f32.mrf.mxu0
    %v2447 = vpop.f32.mrf.mxu0
    %v2448 = vpop.f32.mrf.mxu0
    %2449 = vdwg.mxu0
    %2450 = vrot.lane.b32.xlu0 %v1961, 112
    %v2451 = vpop.permute.xlu0 %2450
    %2452 = vrot.lane.b32.xlu0 %v1961, 80
    %v2453 = vpop.permute.xlu0 %2452
    %v2455 = vsel %vm511, %v2451, 0
    %v2458 = vsel %vm511, %v2453, 0
    %2460 = vmatprep.subr.bf16.mxu0 0
    %2461 = vmatpush1.bf16.xpose.msra.mxu0 0
    %2462 = vmatprep.subr.bf16.mxu0 0
    %2463 = vmatpush1.bf16.xpose.msra.mxu0 0
    %2464 = vmatprep.subr.bf16.mxu0 0
    %2465 = vmatpush1.bf16.xpose.msra.mxu0 0
    %2466 = vmatprep.subr.bf16.mxu0 0
    %2467 = vmatpush1.bf16.xpose.msra.mxu0 0
    %2468 = vmatprep.subr.bf16.mxu0 0
    %2469 = vmatpush1.bf16.xpose.msra.mxu0 0
    %2470 = vmatprep.subr.bf16.mxu0 0
    %2471 = vmatpush1.bf16.xpose.msra.mxu0 0
    %2472 = vmatprep.subr.bf16.mxu0 0
    %2473 = vmatpush1.bf16.xpose.msra.mxu0 0
    %2474 = vmatprep.subr.bf16.mxu0 0
    %2475 = vmatpush1.bf16.xpose.msra.mxu0 %v2458
    %2476 = vmatprep.subr.bf16.mxu0 0
    %2477 = vmatpush2.bf16.xpose.msra.mxu0 0
    %2478 = vmatprep.subr.bf16.mxu0 0
    %2479 = vmatpush2.bf16.xpose.msra.mxu0 0
    %2480 = vmatprep.subr.bf16.mxu0 0
    %2481 = vmatpush2.bf16.xpose.msra.mxu0 0
    %2482 = vmatprep.subr.bf16.mxu0 0
    %2483 = vmatpush2.bf16.xpose.msra.mxu0 0
    %2484 = vmatprep.subr.bf16.mxu0 0
    %2485 = vmatpush2.bf16.xpose.msra.mxu0 0
    %2486 = vmatprep.subr.bf16.mxu0 0
    %2487 = vmatpush2.bf16.xpose.msra.mxu0 0
    %2488 = vmatprep.subr.bf16.mxu0 0
    %2489 = vmatpush2.bf16.xpose.msra.mxu0 0
    %2490 = vmatprep.subr.bf16.mxu0 0
    %2491 = vmatpush2.bf16.xpose.msra.mxu0 0
    %2492 = vmatprep.mubr.bf16.mxu0 0
    %2493 = vmatmul.mubr.bf16.gmra.mxu0 %v2455
    %v2494 = vpop.f32.mrf.mxu0
    %v2495 = vadd.f32 %v505, %v2494
    %v2496 = vpop.f32.mrf.mxu0
    %v2497 = vpop.f32.mrf.mxu0
    %v2498 = vpop.f32.mrf.mxu0
    %2499 = vdwg.mxu0
    %v2500 = vsel %vm511, %v2445, -inf
    %2501 = vmax.xlane.f32.xlu0 %v2500
    %v2502 = vpop.xlane.xlu0 %2501
    %v2503 = vsel %vm511, %v2495, -inf
    %2504 = vmax.xlane.f32.xlu0 %v2503
    %v2505 = vpop.xlane.xlu0 %2504
    %v2506 = vsub.f32 %v2445, %v2502
    %v2507 = vsub.f32 %v2495, %v2505
    %v2508 = vmul.f32 %v2506, 1.442695
    %v2509 = vpow.pop %v2508
    %v2510 = vmul.f32 %v2507, 1.442695
    %v2511 = vpow.pop %v2510
    %v2512 = vsel %vm511, %v2509, 0.0
    %2513 = vadd.xlane.f32.xlu0 %v2512
    %v2514 = vpop.xlane.xlu0 %2513
    %v2515 = vsel %vm511, %v2511, 0.0
    %2516 = vadd.xlane.f32.xlu0 %v2515
    %v2517 = vpop.xlane.xlu0 %2516
    %v2518 = vrcp.pop %v2514
    %v2519 = vrcp.pop %v2517
    %v2520 = vmul.f32 %v2509, %v2518
    %v2521 = vmul.f32 %v2511, %v2519
    %v2522 = vpack.c.bf16 %v2520, %v2520
    %v2523 = vpack.c.bf16 %v2521, %v2521
    %2524 = vrot.lane.b32.xlu0 %v1960, 48
    %v2525 = vpop.permute.xlu0 %2524
    %v2527 = vsel %vm511, %v2522, 0
    %v2530 = vsel %vm636, %v2525, 0
    %2532 = vmatprep.subr.bf16.mxu0 0
    %2533 = vmatpush1.bf16.msra.mxu0 0
    %2534 = vmatprep.subr.bf16.mxu0 0
    %2535 = vmatpush1.bf16.msra.mxu0 0
    %2536 = vmatprep.subr.bf16.mxu0 0
    %2537 = vmatpush1.bf16.msra.mxu0 0
    %2538 = vmatprep.subr.bf16.mxu0 0
    %2539 = vmatpush1.bf16.msra.mxu0 0
    %2540 = vmatprep.subr.bf16.mxu0 0
    %2541 = vmatpush1.bf16.msra.mxu0 0
    %2542 = vmatprep.subr.bf16.mxu0 0
    %2543 = vmatpush1.bf16.msra.mxu0 0
    %2544 = vmatprep.subr.bf16.mxu0 0
    %2545 = vmatpush1.bf16.msra.mxu0 0
    %2546 = vmatprep.subr.bf16.mxu0 0
    %2547 = vmatpush1.bf16.msra.mxu0 %v2530
    %2548 = vmatprep.subr.bf16.mxu0 0
    %2549 = vmatpush2.bf16.msra.mxu0 0
    %2550 = vmatprep.subr.bf16.mxu0 0
    %2551 = vmatpush2.bf16.msra.mxu0 0
    %2552 = vmatprep.subr.bf16.mxu0 0
    %2553 = vmatpush2.bf16.msra.mxu0 0
    %2554 = vmatprep.subr.bf16.mxu0 0
    %2555 = vmatpush2.bf16.msra.mxu0 0
    %2556 = vmatprep.subr.bf16.mxu0 0
    %2557 = vmatpush2.bf16.msra.mxu0 0
    %2558 = vmatprep.subr.bf16.mxu0 0
    %2559 = vmatpush2.bf16.msra.mxu0 0
    %2560 = vmatprep.subr.bf16.mxu0 0
    %2561 = vmatpush2.bf16.msra.mxu0 0
    %2562 = vmatprep.subr.bf16.mxu0 0
    %2563 = vmatpush2.bf16.msra.mxu0 0
    %2564 = vmatprep.mubr.bf16.mxu0 0
    %2565 = vmatmul.mubr.bf16.gmra.mxu0 %v2527
    %v2566 = vpop.f32.mrf.mxu0
    %v2567 = vadd.f32 0.0, %v2566
    %v2568 = vpop.f32.mrf.mxu0
    %v2569 = vpop.f32.mrf.mxu0
    %v2570 = vpop.f32.mrf.mxu0
    %2571 = vdwg.mxu0
    %2572 = vrot.lane.b32.xlu0 %v1961, 48
    %v2573 = vpop.permute.xlu0 %2572
    %v2575 = vsel %vm511, %v2523, 0
    %v2578 = vsel %vm636, %v2573, 0
    %2580 = vmatprep.subr.bf16.mxu0 0
    %2581 = vmatpush1.bf16.msra.mxu0 0
    %2582 = vmatprep.subr.bf16.mxu0 0
    %2583 = vmatpush1.bf16.msra.mxu0 0
    %2584 = vmatprep.subr.bf16.mxu0 0
    %2585 = vmatpush1.bf16.msra.mxu0 0
    %2586 = vmatprep.subr.bf16.mxu0 0
    %2587 = vmatpush1.bf16.msra.mxu0 0
    %2588 = vmatprep.subr.bf16.mxu0 0
    %2589 = vmatpush1.bf16.msra.mxu0 0
    %2590 = vmatprep.subr.bf16.mxu0 0
    %2591 = vmatpush1.bf16.msra.mxu0 0
    %2592 = vmatprep.subr.bf16.mxu0 0
    %2593 = vmatpush1.bf16.msra.mxu0 0
    %2594 = vmatprep.subr.bf16.mxu0 0
    %2595 = vmatpush1.bf16.msra.mxu0 %v2578
    %2596 = vmatprep.subr.bf16.mxu0 0
    %2597 = vmatpush2.bf16.msra.mxu0 0
    %2598 = vmatprep.subr.bf16.mxu0 0
    %2599 = vmatpush2.bf16.msra.mxu0 0
    %2600 = vmatprep.subr.bf16.mxu0 0
    %2601 = vmatpush2.bf16.msra.mxu0 0
    %2602 = vmatprep.subr.bf16.mxu0 0
    %2603 = vmatpush2.bf16.msra.mxu0 0
    %2604 = vmatprep.subr.bf16.mxu0 0
    %2605 = vmatpush2.bf16.msra.mxu0 0
    %2606 = vmatprep.subr.bf16.mxu0 0
    %2607 = vmatpush2.bf16.msra.mxu0 0
    %2608 = vmatprep.subr.bf16.mxu0 0
    %2609 = vmatpush2.bf16.msra.mxu0 0
    %2610 = vmatprep.subr.bf16.mxu0 0
    %2611 = vmatpush2.bf16.msra.mxu0 0
    %2612 = vmatprep.mubr.bf16.mxu0 0
    %2613 = vmatmul.mubr.bf16.gmra.mxu0 %v2575
    %v2614 = vpop.f32.mrf.mxu0
    %v2615 = vadd.f32 0.0, %v2614
    %v2616 = vpop.f32.mrf.mxu0
    %v2617 = vpop.f32.mrf.mxu0
    %v2618 = vpop.f32.mrf.mxu0
    %2619 = vdwg.mxu0
    %2620 = vrot.lane.b32.xlu0 %v1960, 104
    %v2621 = vpop.permute.xlu0 %2620
    %2622 = vrot.lane.b32.xlu0 %v1960, 72
    %v2623 = vpop.permute.xlu0 %2622
    %v2625 = vsel %vm511, %v2621, 0
    %v2628 = vsel %vm511, %v2623, 0
    %2630 = vmatprep.subr.bf16.mxu0 0
    %2631 = vmatpush1.bf16.xpose.msra.mxu0 0
    %2632 = vmatprep.subr.bf16.mxu0 0
    %2633 = vmatpush1.bf16.xpose.msra.mxu0 0
    %2634 = vmatprep.subr.bf16.mxu0 0
    %2635 = vmatpush1.bf16.xpose.msra.mxu0 0
    %2636 = vmatprep.subr.bf16.mxu0 0
    %2637 = vmatpush1.bf16.xpose.msra.mxu0 0
    %2638 = vmatprep.subr.bf16.mxu0 0
    %2639 = vmatpush1.bf16.xpose.msra.mxu0 0
    %2640 = vmatprep.subr.bf16.mxu0 0
    %2641 = vmatpush1.bf16.xpose.msra.mxu0 0
    %2642 = vmatprep.subr.bf16.mxu0 0
    %2643 = vmatpush1.bf16.xpose.msra.mxu0 0
    %2644 = vmatprep.subr.bf16.mxu0 0
    %2645 = vmatpush1.bf16.xpose.msra.mxu0 %v2628
    %2646 = vmatprep.subr.bf16.mxu0 0
    %2647 = vmatpush2.bf16.xpose.msra.mxu0 0
    %2648 = vmatprep.subr.bf16.mxu0 0
    %2649 = vmatpush2.bf16.xpose.msra.mxu0 0
    %2650 = vmatprep.subr.bf16.mxu0 0
    %2651 = vmatpush2.bf16.xpose.msra.mxu0 0
    %2652 = vmatprep.subr.bf16.mxu0 0
    %2653 = vmatpush2.bf16.xpose.msra.mxu0 0
    %2654 = vmatprep.subr.bf16.mxu0 0
    %2655 = vmatpush2.bf16.xpose.msra.mxu0 0
    %2656 = vmatprep.subr.bf16.mxu0 0
    %2657 = vmatpush2.bf16.xpose.msra.mxu0 0
    %2658 = vmatprep.subr.bf16.mxu0 0
    %2659 = vmatpush2.bf16.xpose.msra.mxu0 0
    %2660 = vmatprep.subr.bf16.mxu0 0
    %2661 = vmatpush2.bf16.xpose.msra.mxu0 0
    %2662 = vmatprep.mubr.bf16.mxu0 0
    %2663 = vmatmul.mubr.bf16.gmra.mxu0 %v2625
    %v2664 = vpop.f32.mrf.mxu0
    %v2665 = vadd.f32 %v501, %v2664
    %v2666 = vpop.f32.mrf.mxu0
    %v2667 = vpop.f32.mrf.mxu0
    %v2668 = vpop.f32.mrf.mxu0
    %2669 = vdwg.mxu0
    %2670 = vrot.lane.b32.xlu0 %v1961, 104
    %v2671 = vpop.permute.xlu0 %2670
    %2672 = vrot.lane.b32.xlu0 %v1961, 72
    %v2673 = vpop.permute.xlu0 %2672
    %v2675 = vsel %vm511, %v2671, 0
    %v2678 = vsel %vm511, %v2673, 0
    %2680 = vmatprep.subr.bf16.mxu0 0
    %2681 = vmatpush1.bf16.xpose.msra.mxu0 0
    %2682 = vmatprep.subr.bf16.mxu0 0
    %2683 = vmatpush1.bf16.xpose.msra.mxu0 0
    %2684 = vmatprep.subr.bf16.mxu0 0
    %2685 = vmatpush1.bf16.xpose.msra.mxu0 0
    %2686 = vmatprep.subr.bf16.mxu0 0
    %2687 = vmatpush1.bf16.xpose.msra.mxu0 0
    %2688 = vmatprep.subr.bf16.mxu0 0
    %2689 = vmatpush1.bf16.xpose.msra.mxu0 0
    %2690 = vmatprep.subr.bf16.mxu0 0
    %2691 = vmatpush1.bf16.xpose.msra.mxu0 0
    %2692 = vmatprep.subr.bf16.mxu0 0
    %2693 = vmatpush1.bf16.xpose.msra.mxu0 0
    %2694 = vmatprep.subr.bf16.mxu0 0
    %2695 = vmatpush1.bf16.xpose.msra.mxu0 %v2678
    %2696 = vmatprep.subr.bf16.mxu0 0
    %2697 = vmatpush2.bf16.xpose.msra.mxu0 0
    %2698 = vmatprep.subr.bf16.mxu0 0
    %2699 = vmatpush2.bf16.xpose.msra.mxu0 0
    %2700 = vmatprep.subr.bf16.mxu0 0
    %2701 = vmatpush2.bf16.xpose.msra.mxu0 0
    %2702 = vmatprep.subr.bf16.mxu0 0
    %2703 = vmatpush2.bf16.xpose.msra.mxu0 0
    %2704 = vmatprep.subr.bf16.mxu0 0
    %2705 = vmatpush2.bf16.xpose.msra.mxu0 0
    %2706 = vmatprep.subr.bf16.mxu0 0
    %2707 = vmatpush2.bf16.xpose.msra.mxu0 0
    %2708 = vmatprep.subr.bf16.mxu0 0
    %2709 = vmatpush2.bf16.xpose.msra.mxu0 0
    %2710 = vmatprep.subr.bf16.mxu0 0
    %2711 = vmatpush2.bf16.xpose.msra.mxu0 0
    %2712 = vmatprep.mubr.bf16.mxu0 0
    %2713 = vmatmul.mubr.bf16.gmra.mxu0 %v2675
    %v2714 = vpop.f32.mrf.mxu0
    %v2715 = vadd.f32 %v505, %v2714
    %v2716 = vpop.f32.mrf.mxu0
    %v2717 = vpop.f32.mrf.mxu0
    %v2718 = vpop.f32.mrf.mxu0
    %2719 = vdwg.mxu0
    %v2720 = vsel %vm511, %v2665, -inf
    %2721 = vmax.xlane.f32.xlu0 %v2720
    %v2722 = vpop.xlane.xlu0 %2721
    %v2723 = vsel %vm511, %v2715, -inf
    %2724 = vmax.xlane.f32.xlu0 %v2723
    %v2725 = vpop.xlane.xlu0 %2724
    %v2726 = vsub.f32 %v2665, %v2722
    %v2727 = vsub.f32 %v2715, %v2725
    %v2728 = vmul.f32 %v2726, 1.442695
    %v2729 = vpow.pop %v2728
    %v2730 = vmul.f32 %v2727, 1.442695
    %v2731 = vpow.pop %v2730
    %v2732 = vsel %vm511, %v2729, 0.0
    %2733 = vadd.xlane.f32.xlu0 %v2732
    %v2734 = vpop.xlane.xlu0 %2733
    %v2735 = vsel %vm511, %v2731, 0.0
    %2736 = vadd.xlane.f32.xlu0 %v2735
    %v2737 = vpop.xlane.xlu0 %2736
    %v2738 = vrcp.pop %v2734
    %v2739 = vrcp.pop %v2737
    %v2740 = vmul.f32 %v2729, %v2738
    %v2741 = vmul.f32 %v2731, %v2739
    %v2742 = vpack.c.bf16 %v2740, %v2740
    %v2743 = vpack.c.bf16 %v2741, %v2741
    %2744 = vrot.lane.b32.xlu0 %v1960, 40
    %v2745 = vpop.permute.xlu0 %2744
    %v2747 = vsel %vm511, %v2742, 0
    %v2750 = vsel %vm636, %v2745, 0
    %2752 = vmatprep.subr.bf16.mxu0 0
    %2753 = vmatpush1.bf16.msra.mxu0 0
    %2754 = vmatprep.subr.bf16.mxu0 0
    %2755 = vmatpush1.bf16.msra.mxu0 0
    %2756 = vmatprep.subr.bf16.mxu0 0
    %2757 = vmatpush1.bf16.msra.mxu0 0
    %2758 = vmatprep.subr.bf16.mxu0 0
    %2759 = vmatpush1.bf16.msra.mxu0 0
    %2760 = vmatprep.subr.bf16.mxu0 0
    %2761 = vmatpush1.bf16.msra.mxu0 0
    %2762 = vmatprep.subr.bf16.mxu0 0
    %2763 = vmatpush1.bf16.msra.mxu0 0
    %2764 = vmatprep.subr.bf16.mxu0 0
    %2765 = vmatpush1.bf16.msra.mxu0 0
    %2766 = vmatprep.subr.bf16.mxu0 0
    %2767 = vmatpush1.bf16.msra.mxu0 %v2750
    %2768 = vmatprep.subr.bf16.mxu0 0
    %2769 = vmatpush2.bf16.msra.mxu0 0
    %2770 = vmatprep.subr.bf16.mxu0 0
    %2771 = vmatpush2.bf16.msra.mxu0 0
    %2772 = vmatprep.subr.bf16.mxu0 0
    %2773 = vmatpush2.bf16.msra.mxu0 0
    %2774 = vmatprep.subr.bf16.mxu0 0
    %2775 = vmatpush2.bf16.msra.mxu0 0
    %2776 = vmatprep.subr.bf16.mxu0 0
    %2777 = vmatpush2.bf16.msra.mxu0 0
    %2778 = vmatprep.subr.bf16.mxu0 0
    %2779 = vmatpush2.bf16.msra.mxu0 0
    %2780 = vmatprep.subr.bf16.mxu0 0
    %2781 = vmatpush2.bf16.msra.mxu0 0
    %2782 = vmatprep.subr.bf16.mxu0 0
    %2783 = vmatpush2.bf16.msra.mxu0 0
    %2784 = vmatprep.mubr.bf16.mxu0 0
    %2785 = vmatmul.mubr.bf16.gmra.mxu0 %v2747
    %v2786 = vpop.f32.mrf.mxu0
    %v2787 = vadd.f32 0.0, %v2786
    %v2788 = vpop.f32.mrf.mxu0
    %v2789 = vpop.f32.mrf.mxu0
    %v2790 = vpop.f32.mrf.mxu0
    %2791 = vdwg.mxu0
    %2792 = vrot.lane.b32.xlu0 %v1961, 40
    %v2793 = vpop.permute.xlu0 %2792
    %v2795 = vsel %vm511, %v2743, 0
    %v2798 = vsel %vm636, %v2793, 0
    %2800 = vmatprep.subr.bf16.mxu0 0
    %2801 = vmatpush1.bf16.msra.mxu0 0
    %2802 = vmatprep.subr.bf16.mxu0 0
    %2803 = vmatpush1.bf16.msra.mxu0 0
    %2804 = vmatprep.subr.bf16.mxu0 0
    %2805 = vmatpush1.bf16.msra.mxu0 0
    %2806 = vmatprep.subr.bf16.mxu0 0
    %2807 = vmatpush1.bf16.msra.mxu0 0
    %2808 = vmatprep.subr.bf16.mxu0 0
    %2809 = vmatpush1.bf16.msra.mxu0 0
    %2810 = vmatprep.subr.bf16.mxu0 0
    %2811 = vmatpush1.bf16.msra.mxu0 0
    %2812 = vmatprep.subr.bf16.mxu0 0
    %2813 = vmatpush1.bf16.msra.mxu0 0
    %2814 = vmatprep.subr.bf16.mxu0 0
    %2815 = vmatpush1.bf16.msra.mxu0 %v2798
    %2816 = vmatprep.subr.bf16.mxu0 0
    %2817 = vmatpush2.bf16.msra.mxu0 0
    %2818 = vmatprep.subr.bf16.mxu0 0
    %2819 = vmatpush2.bf16.msra.mxu0 0
    %2820 = vmatprep.subr.bf16.mxu0 0
    %2821 = vmatpush2.bf16.msra.mxu0 0
    %2822 = vmatprep.subr.bf16.mxu0 0
    %2823 = vmatpush2.bf16.msra.mxu0 0
    %2824 = vmatprep.subr.bf16.mxu0 0
    %2825 = vmatpush2.bf16.msra.mxu0 0
    %2826 = vmatprep.subr.bf16.mxu0 0
    %2827 = vmatpush2.bf16.msra.mxu0 0
    %2828 = vmatprep.subr.bf16.mxu0 0
    %2829 = vmatpush2.bf16.msra.mxu0 0
    %2830 = vmatprep.subr.bf16.mxu0 0
    %2831 = vmatpush2.bf16.msra.mxu0 0
    %2832 = vmatprep.mubr.bf16.mxu0 0
    %2833 = vmatmul.mubr.bf16.gmra.mxu0 %v2795
    %v2834 = vpop.f32.mrf.mxu0
    %v2835 = vadd.f32 0.0, %v2834
    %v2836 = vpop.f32.mrf.mxu0
    %v2837 = vpop.f32.mrf.mxu0
    %v2838 = vpop.f32.mrf.mxu0
    %2839 = vdwg.mxu0
    %2842 = vrot.lane.b32.xlu0 %v2347, 8
    %v2843 = vpop.permute.xlu0 %2842
    %2844 = vrot.lane.b32.xlu0 %v2395, 8
    %v2845 = vpop.permute.xlu0 %2844
    %2850 = vrot.lane.b32.xlu0 %v2567, 16
    %v2851 = vpop.permute.xlu0 %2850
    %2852 = vrot.lane.b32.xlu0 %v2615, 16
    %v2853 = vpop.permute.xlu0 %2852
    %2858 = vrot.lane.b32.xlu0 %v2787, 24
    %v2859 = vpop.permute.xlu0 %2858
    %2860 = vrot.lane.b32.xlu0 %v2835, 24
    %v2861 = vpop.permute.xlu0 %2860
    %v2864 = vsel %vm511, %v2127, %v2843
    %v2865 = vsel %vm511, %v2175, %v2845
    %v2866 = vsel %vm1414, %v2864, %v2851
    %v2867 = vsel %vm1414, %v2865, %v2853
    %v2868 = vsel %vm1417, %v2866, %v2859
    %v2869 = vsel %vm1417, %v2867, %v2861
    %v2870 = vpack.c.bf16 %v2869, %v2868
    %v2871 = vlaneseq
    %v2872 = vshrl.u32 %v2871, 7
    %v2873 = vsub.s32 1, %v2872
    %v2874 = vrot.slane %v1865, %v2873
    %v2879 = vunpack.c.l.b16 %v1826
    %v2880 = vunpack.c.l.b16 %v1827
    %v2881 = vunpack.c.l.b16 %v1828
    %v2882 = vunpack.c.l.b16 %v1829
    %v2883 = vpack.c.b16 %v2880, %v2879
    %v2884 = vpack.c.b16 %v2882, %v2881
    %v2888 = vsel %vm1437, %v2870, 0
    %2890 = vmatprep.subr.bf16.mxu0 0
    %2891 = vmatpush1.bf16.msra.mxu0 0
    %2892 = vmatprep.subr.bf16.mxu0 0
    %2893 = vmatpush1.bf16.msra.mxu0 0
    %2894 = vmatprep.subr.bf16.mxu0 0
    %2895 = vmatpush1.bf16.msra.mxu0 0
    %2896 = vmatprep.subr.bf16.mxu0 0
    %2897 = vmatpush1.bf16.msra.mxu0 0
    %2898 = vmatprep.subr.bf16.mxu0 0
    %2899 = vmatpush1.bf16.msra.mxu0 0
    %2900 = vmatprep.subr.bf16.mxu0 0
    %2901 = vmatpush1.bf16.msra.mxu0 0
    %2902 = vmatprep.subr.bf16.mxu0 0
    %2903 = vmatpush1.bf16.msra.mxu0 %v2884
    %2904 = vmatprep.subr.bf16.mxu0 0
    %2905 = vmatpush1.bf16.msra.mxu0 %v2883
    %2906 = vmatprep.subr.bf16.mxu0 0
    %2907 = vmatpush2.bf16.msra.mxu0 0
    %2908 = vmatprep.subr.bf16.mxu0 0
    %2909 = vmatpush2.bf16.msra.mxu0 0
    %2910 = vmatprep.subr.bf16.mxu0 0
    %2911 = vmatpush2.bf16.msra.mxu0 0
    %2912 = vmatprep.subr.bf16.mxu0 0
    %2913 = vmatpush2.bf16.msra.mxu0 0
    %2914 = vmatprep.subr.bf16.mxu0 0
    %2915 = vmatpush2.bf16.msra.mxu0 0
    %2916 = vmatprep.subr.bf16.mxu0 0
    %2917 = vmatpush2.bf16.msra.mxu0 0
    %2918 = vmatprep.subr.bf16.mxu0 0
    %2919 = vmatpush2.bf16.msra.mxu0 0
    %2920 = vmatprep.subr.bf16.mxu0 0
    %2921 = vmatpush2.bf16.msra.mxu0 0
    %2922 = vmatprep.mubr.bf16.mxu0 0
    %2923 = vmatmul.mubr.bf16.gmra.mxu0 %v2888
    %v2924 = vpop.f32.mrf.mxu0
    %v2925 = vadd.f32 %v2874, %v2924
    %v2926 = vpop.f32.mrf.mxu0
    %v2927 = vpop.f32.mrf.mxu0
    %v2928 = vadd.f32 %v2874, %v2927
    %v2929 = vpop.f32.mrf.mxu0
    %2930 = vdwg.mxu0
    %v2931 = vadd.f32 %v1804, %v2925
    %v2932 = vadd.f32 %v1805, %v2928
    %2933 = vadd.xlane.f32.xlu0 %v2931
    %v2934 = vpop.xlane.xlu0 %2933
    %2935 = vadd.xlane.f32.xlu0 %v2932
    %v2936 = vpop.xlane.xlu0 %2935
    %v2937 = vmul.f32 %v2934, 0.03125
    %v2938 = vmul.f32 %v2936, 0.03125
    %v2939 = vmul.f32 %v2931, %v2931
    %v2940 = vmul.f32 %v2932, %v2932
    %2941 = vadd.xlane.f32.xlu0 %v2939
    %v2942 = vpop.xlane.xlu0 %2941
    %2943 = vadd.xlane.f32.xlu0 %v2940
    %v2944 = vpop.xlane.xlu0 %2943
    %v2945 = vmul.f32 %v2942, 0.03125
    %v2946 = vmul.f32 %v2944, 0.03125
    %v2947 = vmul.f32 %v2937, %v2937
    %v2948 = vmul.f32 %v2938, %v2938
    %v2949 = vsub.f32 %v2945, %v2947
    %v2950 = vsub.f32 %v2946, %v2948
    %v2951 = vmax.f32 %v2949, 0.0
    %v2952 = vmax.f32 %v2950, 0.0
    %v2953 = vsub.f32 %v2931, %v2937
    %v2954 = vsub.f32 %v2932, %v2938
    %v2955 = vadd.f32 %v2951, 1e-12
    %v2956 = vadd.f32 %v2952, 1e-12
    %v2957 = vrsqrt.pop %v2955
    %v2958 = vrsqrt.pop %v2956
    %v2959 = vmul.f32 %v2953, %v2957
    %v2960 = vmul.f32 %v2954, %v2958
    %v2961 = vlaneseq
    %v2962 = vshrl.u32 %v2961, 7
    %v2963 = vsub.s32 4, %v2962
    %v2964 = vrot.slane %v1865, %v2963
    %v2965 = vmul.f32 %v2959, %v2964
    %v2966 = vmul.f32 %v2960, %v2964
    %v2967 = vlaneseq
    %v2968 = vshrl.u32 %v2967, 7
    %v2969 = vsub.s32 5, %v2968
    %v2970 = vrot.slane %v1865, %v2969
    %v2971 = vadd.f32 %v2965, %v2970
    %v2972 = vadd.f32 %v2966, %v2970
    %v2973 = vpack.c.bf16 %v2972, %v2971
    %v2974 = vlaneseq
    %v2975 = vshrl.u32 %v2974, 7
    %v2976 = vsub.s32 2, %v2975
    %v2977 = vrot.slane %v1865, %v2976
    %v2994 = vunpack.c.l.b16 %v1831
    %v2995 = vunpack.c.l.b16 %v1832
    %v2996 = vunpack.c.l.b16 %v1833
    %v2997 = vunpack.c.l.b16 %v1834
    %v2998 = vunpack.c.l.b16 %v1835
    %v2999 = vunpack.c.l.b16 %v1836
    %v3000 = vunpack.c.l.b16 %v1837
    %v3001 = vunpack.c.l.b16 %v1838
    %v3002 = vunpack.c.l.b16 %v1839
    %v3003 = vunpack.c.l.b16 %v1840
    %v3004 = vunpack.c.l.b16 %v1841
    %v3005 = vunpack.c.l.b16 %v1842
    %v3006 = vunpack.c.l.b16 %v1843
    %v3007 = vunpack.c.l.b16 %v1844
    %v3008 = vunpack.c.l.b16 %v1845
    %v3009 = vunpack.c.l.b16 %v1846
    %v3010 = vpack.c.b16 %v2995, %v2994
    %v3011 = vpack.c.b16 %v2997, %v2996
    %v3012 = vpack.c.b16 %v2999, %v2998
    %v3013 = vpack.c.b16 %v3001, %v3000
    %v3014 = vpack.c.b16 %v3003, %v3002
    %v3015 = vpack.c.b16 %v3005, %v3004
    %v3016 = vpack.c.b16 %v3007, %v3006
    %v3017 = vpack.c.b16 %v3009, %v3008
    %3026 = vmatprep.subr.bf16.mxu0 0
    %3027 = vmatpush1.bf16.msra.mxu0 %v3017
    %3028 = vmatprep.subr.bf16.mxu0 0
    %3029 = vmatpush1.bf16.msra.mxu0 %v3016
    %3030 = vmatprep.subr.bf16.mxu0 0
    %3031 = vmatpush1.bf16.msra.mxu0 %v3015
    %3032 = vmatprep.subr.bf16.mxu0 0
    %3033 = vmatpush1.bf16.msra.mxu0 %v3014
    %3034 = vmatprep.subr.bf16.mxu0 0
    %3035 = vmatpush1.bf16.msra.mxu0 %v3013
    %3036 = vmatprep.subr.bf16.mxu0 0
    %3037 = vmatpush1.bf16.msra.mxu0 %v3012
    %3038 = vmatprep.subr.bf16.mxu0 0
    %3039 = vmatpush1.bf16.msra.mxu0 %v3011
    %3040 = vmatprep.subr.bf16.mxu0 0
    %3041 = vmatpush1.bf16.msra.mxu0 %v3010
    %3042 = vmatprep.subr.bf16.mxu0 0
    %3043 = vmatpush2.bf16.msra.mxu0 0
    %3044 = vmatprep.subr.bf16.mxu0 0
    %3045 = vmatpush2.bf16.msra.mxu0 0
    %3046 = vmatprep.subr.bf16.mxu0 0
    %3047 = vmatpush2.bf16.msra.mxu0 0
    %3048 = vmatprep.subr.bf16.mxu0 0
    %3049 = vmatpush2.bf16.msra.mxu0 0
    %3050 = vmatprep.subr.bf16.mxu0 0
    %3051 = vmatpush2.bf16.msra.mxu0 0
    %3052 = vmatprep.subr.bf16.mxu0 0
    %3053 = vmatpush2.bf16.msra.mxu0 0
    %3054 = vmatprep.subr.bf16.mxu0 0
    %3055 = vmatpush2.bf16.msra.mxu0 0
    %3056 = vmatprep.subr.bf16.mxu0 0
    %3057 = vmatpush2.bf16.msra.mxu0 0
    %3058 = vmatprep.mubr.bf16.mxu0 0
    %3059 = vmatmul.mubr.bf16.gmra.mxu0 %v2973
    %v3060 = vpop.f32.mrf.mxu0
    %v3061 = vadd.f32 %v2977, %v3060
    %v3062 = vpop.f32.mrf.mxu0
    %v3063 = vpop.f32.mrf.mxu0
    %v3064 = vadd.f32 %v2977, %v3063
    %v3065 = vpop.f32.mrf.mxu0
    %3066 = vdwg.mxu0
    %v3067 = vmul.f32 %v3061, 0.5
    %v3068 = vmul.f32 %v3064, 0.5
    %v3069 = vmul.f32 %v3061, 0.70710677
    %v3070 = vmul.f32 %v3064, 0.70710677
    %vm3071 = vcmp.lt.f32.partialorder %v3069, 0.0
    %vm3072 = vcmp.lt.f32.partialorder %v3070, 0.0
    %v3073 = vsel %vm3071, -1.0, 1.0
    %v3074 = vsel %vm3072, -1.0, 1.0
    %v3075 = vand.u32 2147483647, %v3069
    %v3076 = vand.u32 2147483647, %v3070
    %v3077 = vmul.f32 %v3075, 0.3275911
    %v3078 = vmul.f32 %v3076, 0.3275911
    %v3079 = vadd.f32 %v3077, 1.0
    %v3080 = vadd.f32 %v3078, 1.0
    %v3081 = vrcp.pop %v3079
    %v3082 = vrcp.pop %v3080
    %v3083 = vmul.f32 %v3081, 1.0614054
    %v3084 = vmul.f32 %v3082, 1.0614054
    %v3085 = vadd.f32 %v3083, -1.4531521
    %v3086 = vadd.f32 %v3084, -1.4531521
    %v3087 = vmul.f32 %v3085, %v3081
    %v3088 = vmul.f32 %v3086, %v3082
    %v3089 = vadd.f32 %v3087, 1.4214138
    %v3090 = vadd.f32 %v3088, 1.4214138
    %v3091 = vmul.f32 %v3089, %v3081
    %v3092 = vmul.f32 %v3090, %v3082
    %v3093 = vadd.f32 %v3091, -0.28449672
    %v3094 = vadd.f32 %v3092, -0.28449672
    %v3095 = vmul.f32 %v3093, %v3081
    %v3096 = vmul.f32 %v3094, %v3082
    %v3097 = vadd.f32 %v3095, 0.2548296
    %v3098 = vadd.f32 %v3096, 0.2548296
    %v3099 = vmul.f32 %v3097, %v3081
    %v3100 = vmul.f32 %v3098, %v3082
    %v3101 = vsub.f32 0.0, %v3075
    %v3102 = vsub.f32 0.0, %v3076
    %v3103 = vmul.f32 %v3101, %v3075
    %v3104 = vmul.f32 %v3102, %v3076
    %v3105 = vmul.f32 %v3103, 1.442695
    %v3106 = vpow.pop %v3105
    %v3107 = vmul.f32 %v3104, 1.442695
    %v3108 = vpow.pop %v3107
    %v3109 = vmul.f32 %v3099, %v3106
    %v3110 = vmul.f32 %v3100, %v3108
    %v3111 = vsub.f32 1.0, %v3109
    %v3112 = vsub.f32 1.0, %v3110
    %v3113 = vmul.f32 %v3073, %v3111
    %v3114 = vmul.f32 %v3074, %v3112
    %v3115 = vadd.f32 %v3113, 1.0
    %v3116 = vadd.f32 %v3114, 1.0
    %v3117 = vmul.f32 %v3067, %v3115
    %v3118 = vmul.f32 %v3068, %v3116
    %v3119 = vpack.c.bf16 %v3118, %v3117
    %v3120 = vlaneseq
    %v3121 = vshrl.u32 %v3120, 7
    %v3122 = vsub.s32 3, %v3121
    %v3123 = vrot.slane %v1865, %v3122
    %v3140 = vunpack.c.l.b16 %v1848
    %v3141 = vunpack.c.l.b16 %v1849
    %v3142 = vunpack.c.l.b16 %v1850
    %v3143 = vunpack.c.l.b16 %v1851
    %v3144 = vunpack.c.l.b16 %v1852
    %v3145 = vunpack.c.l.b16 %v1853
    %v3146 = vunpack.c.l.b16 %v1854
    %v3147 = vunpack.c.l.b16 %v1855
    %v3148 = vunpack.c.l.b16 %v1856
    %v3149 = vunpack.c.l.b16 %v1857
    %v3150 = vunpack.c.l.b16 %v1858
    %v3151 = vunpack.c.l.b16 %v1859
    %v3152 = vunpack.c.l.b16 %v1860
    %v3153 = vunpack.c.l.b16 %v1861
    %v3154 = vunpack.c.l.b16 %v1862
    %v3155 = vunpack.c.l.b16 %v1863
    %v3156 = vpack.c.b16 %v3141, %v3140
    %v3157 = vpack.c.b16 %v3143, %v3142
    %v3158 = vpack.c.b16 %v3145, %v3144
    %v3159 = vpack.c.b16 %v3147, %v3146
    %v3160 = vpack.c.b16 %v3149, %v3148
    %v3161 = vpack.c.b16 %v3151, %v3150
    %v3162 = vpack.c.b16 %v3153, %v3152
    %v3163 = vpack.c.b16 %v3155, %v3154
    %3172 = vmatprep.subr.bf16.mxu0 0
    %3173 = vmatpush1.bf16.msra.mxu0 %v3163
    %3174 = vmatprep.subr.bf16.mxu0 0
    %3175 = vmatpush1.bf16.msra.mxu0 %v3162
    %3176 = vmatprep.subr.bf16.mxu0 0
    %3177 = vmatpush1.bf16.msra.mxu0 %v3161
    %3178 = vmatprep.subr.bf16.mxu0 0
    %3179 = vmatpush1.bf16.msra.mxu0 %v3160
    %3180 = vmatprep.subr.bf16.mxu0 0
    %3181 = vmatpush1.bf16.msra.mxu0 %v3159
    %3182 = vmatprep.subr.bf16.mxu0 0
    %3183 = vmatpush1.bf16.msra.mxu0 %v3158
    %3184 = vmatprep.subr.bf16.mxu0 0
    %3185 = vmatpush1.bf16.msra.mxu0 %v3157
    %3186 = vmatprep.subr.bf16.mxu0 0
    %3187 = vmatpush1.bf16.msra.mxu0 %v3156
    %3188 = vmatprep.subr.bf16.mxu0 0
    %3189 = vmatpush2.bf16.msra.mxu0 0
    %3190 = vmatprep.subr.bf16.mxu0 0
    %3191 = vmatpush2.bf16.msra.mxu0 0
    %3192 = vmatprep.subr.bf16.mxu0 0
    %3193 = vmatpush2.bf16.msra.mxu0 0
    %3194 = vmatprep.subr.bf16.mxu0 0
    %3195 = vmatpush2.bf16.msra.mxu0 0
    %3196 = vmatprep.subr.bf16.mxu0 0
    %3197 = vmatpush2.bf16.msra.mxu0 0
    %3198 = vmatprep.subr.bf16.mxu0 0
    %3199 = vmatpush2.bf16.msra.mxu0 0
    %3200 = vmatprep.subr.bf16.mxu0 0
    %3201 = vmatpush2.bf16.msra.mxu0 0
    %3202 = vmatprep.subr.bf16.mxu0 0
    %3203 = vmatpush2.bf16.msra.mxu0 0
    %3204 = vmatprep.mubr.bf16.mxu0 0
    %3205 = vmatmul.mubr.bf16.gmra.mxu0 %v3119
    %v3206 = vpop.f32.mrf.mxu0
    %v3207 = vadd.f32 %v3123, %v3206
    %v3208 = vpop.f32.mrf.mxu0
    %v3209 = vpop.f32.mrf.mxu0
    %v3210 = vadd.f32 %v3123, %v3209
    %v3211 = vpop.f32.mrf.mxu0
    %3212 = vdwg.mxu0
    %v3213 = vadd.f32 %v2971, %v3207
    %v3214 = vadd.f32 %v2972, %v3210
    %3215 = vadd.xlane.f32.xlu0 %v3213
    %v3216 = vpop.xlane.xlu0 %3215
    %3217 = vadd.xlane.f32.xlu0 %v3214
    %v3218 = vpop.xlane.xlu0 %3217
    %v3219 = vmul.f32 %v3216, 0.03125
    %v3220 = vmul.f32 %v3218, 0.03125
    %v3221 = vmul.f32 %v3213, %v3213
    %v3222 = vmul.f32 %v3214, %v3214
    %3223 = vadd.xlane.f32.xlu0 %v3221
    %v3224 = vpop.xlane.xlu0 %3223
    %3225 = vadd.xlane.f32.xlu0 %v3222
    %v3226 = vpop.xlane.xlu0 %3225
    %v3227 = vmul.f32 %v3224, 0.03125
    %v3228 = vmul.f32 %v3226, 0.03125
    %v3229 = vmul.f32 %v3219, %v3219
    %v3230 = vmul.f32 %v3220, %v3220
    %v3231 = vsub.f32 %v3227, %v3229
    %v3232 = vsub.f32 %v3228, %v3230
    %v3233 = vmax.f32 %v3231, 0.0
    %v3234 = vmax.f32 %v3232, 0.0
    %v3235 = vsub.f32 %v3213, %v3219
    %v3236 = vsub.f32 %v3214, %v3220
    %v3237 = vadd.f32 %v3233, 1e-12
    %v3238 = vadd.f32 %v3234, 1e-12
    %v3239 = vrsqrt.pop %v3237
    %v3240 = vrsqrt.pop %v3238
    %v3241 = vmul.f32 %v3235, %v3239
    %v3242 = vmul.f32 %v3236, %v3240
    %v3243 = vlaneseq
    %v3244 = vshrl.u32 %v3243, 7
    %v3245 = vsub.s32 6, %v3244
    %v3246 = vrot.slane %v1865, %v3245
    %v3247 = vmul.f32 %v3241, %v3246
    %v3248 = vmul.f32 %v3242, %v3246
    %v3249 = vlaneseq
    %v3250 = vshrl.u32 %v3249, 7
    %v3251 = vsub.s32 7, %v3250
    %v3252 = vrot.slane %v1865, %v3251
    %v3253 = vadd.f32 %v3247, %v3252
    %v3254 = vadd.f32 %v3248, %v3252
    %v3255 = vadd.f32 %v1806, %v3253
    %v3256 = vadd.f32 %v1807, %v3254
    %s3257 = scalar_lea.vmem [#allocation11], 128
    %v3258 = vld [vmem:[%s3257] sm:$0xf]
    %v3259 = vld [vmem:[%s3257 + $0x4] sm:$0xf]
    %v3260 = vld [vmem:[%s3257 + $0x8] sm:$0xf]
    %v3261 = vld [vmem:[%s3257 + $0xc] sm:$0xf]
    %v3262 = vld [vmem:[%s3257 + $0x10] sm:$0xf]
    %v3263 = vld [vmem:[%s3257 + $0x14] sm:$0xf]
    %v3264 = vld [vmem:[%s3257 + $0x18] sm:$0xf]
    %v3265 = vld [vmem:[%s3257 + $0x1c] sm:$0xf]
    %v3266 = vld [vmem:[%s3257 + $0x20] sm:$0xf]
    %v3267 = vld [vmem:[%s3257 + $0x24] sm:$0xf]
    %v3268 = vld [vmem:[%s3257 + $0x28] sm:$0xf]
    %v3269 = vld [vmem:[%s3257 + $0x2c] sm:$0xf]
    %v3270 = vld [vmem:[%s3257 + $0x30] sm:$0xf]
    %v3271 = vld [vmem:[%s3257 + $0x34] sm:$0xf]
    %v3272 = vld [vmem:[%s3257 + $0x38] sm:$0xf]
    %v3273 = vld [vmem:[%s3257 + $0x3c] sm:$0xf]
    %s3274 = scalar_lea.vmem [#allocation13], 32
    %v3275 = vld [vmem:[%s3274] sm:$0xf]
    %v3276 = vld [vmem:[%s3274 + $0x4] sm:$0xf]
    %v3277 = vld [vmem:[%s3274 + $0x8] sm:$0xf]
    %v3278 = vld [vmem:[%s3274 + $0xc] sm:$0xf]
    %s3279 = scalar_lea.vmem [#allocation14], 128
    %v3280 = vld [vmem:[%s3279] sm:$0xf]
    %v3281 = vld [vmem:[%s3279 + $0x4] sm:$0xf]
    %v3282 = vld [vmem:[%s3279 + $0x8] sm:$0xf]
    %v3283 = vld [vmem:[%s3279 + $0xc] sm:$0xf]
    %v3284 = vld [vmem:[%s3279 + $0x10] sm:$0xf]
    %v3285 = vld [vmem:[%s3279 + $0x14] sm:$0xf]
    %v3286 = vld [vmem:[%s3279 + $0x18] sm:$0xf]
    %v3287 = vld [vmem:[%s3279 + $0x1c] sm:$0xf]
    %v3288 = vld [vmem:[%s3279 + $0x20] sm:$0xf]
    %v3289 = vld [vmem:[%s3279 + $0x24] sm:$0xf]
    %v3290 = vld [vmem:[%s3279 + $0x28] sm:$0xf]
    %v3291 = vld [vmem:[%s3279 + $0x2c] sm:$0xf]
    %v3292 = vld [vmem:[%s3279 + $0x30] sm:$0xf]
    %v3293 = vld [vmem:[%s3279 + $0x34] sm:$0xf]
    %v3294 = vld [vmem:[%s3279 + $0x38] sm:$0xf]
    %v3295 = vld [vmem:[%s3279 + $0x3c] sm:$0xf]
    %s3296 = scalar_lea.vmem [#allocation16], 128
    %v3297 = vld [vmem:[%s3296] sm:$0xf]
    %v3298 = vld [vmem:[%s3296 + $0x4] sm:$0xf]
    %v3299 = vld [vmem:[%s3296 + $0x8] sm:$0xf]
    %v3300 = vld [vmem:[%s3296 + $0xc] sm:$0xf]
    %v3301 = vld [vmem:[%s3296 + $0x10] sm:$0xf]
    %v3302 = vld [vmem:[%s3296 + $0x14] sm:$0xf]
    %v3303 = vld [vmem:[%s3296 + $0x18] sm:$0xf]
    %v3304 = vld [vmem:[%s3296 + $0x1c] sm:$0xf]
    %v3305 = vld [vmem:[%s3296 + $0x20] sm:$0xf]
    %v3306 = vld [vmem:[%s3296 + $0x24] sm:$0xf]
    %v3307 = vld [vmem:[%s3296 + $0x28] sm:$0xf]
    %v3308 = vld [vmem:[%s3296 + $0x2c] sm:$0xf]
    %v3309 = vld [vmem:[%s3296 + $0x30] sm:$0xf]
    %v3310 = vld [vmem:[%s3296 + $0x34] sm:$0xf]
    %v3311 = vld [vmem:[%s3296 + $0x38] sm:$0xf]
    %v3312 = vld [vmem:[%s3296 + $0x3c] sm:$0xf]
    %s3313 = scalar_lea.vmem [#allocation17], 16
    %v3314 = vld [vmem:[%s3313] sm:$0xff]
    %v3315 = vpack.c.bf16 %v3254, %v3253
    %v3316 = vlaneseq
    %v3317 = vshrl.u32 %v3316, 7
    %v3318 = vsub.s32 0, %v3317
    %v3319 = vrot.slane %v3314, %v3318
    %v3336 = vunpack.c.l.b16 %v3258
    %v3337 = vunpack.c.l.b16 %v3259
    %v3338 = vunpack.c.l.b16 %v3260
    %v3339 = vunpack.c.l.b16 %v3261
    %v3340 = vunpack.c.l.b16 %v3262
    %v3341 = vunpack.c.l.b16 %v3263
    %v3342 = vunpack.c.l.b16 %v3264
    %v3343 = vunpack.c.l.b16 %v3265
    %v3344 = vunpack.c.l.b16 %v3266
    %v3345 = vunpack.c.l.b16 %v3267
    %v3346 = vunpack.c.l.b16 %v3268
    %v3347 = vunpack.c.l.b16 %v3269
    %v3348 = vunpack.c.l.b16 %v3270
    %v3349 = vunpack.c.l.b16 %v3271
    %v3350 = vunpack.c.l.b16 %v3272
    %v3351 = vunpack.c.l.b16 %v3273
    %v3352 = vpack.c.b16 %v3337, %v3336
    %v3353 = vpack.c.b16 %v3339, %v3338
    %v3354 = vpack.c.b16 %v3341, %v3340
    %v3355 = vpack.c.b16 %v3343, %v3342
    %v3356 = vpack.c.b16 %v3345, %v3344
    %v3357 = vpack.c.b16 %v3347, %v3346
    %v3358 = vpack.c.b16 %v3349, %v3348
    %v3359 = vpack.c.b16 %v3351, %v3350
    %3368 = vmatprep.subr.bf16.mxu0 0
    %3369 = vmatpush1.bf16.msra.mxu0 %v3359
    %3370 = vmatprep.subr.bf16.mxu0 0
    %3371 = vmatpush1.bf16.msra.mxu0 %v3358
    %3372 = vmatprep.subr.bf16.mxu0 0
    %3373 = vmatpush1.bf16.msra.mxu0 %v3357
    %3374 = vmatprep.subr.bf16.mxu0 0
    %3375 = vmatpush1.bf16.msra.mxu0 %v3356
    %3376 = vmatprep.subr.bf16.mxu0 0
    %3377 = vmatpush1.bf16.msra.mxu0 %v3355
    %3378 = vmatprep.subr.bf16.mxu0 0
    %3379 = vmatpush1.bf16.msra.mxu0 %v3354
    %3380 = vmatprep.subr.bf16.mxu0 0
    %3381 = vmatpush1.bf16.msra.mxu0 %v3353
    %3382 = vmatprep.subr.bf16.mxu0 0
    %3383 = vmatpush1.bf16.msra.mxu0 %v3352
    %3384 = vmatprep.subr.bf16.mxu0 0
    %3385 = vmatpush2.bf16.msra.mxu0 0
    %3386 = vmatprep.subr.bf16.mxu0 0
    %3387 = vmatpush2.bf16.msra.mxu0 0
    %3388 = vmatprep.subr.bf16.mxu0 0
    %3389 = vmatpush2.bf16.msra.mxu0 0
    %3390 = vmatprep.subr.bf16.mxu0 0
    %3391 = vmatpush2.bf16.msra.mxu0 0
    %3392 = vmatprep.subr.bf16.mxu0 0
    %3393 = vmatpush2.bf16.msra.mxu0 0
    %3394 = vmatprep.subr.bf16.mxu0 0
    %3395 = vmatpush2.bf16.msra.mxu0 0
    %3396 = vmatprep.subr.bf16.mxu0 0
    %3397 = vmatpush2.bf16.msra.mxu0 0
    %3398 = vmatprep.subr.bf16.mxu0 0
    %3399 = vmatpush2.bf16.msra.mxu0 0
    %3400 = vmatprep.mubr.bf16.mxu0 0
    %3401 = vmatmul.mubr.bf16.gmra.mxu0 %v3315
    %v3402 = vpop.f32.mrf.mxu0
    %v3403 = vadd.f32 %v3319, %v3402
    %v3404 = vpop.f32.mrf.mxu0
    %v3405 = vpop.f32.mrf.mxu0
    %v3406 = vadd.f32 %v3319, %v3405
    %v3407 = vpop.f32.mrf.mxu0
    %3408 = vdwg.mxu0
    %v3409 = vpack.c.bf16 %v3403, %v3403
    %v3410 = vpack.c.bf16 %v3406, %v3406
    %3412 = vrot.lane.b32.xlu0 %v3409, 96
    %v3413 = vpop.permute.xlu0 %3412
    %v3415 = vsel %vm511, %v3409, 0
    %v3418 = vsel %vm511, %v3413, 0
    %3420 = vmatprep.subr.bf16.mxu0 0
    %3421 = vmatpush1.bf16.xpose.msra.mxu0 0
    %3422 = vmatprep.subr.bf16.mxu0 0
    %3423 = vmatpush1.bf16.xpose.msra.mxu0 0
    %3424 = vmatprep.subr.bf16.mxu0 0
    %3425 = vmatpush1.bf16.xpose.msra.mxu0 0
    %3426 = vmatprep.subr.bf16.mxu0 0
    %3427 = vmatpush1.bf16.xpose.msra.mxu0 0
    %3428 = vmatprep.subr.bf16.mxu0 0
    %3429 = vmatpush1.bf16.xpose.msra.mxu0 0
    %3430 = vmatprep.subr.bf16.mxu0 0
    %3431 = vmatpush1.bf16.xpose.msra.mxu0 0
    %3432 = vmatprep.subr.bf16.mxu0 0
    %3433 = vmatpush1.bf16.xpose.msra.mxu0 0
    %3434 = vmatprep.subr.bf16.mxu0 0
    %3435 = vmatpush1.bf16.xpose.msra.mxu0 %v3418
    %3436 = vmatprep.subr.bf16.mxu0 0
    %3437 = vmatpush2.bf16.xpose.msra.mxu0 0
    %3438 = vmatprep.subr.bf16.mxu0 0
    %3439 = vmatpush2.bf16.xpose.msra.mxu0 0
    %3440 = vmatprep.subr.bf16.mxu0 0
    %3441 = vmatpush2.bf16.xpose.msra.mxu0 0
    %3442 = vmatprep.subr.bf16.mxu0 0
    %3443 = vmatpush2.bf16.xpose.msra.mxu0 0
    %3444 = vmatprep.subr.bf16.mxu0 0
    %3445 = vmatpush2.bf16.xpose.msra.mxu0 0
    %3446 = vmatprep.subr.bf16.mxu0 0
    %3447 = vmatpush2.bf16.xpose.msra.mxu0 0
    %3448 = vmatprep.subr.bf16.mxu0 0
    %3449 = vmatpush2.bf16.xpose.msra.mxu0 0
    %3450 = vmatprep.subr.bf16.mxu0 0
    %3451 = vmatpush2.bf16.xpose.msra.mxu0 0
    %3452 = vmatprep.mubr.bf16.mxu0 0
    %3453 = vmatmul.mubr.bf16.gmra.mxu0 %v3415
    %v3454 = vpop.f32.mrf.mxu0
    %v3455 = vadd.f32 %v501, %v3454
    %v3456 = vpop.f32.mrf.mxu0
    %v3457 = vpop.f32.mrf.mxu0
    %v3458 = vpop.f32.mrf.mxu0
    %3459 = vdwg.mxu0
    %3461 = vrot.lane.b32.xlu0 %v3410, 96
    %v3462 = vpop.permute.xlu0 %3461
    %v3464 = vsel %vm511, %v3410, 0
    %v3467 = vsel %vm511, %v3462, 0
    %3469 = vmatprep.subr.bf16.mxu0 0
    %3470 = vmatpush1.bf16.xpose.msra.mxu0 0
    %3471 = vmatprep.subr.bf16.mxu0 0
    %3472 = vmatpush1.bf16.xpose.msra.mxu0 0
    %3473 = vmatprep.subr.bf16.mxu0 0
    %3474 = vmatpush1.bf16.xpose.msra.mxu0 0
    %3475 = vmatprep.subr.bf16.mxu0 0
    %3476 = vmatpush1.bf16.xpose.msra.mxu0 0
    %3477 = vmatprep.subr.bf16.mxu0 0
    %3478 = vmatpush1.bf16.xpose.msra.mxu0 0
    %3479 = vmatprep.subr.bf16.mxu0 0
    %3480 = vmatpush1.bf16.xpose.msra.mxu0 0
    %3481 = vmatprep.subr.bf16.mxu0 0
    %3482 = vmatpush1.bf16.xpose.msra.mxu0 0
    %3483 = vmatprep.subr.bf16.mxu0 0
    %3484 = vmatpush1.bf16.xpose.msra.mxu0 %v3467
    %3485 = vmatprep.subr.bf16.mxu0 0
    %3486 = vmatpush2.bf16.xpose.msra.mxu0 0
    %3487 = vmatprep.subr.bf16.mxu0 0
    %3488 = vmatpush2.bf16.xpose.msra.mxu0 0
    %3489 = vmatprep.subr.bf16.mxu0 0
    %3490 = vmatpush2.bf16.xpose.msra.mxu0 0
    %3491 = vmatprep.subr.bf16.mxu0 0
    %3492 = vmatpush2.bf16.xpose.msra.mxu0 0
    %3493 = vmatprep.subr.bf16.mxu0 0
    %3494 = vmatpush2.bf16.xpose.msra.mxu0 0
    %3495 = vmatprep.subr.bf16.mxu0 0
    %3496 = vmatpush2.bf16.xpose.msra.mxu0 0
    %3497 = vmatprep.subr.bf16.mxu0 0
    %3498 = vmatpush2.bf16.xpose.msra.mxu0 0
    %3499 = vmatprep.subr.bf16.mxu0 0
    %3500 = vmatpush2.bf16.xpose.msra.mxu0 0
    %3501 = vmatprep.mubr.bf16.mxu0 0
    %3502 = vmatmul.mubr.bf16.gmra.mxu0 %v3464
    %v3503 = vpop.f32.mrf.mxu0
    %v3504 = vadd.f32 %v505, %v3503
    %v3505 = vpop.f32.mrf.mxu0
    %v3506 = vpop.f32.mrf.mxu0
    %v3507 = vpop.f32.mrf.mxu0
    %3508 = vdwg.mxu0
    %v3509 = vsel %vm511, %v3455, -inf
    %3510 = vmax.xlane.f32.xlu0 %v3509
    %v3511 = vpop.xlane.xlu0 %3510
    %v3512 = vsel %vm511, %v3504, -inf
    %3513 = vmax.xlane.f32.xlu0 %v3512
    %v3514 = vpop.xlane.xlu0 %3513
    %v3515 = vsub.f32 %v3455, %v3511
    %v3516 = vsub.f32 %v3504, %v3514
    %v3517 = vmul.f32 %v3515, 1.442695
    %v3518 = vpow.pop %v3517
    %v3519 = vmul.f32 %v3516, 1.442695
    %v3520 = vpow.pop %v3519
    %v3521 = vsel %vm511, %v3518, 0.0
    %3522 = vadd.xlane.f32.xlu0 %v3521
    %v3523 = vpop.xlane.xlu0 %3522
    %v3524 = vsel %vm511, %v3520, 0.0
    %3525 = vadd.xlane.f32.xlu0 %v3524
    %v3526 = vpop.xlane.xlu0 %3525
    %v3527 = vrcp.pop %v3523
    %v3528 = vrcp.pop %v3526
    %v3529 = vmul.f32 %v3518, %v3527
    %v3530 = vmul.f32 %v3520, %v3528
    %v3531 = vpack.c.bf16 %v3529, %v3529
    %v3532 = vpack.c.bf16 %v3530, %v3530
    %3533 = vrot.lane.b32.xlu0 %v3409, 64
    %v3534 = vpop.permute.xlu0 %3533
    %v3536 = vsel %vm511, %v3531, 0
    %v3539 = vsel %vm636, %v3534, 0
    %3541 = vmatprep.subr.bf16.mxu0 0
    %3542 = vmatpush1.bf16.msra.mxu0 0
    %3543 = vmatprep.subr.bf16.mxu0 0
    %3544 = vmatpush1.bf16.msra.mxu0 0
    %3545 = vmatprep.subr.bf16.mxu0 0
    %3546 = vmatpush1.bf16.msra.mxu0 0
    %3547 = vmatprep.subr.bf16.mxu0 0
    %3548 = vmatpush1.bf16.msra.mxu0 0
    %3549 = vmatprep.subr.bf16.mxu0 0
    %3550 = vmatpush1.bf16.msra.mxu0 0
    %3551 = vmatprep.subr.bf16.mxu0 0
    %3552 = vmatpush1.bf16.msra.mxu0 0
    %3553 = vmatprep.subr.bf16.mxu0 0
    %3554 = vmatpush1.bf16.msra.mxu0 0
    %3555 = vmatprep.subr.bf16.mxu0 0
    %3556 = vmatpush1.bf16.msra.mxu0 %v3539
    %3557 = vmatprep.subr.bf16.mxu0 0
    %3558 = vmatpush2.bf16.msra.mxu0 0
    %3559 = vmatprep.subr.bf16.mxu0 0
    %3560 = vmatpush2.bf16.msra.mxu0 0
    %3561 = vmatprep.subr.bf16.mxu0 0
    %3562 = vmatpush2.bf16.msra.mxu0 0
    %3563 = vmatprep.subr.bf16.mxu0 0
    %3564 = vmatpush2.bf16.msra.mxu0 0
    %3565 = vmatprep.subr.bf16.mxu0 0
    %3566 = vmatpush2.bf16.msra.mxu0 0
    %3567 = vmatprep.subr.bf16.mxu0 0
    %3568 = vmatpush2.bf16.msra.mxu0 0
    %3569 = vmatprep.subr.bf16.mxu0 0
    %3570 = vmatpush2.bf16.msra.mxu0 0
    %3571 = vmatprep.subr.bf16.mxu0 0
    %3572 = vmatpush2.bf16.msra.mxu0 0
    %3573 = vmatprep.mubr.bf16.mxu0 0
    %3574 = vmatmul.mubr.bf16.gmra.mxu0 %v3536
    %v3575 = vpop.f32.mrf.mxu0
    %v3576 = vadd.f32 0.0, %v3575
    %v3577 = vpop.f32.mrf.mxu0
    %v3578 = vpop.f32.mrf.mxu0
    %v3579 = vpop.f32.mrf.mxu0
    %3580 = vdwg.mxu0
    %3581 = vrot.lane.b32.xlu0 %v3410, 64
    %v3582 = vpop.permute.xlu0 %3581
    %v3584 = vsel %vm511, %v3532, 0
    %v3587 = vsel %vm636, %v3582, 0
    %3589 = vmatprep.subr.bf16.mxu0 0
    %3590 = vmatpush1.bf16.msra.mxu0 0
    %3591 = vmatprep.subr.bf16.mxu0 0
    %3592 = vmatpush1.bf16.msra.mxu0 0
    %3593 = vmatprep.subr.bf16.mxu0 0
    %3594 = vmatpush1.bf16.msra.mxu0 0
    %3595 = vmatprep.subr.bf16.mxu0 0
    %3596 = vmatpush1.bf16.msra.mxu0 0
    %3597 = vmatprep.subr.bf16.mxu0 0
    %3598 = vmatpush1.bf16.msra.mxu0 0
    %3599 = vmatprep.subr.bf16.mxu0 0
    %3600 = vmatpush1.bf16.msra.mxu0 0
    %3601 = vmatprep.subr.bf16.mxu0 0
    %3602 = vmatpush1.bf16.msra.mxu0 0
    %3603 = vmatprep.subr.bf16.mxu0 0
    %3604 = vmatpush1.bf16.msra.mxu0 %v3587
    %3605 = vmatprep.subr.bf16.mxu0 0
    %3606 = vmatpush2.bf16.msra.mxu0 0
    %3607 = vmatprep.subr.bf16.mxu0 0
    %3608 = vmatpush2.bf16.msra.mxu0 0
    %3609 = vmatprep.subr.bf16.mxu0 0
    %3610 = vmatpush2.bf16.msra.mxu0 0
    %3611 = vmatprep.subr.bf16.mxu0 0
    %3612 = vmatpush2.bf16.msra.mxu0 0
    %3613 = vmatprep.subr.bf16.mxu0 0
    %3614 = vmatpush2.bf16.msra.mxu0 0
    %3615 = vmatprep.subr.bf16.mxu0 0
    %3616 = vmatpush2.bf16.msra.mxu0 0
    %3617 = vmatprep.subr.bf16.mxu0 0
    %3618 = vmatpush2.bf16.msra.mxu0 0
    %3619 = vmatprep.subr.bf16.mxu0 0
    %3620 = vmatpush2.bf16.msra.mxu0 0
    %3621 = vmatprep.mubr.bf16.mxu0 0
    %3622 = vmatmul.mubr.bf16.gmra.mxu0 %v3584
    %v3623 = vpop.f32.mrf.mxu0
    %v3624 = vadd.f32 0.0, %v3623
    %v3625 = vpop.f32.mrf.mxu0
    %v3626 = vpop.f32.mrf.mxu0
    %v3627 = vpop.f32.mrf.mxu0
    %3628 = vdwg.mxu0
    %3629 = vrot.lane.b32.xlu0 %v3409, 120
    %v3630 = vpop.permute.xlu0 %3629
    %3631 = vrot.lane.b32.xlu0 %v3409, 88
    %v3632 = vpop.permute.xlu0 %3631
    %v3634 = vsel %vm511, %v3630, 0
    %v3637 = vsel %vm511, %v3632, 0
    %3639 = vmatprep.subr.bf16.mxu0 0
    %3640 = vmatpush1.bf16.xpose.msra.mxu0 0
    %3641 = vmatprep.subr.bf16.mxu0 0
    %3642 = vmatpush1.bf16.xpose.msra.mxu0 0
    %3643 = vmatprep.subr.bf16.mxu0 0
    %3644 = vmatpush1.bf16.xpose.msra.mxu0 0
    %3645 = vmatprep.subr.bf16.mxu0 0
    %3646 = vmatpush1.bf16.xpose.msra.mxu0 0
    %3647 = vmatprep.subr.bf16.mxu0 0
    %3648 = vmatpush1.bf16.xpose.msra.mxu0 0
    %3649 = vmatprep.subr.bf16.mxu0 0
    %3650 = vmatpush1.bf16.xpose.msra.mxu0 0
    %3651 = vmatprep.subr.bf16.mxu0 0
    %3652 = vmatpush1.bf16.xpose.msra.mxu0 0
    %3653 = vmatprep.subr.bf16.mxu0 0
    %3654 = vmatpush1.bf16.xpose.msra.mxu0 %v3637
    %3655 = vmatprep.subr.bf16.mxu0 0
    %3656 = vmatpush2.bf16.xpose.msra.mxu0 0
    %3657 = vmatprep.subr.bf16.mxu0 0
    %3658 = vmatpush2.bf16.xpose.msra.mxu0 0
    %3659 = vmatprep.subr.bf16.mxu0 0
    %3660 = vmatpush2.bf16.xpose.msra.mxu0 0
    %3661 = vmatprep.subr.bf16.mxu0 0
    %3662 = vmatpush2.bf16.xpose.msra.mxu0 0
    %3663 = vmatprep.subr.bf16.mxu0 0
    %3664 = vmatpush2.bf16.xpose.msra.mxu0 0
    %3665 = vmatprep.subr.bf16.mxu0 0
    %3666 = vmatpush2.bf16.xpose.msra.mxu0 0
    %3667 = vmatprep.subr.bf16.mxu0 0
    %3668 = vmatpush2.bf16.xpose.msra.mxu0 0
    %3669 = vmatprep.subr.bf16.mxu0 0
    %3670 = vmatpush2.bf16.xpose.msra.mxu0 0
    %3671 = vmatprep.mubr.bf16.mxu0 0
    %3672 = vmatmul.mubr.bf16.gmra.mxu0 %v3634
    %v3673 = vpop.f32.mrf.mxu0
    %v3674 = vadd.f32 %v501, %v3673
    %v3675 = vpop.f32.mrf.mxu0
    %v3676 = vpop.f32.mrf.mxu0
    %v3677 = vpop.f32.mrf.mxu0
    %3678 = vdwg.mxu0
    %3679 = vrot.lane.b32.xlu0 %v3410, 120
    %v3680 = vpop.permute.xlu0 %3679
    %3681 = vrot.lane.b32.xlu0 %v3410, 88
    %v3682 = vpop.permute.xlu0 %3681
    %v3684 = vsel %vm511, %v3680, 0
    %v3687 = vsel %vm511, %v3682, 0
    %3689 = vmatprep.subr.bf16.mxu0 0
    %3690 = vmatpush1.bf16.xpose.msra.mxu0 0
    %3691 = vmatprep.subr.bf16.mxu0 0
    %3692 = vmatpush1.bf16.xpose.msra.mxu0 0
    %3693 = vmatprep.subr.bf16.mxu0 0
    %3694 = vmatpush1.bf16.xpose.msra.mxu0 0
    %3695 = vmatprep.subr.bf16.mxu0 0
    %3696 = vmatpush1.bf16.xpose.msra.mxu0 0
    %3697 = vmatprep.subr.bf16.mxu0 0
    %3698 = vmatpush1.bf16.xpose.msra.mxu0 0
    %3699 = vmatprep.subr.bf16.mxu0 0
    %3700 = vmatpush1.bf16.xpose.msra.mxu0 0
    %3701 = vmatprep.subr.bf16.mxu0 0
    %3702 = vmatpush1.bf16.xpose.msra.mxu0 0
    %3703 = vmatprep.subr.bf16.mxu0 0
    %3704 = vmatpush1.bf16.xpose.msra.mxu0 %v3687
    %3705 = vmatprep.subr.bf16.mxu0 0
    %3706 = vmatpush2.bf16.xpose.msra.mxu0 0
    %3707 = vmatprep.subr.bf16.mxu0 0
    %3708 = vmatpush2.bf16.xpose.msra.mxu0 0
    %3709 = vmatprep.subr.bf16.mxu0 0
    %3710 = vmatpush2.bf16.xpose.msra.mxu0 0
    %3711 = vmatprep.subr.bf16.mxu0 0
    %3712 = vmatpush2.bf16.xpose.msra.mxu0 0
    %3713 = vmatprep.subr.bf16.mxu0 0
    %3714 = vmatpush2.bf16.xpose.msra.mxu0 0
    %3715 = vmatprep.subr.bf16.mxu0 0
    %3716 = vmatpush2.bf16.xpose.msra.mxu0 0
    %3717 = vmatprep.subr.bf16.mxu0 0
    %3718 = vmatpush2.bf16.xpose.msra.mxu0 0
    %3719 = vmatprep.subr.bf16.mxu0 0
    %3720 = vmatpush2.bf16.xpose.msra.mxu0 0
    %3721 = vmatprep.mubr.bf16.mxu0 0
    %3722 = vmatmul.mubr.bf16.gmra.mxu0 %v3684
    %v3723 = vpop.f32.mrf.mxu0
    %v3724 = vadd.f32 %v505, %v3723
    %v3725 = vpop.f32.mrf.mxu0
    %v3726 = vpop.f32.mrf.mxu0
    %v3727 = vpop.f32.mrf.mxu0
    %3728 = vdwg.mxu0
    %v3729 = vsel %vm511, %v3674, -inf
    %3730 = vmax.xlane.f32.xlu0 %v3729
    %v3731 = vpop.xlane.xlu0 %3730
    %v3732 = vsel %vm511, %v3724, -inf
    %3733 = vmax.xlane.f32.xlu0 %v3732
    %v3734 = vpop.xlane.xlu0 %3733
    %v3735 = vsub.f32 %v3674, %v3731
    %v3736 = vsub.f32 %v3724, %v3734
    %v3737 = vmul.f32 %v3735, 1.442695
    %v3738 = vpow.pop %v3737
    %v3739 = vmul.f32 %v3736, 1.442695
    %v3740 = vpow.pop %v3739
    %v3741 = vsel %vm511, %v3738, 0.0
    %3742 = vadd.xlane.f32.xlu0 %v3741
    %v3743 = vpop.xlane.xlu0 %3742
    %v3744 = vsel %vm511, %v3740, 0.0
    %3745 = vadd.xlane.f32.xlu0 %v3744
    %v3746 = vpop.xlane.xlu0 %3745
    %v3747 = vrcp.pop %v3743
    %v3748 = vrcp.pop %v3746
    %v3749 = vmul.f32 %v3738, %v3747
    %v3750 = vmul.f32 %v3740, %v3748
    %v3751 = vpack.c.bf16 %v3749, %v3749
    %v3752 = vpack.c.bf16 %v3750, %v3750
    %3753 = vrot.lane.b32.xlu0 %v3409, 56
    %v3754 = vpop.permute.xlu0 %3753
    %v3756 = vsel %vm511, %v3751, 0
    %v3759 = vsel %vm636, %v3754, 0
    %3761 = vmatprep.subr.bf16.mxu0 0
    %3762 = vmatpush1.bf16.msra.mxu0 0
    %3763 = vmatprep.subr.bf16.mxu0 0
    %3764 = vmatpush1.bf16.msra.mxu0 0
    %3765 = vmatprep.subr.bf16.mxu0 0
    %3766 = vmatpush1.bf16.msra.mxu0 0
    %3767 = vmatprep.subr.bf16.mxu0 0
    %3768 = vmatpush1.bf16.msra.mxu0 0
    %3769 = vmatprep.subr.bf16.mxu0 0
    %3770 = vmatpush1.bf16.msra.mxu0 0
    %3771 = vmatprep.subr.bf16.mxu0 0
    %3772 = vmatpush1.bf16.msra.mxu0 0
    %3773 = vmatprep.subr.bf16.mxu0 0
    %3774 = vmatpush1.bf16.msra.mxu0 0
    %3775 = vmatprep.subr.bf16.mxu0 0
    %3776 = vmatpush1.bf16.msra.mxu0 %v3759
    %3777 = vmatprep.subr.bf16.mxu0 0
    %3778 = vmatpush2.bf16.msra.mxu0 0
    %3779 = vmatprep.subr.bf16.mxu0 0
    %3780 = vmatpush2.bf16.msra.mxu0 0
    %3781 = vmatprep.subr.bf16.mxu0 0
    %3782 = vmatpush2.bf16.msra.mxu0 0
    %3783 = vmatprep.subr.bf16.mxu0 0
    %3784 = vmatpush2.bf16.msra.mxu0 0
    %3785 = vmatprep.subr.bf16.mxu0 0
    %3786 = vmatpush2.bf16.msra.mxu0 0
    %3787 = vmatprep.subr.bf16.mxu0 0
    %3788 = vmatpush2.bf16.msra.mxu0 0
    %3789 = vmatprep.subr.bf16.mxu0 0
    %3790 = vmatpush2.bf16.msra.mxu0 0
    %3791 = vmatprep.subr.bf16.mxu0 0
    %3792 = vmatpush2.bf16.msra.mxu0 0
    %3793 = vmatprep.mubr.bf16.mxu0 0
    %3794 = vmatmul.mubr.bf16.gmra.mxu0 %v3756
    %v3795 = vpop.f32.mrf.mxu0
    %v3796 = vadd.f32 0.0, %v3795
    %v3797 = vpop.f32.mrf.mxu0
    %v3798 = vpop.f32.mrf.mxu0
    %v3799 = vpop.f32.mrf.mxu0
    %3800 = vdwg.mxu0
    %3801 = vrot.lane.b32.xlu0 %v3410, 56
    %v3802 = vpop.permute.xlu0 %3801
    %v3804 = vsel %vm511, %v3752, 0
    %v3807 = vsel %vm636, %v3802, 0
    %3809 = vmatprep.subr.bf16.mxu0 0
    %3810 = vmatpush1.bf16.msra.mxu0 0
    %3811 = vmatprep.subr.bf16.mxu0 0
    %3812 = vmatpush1.bf16.msra.mxu0 0
    %3813 = vmatprep.subr.bf16.mxu0 0
    %3814 = vmatpush1.bf16.msra.mxu0 0
    %3815 = vmatprep.subr.bf16.mxu0 0
    %3816 = vmatpush1.bf16.msra.mxu0 0
    %3817 = vmatprep.subr.bf16.mxu0 0
    %3818 = vmatpush1.bf16.msra.mxu0 0
    %3819 = vmatprep.subr.bf16.mxu0 0
    %3820 = vmatpush1.bf16.msra.mxu0 0
    %3821 = vmatprep.subr.bf16.mxu0 0
    %3822 = vmatpush1.bf16.msra.mxu0 0
    %3823 = vmatprep.subr.bf16.mxu0 0
    %3824 = vmatpush1.bf16.msra.mxu0 %v3807
    %3825 = vmatprep.subr.bf16.mxu0 0
    %3826 = vmatpush2.bf16.msra.mxu0 0
    %3827 = vmatprep.subr.bf16.mxu0 0
    %3828 = vmatpush2.bf16.msra.mxu0 0
    %3829 = vmatprep.subr.bf16.mxu0 0
    %3830 = vmatpush2.bf16.msra.mxu0 0
    %3831 = vmatprep.subr.bf16.mxu0 0
    %3832 = vmatpush2.bf16.msra.mxu0 0
    %3833 = vmatprep.subr.bf16.mxu0 0
    %3834 = vmatpush2.bf16.msra.mxu0 0
    %3835 = vmatprep.subr.bf16.mxu0 0
    %3836 = vmatpush2.bf16.msra.mxu0 0
    %3837 = vmatprep.subr.bf16.mxu0 0
    %3838 = vmatpush2.bf16.msra.mxu0 0
    %3839 = vmatprep.subr.bf16.mxu0 0
    %3840 = vmatpush2.bf16.msra.mxu0 0
    %3841 = vmatprep.mubr.bf16.mxu0 0
    %3842 = vmatmul.mubr.bf16.gmra.mxu0 %v3804
    %v3843 = vpop.f32.mrf.mxu0
    %v3844 = vadd.f32 0.0, %v3843
    %v3845 = vpop.f32.mrf.mxu0
    %v3846 = vpop.f32.mrf.mxu0
    %v3847 = vpop.f32.mrf.mxu0
    %3848 = vdwg.mxu0
    %3849 = vrot.lane.b32.xlu0 %v3409, 112
    %v3850 = vpop.permute.xlu0 %3849
    %3851 = vrot.lane.b32.xlu0 %v3409, 80
    %v3852 = vpop.permute.xlu0 %3851
    %v3854 = vsel %vm511, %v3850, 0
    %v3857 = vsel %vm511, %v3852, 0
    %3859 = vmatprep.subr.bf16.mxu0 0
    %3860 = vmatpush1.bf16.xpose.msra.mxu0 0
    %3861 = vmatprep.subr.bf16.mxu0 0
    %3862 = vmatpush1.bf16.xpose.msra.mxu0 0
    %3863 = vmatprep.subr.bf16.mxu0 0
    %3864 = vmatpush1.bf16.xpose.msra.mxu0 0
    %3865 = vmatprep.subr.bf16.mxu0 0
    %3866 = vmatpush1.bf16.xpose.msra.mxu0 0
    %3867 = vmatprep.subr.bf16.mxu0 0
    %3868 = vmatpush1.bf16.xpose.msra.mxu0 0
    %3869 = vmatprep.subr.bf16.mxu0 0
    %3870 = vmatpush1.bf16.xpose.msra.mxu0 0
    %3871 = vmatprep.subr.bf16.mxu0 0
    %3872 = vmatpush1.bf16.xpose.msra.mxu0 0
    %3873 = vmatprep.subr.bf16.mxu0 0
    %3874 = vmatpush1.bf16.xpose.msra.mxu0 %v3857
    %3875 = vmatprep.subr.bf16.mxu0 0
    %3876 = vmatpush2.bf16.xpose.msra.mxu0 0
    %3877 = vmatprep.subr.bf16.mxu0 0
    %3878 = vmatpush2.bf16.xpose.msra.mxu0 0
    %3879 = vmatprep.subr.bf16.mxu0 0
    %3880 = vmatpush2.bf16.xpose.msra.mxu0 0
    %3881 = vmatprep.subr.bf16.mxu0 0
    %3882 = vmatpush2.bf16.xpose.msra.mxu0 0
    %3883 = vmatprep.subr.bf16.mxu0 0
    %3884 = vmatpush2.bf16.xpose.msra.mxu0 0
    %3885 = vmatprep.subr.bf16.mxu0 0
    %3886 = vmatpush2.bf16.xpose.msra.mxu0 0
    %3887 = vmatprep.subr.bf16.mxu0 0
    %3888 = vmatpush2.bf16.xpose.msra.mxu0 0
    %3889 = vmatprep.subr.bf16.mxu0 0
    %3890 = vmatpush2.bf16.xpose.msra.mxu0 0
    %3891 = vmatprep.mubr.bf16.mxu0 0
    %3892 = vmatmul.mubr.bf16.gmra.mxu0 %v3854
    %v3893 = vpop.f32.mrf.mxu0
    %v3894 = vadd.f32 %v501, %v3893
    %v3895 = vpop.f32.mrf.mxu0
    %v3896 = vpop.f32.mrf.mxu0
    %v3897 = vpop.f32.mrf.mxu0
    %3898 = vdwg.mxu0
    %3899 = vrot.lane.b32.xlu0 %v3410, 112
    %v3900 = vpop.permute.xlu0 %3899
    %3901 = vrot.lane.b32.xlu0 %v3410, 80
    %v3902 = vpop.permute.xlu0 %3901
    %v3904 = vsel %vm511, %v3900, 0
    %v3907 = vsel %vm511, %v3902, 0
    %3909 = vmatprep.subr.bf16.mxu0 0
    %3910 = vmatpush1.bf16.xpose.msra.mxu0 0
    %3911 = vmatprep.subr.bf16.mxu0 0
    %3912 = vmatpush1.bf16.xpose.msra.mxu0 0
    %3913 = vmatprep.subr.bf16.mxu0 0
    %3914 = vmatpush1.bf16.xpose.msra.mxu0 0
    %3915 = vmatprep.subr.bf16.mxu0 0
    %3916 = vmatpush1.bf16.xpose.msra.mxu0 0
    %3917 = vmatprep.subr.bf16.mxu0 0
    %3918 = vmatpush1.bf16.xpose.msra.mxu0 0
    %3919 = vmatprep.subr.bf16.mxu0 0
    %3920 = vmatpush1.bf16.xpose.msra.mxu0 0
    %3921 = vmatprep.subr.bf16.mxu0 0
    %3922 = vmatpush1.bf16.xpose.msra.mxu0 0
    %3923 = vmatprep.subr.bf16.mxu0 0
    %3924 = vmatpush1.bf16.xpose.msra.mxu0 %v3907
    %3925 = vmatprep.subr.bf16.mxu0 0
    %3926 = vmatpush2.bf16.xpose.msra.mxu0 0
    %3927 = vmatprep.subr.bf16.mxu0 0
    %3928 = vmatpush2.bf16.xpose.msra.mxu0 0
    %3929 = vmatprep.subr.bf16.mxu0 0
    %3930 = vmatpush2.bf16.xpose.msra.mxu0 0
    %3931 = vmatprep.subr.bf16.mxu0 0
    %3932 = vmatpush2.bf16.xpose.msra.mxu0 0
    %3933 = vmatprep.subr.bf16.mxu0 0
    %3934 = vmatpush2.bf16.xpose.msra.mxu0 0
    %3935 = vmatprep.subr.bf16.mxu0 0
    %3936 = vmatpush2.bf16.xpose.msra.mxu0 0
    %3937 = vmatprep.subr.bf16.mxu0 0
    %3938 = vmatpush2.bf16.xpose.msra.mxu0 0
    %3939 = vmatprep.subr.bf16.mxu0 0
    %3940 = vmatpush2.bf16.xpose.msra.mxu0 0
    %3941 = vmatprep.mubr.bf16.mxu0 0
    %3942 = vmatmul.mubr.bf16.gmra.mxu0 %v3904
    %v3943 = vpop.f32.mrf.mxu0
    %v3944 = vadd.f32 %v505, %v3943
    %v3945 = vpop.f32.mrf.mxu0
    %v3946 = vpop.f32.mrf.mxu0
    %v3947 = vpop.f32.mrf.mxu0
    %3948 = vdwg.mxu0
    %v3949 = vsel %vm511, %v3894, -inf
    %3950 = vmax.xlane.f32.xlu0 %v3949
    %v3951 = vpop.xlane.xlu0 %3950
    %v3952 = vsel %vm511, %v3944, -inf
    %3953 = vmax.xlane.f32.xlu0 %v3952
    %v3954 = vpop.xlane.xlu0 %3953
    %v3955 = vsub.f32 %v3894, %v3951
    %v3956 = vsub.f32 %v3944, %v3954
    %v3957 = vmul.f32 %v3955, 1.442695
    %v3958 = vpow.pop %v3957
    %v3959 = vmul.f32 %v3956, 1.442695
    %v3960 = vpow.pop %v3959
    %v3961 = vsel %vm511, %v3958, 0.0
    %3962 = vadd.xlane.f32.xlu0 %v3961
    %v3963 = vpop.xlane.xlu0 %3962
    %v3964 = vsel %vm511, %v3960, 0.0
    %3965 = vadd.xlane.f32.xlu0 %v3964
    %v3966 = vpop.xlane.xlu0 %3965
    %v3967 = vrcp.pop %v3963
    %v3968 = vrcp.pop %v3966
    %v3969 = vmul.f32 %v3958, %v3967
    %v3970 = vmul.f32 %v3960, %v3968
    %v3971 = vpack.c.bf16 %v3969, %v3969
    %v3972 = vpack.c.bf16 %v3970, %v3970
    %3973 = vrot.lane.b32.xlu0 %v3409, 48
    %v3974 = vpop.permute.xlu0 %3973
    %v3976 = vsel %vm511, %v3971, 0
    %v3979 = vsel %vm636, %v3974, 0
    %3981 = vmatprep.subr.bf16.mxu0 0
    %3982 = vmatpush1.bf16.msra.mxu0 0
    %3983 = vmatprep.subr.bf16.mxu0 0
    %3984 = vmatpush1.bf16.msra.mxu0 0
    %3985 = vmatprep.subr.bf16.mxu0 0
    %3986 = vmatpush1.bf16.msra.mxu0 0
    %3987 = vmatprep.subr.bf16.mxu0 0
    %3988 = vmatpush1.bf16.msra.mxu0 0
    %3989 = vmatprep.subr.bf16.mxu0 0
    %3990 = vmatpush1.bf16.msra.mxu0 0
    %3991 = vmatprep.subr.bf16.mxu0 0
    %3992 = vmatpush1.bf16.msra.mxu0 0
    %3993 = vmatprep.subr.bf16.mxu0 0
    %3994 = vmatpush1.bf16.msra.mxu0 0
    %3995 = vmatprep.subr.bf16.mxu0 0
    %3996 = vmatpush1.bf16.msra.mxu0 %v3979
    %3997 = vmatprep.subr.bf16.mxu0 0
    %3998 = vmatpush2.bf16.msra.mxu0 0
    %3999 = vmatprep.subr.bf16.mxu0 0
    %4000 = vmatpush2.bf16.msra.mxu0 0
    %4001 = vmatprep.subr.bf16.mxu0 0
    %4002 = vmatpush2.bf16.msra.mxu0 0
    %4003 = vmatprep.subr.bf16.mxu0 0
    %4004 = vmatpush2.bf16.msra.mxu0 0
    %4005 = vmatprep.subr.bf16.mxu0 0
    %4006 = vmatpush2.bf16.msra.mxu0 0
    %4007 = vmatprep.subr.bf16.mxu0 0
    %4008 = vmatpush2.bf16.msra.mxu0 0
    %4009 = vmatprep.subr.bf16.mxu0 0
    %4010 = vmatpush2.bf16.msra.mxu0 0
    %4011 = vmatprep.subr.bf16.mxu0 0
    %4012 = vmatpush2.bf16.msra.mxu0 0
    %4013 = vmatprep.mubr.bf16.mxu0 0
    %4014 = vmatmul.mubr.bf16.gmra.mxu0 %v3976
    %v4015 = vpop.f32.mrf.mxu0
    %v4016 = vadd.f32 0.0, %v4015
    %v4017 = vpop.f32.mrf.mxu0
    %v4018 = vpop.f32.mrf.mxu0
    %v4019 = vpop.f32.mrf.mxu0
    %4020 = vdwg.mxu0
    %4021 = vrot.lane.b32.xlu0 %v3410, 48
    %v4022 = vpop.permute.xlu0 %4021
    %v4024 = vsel %vm511, %v3972, 0
    %v4027 = vsel %vm636, %v4022, 0
    %4029 = vmatprep.subr.bf16.mxu0 0
    %4030 = vmatpush1.bf16.msra.mxu0 0
    %4031 = vmatprep.subr.bf16.mxu0 0
    %4032 = vmatpush1.bf16.msra.mxu0 0
    %4033 = vmatprep.subr.bf16.mxu0 0
    %4034 = vmatpush1.bf16.msra.mxu0 0
    %4035 = vmatprep.subr.bf16.mxu0 0
    %4036 = vmatpush1.bf16.msra.mxu0 0
    %4037 = vmatprep.subr.bf16.mxu0 0
    %4038 = vmatpush1.bf16.msra.mxu0 0
    %4039 = vmatprep.subr.bf16.mxu0 0
    %4040 = vmatpush1.bf16.msra.mxu0 0
    %4041 = vmatprep.subr.bf16.mxu0 0
    %4042 = vmatpush1.bf16.msra.mxu0 0
    %4043 = vmatprep.subr.bf16.mxu0 0
    %4044 = vmatpush1.bf16.msra.mxu0 %v4027
    %4045 = vmatprep.subr.bf16.mxu0 0
    %4046 = vmatpush2.bf16.msra.mxu0 0
    %4047 = vmatprep.subr.bf16.mxu0 0
    %4048 = vmatpush2.bf16.msra.mxu0 0
    %4049 = vmatprep.subr.bf16.mxu0 0
    %4050 = vmatpush2.bf16.msra.mxu0 0
    %4051 = vmatprep.subr.bf16.mxu0 0
    %4052 = vmatpush2.bf16.msra.mxu0 0
    %4053 = vmatprep.subr.bf16.mxu0 0
    %4054 = vmatpush2.bf16.msra.mxu0 0
    %4055 = vmatprep.subr.bf16.mxu0 0
    %4056 = vmatpush2.bf16.msra.mxu0 0
    %4057 = vmatprep.subr.bf16.mxu0 0
    %4058 = vmatpush2.bf16.msra.mxu0 0
    %4059 = vmatprep.subr.bf16.mxu0 0
    %4060 = vmatpush2.bf16.msra.mxu0 0
    %4061 = vmatprep.mubr.bf16.mxu0 0
    %4062 = vmatmul.mubr.bf16.gmra.mxu0 %v4024
    %v4063 = vpop.f32.mrf.mxu0
    %v4064 = vadd.f32 0.0, %v4063
    %v4065 = vpop.f32.mrf.mxu0
    %v4066 = vpop.f32.mrf.mxu0
    %v4067 = vpop.f32.mrf.mxu0
    %4068 = vdwg.mxu0
    %4069 = vrot.lane.b32.xlu0 %v3409, 104
    %v4070 = vpop.permute.xlu0 %4069
    %4071 = vrot.lane.b32.xlu0 %v3409, 72
    %v4072 = vpop.permute.xlu0 %4071
    %v4074 = vsel %vm511, %v4070, 0
    %v4077 = vsel %vm511, %v4072, 0
    %4079 = vmatprep.subr.bf16.mxu0 0
    %4080 = vmatpush1.bf16.xpose.msra.mxu0 0
    %4081 = vmatprep.subr.bf16.mxu0 0
    %4082 = vmatpush1.bf16.xpose.msra.mxu0 0
    %4083 = vmatprep.subr.bf16.mxu0 0
    %4084 = vmatpush1.bf16.xpose.msra.mxu0 0
    %4085 = vmatprep.subr.bf16.mxu0 0
    %4086 = vmatpush1.bf16.xpose.msra.mxu0 0
    %4087 = vmatprep.subr.bf16.mxu0 0
    %4088 = vmatpush1.bf16.xpose.msra.mxu0 0
    %4089 = vmatprep.subr.bf16.mxu0 0
    %4090 = vmatpush1.bf16.xpose.msra.mxu0 0
    %4091 = vmatprep.subr.bf16.mxu0 0
    %4092 = vmatpush1.bf16.xpose.msra.mxu0 0
    %4093 = vmatprep.subr.bf16.mxu0 0
    %4094 = vmatpush1.bf16.xpose.msra.mxu0 %v4077
    %4095 = vmatprep.subr.bf16.mxu0 0
    %4096 = vmatpush2.bf16.xpose.msra.mxu0 0
    %4097 = vmatprep.subr.bf16.mxu0 0
    %4098 = vmatpush2.bf16.xpose.msra.mxu0 0
    %4099 = vmatprep.subr.bf16.mxu0 0
    %4100 = vmatpush2.bf16.xpose.msra.mxu0 0
    %4101 = vmatprep.subr.bf16.mxu0 0
    %4102 = vmatpush2.bf16.xpose.msra.mxu0 0
    %4103 = vmatprep.subr.bf16.mxu0 0
    %4104 = vmatpush2.bf16.xpose.msra.mxu0 0
    %4105 = vmatprep.subr.bf16.mxu0 0
    %4106 = vmatpush2.bf16.xpose.msra.mxu0 0
    %4107 = vmatprep.subr.bf16.mxu0 0
    %4108 = vmatpush2.bf16.xpose.msra.mxu0 0
    %4109 = vmatprep.subr.bf16.mxu0 0
    %4110 = vmatpush2.bf16.xpose.msra.mxu0 0
    %4111 = vmatprep.mubr.bf16.mxu0 0
    %4112 = vmatmul.mubr.bf16.gmra.mxu0 %v4074
    %v4113 = vpop.f32.mrf.mxu0
    %v4114 = vadd.f32 %v501, %v4113
    %v4115 = vpop.f32.mrf.mxu0
    %v4116 = vpop.f32.mrf.mxu0
    %v4117 = vpop.f32.mrf.mxu0
    %4118 = vdwg.mxu0
    %4119 = vrot.lane.b32.xlu0 %v3410, 104
    %v4120 = vpop.permute.xlu0 %4119
    %4121 = vrot.lane.b32.xlu0 %v3410, 72
    %v4122 = vpop.permute.xlu0 %4121
    %v4124 = vsel %vm511, %v4120, 0
    %v4127 = vsel %vm511, %v4122, 0
    %4129 = vmatprep.subr.bf16.mxu0 0
    %4130 = vmatpush1.bf16.xpose.msra.mxu0 0
    %4131 = vmatprep.subr.bf16.mxu0 0
    %4132 = vmatpush1.bf16.xpose.msra.mxu0 0
    %4133 = vmatprep.subr.bf16.mxu0 0
    %4134 = vmatpush1.bf16.xpose.msra.mxu0 0
    %4135 = vmatprep.subr.bf16.mxu0 0
    %4136 = vmatpush1.bf16.xpose.msra.mxu0 0
    %4137 = vmatprep.subr.bf16.mxu0 0
    %4138 = vmatpush1.bf16.xpose.msra.mxu0 0
    %4139 = vmatprep.subr.bf16.mxu0 0
    %4140 = vmatpush1.bf16.xpose.msra.mxu0 0
    %4141 = vmatprep.subr.bf16.mxu0 0
    %4142 = vmatpush1.bf16.xpose.msra.mxu0 0
    %4143 = vmatprep.subr.bf16.mxu0 0
    %4144 = vmatpush1.bf16.xpose.msra.mxu0 %v4127
    %4145 = vmatprep.subr.bf16.mxu0 0
    %4146 = vmatpush2.bf16.xpose.msra.mxu0 0
    %4147 = vmatprep.subr.bf16.mxu0 0
    %4148 = vmatpush2.bf16.xpose.msra.mxu0 0
    %4149 = vmatprep.subr.bf16.mxu0 0
    %4150 = vmatpush2.bf16.xpose.msra.mxu0 0
    %4151 = vmatprep.subr.bf16.mxu0 0
    %4152 = vmatpush2.bf16.xpose.msra.mxu0 0
    %4153 = vmatprep.subr.bf16.mxu0 0
    %4154 = vmatpush2.bf16.xpose.msra.mxu0 0
    %4155 = vmatprep.subr.bf16.mxu0 0
    %4156 = vmatpush2.bf16.xpose.msra.mxu0 0
    %4157 = vmatprep.subr.bf16.mxu0 0
    %4158 = vmatpush2.bf16.xpose.msra.mxu0 0
    %4159 = vmatprep.subr.bf16.mxu0 0
    %4160 = vmatpush2.bf16.xpose.msra.mxu0 0
    %4161 = vmatprep.mubr.bf16.mxu0 0
    %4162 = vmatmul.mubr.bf16.gmra.mxu0 %v4124
    %v4163 = vpop.f32.mrf.mxu0
    %v4164 = vadd.f32 %v505, %v4163
    %v4165 = vpop.f32.mrf.mxu0
    %v4166 = vpop.f32.mrf.mxu0
    %v4167 = vpop.f32.mrf.mxu0
    %4168 = vdwg.mxu0
    %v4169 = vsel %vm511, %v4114, -inf
    %4170 = vmax.xlane.f32.xlu0 %v4169
    %v4171 = vpop.xlane.xlu0 %4170
    %v4172 = vsel %vm511, %v4164, -inf
    %4173 = vmax.xlane.f32.xlu0 %v4172
    %v4174 = vpop.xlane.xlu0 %4173
    %v4175 = vsub.f32 %v4114, %v4171
    %v4176 = vsub.f32 %v4164, %v4174
    %v4177 = vmul.f32 %v4175, 1.442695
    %v4178 = vpow.pop %v4177
    %v4179 = vmul.f32 %v4176, 1.442695
    %v4180 = vpow.pop %v4179
    %v4181 = vsel %vm511, %v4178, 0.0
    %4182 = vadd.xlane.f32.xlu0 %v4181
    %v4183 = vpop.xlane.xlu0 %4182
    %v4184 = vsel %vm511, %v4180, 0.0
    %4185 = vadd.xlane.f32.xlu0 %v4184
    %v4186 = vpop.xlane.xlu0 %4185
    %v4187 = vrcp.pop %v4183
    %v4188 = vrcp.pop %v4186
    %v4189 = vmul.f32 %v4178, %v4187
    %v4190 = vmul.f32 %v4180, %v4188
    %v4191 = vpack.c.bf16 %v4189, %v4189
    %v4192 = vpack.c.bf16 %v4190, %v4190
    %4193 = vrot.lane.b32.xlu0 %v3409, 40
    %v4194 = vpop.permute.xlu0 %4193
    %v4196 = vsel %vm511, %v4191, 0
    %v4199 = vsel %vm636, %v4194, 0
    %4201 = vmatprep.subr.bf16.mxu0 0
    %4202 = vmatpush1.bf16.msra.mxu0 0
    %4203 = vmatprep.subr.bf16.mxu0 0
    %4204 = vmatpush1.bf16.msra.mxu0 0
    %4205 = vmatprep.subr.bf16.mxu0 0
    %4206 = vmatpush1.bf16.msra.mxu0 0
    %4207 = vmatprep.subr.bf16.mxu0 0
    %4208 = vmatpush1.bf16.msra.mxu0 0
    %4209 = vmatprep.subr.bf16.mxu0 0
    %4210 = vmatpush1.bf16.msra.mxu0 0
    %4211 = vmatprep.subr.bf16.mxu0 0
    %4212 = vmatpush1.bf16.msra.mxu0 0
    %4213 = vmatprep.subr.bf16.mxu0 0
    %4214 = vmatpush1.bf16.msra.mxu0 0
    %4215 = vmatprep.subr.bf16.mxu0 0
    %4216 = vmatpush1.bf16.msra.mxu0 %v4199
    %4217 = vmatprep.subr.bf16.mxu0 0
    %4218 = vmatpush2.bf16.msra.mxu0 0
    %4219 = vmatprep.subr.bf16.mxu0 0
    %4220 = vmatpush2.bf16.msra.mxu0 0
    %4221 = vmatprep.subr.bf16.mxu0 0
    %4222 = vmatpush2.bf16.msra.mxu0 0
    %4223 = vmatprep.subr.bf16.mxu0 0
    %4224 = vmatpush2.bf16.msra.mxu0 0
    %4225 = vmatprep.subr.bf16.mxu0 0
    %4226 = vmatpush2.bf16.msra.mxu0 0
    %4227 = vmatprep.subr.bf16.mxu0 0
    %4228 = vmatpush2.bf16.msra.mxu0 0
    %4229 = vmatprep.subr.bf16.mxu0 0
    %4230 = vmatpush2.bf16.msra.mxu0 0
    %4231 = vmatprep.subr.bf16.mxu0 0
    %4232 = vmatpush2.bf16.msra.mxu0 0
    %4233 = vmatprep.mubr.bf16.mxu0 0
    %4234 = vmatmul.mubr.bf16.gmra.mxu0 %v4196
    %v4235 = vpop.f32.mrf.mxu0
    %v4236 = vadd.f32 0.0, %v4235
    %v4237 = vpop.f32.mrf.mxu0
    %v4238 = vpop.f32.mrf.mxu0
    %v4239 = vpop.f32.mrf.mxu0
    %4240 = vdwg.mxu0
    %4241 = vrot.lane.b32.xlu0 %v3410, 40
    %v4242 = vpop.permute.xlu0 %4241
    %v4244 = vsel %vm511, %v4192, 0
    %v4247 = vsel %vm636, %v4242, 0
    %4249 = vmatprep.subr.bf16.mxu0 0
    %4250 = vmatpush1.bf16.msra.mxu0 0
    %4251 = vmatprep.subr.bf16.mxu0 0
    %4252 = vmatpush1.bf16.msra.mxu0 0
    %4253 = vmatprep.subr.bf16.mxu0 0
    %4254 = vmatpush1.bf16.msra.mxu0 0
    %4255 = vmatprep.subr.bf16.mxu0 0
    %4256 = vmatpush1.bf16.msra.mxu0 0
    %4257 = vmatprep.subr.bf16.mxu0 0
    %4258 = vmatpush1.bf16.msra.mxu0 0
    %4259 = vmatprep.subr.bf16.mxu0 0
    %4260 = vmatpush1.bf16.msra.mxu0 0
    %4261 = vmatprep.subr.bf16.mxu0 0
    %4262 = vmatpush1.bf16.msra.mxu0 0
    %4263 = vmatprep.subr.bf16.mxu0 0
    %4264 = vmatpush1.bf16.msra.mxu0 %v4247
    %4265 = vmatprep.subr.bf16.mxu0 0
    %4266 = vmatpush2.bf16.msra.mxu0 0
    %4267 = vmatprep.subr.bf16.mxu0 0
    %4268 = vmatpush2.bf16.msra.mxu0 0
    %4269 = vmatprep.subr.bf16.mxu0 0
    %4270 = vmatpush2.bf16.msra.mxu0 0
    %4271 = vmatprep.subr.bf16.mxu0 0
    %4272 = vmatpush2.bf16.msra.mxu0 0
    %4273 = vmatprep.subr.bf16.mxu0 0
    %4274 = vmatpush2.bf16.msra.mxu0 0
    %4275 = vmatprep.subr.bf16.mxu0 0
    %4276 = vmatpush2.bf16.msra.mxu0 0
    %4277 = vmatprep.subr.bf16.mxu0 0
    %4278 = vmatpush2.bf16.msra.mxu0 0
    %4279 = vmatprep.subr.bf16.mxu0 0
    %4280 = vmatpush2.bf16.msra.mxu0 0
    %4281 = vmatprep.mubr.bf16.mxu0 0
    %4282 = vmatmul.mubr.bf16.gmra.mxu0 %v4244
    %v4283 = vpop.f32.mrf.mxu0
    %v4284 = vadd.f32 0.0, %v4283
    %v4285 = vpop.f32.mrf.mxu0
    %v4286 = vpop.f32.mrf.mxu0
    %v4287 = vpop.f32.mrf.mxu0
    %4288 = vdwg.mxu0
    %4291 = vrot.lane.b32.xlu0 %v3796, 8
    %v4292 = vpop.permute.xlu0 %4291
    %4293 = vrot.lane.b32.xlu0 %v3844, 8
    %v4294 = vpop.permute.xlu0 %4293
    %4299 = vrot.lane.b32.xlu0 %v4016, 16
    %v4300 = vpop.permute.xlu0 %4299
    %4301 = vrot.lane.b32.xlu0 %v4064, 16
    %v4302 = vpop.permute.xlu0 %4301
    %4307 = vrot.lane.b32.xlu0 %v4236, 24
    %v4308 = vpop.permute.xlu0 %4307
    %4309 = vrot.lane.b32.xlu0 %v4284, 24
    %v4310 = vpop.permute.xlu0 %4309
    %v4313 = vsel %vm511, %v3576, %v4292
    %v4314 = vsel %vm511, %v3624, %v4294
    %v4315 = vsel %vm1414, %v4313, %v4300
    %v4316 = vsel %vm1414, %v4314, %v4302
    %v4317 = vsel %vm1417, %v4315, %v4308
    %v4318 = vsel %vm1417, %v4316, %v4310
    %v4319 = vpack.c.bf16 %v4318, %v4317
    %v4320 = vlaneseq
    %v4321 = vshrl.u32 %v4320, 7
    %v4322 = vsub.s32 1, %v4321
    %v4323 = vrot.slane %v3314, %v4322
    %v4328 = vunpack.c.l.b16 %v3275
    %v4329 = vunpack.c.l.b16 %v3276
    %v4330 = vunpack.c.l.b16 %v3277
    %v4331 = vunpack.c.l.b16 %v3278
    %v4332 = vpack.c.b16 %v4329, %v4328
    %v4333 = vpack.c.b16 %v4331, %v4330
    %v4337 = vsel %vm1437, %v4319, 0
    %4339 = vmatprep.subr.bf16.mxu0 0
    %4340 = vmatpush1.bf16.msra.mxu0 0
    %4341 = vmatprep.subr.bf16.mxu0 0
    %4342 = vmatpush1.bf16.msra.mxu0 0
    %4343 = vmatprep.subr.bf16.mxu0 0
    %4344 = vmatpush1.bf16.msra.mxu0 0
    %4345 = vmatprep.subr.bf16.mxu0 0
    %4346 = vmatpush1.bf16.msra.mxu0 0
    %4347 = vmatprep.subr.bf16.mxu0 0
    %4348 = vmatpush1.bf16.msra.mxu0 0
    %4349 = vmatprep.subr.bf16.mxu0 0
    %4350 = vmatpush1.bf16.msra.mxu0 0
    %4351 = vmatprep.subr.bf16.mxu0 0
    %4352 = vmatpush1.bf16.msra.mxu0 %v4333
    %4353 = vmatprep.subr.bf16.mxu0 0
    %4354 = vmatpush1.bf16.msra.mxu0 %v4332
    %4355 = vmatprep.subr.bf16.mxu0 0
    %4356 = vmatpush2.bf16.msra.mxu0 0
    %4357 = vmatprep.subr.bf16.mxu0 0
    %4358 = vmatpush2.bf16.msra.mxu0 0
    %4359 = vmatprep.subr.bf16.mxu0 0
    %4360 = vmatpush2.bf16.msra.mxu0 0
    %4361 = vmatprep.subr.bf16.mxu0 0
    %4362 = vmatpush2.bf16.msra.mxu0 0
    %4363 = vmatprep.subr.bf16.mxu0 0
    %4364 = vmatpush2.bf16.msra.mxu0 0
    %4365 = vmatprep.subr.bf16.mxu0 0
    %4366 = vmatpush2.bf16.msra.mxu0 0
    %4367 = vmatprep.subr.bf16.mxu0 0
    %4368 = vmatpush2.bf16.msra.mxu0 0
    %4369 = vmatprep.subr.bf16.mxu0 0
    %4370 = vmatpush2.bf16.msra.mxu0 0
    %4371 = vmatprep.mubr.bf16.mxu0 0
    %4372 = vmatmul.mubr.bf16.gmra.mxu0 %v4337
    %v4373 = vpop.f32.mrf.mxu0
    %v4374 = vadd.f32 %v4323, %v4373
    %v4375 = vpop.f32.mrf.mxu0
    %v4376 = vpop.f32.mrf.mxu0
    %v4377 = vadd.f32 %v4323, %v4376
    %v4378 = vpop.f32.mrf.mxu0
    %4379 = vdwg.mxu0
    %v4380 = vadd.f32 %v3253, %v4374
    %v4381 = vadd.f32 %v3254, %v4377
    %4382 = vadd.xlane.f32.xlu0 %v4380
    %v4383 = vpop.xlane.xlu0 %4382
    %4384 = vadd.xlane.f32.xlu0 %v4381
    %v4385 = vpop.xlane.xlu0 %4384
    %v4386 = vmul.f32 %v4383, 0.03125
    %v4387 = vmul.f32 %v4385, 0.03125
    %v4388 = vmul.f32 %v4380, %v4380
    %v4389 = vmul.f32 %v4381, %v4381
    %4390 = vadd.xlane.f32.xlu0 %v4388
    %v4391 = vpop.xlane.xlu0 %4390
    %4392 = vadd.xlane.f32.xlu0 %v4389
    %v4393 = vpop.xlane.xlu0 %4392
    %v4394 = vmul.f32 %v4391, 0.03125
    %v4395 = vmul.f32 %v4393, 0.03125
    %v4396 = vmul.f32 %v4386, %v4386
    %v4397 = vmul.f32 %v4387, %v4387
    %v4398 = vsub.f32 %v4394, %v4396
    %v4399 = vsub.f32 %v4395, %v4397
    %v4400 = vmax.f32 %v4398, 0.0
    %v4401 = vmax.f32 %v4399, 0.0
    %v4402 = vsub.f32 %v4380, %v4386
    %v4403 = vsub.f32 %v4381, %v4387
    %v4404 = vadd.f32 %v4400, 1e-12
    %v4405 = vadd.f32 %v4401, 1e-12
    %v4406 = vrsqrt.pop %v4404
    %v4407 = vrsqrt.pop %v4405
    %v4408 = vmul.f32 %v4402, %v4406
    %v4409 = vmul.f32 %v4403, %v4407
    %v4410 = vlaneseq
    %v4411 = vshrl.u32 %v4410, 7
    %v4412 = vsub.s32 4, %v4411
    %v4413 = vrot.slane %v3314, %v4412
    %v4414 = vmul.f32 %v4408, %v4413
    %v4415 = vmul.f32 %v4409, %v4413
    %v4416 = vlaneseq
    %v4417 = vshrl.u32 %v4416, 7
    %v4418 = vsub.s32 5, %v4417
    %v4419 = vrot.slane %v3314, %v4418
    %v4420 = vadd.f32 %v4414, %v4419
    %v4421 = vadd.f32 %v4415, %v4419
    %v4422 = vpack.c.bf16 %v4421, %v4420
    %v4423 = vlaneseq
    %v4424 = vshrl.u32 %v4423, 7
    %v4425 = vsub.s32 2, %v4424
    %v4426 = vrot.slane %v3314, %v4425
    %v4443 = vunpack.c.l.b16 %v3280
    %v4444 = vunpack.c.l.b16 %v3281
    %v4445 = vunpack.c.l.b16 %v3282
    %v4446 = vunpack.c.l.b16 %v3283
    %v4447 = vunpack.c.l.b16 %v3284
    %v4448 = vunpack.c.l.b16 %v3285
    %v4449 = vunpack.c.l.b16 %v3286
    %v4450 = vunpack.c.l.b16 %v3287
    %v4451 = vunpack.c.l.b16 %v3288
    %v4452 = vunpack.c.l.b16 %v3289
    %v4453 = vunpack.c.l.b16 %v3290
    %v4454 = vunpack.c.l.b16 %v3291
    %v4455 = vunpack.c.l.b16 %v3292
    %v4456 = vunpack.c.l.b16 %v3293
    %v4457 = vunpack.c.l.b16 %v3294
    %v4458 = vunpack.c.l.b16 %v3295
    %v4459 = vpack.c.b16 %v4444, %v4443
    %v4460 = vpack.c.b16 %v4446, %v4445
    %v4461 = vpack.c.b16 %v4448, %v4447
    %v4462 = vpack.c.b16 %v4450, %v4449
    %v4463 = vpack.c.b16 %v4452, %v4451
    %v4464 = vpack.c.b16 %v4454, %v4453
    %v4465 = vpack.c.b16 %v4456, %v4455
    %v4466 = vpack.c.b16 %v4458, %v4457
    %4475 = vmatprep.subr.bf16.mxu0 0
    %4476 = vmatpush1.bf16.msra.mxu0 %v4466
    %4477 = vmatprep.subr.bf16.mxu0 0
    %4478 = vmatpush1.bf16.msra.mxu0 %v4465
    %4479 = vmatprep.subr.bf16.mxu0 0
    %4480 = vmatpush1.bf16.msra.mxu0 %v4464
    %4481 = vmatprep.subr.bf16.mxu0 0
    %4482 = vmatpush1.bf16.msra.mxu0 %v4463
    %4483 = vmatprep.subr.bf16.mxu0 0
    %4484 = vmatpush1.bf16.msra.mxu0 %v4462
    %4485 = vmatprep.subr.bf16.mxu0 0
    %4486 = vmatpush1.bf16.msra.mxu0 %v4461
    %4487 = vmatprep.subr.bf16.mxu0 0
    %4488 = vmatpush1.bf16.msra.mxu0 %v4460
    %4489 = vmatprep.subr.bf16.mxu0 0
    %4490 = vmatpush1.bf16.msra.mxu0 %v4459
    %4491 = vmatprep.subr.bf16.mxu0 0
    %4492 = vmatpush2.bf16.msra.mxu0 0
    %4493 = vmatprep.subr.bf16.mxu0 0
    %4494 = vmatpush2.bf16.msra.mxu0 0
    %4495 = vmatprep.subr.bf16.mxu0 0
    %4496 = vmatpush2.bf16.msra.mxu0 0
    %4497 = vmatprep.subr.bf16.mxu0 0
    %4498 = vmatpush2.bf16.msra.mxu0 0
    %4499 = vmatprep.subr.bf16.mxu0 0
    %4500 = vmatpush2.bf16.msra.mxu0 0
    %4501 = vmatprep.subr.bf16.mxu0 0
    %4502 = vmatpush2.bf16.msra.mxu0 0
    %4503 = vmatprep.subr.bf16.mxu0 0
    %4504 = vmatpush2.bf16.msra.mxu0 0
    %4505 = vmatprep.subr.bf16.mxu0 0
    %4506 = vmatpush2.bf16.msra.mxu0 0
    %4507 = vmatprep.mubr.bf16.mxu0 0
    %4508 = vmatmul.mubr.bf16.gmra.mxu0 %v4422
    %v4509 = vpop.f32.mrf.mxu0
    %v4510 = vadd.f32 %v4426, %v4509
    %v4511 = vpop.f32.mrf.mxu0
    %v4512 = vpop.f32.mrf.mxu0
    %v4513 = vadd.f32 %v4426, %v4512
    %v4514 = vpop.f32.mrf.mxu0
    %4515 = vdwg.mxu0
    %v4516 = vmul.f32 %v4510, 0.5
    %v4517 = vmul.f32 %v4513, 0.5
    %v4518 = vmul.f32 %v4510, 0.70710677
    %v4519 = vmul.f32 %v4513, 0.70710677
    %vm4520 = vcmp.lt.f32.partialorder %v4518, 0.0
    %vm4521 = vcmp.lt.f32.partialorder %v4519, 0.0
    %v4522 = vsel %vm4520, -1.0, 1.0
    %v4523 = vsel %vm4521, -1.0, 1.0
    %v4524 = vand.u32 2147483647, %v4518
    %v4525 = vand.u32 2147483647, %v4519
    %v4526 = vmul.f32 %v4524, 0.3275911
    %v4527 = vmul.f32 %v4525, 0.3275911
    %v4528 = vadd.f32 %v4526, 1.0
    %v4529 = vadd.f32 %v4527, 1.0
    %v4530 = vrcp.pop %v4528
    %v4531 = vrcp.pop %v4529
    %v4532 = vmul.f32 %v4530, 1.0614054
    %v4533 = vmul.f32 %v4531, 1.0614054
    %v4534 = vadd.f32 %v4532, -1.4531521
    %v4535 = vadd.f32 %v4533, -1.4531521
    %v4536 = vmul.f32 %v4534, %v4530
    %v4537 = vmul.f32 %v4535, %v4531
    %v4538 = vadd.f32 %v4536, 1.4214138
    %v4539 = vadd.f32 %v4537, 1.4214138
    %v4540 = vmul.f32 %v4538, %v4530
    %v4541 = vmul.f32 %v4539, %v4531
    %v4542 = vadd.f32 %v4540, -0.28449672
    %v4543 = vadd.f32 %v4541, -0.28449672
    %v4544 = vmul.f32 %v4542, %v4530
    %v4545 = vmul.f32 %v4543, %v4531
    %v4546 = vadd.f32 %v4544, 0.2548296
    %v4547 = vadd.f32 %v4545, 0.2548296
    %v4548 = vmul.f32 %v4546, %v4530
    %v4549 = vmul.f32 %v4547, %v4531
    %v4550 = vsub.f32 0.0, %v4524
    %v4551 = vsub.f32 0.0, %v4525
    %v4552 = vmul.f32 %v4550, %v4524
    %v4553 = vmul.f32 %v4551, %v4525
    %v4554 = vmul.f32 %v4552, 1.442695
    %v4555 = vpow.pop %v4554
    %v4556 = vmul.f32 %v4553, 1.442695
    %v4557 = vpow.pop %v4556
    %v4558 = vmul.f32 %v4548, %v4555
    %v4559 = vmul.f32 %v4549, %v4557
    %v4560 = vsub.f32 1.0, %v4558
    %v4561 = vsub.f32 1.0, %v4559
    %v4562 = vmul.f32 %v4522, %v4560
    %v4563 = vmul.f32 %v4523, %v4561
    %v4564 = vadd.f32 %v4562, 1.0
    %v4565 = vadd.f32 %v4563, 1.0
    %v4566 = vmul.f32 %v4516, %v4564
    %v4567 = vmul.f32 %v4517, %v4565
    %v4568 = vpack.c.bf16 %v4567, %v4566
    %v4569 = vlaneseq
    %v4570 = vshrl.u32 %v4569, 7
    %v4571 = vsub.s32 3, %v4570
    %v4572 = vrot.slane %v3314, %v4571
    %v4589 = vunpack.c.l.b16 %v3297
    %v4590 = vunpack.c.l.b16 %v3298
    %v4591 = vunpack.c.l.b16 %v3299
    %v4592 = vunpack.c.l.b16 %v3300
    %v4593 = vunpack.c.l.b16 %v3301
    %v4594 = vunpack.c.l.b16 %v3302
    %v4595 = vunpack.c.l.b16 %v3303
    %v4596 = vunpack.c.l.b16 %v3304
    %v4597 = vunpack.c.l.b16 %v3305
    %v4598 = vunpack.c.l.b16 %v3306
    %v4599 = vunpack.c.l.b16 %v3307
    %v4600 = vunpack.c.l.b16 %v3308
    %v4601 = vunpack.c.l.b16 %v3309
    %v4602 = vunpack.c.l.b16 %v3310
    %v4603 = vunpack.c.l.b16 %v3311
    %v4604 = vunpack.c.l.b16 %v3312
    %v4605 = vpack.c.b16 %v4590, %v4589
    %v4606 = vpack.c.b16 %v4592, %v4591
    %v4607 = vpack.c.b16 %v4594, %v4593
    %v4608 = vpack.c.b16 %v4596, %v4595
    %v4609 = vpack.c.b16 %v4598, %v4597
    %v4610 = vpack.c.b16 %v4600, %v4599
    %v4611 = vpack.c.b16 %v4602, %v4601
    %v4612 = vpack.c.b16 %v4604, %v4603
    %4621 = vmatprep.subr.bf16.mxu0 0
    %4622 = vmatpush1.bf16.msra.mxu0 %v4612
    %4623 = vmatprep.subr.bf16.mxu0 0
    %4624 = vmatpush1.bf16.msra.mxu0 %v4611
    %4625 = vmatprep.subr.bf16.mxu0 0
    %4626 = vmatpush1.bf16.msra.mxu0 %v4610
    %4627 = vmatprep.subr.bf16.mxu0 0
    %4628 = vmatpush1.bf16.msra.mxu0 %v4609
    %4629 = vmatprep.subr.bf16.mxu0 0
    %4630 = vmatpush1.bf16.msra.mxu0 %v4608
    %4631 = vmatprep.subr.bf16.mxu0 0
    %4632 = vmatpush1.bf16.msra.mxu0 %v4607
    %4633 = vmatprep.subr.bf16.mxu0 0
    %4634 = vmatpush1.bf16.msra.mxu0 %v4606
    %4635 = vmatprep.subr.bf16.mxu0 0
    %4636 = vmatpush1.bf16.msra.mxu0 %v4605
    %4637 = vmatprep.subr.bf16.mxu0 0
    %4638 = vmatpush2.bf16.msra.mxu0 0
    %4639 = vmatprep.subr.bf16.mxu0 0
    %4640 = vmatpush2.bf16.msra.mxu0 0
    %4641 = vmatprep.subr.bf16.mxu0 0
    %4642 = vmatpush2.bf16.msra.mxu0 0
    %4643 = vmatprep.subr.bf16.mxu0 0
    %4644 = vmatpush2.bf16.msra.mxu0 0
    %4645 = vmatprep.subr.bf16.mxu0 0
    %4646 = vmatpush2.bf16.msra.mxu0 0
    %4647 = vmatprep.subr.bf16.mxu0 0
    %4648 = vmatpush2.bf16.msra.mxu0 0
    %4649 = vmatprep.subr.bf16.mxu0 0
    %4650 = vmatpush2.bf16.msra.mxu0 0
    %4651 = vmatprep.subr.bf16.mxu0 0
    %4652 = vmatpush2.bf16.msra.mxu0 0
    %4653 = vmatprep.mubr.bf16.mxu0 0
    %4654 = vmatmul.mubr.bf16.gmra.mxu0 %v4568
    %v4655 = vpop.f32.mrf.mxu0
    %v4656 = vadd.f32 %v4572, %v4655
    %v4657 = vpop.f32.mrf.mxu0
    %v4658 = vpop.f32.mrf.mxu0
    %v4659 = vadd.f32 %v4572, %v4658
    %v4660 = vpop.f32.mrf.mxu0
    %4661 = vdwg.mxu0
    %v4662 = vadd.f32 %v4420, %v4656
    %v4663 = vadd.f32 %v4421, %v4659
    %4664 = vadd.xlane.f32.xlu0 %v4662
    %v4665 = vpop.xlane.xlu0 %4664
    %4666 = vadd.xlane.f32.xlu0 %v4663
    %v4667 = vpop.xlane.xlu0 %4666
    %v4668 = vmul.f32 %v4665, 0.03125
    %v4669 = vmul.f32 %v4667, 0.03125
    %v4670 = vmul.f32 %v4662, %v4662
    %v4671 = vmul.f32 %v4663, %v4663
    %4672 = vadd.xlane.f32.xlu0 %v4670
    %v4673 = vpop.xlane.xlu0 %4672
    %4674 = vadd.xlane.f32.xlu0 %v4671
    %v4675 = vpop.xlane.xlu0 %4674
    %v4676 = vmul.f32 %v4673, 0.03125
    %v4677 = vmul.f32 %v4675, 0.03125
    %v4678 = vmul.f32 %v4668, %v4668
    %v4679 = vmul.f32 %v4669, %v4669
    %v4680 = vsub.f32 %v4676, %v4678
    %v4681 = vsub.f32 %v4677, %v4679
    %v4682 = vmax.f32 %v4680, 0.0
    %v4683 = vmax.f32 %v4681, 0.0
    %v4684 = vsub.f32 %v4662, %v4668
    %v4685 = vsub.f32 %v4663, %v4669
    %v4686 = vadd.f32 %v4682, 1e-12
    %v4687 = vadd.f32 %v4683, 1e-12
    %v4688 = vrsqrt.pop %v4686
    %v4689 = vrsqrt.pop %v4687
    %v4690 = vmul.f32 %v4684, %v4688
    %v4691 = vmul.f32 %v4685, %v4689
    %v4692 = vlaneseq
    %v4693 = vshrl.u32 %v4692, 7
    %v4694 = vsub.s32 6, %v4693
    %v4695 = vrot.slane %v3314, %v4694
    %v4696 = vmul.f32 %v4690, %v4695
    %v4697 = vmul.f32 %v4691, %v4695
    %v4698 = vlaneseq
    %v4699 = vshrl.u32 %v4698, 7
    %v4700 = vsub.s32 7, %v4699
    %v4701 = vrot.slane %v3314, %v4700
    %v4702 = vadd.f32 %v4696, %v4701
    %v4703 = vadd.f32 %v4697, %v4701
    %v4704 = vadd.f32 %v3255, %v4702
    %v4705 = vadd.f32 %v3256, %v4703
    %s4706 = scalar_lea.vmem [#allocation11], 192
    %v4707 = vld [vmem:[%s4706] sm:$0xf]
    %v4708 = vld [vmem:[%s4706 + $0x4] sm:$0xf]
    %v4709 = vld [vmem:[%s4706 + $0x8] sm:$0xf]
    %v4710 = vld [vmem:[%s4706 + $0xc] sm:$0xf]
    %v4711 = vld [vmem:[%s4706 + $0x10] sm:$0xf]
    %v4712 = vld [vmem:[%s4706 + $0x14] sm:$0xf]
    %v4713 = vld [vmem:[%s4706 + $0x18] sm:$0xf]
    %v4714 = vld [vmem:[%s4706 + $0x1c] sm:$0xf]
    %v4715 = vld [vmem:[%s4706 + $0x20] sm:$0xf]
    %v4716 = vld [vmem:[%s4706 + $0x24] sm:$0xf]
    %v4717 = vld [vmem:[%s4706 + $0x28] sm:$0xf]
    %v4718 = vld [vmem:[%s4706 + $0x2c] sm:$0xf]
    %v4719 = vld [vmem:[%s4706 + $0x30] sm:$0xf]
    %v4720 = vld [vmem:[%s4706 + $0x34] sm:$0xf]
    %v4721 = vld [vmem:[%s4706 + $0x38] sm:$0xf]
    %v4722 = vld [vmem:[%s4706 + $0x3c] sm:$0xf]
    %s4723 = scalar_lea.vmem [#allocation13], 48
    %v4724 = vld [vmem:[%s4723] sm:$0xf]
    %v4725 = vld [vmem:[%s4723 + $0x4] sm:$0xf]
    %v4726 = vld [vmem:[%s4723 + $0x8] sm:$0xf]
    %v4727 = vld [vmem:[%s4723 + $0xc] sm:$0xf]
    %s4728 = scalar_lea.vmem [#allocation14], 192
    %v4729 = vld [vmem:[%s4728] sm:$0xf]
    %v4730 = vld [vmem:[%s4728 + $0x4] sm:$0xf]
    %v4731 = vld [vmem:[%s4728 + $0x8] sm:$0xf]
    %v4732 = vld [vmem:[%s4728 + $0xc] sm:$0xf]
    %v4733 = vld [vmem:[%s4728 + $0x10] sm:$0xf]
    %v4734 = vld [vmem:[%s4728 + $0x14] sm:$0xf]
    %v4735 = vld [vmem:[%s4728 + $0x18] sm:$0xf]
    %v4736 = vld [vmem:[%s4728 + $0x1c] sm:$0xf]
    %v4737 = vld [vmem:[%s4728 + $0x20] sm:$0xf]
    %v4738 = vld [vmem:[%s4728 + $0x24] sm:$0xf]
    %v4739 = vld [vmem:[%s4728 + $0x28] sm:$0xf]
    %v4740 = vld [vmem:[%s4728 + $0x2c] sm:$0xf]
    %v4741 = vld [vmem:[%s4728 + $0x30] sm:$0xf]
    %v4742 = vld [vmem:[%s4728 + $0x34] sm:$0xf]
    %v4743 = vld [vmem:[%s4728 + $0x38] sm:$0xf]
    %v4744 = vld [vmem:[%s4728 + $0x3c] sm:$0xf]
    %s4745 = scalar_lea.vmem [#allocation16], 192
    %v4746 = vld [vmem:[%s4745] sm:$0xf]
    %v4747 = vld [vmem:[%s4745 + $0x4] sm:$0xf]
    %v4748 = vld [vmem:[%s4745 + $0x8] sm:$0xf]
    %v4749 = vld [vmem:[%s4745 + $0xc] sm:$0xf]
    %v4750 = vld [vmem:[%s4745 + $0x10] sm:$0xf]
    %v4751 = vld [vmem:[%s4745 + $0x14] sm:$0xf]
    %v4752 = vld [vmem:[%s4745 + $0x18] sm:$0xf]
    %v4753 = vld [vmem:[%s4745 + $0x1c] sm:$0xf]
    %v4754 = vld [vmem:[%s4745 + $0x20] sm:$0xf]
    %v4755 = vld [vmem:[%s4745 + $0x24] sm:$0xf]
    %v4756 = vld [vmem:[%s4745 + $0x28] sm:$0xf]
    %v4757 = vld [vmem:[%s4745 + $0x2c] sm:$0xf]
    %v4758 = vld [vmem:[%s4745 + $0x30] sm:$0xf]
    %v4759 = vld [vmem:[%s4745 + $0x34] sm:$0xf]
    %v4760 = vld [vmem:[%s4745 + $0x38] sm:$0xf]
    %v4761 = vld [vmem:[%s4745 + $0x3c] sm:$0xf]
    %s4762 = scalar_lea.vmem [#allocation17], 24
    %v4763 = vld [vmem:[%s4762] sm:$0xff]
    %v4764 = vpack.c.bf16 %v4703, %v4702
    %v4765 = vlaneseq
    %v4766 = vshrl.u32 %v4765, 7
    %v4767 = vsub.s32 0, %v4766
    %v4768 = vrot.slane %v4763, %v4767
    %v4785 = vunpack.c.l.b16 %v4707
    %v4786 = vunpack.c.l.b16 %v4708
    %v4787 = vunpack.c.l.b16 %v4709
    %v4788 = vunpack.c.l.b16 %v4710
    %v4789 = vunpack.c.l.b16 %v4711
    %v4790 = vunpack.c.l.b16 %v4712
    %v4791 = vunpack.c.l.b16 %v4713
    %v4792 = vunpack.c.l.b16 %v4714
    %v4793 = vunpack.c.l.b16 %v4715
    %v4794 = vunpack.c.l.b16 %v4716
    %v4795 = vunpack.c.l.b16 %v4717
    %v4796 = vunpack.c.l.b16 %v4718
    %v4797 = vunpack.c.l.b16 %v4719
    %v4798 = vunpack.c.l.b16 %v4720
    %v4799 = vunpack.c.l.b16 %v4721
    %v4800 = vunpack.c.l.b16 %v4722
    %v4801 = vpack.c.b16 %v4786, %v4785
    %v4802 = vpack.c.b16 %v4788, %v4787
    %v4803 = vpack.c.b16 %v4790, %v4789
    %v4804 = vpack.c.b16 %v4792, %v4791
    %v4805 = vpack.c.b16 %v4794, %v4793
    %v4806 = vpack.c.b16 %v4796, %v4795
    %v4807 = vpack.c.b16 %v4798, %v4797
    %v4808 = vpack.c.b16 %v4800, %v4799
    %4817 = vmatprep.subr.bf16.mxu0 0
    %4818 = vmatpush1.bf16.msra.mxu0 %v4808
    %4819 = vmatprep.subr.bf16.mxu0 0
    %4820 = vmatpush1.bf16.msra.mxu0 %v4807
    %4821 = vmatprep.subr.bf16.mxu0 0
    %4822 = vmatpush1.bf16.msra.mxu0 %v4806
    %4823 = vmatprep.subr.bf16.mxu0 0
    %4824 = vmatpush1.bf16.msra.mxu0 %v4805
    %4825 = vmatprep.subr.bf16.mxu0 0
    %4826 = vmatpush1.bf16.msra.mxu0 %v4804
    %4827 = vmatprep.subr.bf16.mxu0 0
    %4828 = vmatpush1.bf16.msra.mxu0 %v4803
    %4829 = vmatprep.subr.bf16.mxu0 0
    %4830 = vmatpush1.bf16.msra.mxu0 %v4802
    %4831 = vmatprep.subr.bf16.mxu0 0
    %4832 = vmatpush1.bf16.msra.mxu0 %v4801
    %4833 = vmatprep.subr.bf16.mxu0 0
    %4834 = vmatpush2.bf16.msra.mxu0 0
    %4835 = vmatprep.subr.bf16.mxu0 0
    %4836 = vmatpush2.bf16.msra.mxu0 0
    %4837 = vmatprep.subr.bf16.mxu0 0
    %4838 = vmatpush2.bf16.msra.mxu0 0
    %4839 = vmatprep.subr.bf16.mxu0 0
    %4840 = vmatpush2.bf16.msra.mxu0 0
    %4841 = vmatprep.subr.bf16.mxu0 0
    %4842 = vmatpush2.bf16.msra.mxu0 0
    %4843 = vmatprep.subr.bf16.mxu0 0
    %4844 = vmatpush2.bf16.msra.mxu0 0
    %4845 = vmatprep.subr.bf16.mxu0 0
    %4846 = vmatpush2.bf16.msra.mxu0 0
    %4847 = vmatprep.subr.bf16.mxu0 0
    %4848 = vmatpush2.bf16.msra.mxu0 0
    %4849 = vmatprep.mubr.bf16.mxu0 0
    %4850 = vmatmul.mubr.bf16.gmra.mxu0 %v4764
    %v4851 = vpop.f32.mrf.mxu0
    %v4852 = vadd.f32 %v4768, %v4851
    %v4853 = vpop.f32.mrf.mxu0
    %v4854 = vpop.f32.mrf.mxu0
    %v4855 = vadd.f32 %v4768, %v4854
    %v4856 = vpop.f32.mrf.mxu0
    %4857 = vdwg.mxu0
    %v4858 = vpack.c.bf16 %v4852, %v4852
    %v4859 = vpack.c.bf16 %v4855, %v4855
    %4861 = vrot.lane.b32.xlu0 %v4858, 96
    %v4862 = vpop.permute.xlu0 %4861
    %v4864 = vsel %vm511, %v4858, 0
    %v4867 = vsel %vm511, %v4862, 0
    %4869 = vmatprep.subr.bf16.mxu0 0
    %4870 = vmatpush1.bf16.xpose.msra.mxu0 0
    %4871 = vmatprep.subr.bf16.mxu0 0
    %4872 = vmatpush1.bf16.xpose.msra.mxu0 0
    %4873 = vmatprep.subr.bf16.mxu0 0
    %4874 = vmatpush1.bf16.xpose.msra.mxu0 0
    %4875 = vmatprep.subr.bf16.mxu0 0
    %4876 = vmatpush1.bf16.xpose.msra.mxu0 0
    %4877 = vmatprep.subr.bf16.mxu0 0
    %4878 = vmatpush1.bf16.xpose.msra.mxu0 0
    %4879 = vmatprep.subr.bf16.mxu0 0
    %4880 = vmatpush1.bf16.xpose.msra.mxu0 0
    %4881 = vmatprep.subr.bf16.mxu0 0
    %4882 = vmatpush1.bf16.xpose.msra.mxu0 0
    %4883 = vmatprep.subr.bf16.mxu0 0
    %4884 = vmatpush1.bf16.xpose.msra.mxu0 %v4867
    %4885 = vmatprep.subr.bf16.mxu0 0
    %4886 = vmatpush2.bf16.xpose.msra.mxu0 0
    %4887 = vmatprep.subr.bf16.mxu0 0
    %4888 = vmatpush2.bf16.xpose.msra.mxu0 0
    %4889 = vmatprep.subr.bf16.mxu0 0
    %4890 = vmatpush2.bf16.xpose.msra.mxu0 0
    %4891 = vmatprep.subr.bf16.mxu0 0
    %4892 = vmatpush2.bf16.xpose.msra.mxu0 0
    %4893 = vmatprep.subr.bf16.mxu0 0
    %4894 = vmatpush2.bf16.xpose.msra.mxu0 0
    %4895 = vmatprep.subr.bf16.mxu0 0
    %4896 = vmatpush2.bf16.xpose.msra.mxu0 0
    %4897 = vmatprep.subr.bf16.mxu0 0
    %4898 = vmatpush2.bf16.xpose.msra.mxu0 0
    %4899 = vmatprep.subr.bf16.mxu0 0
    %4900 = vmatpush2.bf16.xpose.msra.mxu0 0
    %4901 = vmatprep.mubr.bf16.mxu0 0
    %4902 = vmatmul.mubr.bf16.gmra.mxu0 %v4864
    %v4903 = vpop.f32.mrf.mxu0
    %v4904 = vadd.f32 %v501, %v4903
    %v4905 = vpop.f32.mrf.mxu0
    %v4906 = vpop.f32.mrf.mxu0
    %v4907 = vpop.f32.mrf.mxu0
    %4908 = vdwg.mxu0
    %4910 = vrot.lane.b32.xlu0 %v4859, 96
    %v4911 = vpop.permute.xlu0 %4910
    %v4913 = vsel %vm511, %v4859, 0
    %v4916 = vsel %vm511, %v4911, 0
    %4918 = vmatprep.subr.bf16.mxu0 0
    %4919 = vmatpush1.bf16.xpose.msra.mxu0 0
    %4920 = vmatprep.subr.bf16.mxu0 0
    %4921 = vmatpush1.bf16.xpose.msra.mxu0 0
    %4922 = vmatprep.subr.bf16.mxu0 0
    %4923 = vmatpush1.bf16.xpose.msra.mxu0 0
    %4924 = vmatprep.subr.bf16.mxu0 0
    %4925 = vmatpush1.bf16.xpose.msra.mxu0 0
    %4926 = vmatprep.subr.bf16.mxu0 0
    %4927 = vmatpush1.bf16.xpose.msra.mxu0 0
    %4928 = vmatprep.subr.bf16.mxu0 0
    %4929 = vmatpush1.bf16.xpose.msra.mxu0 0
    %4930 = vmatprep.subr.bf16.mxu0 0
    %4931 = vmatpush1.bf16.xpose.msra.mxu0 0
    %4932 = vmatprep.subr.bf16.mxu0 0
    %4933 = vmatpush1.bf16.xpose.msra.mxu0 %v4916
    %4934 = vmatprep.subr.bf16.mxu0 0
    %4935 = vmatpush2.bf16.xpose.msra.mxu0 0
    %4936 = vmatprep.subr.bf16.mxu0 0
    %4937 = vmatpush2.bf16.xpose.msra.mxu0 0
    %4938 = vmatprep.subr.bf16.mxu0 0
    %4939 = vmatpush2.bf16.xpose.msra.mxu0 0
    %4940 = vmatprep.subr.bf16.mxu0 0
    %4941 = vmatpush2.bf16.xpose.msra.mxu0 0
    %4942 = vmatprep.subr.bf16.mxu0 0
    %4943 = vmatpush2.bf16.xpose.msra.mxu0 0
    %4944 = vmatprep.subr.bf16.mxu0 0
    %4945 = vmatpush2.bf16.xpose.msra.mxu0 0
    %4946 = vmatprep.subr.bf16.mxu0 0
    %4947 = vmatpush2.bf16.xpose.msra.mxu0 0
    %4948 = vmatprep.subr.bf16.mxu0 0
    %4949 = vmatpush2.bf16.xpose.msra.mxu0 0
    %4950 = vmatprep.mubr.bf16.mxu0 0
    %4951 = vmatmul.mubr.bf16.gmra.mxu0 %v4913
    %v4952 = vpop.f32.mrf.mxu0
    %v4953 = vadd.f32 %v505, %v4952
    %v4954 = vpop.f32.mrf.mxu0
    %v4955 = vpop.f32.mrf.mxu0
    %v4956 = vpop.f32.mrf.mxu0
    %4957 = vdwg.mxu0
    %v4958 = vsel %vm511, %v4904, -inf
    %4959 = vmax.xlane.f32.xlu0 %v4958
    %v4960 = vpop.xlane.xlu0 %4959
    %v4961 = vsel %vm511, %v4953, -inf
    %4962 = vmax.xlane.f32.xlu0 %v4961
    %v4963 = vpop.xlane.xlu0 %4962
    %v4964 = vsub.f32 %v4904, %v4960
    %v4965 = vsub.f32 %v4953, %v4963
    %v4966 = vmul.f32 %v4964, 1.442695
    %v4967 = vpow.pop %v4966
    %v4968 = vmul.f32 %v4965, 1.442695
    %v4969 = vpow.pop %v4968
    %v4970 = vsel %vm511, %v4967, 0.0
    %4971 = vadd.xlane.f32.xlu0 %v4970
    %v4972 = vpop.xlane.xlu0 %4971
    %v4973 = vsel %vm511, %v4969, 0.0
    %4974 = vadd.xlane.f32.xlu0 %v4973
    %v4975 = vpop.xlane.xlu0 %4974
    %v4976 = vrcp.pop %v4972
    %v4977 = vrcp.pop %v4975
    %v4978 = vmul.f32 %v4967, %v4976
    %v4979 = vmul.f32 %v4969, %v4977
    %v4980 = vpack.c.bf16 %v4978, %v4978
    %v4981 = vpack.c.bf16 %v4979, %v4979
    %4982 = vrot.lane.b32.xlu0 %v4858, 64
    %v4983 = vpop.permute.xlu0 %4982
    %v4985 = vsel %vm511, %v4980, 0
    %v4988 = vsel %vm636, %v4983, 0
    %4990 = vmatprep.subr.bf16.mxu0 0
    %4991 = vmatpush1.bf16.msra.mxu0 0
    %4992 = vmatprep.subr.bf16.mxu0 0
    %4993 = vmatpush1.bf16.msra.mxu0 0
    %4994 = vmatprep.subr.bf16.mxu0 0
    %4995 = vmatpush1.bf16.msra.mxu0 0
    %4996 = vmatprep.subr.bf16.mxu0 0
    %4997 = vmatpush1.bf16.msra.mxu0 0
    %4998 = vmatprep.subr.bf16.mxu0 0
    %4999 = vmatpush1.bf16.msra.mxu0 0
    %5000 = vmatprep.subr.bf16.mxu0 0
    %5001 = vmatpush1.bf16.msra.mxu0 0
    %5002 = vmatprep.subr.bf16.mxu0 0
    %5003 = vmatpush1.bf16.msra.mxu0 0
    %5004 = vmatprep.subr.bf16.mxu0 0
    %5005 = vmatpush1.bf16.msra.mxu0 %v4988
    %5006 = vmatprep.subr.bf16.mxu0 0
    %5007 = vmatpush2.bf16.msra.mxu0 0
    %5008 = vmatprep.subr.bf16.mxu0 0
    %5009 = vmatpush2.bf16.msra.mxu0 0
    %5010 = vmatprep.subr.bf16.mxu0 0
    %5011 = vmatpush2.bf16.msra.mxu0 0
    %5012 = vmatprep.subr.bf16.mxu0 0
    %5013 = vmatpush2.bf16.msra.mxu0 0
    %5014 = vmatprep.subr.bf16.mxu0 0
    %5015 = vmatpush2.bf16.msra.mxu0 0
    %5016 = vmatprep.subr.bf16.mxu0 0
    %5017 = vmatpush2.bf16.msra.mxu0 0
    %5018 = vmatprep.subr.bf16.mxu0 0
    %5019 = vmatpush2.bf16.msra.mxu0 0
    %5020 = vmatprep.subr.bf16.mxu0 0
    %5021 = vmatpush2.bf16.msra.mxu0 0
    %5022 = vmatprep.mubr.bf16.mxu0 0
    %5023 = vmatmul.mubr.bf16.gmra.mxu0 %v4985
    %v5024 = vpop.f32.mrf.mxu0
    %v5025 = vadd.f32 0.0, %v5024
    %v5026 = vpop.f32.mrf.mxu0
    %v5027 = vpop.f32.mrf.mxu0
    %v5028 = vpop.f32.mrf.mxu0
    %5029 = vdwg.mxu0
    %5030 = vrot.lane.b32.xlu0 %v4859, 64
    %v5031 = vpop.permute.xlu0 %5030
    %v5033 = vsel %vm511, %v4981, 0
    %v5036 = vsel %vm636, %v5031, 0
    %5038 = vmatprep.subr.bf16.mxu0 0
    %5039 = vmatpush1.bf16.msra.mxu0 0
    %5040 = vmatprep.subr.bf16.mxu0 0
    %5041 = vmatpush1.bf16.msra.mxu0 0
    %5042 = vmatprep.subr.bf16.mxu0 0
    %5043 = vmatpush1.bf16.msra.mxu0 0
    %5044 = vmatprep.subr.bf16.mxu0 0
    %5045 = vmatpush1.bf16.msra.mxu0 0
    %5046 = vmatprep.subr.bf16.mxu0 0
    %5047 = vmatpush1.bf16.msra.mxu0 0
    %5048 = vmatprep.subr.bf16.mxu0 0
    %5049 = vmatpush1.bf16.msra.mxu0 0
    %5050 = vmatprep.subr.bf16.mxu0 0
    %5051 = vmatpush1.bf16.msra.mxu0 0
    %5052 = vmatprep.subr.bf16.mxu0 0
    %5053 = vmatpush1.bf16.msra.mxu0 %v5036
    %5054 = vmatprep.subr.bf16.mxu0 0
    %5055 = vmatpush2.bf16.msra.mxu0 0
    %5056 = vmatprep.subr.bf16.mxu0 0
    %5057 = vmatpush2.bf16.msra.mxu0 0
    %5058 = vmatprep.subr.bf16.mxu0 0
    %5059 = vmatpush2.bf16.msra.mxu0 0
    %5060 = vmatprep.subr.bf16.mxu0 0
    %5061 = vmatpush2.bf16.msra.mxu0 0
    %5062 = vmatprep.subr.bf16.mxu0 0
    %5063 = vmatpush2.bf16.msra.mxu0 0
    %5064 = vmatprep.subr.bf16.mxu0 0
    %5065 = vmatpush2.bf16.msra.mxu0 0
    %5066 = vmatprep.subr.bf16.mxu0 0
    %5067 = vmatpush2.bf16.msra.mxu0 0
    %5068 = vmatprep.subr.bf16.mxu0 0
    %5069 = vmatpush2.bf16.msra.mxu0 0
    %5070 = vmatprep.mubr.bf16.mxu0 0
    %5071 = vmatmul.mubr.bf16.gmra.mxu0 %v5033
    %v5072 = vpop.f32.mrf.mxu0
    %v5073 = vadd.f32 0.0, %v5072
    %v5074 = vpop.f32.mrf.mxu0
    %v5075 = vpop.f32.mrf.mxu0
    %v5076 = vpop.f32.mrf.mxu0
    %5077 = vdwg.mxu0
    %5078 = vrot.lane.b32.xlu0 %v4858, 120
    %v5079 = vpop.permute.xlu0 %5078
    %5080 = vrot.lane.b32.xlu0 %v4858, 88
    %v5081 = vpop.permute.xlu0 %5080
    %v5083 = vsel %vm511, %v5079, 0
    %v5086 = vsel %vm511, %v5081, 0
    %5088 = vmatprep.subr.bf16.mxu0 0
    %5089 = vmatpush1.bf16.xpose.msra.mxu0 0
    %5090 = vmatprep.subr.bf16.mxu0 0
    %5091 = vmatpush1.bf16.xpose.msra.mxu0 0
    %5092 = vmatprep.subr.bf16.mxu0 0
    %5093 = vmatpush1.bf16.xpose.msra.mxu0 0
    %5094 = vmatprep.subr.bf16.mxu0 0
    %5095 = vmatpush1.bf16.xpose.msra.mxu0 0
    %5096 = vmatprep.subr.bf16.mxu0 0
    %5097 = vmatpush1.bf16.xpose.msra.mxu0 0
    %5098 = vmatprep.subr.bf16.mxu0 0
    %5099 = vmatpush1.bf16.xpose.msra.mxu0 0
    %5100 = vmatprep.subr.bf16.mxu0 0
    %5101 = vmatpush1.bf16.xpose.msra.mxu0 0
    %5102 = vmatprep.subr.bf16.mxu0 0
    %5103 = vmatpush1.bf16.xpose.msra.mxu0 %v5086
    %5104 = vmatprep.subr.bf16.mxu0 0
    %5105 = vmatpush2.bf16.xpose.msra.mxu0 0
    %5106 = vmatprep.subr.bf16.mxu0 0
    %5107 = vmatpush2.bf16.xpose.msra.mxu0 0
    %5108 = vmatprep.subr.bf16.mxu0 0
    %5109 = vmatpush2.bf16.xpose.msra.mxu0 0
    %5110 = vmatprep.subr.bf16.mxu0 0
    %5111 = vmatpush2.bf16.xpose.msra.mxu0 0
    %5112 = vmatprep.subr.bf16.mxu0 0
    %5113 = vmatpush2.bf16.xpose.msra.mxu0 0
    %5114 = vmatprep.subr.bf16.mxu0 0
    %5115 = vmatpush2.bf16.xpose.msra.mxu0 0
    %5116 = vmatprep.subr.bf16.mxu0 0
    %5117 = vmatpush2.bf16.xpose.msra.mxu0 0
    %5118 = vmatprep.subr.bf16.mxu0 0
    %5119 = vmatpush2.bf16.xpose.msra.mxu0 0
    %5120 = vmatprep.mubr.bf16.mxu0 0
    %5121 = vmatmul.mubr.bf16.gmra.mxu0 %v5083
    %v5122 = vpop.f32.mrf.mxu0
    %v5123 = vadd.f32 %v501, %v5122
    %v5124 = vpop.f32.mrf.mxu0
    %v5125 = vpop.f32.mrf.mxu0
    %v5126 = vpop.f32.mrf.mxu0
    %5127 = vdwg.mxu0
    %5128 = vrot.lane.b32.xlu0 %v4859, 120
    %v5129 = vpop.permute.xlu0 %5128
    %5130 = vrot.lane.b32.xlu0 %v4859, 88
    %v5131 = vpop.permute.xlu0 %5130
    %v5133 = vsel %vm511, %v5129, 0
    %v5136 = vsel %vm511, %v5131, 0
    %5138 = vmatprep.subr.bf16.mxu0 0
    %5139 = vmatpush1.bf16.xpose.msra.mxu0 0
    %5140 = vmatprep.subr.bf16.mxu0 0
    %5141 = vmatpush1.bf16.xpose.msra.mxu0 0
    %5142 = vmatprep.subr.bf16.mxu0 0
    %5143 = vmatpush1.bf16.xpose.msra.mxu0 0
    %5144 = vmatprep.subr.bf16.mxu0 0
    %5145 = vmatpush1.bf16.xpose.msra.mxu0 0
    %5146 = vmatprep.subr.bf16.mxu0 0
    %5147 = vmatpush1.bf16.xpose.msra.mxu0 0
    %5148 = vmatprep.subr.bf16.mxu0 0
    %5149 = vmatpush1.bf16.xpose.msra.mxu0 0
    %5150 = vmatprep.subr.bf16.mxu0 0
    %5151 = vmatpush1.bf16.xpose.msra.mxu0 0
    %5152 = vmatprep.subr.bf16.mxu0 0
    %5153 = vmatpush1.bf16.xpose.msra.mxu0 %v5136
    %5154 = vmatprep.subr.bf16.mxu0 0
    %5155 = vmatpush2.bf16.xpose.msra.mxu0 0
    %5156 = vmatprep.subr.bf16.mxu0 0
    %5157 = vmatpush2.bf16.xpose.msra.mxu0 0
    %5158 = vmatprep.subr.bf16.mxu0 0
    %5159 = vmatpush2.bf16.xpose.msra.mxu0 0
    %5160 = vmatprep.subr.bf16.mxu0 0
    %5161 = vmatpush2.bf16.xpose.msra.mxu0 0
    %5162 = vmatprep.subr.bf16.mxu0 0
    %5163 = vmatpush2.bf16.xpose.msra.mxu0 0
    %5164 = vmatprep.subr.bf16.mxu0 0
    %5165 = vmatpush2.bf16.xpose.msra.mxu0 0
    %5166 = vmatprep.subr.bf16.mxu0 0
    %5167 = vmatpush2.bf16.xpose.msra.mxu0 0
    %5168 = vmatprep.subr.bf16.mxu0 0
    %5169 = vmatpush2.bf16.xpose.msra.mxu0 0
    %5170 = vmatprep.mubr.bf16.mxu0 0
    %5171 = vmatmul.mubr.bf16.gmra.mxu0 %v5133
    %v5172 = vpop.f32.mrf.mxu0
    %v5173 = vadd.f32 %v505, %v5172
    %v5174 = vpop.f32.mrf.mxu0
    %v5175 = vpop.f32.mrf.mxu0
    %v5176 = vpop.f32.mrf.mxu0
    %5177 = vdwg.mxu0
    %v5178 = vsel %vm511, %v5123, -inf
    %5179 = vmax.xlane.f32.xlu0 %v5178
    %v5180 = vpop.xlane.xlu0 %5179
    %v5181 = vsel %vm511, %v5173, -inf
    %5182 = vmax.xlane.f32.xlu0 %v5181
    %v5183 = vpop.xlane.xlu0 %5182
    %v5184 = vsub.f32 %v5123, %v5180
    %v5185 = vsub.f32 %v5173, %v5183
    %v5186 = vmul.f32 %v5184, 1.442695
    %v5187 = vpow.pop %v5186
    %v5188 = vmul.f32 %v5185, 1.442695
    %v5189 = vpow.pop %v5188
    %v5190 = vsel %vm511, %v5187, 0.0
    %5191 = vadd.xlane.f32.xlu0 %v5190
    %v5192 = vpop.xlane.xlu0 %5191
    %v5193 = vsel %vm511, %v5189, 0.0
    %5194 = vadd.xlane.f32.xlu0 %v5193
    %v5195 = vpop.xlane.xlu0 %5194
    %v5196 = vrcp.pop %v5192
    %v5197 = vrcp.pop %v5195
    %v5198 = vmul.f32 %v5187, %v5196
    %v5199 = vmul.f32 %v5189, %v5197
    %v5200 = vpack.c.bf16 %v5198, %v5198
    %v5201 = vpack.c.bf16 %v5199, %v5199
    %5202 = vrot.lane.b32.xlu0 %v4858, 56
    %v5203 = vpop.permute.xlu0 %5202
    %v5205 = vsel %vm511, %v5200, 0
    %v5208 = vsel %vm636, %v5203, 0
    %5210 = vmatprep.subr.bf16.mxu0 0
    %5211 = vmatpush1.bf16.msra.mxu0 0
    %5212 = vmatprep.subr.bf16.mxu0 0
    %5213 = vmatpush1.bf16.msra.mxu0 0
    %5214 = vmatprep.subr.bf16.mxu0 0
    %5215 = vmatpush1.bf16.msra.mxu0 0
    %5216 = vmatprep.subr.bf16.mxu0 0
    %5217 = vmatpush1.bf16.msra.mxu0 0
    %5218 = vmatprep.subr.bf16.mxu0 0
    %5219 = vmatpush1.bf16.msra.mxu0 0
    %5220 = vmatprep.subr.bf16.mxu0 0
    %5221 = vmatpush1.bf16.msra.mxu0 0
    %5222 = vmatprep.subr.bf16.mxu0 0
    %5223 = vmatpush1.bf16.msra.mxu0 0
    %5224 = vmatprep.subr.bf16.mxu0 0
    %5225 = vmatpush1.bf16.msra.mxu0 %v5208
    %5226 = vmatprep.subr.bf16.mxu0 0
    %5227 = vmatpush2.bf16.msra.mxu0 0
    %5228 = vmatprep.subr.bf16.mxu0 0
    %5229 = vmatpush2.bf16.msra.mxu0 0
    %5230 = vmatprep.subr.bf16.mxu0 0
    %5231 = vmatpush2.bf16.msra.mxu0 0
    %5232 = vmatprep.subr.bf16.mxu0 0
    %5233 = vmatpush2.bf16.msra.mxu0 0
    %5234 = vmatprep.subr.bf16.mxu0 0
    %5235 = vmatpush2.bf16.msra.mxu0 0
    %5236 = vmatprep.subr.bf16.mxu0 0
    %5237 = vmatpush2.bf16.msra.mxu0 0
    %5238 = vmatprep.subr.bf16.mxu0 0
    %5239 = vmatpush2.bf16.msra.mxu0 0
    %5240 = vmatprep.subr.bf16.mxu0 0
    %5241 = vmatpush2.bf16.msra.mxu0 0
    %5242 = vmatprep.mubr.bf16.mxu0 0
    %5243 = vmatmul.mubr.bf16.gmra.mxu0 %v5205
    %v5244 = vpop.f32.mrf.mxu0
    %v5245 = vadd.f32 0.0, %v5244
    %v5246 = vpop.f32.mrf.mxu0
    %v5247 = vpop.f32.mrf.mxu0
    %v5248 = vpop.f32.mrf.mxu0
    %5249 = vdwg.mxu0
    %5250 = vrot.lane.b32.xlu0 %v4859, 56
    %v5251 = vpop.permute.xlu0 %5250
    %v5253 = vsel %vm511, %v5201, 0
    %v5256 = vsel %vm636, %v5251, 0
    %5258 = vmatprep.subr.bf16.mxu0 0
    %5259 = vmatpush1.bf16.msra.mxu0 0
    %5260 = vmatprep.subr.bf16.mxu0 0
    %5261 = vmatpush1.bf16.msra.mxu0 0
    %5262 = vmatprep.subr.bf16.mxu0 0
    %5263 = vmatpush1.bf16.msra.mxu0 0
    %5264 = vmatprep.subr.bf16.mxu0 0
    %5265 = vmatpush1.bf16.msra.mxu0 0
    %5266 = vmatprep.subr.bf16.mxu0 0
    %5267 = vmatpush1.bf16.msra.mxu0 0
    %5268 = vmatprep.subr.bf16.mxu0 0
    %5269 = vmatpush1.bf16.msra.mxu0 0
    %5270 = vmatprep.subr.bf16.mxu0 0
    %5271 = vmatpush1.bf16.msra.mxu0 0
    %5272 = vmatprep.subr.bf16.mxu0 0
    %5273 = vmatpush1.bf16.msra.mxu0 %v5256
    %5274 = vmatprep.subr.bf16.mxu0 0
    %5275 = vmatpush2.bf16.msra.mxu0 0
    %5276 = vmatprep.subr.bf16.mxu0 0
    %5277 = vmatpush2.bf16.msra.mxu0 0
    %5278 = vmatprep.subr.bf16.mxu0 0
    %5279 = vmatpush2.bf16.msra.mxu0 0
    %5280 = vmatprep.subr.bf16.mxu0 0
    %5281 = vmatpush2.bf16.msra.mxu0 0
    %5282 = vmatprep.subr.bf16.mxu0 0
    %5283 = vmatpush2.bf16.msra.mxu0 0
    %5284 = vmatprep.subr.bf16.mxu0 0
    %5285 = vmatpush2.bf16.msra.mxu0 0
    %5286 = vmatprep.subr.bf16.mxu0 0
    %5287 = vmatpush2.bf16.msra.mxu0 0
    %5288 = vmatprep.subr.bf16.mxu0 0
    %5289 = vmatpush2.bf16.msra.mxu0 0
    %5290 = vmatprep.mubr.bf16.mxu0 0
    %5291 = vmatmul.mubr.bf16.gmra.mxu0 %v5253
    %v5292 = vpop.f32.mrf.mxu0
    %v5293 = vadd.f32 0.0, %v5292
    %v5294 = vpop.f32.mrf.mxu0
    %v5295 = vpop.f32.mrf.mxu0
    %v5296 = vpop.f32.mrf.mxu0
    %5297 = vdwg.mxu0
    %5298 = vrot.lane.b32.xlu0 %v4858, 112
    %v5299 = vpop.permute.xlu0 %5298
    %5300 = vrot.lane.b32.xlu0 %v4858, 80
    %v5301 = vpop.permute.xlu0 %5300
    %v5303 = vsel %vm511, %v5299, 0
    %v5306 = vsel %vm511, %v5301, 0
    %5308 = vmatprep.subr.bf16.mxu0 0
    %5309 = vmatpush1.bf16.xpose.msra.mxu0 0
    %5310 = vmatprep.subr.bf16.mxu0 0
    %5311 = vmatpush1.bf16.xpose.msra.mxu0 0
    %5312 = vmatprep.subr.bf16.mxu0 0
    %5313 = vmatpush1.bf16.xpose.msra.mxu0 0
    %5314 = vmatprep.subr.bf16.mxu0 0
    %5315 = vmatpush1.bf16.xpose.msra.mxu0 0
    %5316 = vmatprep.subr.bf16.mxu0 0
    %5317 = vmatpush1.bf16.xpose.msra.mxu0 0
    %5318 = vmatprep.subr.bf16.mxu0 0
    %5319 = vmatpush1.bf16.xpose.msra.mxu0 0
    %5320 = vmatprep.subr.bf16.mxu0 0
    %5321 = vmatpush1.bf16.xpose.msra.mxu0 0
    %5322 = vmatprep.subr.bf16.mxu0 0
    %5323 = vmatpush1.bf16.xpose.msra.mxu0 %v5306
    %5324 = vmatprep.subr.bf16.mxu0 0
    %5325 = vmatpush2.bf16.xpose.msra.mxu0 0
    %5326 = vmatprep.subr.bf16.mxu0 0
    %5327 = vmatpush2.bf16.xpose.msra.mxu0 0
    %5328 = vmatprep.subr.bf16.mxu0 0
    %5329 = vmatpush2.bf16.xpose.msra.mxu0 0
    %5330 = vmatprep.subr.bf16.mxu0 0
    %5331 = vmatpush2.bf16.xpose.msra.mxu0 0
    %5332 = vmatprep.subr.bf16.mxu0 0
    %5333 = vmatpush2.bf16.xpose.msra.mxu0 0
    %5334 = vmatprep.subr.bf16.mxu0 0
    %5335 = vmatpush2.bf16.xpose.msra.mxu0 0
    %5336 = vmatprep.subr.bf16.mxu0 0
    %5337 = vmatpush2.bf16.xpose.msra.mxu0 0
    %5338 = vmatprep.subr.bf16.mxu0 0
    %5339 = vmatpush2.bf16.xpose.msra.mxu0 0
    %5340 = vmatprep.mubr.bf16.mxu0 0
    %5341 = vmatmul.mubr.bf16.gmra.mxu0 %v5303
    %v5342 = vpop.f32.mrf.mxu0
    %v5343 = vadd.f32 %v501, %v5342
    %v5344 = vpop.f32.mrf.mxu0
    %v5345 = vpop.f32.mrf.mxu0
    %v5346 = vpop.f32.mrf.mxu0
    %5347 = vdwg.mxu0
    %5348 = vrot.lane.b32.xlu0 %v4859, 112
    %v5349 = vpop.permute.xlu0 %5348
    %5350 = vrot.lane.b32.xlu0 %v4859, 80
    %v5351 = vpop.permute.xlu0 %5350
    %v5353 = vsel %vm511, %v5349, 0
    %v5356 = vsel %vm511, %v5351, 0
    %5358 = vmatprep.subr.bf16.mxu0 0
    %5359 = vmatpush1.bf16.xpose.msra.mxu0 0
    %5360 = vmatprep.subr.bf16.mxu0 0
    %5361 = vmatpush1.bf16.xpose.msra.mxu0 0
    %5362 = vmatprep.subr.bf16.mxu0 0
    %5363 = vmatpush1.bf16.xpose.msra.mxu0 0
    %5364 = vmatprep.subr.bf16.mxu0 0
    %5365 = vmatpush1.bf16.xpose.msra.mxu0 0
    %5366 = vmatprep.subr.bf16.mxu0 0
    %5367 = vmatpush1.bf16.xpose.msra.mxu0 0
    %5368 = vmatprep.subr.bf16.mxu0 0
    %5369 = vmatpush1.bf16.xpose.msra.mxu0 0
    %5370 = vmatprep.subr.bf16.mxu0 0
    %5371 = vmatpush1.bf16.xpose.msra.mxu0 0
    %5372 = vmatprep.subr.bf16.mxu0 0
    %5373 = vmatpush1.bf16.xpose.msra.mxu0 %v5356
    %5374 = vmatprep.subr.bf16.mxu0 0
    %5375 = vmatpush2.bf16.xpose.msra.mxu0 0
    %5376 = vmatprep.subr.bf16.mxu0 0
    %5377 = vmatpush2.bf16.xpose.msra.mxu0 0
    %5378 = vmatprep.subr.bf16.mxu0 0
    %5379 = vmatpush2.bf16.xpose.msra.mxu0 0
    %5380 = vmatprep.subr.bf16.mxu0 0
    %5381 = vmatpush2.bf16.xpose.msra.mxu0 0
    %5382 = vmatprep.subr.bf16.mxu0 0
    %5383 = vmatpush2.bf16.xpose.msra.mxu0 0
    %5384 = vmatprep.subr.bf16.mxu0 0
    %5385 = vmatpush2.bf16.xpose.msra.mxu0 0
    %5386 = vmatprep.subr.bf16.mxu0 0
    %5387 = vmatpush2.bf16.xpose.msra.mxu0 0
    %5388 = vmatprep.subr.bf16.mxu0 0
    %5389 = vmatpush2.bf16.xpose.msra.mxu0 0
    %5390 = vmatprep.mubr.bf16.mxu0 0
    %5391 = vmatmul.mubr.bf16.gmra.mxu0 %v5353
    %v5392 = vpop.f32.mrf.mxu0
    %v5393 = vadd.f32 %v505, %v5392
    %v5394 = vpop.f32.mrf.mxu0
    %v5395 = vpop.f32.mrf.mxu0
    %v5396 = vpop.f32.mrf.mxu0
    %5397 = vdwg.mxu0
    %v5398 = vsel %vm511, %v5343, -inf
    %5399 = vmax.xlane.f32.xlu0 %v5398
    %v5400 = vpop.xlane.xlu0 %5399
    %v5401 = vsel %vm511, %v5393, -inf
    %5402 = vmax.xlane.f32.xlu0 %v5401
    %v5403 = vpop.xlane.xlu0 %5402
    %v5404 = vsub.f32 %v5343, %v5400
    %v5405 = vsub.f32 %v5393, %v5403
    %v5406 = vmul.f32 %v5404, 1.442695
    %v5407 = vpow.pop %v5406
    %v5408 = vmul.f32 %v5405, 1.442695
    %v5409 = vpow.pop %v5408
    %v5410 = vsel %vm511, %v5407, 0.0
    %5411 = vadd.xlane.f32.xlu0 %v5410
    %v5412 = vpop.xlane.xlu0 %5411
    %v5413 = vsel %vm511, %v5409, 0.0
    %5414 = vadd.xlane.f32.xlu0 %v5413
    %v5415 = vpop.xlane.xlu0 %5414
    %v5416 = vrcp.pop %v5412
    %v5417 = vrcp.pop %v5415
    %v5418 = vmul.f32 %v5407, %v5416
    %v5419 = vmul.f32 %v5409, %v5417
    %v5420 = vpack.c.bf16 %v5418, %v5418
    %v5421 = vpack.c.bf16 %v5419, %v5419
    %5422 = vrot.lane.b32.xlu0 %v4858, 48
    %v5423 = vpop.permute.xlu0 %5422
    %v5425 = vsel %vm511, %v5420, 0
    %v5428 = vsel %vm636, %v5423, 0
    %5430 = vmatprep.subr.bf16.mxu0 0
    %5431 = vmatpush1.bf16.msra.mxu0 0
    %5432 = vmatprep.subr.bf16.mxu0 0
    %5433 = vmatpush1.bf16.msra.mxu0 0
    %5434 = vmatprep.subr.bf16.mxu0 0
    %5435 = vmatpush1.bf16.msra.mxu0 0
    %5436 = vmatprep.subr.bf16.mxu0 0
    %5437 = vmatpush1.bf16.msra.mxu0 0
    %5438 = vmatprep.subr.bf16.mxu0 0
    %5439 = vmatpush1.bf16.msra.mxu0 0
    %5440 = vmatprep.subr.bf16.mxu0 0
    %5441 = vmatpush1.bf16.msra.mxu0 0
    %5442 = vmatprep.subr.bf16.mxu0 0
    %5443 = vmatpush1.bf16.msra.mxu0 0
    %5444 = vmatprep.subr.bf16.mxu0 0
    %5445 = vmatpush1.bf16.msra.mxu0 %v5428
    %5446 = vmatprep.subr.bf16.mxu0 0
    %5447 = vmatpush2.bf16.msra.mxu0 0
    %5448 = vmatprep.subr.bf16.mxu0 0
    %5449 = vmatpush2.bf16.msra.mxu0 0
    %5450 = vmatprep.subr.bf16.mxu0 0
    %5451 = vmatpush2.bf16.msra.mxu0 0
    %5452 = vmatprep.subr.bf16.mxu0 0
    %5453 = vmatpush2.bf16.msra.mxu0 0
    %5454 = vmatprep.subr.bf16.mxu0 0
    %5455 = vmatpush2.bf16.msra.mxu0 0
    %5456 = vmatprep.subr.bf16.mxu0 0
    %5457 = vmatpush2.bf16.msra.mxu0 0
    %5458 = vmatprep.subr.bf16.mxu0 0
    %5459 = vmatpush2.bf16.msra.mxu0 0
    %5460 = vmatprep.subr.bf16.mxu0 0
    %5461 = vmatpush2.bf16.msra.mxu0 0
    %5462 = vmatprep.mubr.bf16.mxu0 0
    %5463 = vmatmul.mubr.bf16.gmra.mxu0 %v5425
    %v5464 = vpop.f32.mrf.mxu0
    %v5465 = vadd.f32 0.0, %v5464
    %v5466 = vpop.f32.mrf.mxu0
    %v5467 = vpop.f32.mrf.mxu0
    %v5468 = vpop.f32.mrf.mxu0
    %5469 = vdwg.mxu0
    %5470 = vrot.lane.b32.xlu0 %v4859, 48
    %v5471 = vpop.permute.xlu0 %5470
    %v5473 = vsel %vm511, %v5421, 0
    %v5476 = vsel %vm636, %v5471, 0
    %5478 = vmatprep.subr.bf16.mxu0 0
    %5479 = vmatpush1.bf16.msra.mxu0 0
    %5480 = vmatprep.subr.bf16.mxu0 0
    %5481 = vmatpush1.bf16.msra.mxu0 0
    %5482 = vmatprep.subr.bf16.mxu0 0
    %5483 = vmatpush1.bf16.msra.mxu0 0
    %5484 = vmatprep.subr.bf16.mxu0 0
    %5485 = vmatpush1.bf16.msra.mxu0 0
    %5486 = vmatprep.subr.bf16.mxu0 0
    %5487 = vmatpush1.bf16.msra.mxu0 0
    %5488 = vmatprep.subr.bf16.mxu0 0
    %5489 = vmatpush1.bf16.msra.mxu0 0
    %5490 = vmatprep.subr.bf16.mxu0 0
    %5491 = vmatpush1.bf16.msra.mxu0 0
    %5492 = vmatprep.subr.bf16.mxu0 0
    %5493 = vmatpush1.bf16.msra.mxu0 %v5476
    %5494 = vmatprep.subr.bf16.mxu0 0
    %5495 = vmatpush2.bf16.msra.mxu0 0
    %5496 = vmatprep.subr.bf16.mxu0 0
    %5497 = vmatpush2.bf16.msra.mxu0 0
    %5498 = vmatprep.subr.bf16.mxu0 0
    %5499 = vmatpush2.bf16.msra.mxu0 0
    %5500 = vmatprep.subr.bf16.mxu0 0
    %5501 = vmatpush2.bf16.msra.mxu0 0
    %5502 = vmatprep.subr.bf16.mxu0 0
    %5503 = vmatpush2.bf16.msra.mxu0 0
    %5504 = vmatprep.subr.bf16.mxu0 0
    %5505 = vmatpush2.bf16.msra.mxu0 0
    %5506 = vmatprep.subr.bf16.mxu0 0
    %5507 = vmatpush2.bf16.msra.mxu0 0
    %5508 = vmatprep.subr.bf16.mxu0 0
    %5509 = vmatpush2.bf16.msra.mxu0 0
    %5510 = vmatprep.mubr.bf16.mxu0 0
    %5511 = vmatmul.mubr.bf16.gmra.mxu0 %v5473
    %v5512 = vpop.f32.mrf.mxu0
    %v5513 = vadd.f32 0.0, %v5512
    %v5514 = vpop.f32.mrf.mxu0
    %v5515 = vpop.f32.mrf.mxu0
    %v5516 = vpop.f32.mrf.mxu0
    %5517 = vdwg.mxu0
    %5518 = vrot.lane.b32.xlu0 %v4858, 104
    %v5519 = vpop.permute.xlu0 %5518
    %5520 = vrot.lane.b32.xlu0 %v4858, 72
    %v5521 = vpop.permute.xlu0 %5520
    %v5523 = vsel %vm511, %v5519, 0
    %v5526 = vsel %vm511, %v5521, 0
    %5528 = vmatprep.subr.bf16.mxu0 0
    %5529 = vmatpush1.bf16.xpose.msra.mxu0 0
    %5530 = vmatprep.subr.bf16.mxu0 0
    %5531 = vmatpush1.bf16.xpose.msra.mxu0 0
    %5532 = vmatprep.subr.bf16.mxu0 0
    %5533 = vmatpush1.bf16.xpose.msra.mxu0 0
    %5534 = vmatprep.subr.bf16.mxu0 0
    %5535 = vmatpush1.bf16.xpose.msra.mxu0 0
    %5536 = vmatprep.subr.bf16.mxu0 0
    %5537 = vmatpush1.bf16.xpose.msra.mxu0 0
    %5538 = vmatprep.subr.bf16.mxu0 0
    %5539 = vmatpush1.bf16.xpose.msra.mxu0 0
    %5540 = vmatprep.subr.bf16.mxu0 0
    %5541 = vmatpush1.bf16.xpose.msra.mxu0 0
    %5542 = vmatprep.subr.bf16.mxu0 0
    %5543 = vmatpush1.bf16.xpose.msra.mxu0 %v5526
    %5544 = vmatprep.subr.bf16.mxu0 0
    %5545 = vmatpush2.bf16.xpose.msra.mxu0 0
    %5546 = vmatprep.subr.bf16.mxu0 0
    %5547 = vmatpush2.bf16.xpose.msra.mxu0 0
    %5548 = vmatprep.subr.bf16.mxu0 0
    %5549 = vmatpush2.bf16.xpose.msra.mxu0 0
    %5550 = vmatprep.subr.bf16.mxu0 0
    %5551 = vmatpush2.bf16.xpose.msra.mxu0 0
    %5552 = vmatprep.subr.bf16.mxu0 0
    %5553 = vmatpush2.bf16.xpose.msra.mxu0 0
    %5554 = vmatprep.subr.bf16.mxu0 0
    %5555 = vmatpush2.bf16.xpose.msra.mxu0 0
    %5556 = vmatprep.subr.bf16.mxu0 0
    %5557 = vmatpush2.bf16.xpose.msra.mxu0 0
    %5558 = vmatprep.subr.bf16.mxu0 0
    %5559 = vmatpush2.bf16.xpose.msra.mxu0 0
    %5560 = vmatprep.mubr.bf16.mxu0 0
    %5561 = vmatmul.mubr.bf16.gmra.mxu0 %v5523
    %v5562 = vpop.f32.mrf.mxu0
    %v5563 = vadd.f32 %v501, %v5562
    %v5564 = vpop.f32.mrf.mxu0
    %v5565 = vpop.f32.mrf.mxu0
    %v5566 = vpop.f32.mrf.mxu0
    %5567 = vdwg.mxu0
    %5568 = vrot.lane.b32.xlu0 %v4859, 104
    %v5569 = vpop.permute.xlu0 %5568
    %5570 = vrot.lane.b32.xlu0 %v4859, 72
    %v5571 = vpop.permute.xlu0 %5570
    %v5573 = vsel %vm511, %v5569, 0
    %v5576 = vsel %vm511, %v5571, 0
    %5578 = vmatprep.subr.bf16.mxu0 0
    %5579 = vmatpush1.bf16.xpose.msra.mxu0 0
    %5580 = vmatprep.subr.bf16.mxu0 0
    %5581 = vmatpush1.bf16.xpose.msra.mxu0 0
    %5582 = vmatprep.subr.bf16.mxu0 0
    %5583 = vmatpush1.bf16.xpose.msra.mxu0 0
    %5584 = vmatprep.subr.bf16.mxu0 0
    %5585 = vmatpush1.bf16.xpose.msra.mxu0 0
    %5586 = vmatprep.subr.bf16.mxu0 0
    %5587 = vmatpush1.bf16.xpose.msra.mxu0 0
    %5588 = vmatprep.subr.bf16.mxu0 0
    %5589 = vmatpush1.bf16.xpose.msra.mxu0 0
    %5590 = vmatprep.subr.bf16.mxu0 0
    %5591 = vmatpush1.bf16.xpose.msra.mxu0 0
    %5592 = vmatprep.subr.bf16.mxu0 0
    %5593 = vmatpush1.bf16.xpose.msra.mxu0 %v5576
    %5594 = vmatprep.subr.bf16.mxu0 0
    %5595 = vmatpush2.bf16.xpose.msra.mxu0 0
    %5596 = vmatprep.subr.bf16.mxu0 0
    %5597 = vmatpush2.bf16.xpose.msra.mxu0 0
    %5598 = vmatprep.subr.bf16.mxu0 0
    %5599 = vmatpush2.bf16.xpose.msra.mxu0 0
    %5600 = vmatprep.subr.bf16.mxu0 0
    %5601 = vmatpush2.bf16.xpose.msra.mxu0 0
    %5602 = vmatprep.subr.bf16.mxu0 0
    %5603 = vmatpush2.bf16.xpose.msra.mxu0 0
    %5604 = vmatprep.subr.bf16.mxu0 0
    %5605 = vmatpush2.bf16.xpose.msra.mxu0 0
    %5606 = vmatprep.subr.bf16.mxu0 0
    %5607 = vmatpush2.bf16.xpose.msra.mxu0 0
    %5608 = vmatprep.subr.bf16.mxu0 0
    %5609 = vmatpush2.bf16.xpose.msra.mxu0 0
    %5610 = vmatprep.mubr.bf16.mxu0 0
    %5611 = vmatmul.mubr.bf16.gmra.mxu0 %v5573
    %v5612 = vpop.f32.mrf.mxu0
    %v5613 = vadd.f32 %v505, %v5612
    %v5614 = vpop.f32.mrf.mxu0
    %v5615 = vpop.f32.mrf.mxu0
    %v5616 = vpop.f32.mrf.mxu0
    %5617 = vdwg.mxu0
    %v5618 = vsel %vm511, %v5563, -inf
    %5619 = vmax.xlane.f32.xlu0 %v5618
    %v5620 = vpop.xlane.xlu0 %5619
    %v5621 = vsel %vm511, %v5613, -inf
    %5622 = vmax.xlane.f32.xlu0 %v5621
    %v5623 = vpop.xlane.xlu0 %5622
    %v5624 = vsub.f32 %v5563, %v5620
    %v5625 = vsub.f32 %v5613, %v5623
    %v5626 = vmul.f32 %v5624, 1.442695
    %v5627 = vpow.pop %v5626
    %v5628 = vmul.f32 %v5625, 1.442695
    %v5629 = vpow.pop %v5628
    %v5630 = vsel %vm511, %v5627, 0.0
    %5631 = vadd.xlane.f32.xlu0 %v5630
    %v5632 = vpop.xlane.xlu0 %5631
    %v5633 = vsel %vm511, %v5629, 0.0
    %5634 = vadd.xlane.f32.xlu0 %v5633
    %v5635 = vpop.xlane.xlu0 %5634
    %v5636 = vrcp.pop %v5632
    %v5637 = vrcp.pop %v5635
    %v5638 = vmul.f32 %v5627, %v5636
    %v5639 = vmul.f32 %v5629, %v5637
    %v5640 = vpack.c.bf16 %v5638, %v5638
    %v5641 = vpack.c.bf16 %v5639, %v5639
    %5642 = vrot.lane.b32.xlu0 %v4858, 40
    %v5643 = vpop.permute.xlu0 %5642
    %v5645 = vsel %vm511, %v5640, 0
    %v5648 = vsel %vm636, %v5643, 0
    %5650 = vmatprep.subr.bf16.mxu0 0
    %5651 = vmatpush1.bf16.msra.mxu0 0
    %5652 = vmatprep.subr.bf16.mxu0 0
    %5653 = vmatpush1.bf16.msra.mxu0 0
    %5654 = vmatprep.subr.bf16.mxu0 0
    %5655 = vmatpush1.bf16.msra.mxu0 0
    %5656 = vmatprep.subr.bf16.mxu0 0
    %5657 = vmatpush1.bf16.msra.mxu0 0
    %5658 = vmatprep.subr.bf16.mxu0 0
    %5659 = vmatpush1.bf16.msra.mxu0 0
    %5660 = vmatprep.subr.bf16.mxu0 0
    %5661 = vmatpush1.bf16.msra.mxu0 0
    %5662 = vmatprep.subr.bf16.mxu0 0
    %5663 = vmatpush1.bf16.msra.mxu0 0
    %5664 = vmatprep.subr.bf16.mxu0 0
    %5665 = vmatpush1.bf16.msra.mxu0 %v5648
    %5666 = vmatprep.subr.bf16.mxu0 0
    %5667 = vmatpush2.bf16.msra.mxu0 0
    %5668 = vmatprep.subr.bf16.mxu0 0
    %5669 = vmatpush2.bf16.msra.mxu0 0
    %5670 = vmatprep.subr.bf16.mxu0 0
    %5671 = vmatpush2.bf16.msra.mxu0 0
    %5672 = vmatprep.subr.bf16.mxu0 0
    %5673 = vmatpush2.bf16.msra.mxu0 0
    %5674 = vmatprep.subr.bf16.mxu0 0
    %5675 = vmatpush2.bf16.msra.mxu0 0
    %5676 = vmatprep.subr.bf16.mxu0 0
    %5677 = vmatpush2.bf16.msra.mxu0 0
    %5678 = vmatprep.subr.bf16.mxu0 0
    %5679 = vmatpush2.bf16.msra.mxu0 0
    %5680 = vmatprep.subr.bf16.mxu0 0
    %5681 = vmatpush2.bf16.msra.mxu0 0
    %5682 = vmatprep.mubr.bf16.mxu0 0
    %5683 = vmatmul.mubr.bf16.gmra.mxu0 %v5645
    %v5684 = vpop.f32.mrf.mxu0
    %v5685 = vadd.f32 0.0, %v5684
    %v5686 = vpop.f32.mrf.mxu0
    %v5687 = vpop.f32.mrf.mxu0
    %v5688 = vpop.f32.mrf.mxu0
    %5689 = vdwg.mxu0
    %5690 = vrot.lane.b32.xlu0 %v4859, 40
    %v5691 = vpop.permute.xlu0 %5690
    %v5693 = vsel %vm511, %v5641, 0
    %v5696 = vsel %vm636, %v5691, 0
    %5698 = vmatprep.subr.bf16.mxu0 0
    %5699 = vmatpush1.bf16.msra.mxu0 0
    %5700 = vmatprep.subr.bf16.mxu0 0
    %5701 = vmatpush1.bf16.msra.mxu0 0
    %5702 = vmatprep.subr.bf16.mxu0 0
    %5703 = vmatpush1.bf16.msra.mxu0 0
    %5704 = vmatprep.subr.bf16.mxu0 0
    %5705 = vmatpush1.bf16.msra.mxu0 0
    %5706 = vmatprep.subr.bf16.mxu0 0
    %5707 = vmatpush1.bf16.msra.mxu0 0
    %5708 = vmatprep.subr.bf16.mxu0 0
    %5709 = vmatpush1.bf16.msra.mxu0 0
    %5710 = vmatprep.subr.bf16.mxu0 0
    %5711 = vmatpush1.bf16.msra.mxu0 0
    %5712 = vmatprep.subr.bf16.mxu0 0
    %5713 = vmatpush1.bf16.msra.mxu0 %v5696
    %5714 = vmatprep.subr.bf16.mxu0 0
    %5715 = vmatpush2.bf16.msra.mxu0 0
    %5716 = vmatprep.subr.bf16.mxu0 0
    %5717 = vmatpush2.bf16.msra.mxu0 0
    %5718 = vmatprep.subr.bf16.mxu0 0
    %5719 = vmatpush2.bf16.msra.mxu0 0
    %5720 = vmatprep.subr.bf16.mxu0 0
    %5721 = vmatpush2.bf16.msra.mxu0 0
    %5722 = vmatprep.subr.bf16.mxu0 0
    %5723 = vmatpush2.bf16.msra.mxu0 0
    %5724 = vmatprep.subr.bf16.mxu0 0
    %5725 = vmatpush2.bf16.msra.mxu0 0
    %5726 = vmatprep.subr.bf16.mxu0 0
    %5727 = vmatpush2.bf16.msra.mxu0 0
    %5728 = vmatprep.subr.bf16.mxu0 0
    %5729 = vmatpush2.bf16.msra.mxu0 0
    %5730 = vmatprep.mubr.bf16.mxu0 0
    %5731 = vmatmul.mubr.bf16.gmra.mxu0 %v5693
    %v5732 = vpop.f32.mrf.mxu0
    %v5733 = vadd.f32 0.0, %v5732
    %v5734 = vpop.f32.mrf.mxu0
    %v5735 = vpop.f32.mrf.mxu0
    %v5736 = vpop.f32.mrf.mxu0
    %5737 = vdwg.mxu0
    %5740 = vrot.lane.b32.xlu0 %v5245, 8
    %v5741 = vpop.permute.xlu0 %5740
    %5742 = vrot.lane.b32.xlu0 %v5293, 8
    %v5743 = vpop.permute.xlu0 %5742
    %5748 = vrot.lane.b32.xlu0 %v5465, 16
    %v5749 = vpop.permute.xlu0 %5748
    %5750 = vrot.lane.b32.xlu0 %v5513, 16
    %v5751 = vpop.permute.xlu0 %5750
    %5756 = vrot.lane.b32.xlu0 %v5685, 24
    %v5757 = vpop.permute.xlu0 %5756
    %5758 = vrot.lane.b32.xlu0 %v5733, 24
    %v5759 = vpop.permute.xlu0 %5758
    %v5762 = vsel %vm511, %v5025, %v5741
    %v5763 = vsel %vm511, %v5073, %v5743
    %v5764 = vsel %vm1414, %v5762, %v5749
    %v5765 = vsel %vm1414, %v5763, %v5751
    %v5766 = vsel %vm1417, %v5764, %v5757
    %v5767 = vsel %vm1417, %v5765, %v5759
    %v5768 = vpack.c.bf16 %v5767, %v5766
    %v5769 = vlaneseq
    %v5770 = vshrl.u32 %v5769, 7
    %v5771 = vsub.s32 1, %v5770
    %v5772 = vrot.slane %v4763, %v5771
    %v5777 = vunpack.c.l.b16 %v4724
    %v5778 = vunpack.c.l.b16 %v4725
    %v5779 = vunpack.c.l.b16 %v4726
    %v5780 = vunpack.c.l.b16 %v4727
    %v5781 = vpack.c.b16 %v5778, %v5777
    %v5782 = vpack.c.b16 %v5780, %v5779
    %v5786 = vsel %vm1437, %v5768, 0
    %5788 = vmatprep.subr.bf16.mxu0 0
    %5789 = vmatpush1.bf16.msra.mxu0 0
    %5790 = vmatprep.subr.bf16.mxu0 0
    %5791 = vmatpush1.bf16.msra.mxu0 0
    %5792 = vmatprep.subr.bf16.mxu0 0
    %5793 = vmatpush1.bf16.msra.mxu0 0
    %5794 = vmatprep.subr.bf16.mxu0 0
    %5795 = vmatpush1.bf16.msra.mxu0 0
    %5796 = vmatprep.subr.bf16.mxu0 0
    %5797 = vmatpush1.bf16.msra.mxu0 0
    %5798 = vmatprep.subr.bf16.mxu0 0
    %5799 = vmatpush1.bf16.msra.mxu0 0
    %5800 = vmatprep.subr.bf16.mxu0 0
    %5801 = vmatpush1.bf16.msra.mxu0 %v5782
    %5802 = vmatprep.subr.bf16.mxu0 0
    %5803 = vmatpush1.bf16.msra.mxu0 %v5781
    %5804 = vmatprep.subr.bf16.mxu0 0
    %5805 = vmatpush2.bf16.msra.mxu0 0
    %5806 = vmatprep.subr.bf16.mxu0 0
    %5807 = vmatpush2.bf16.msra.mxu0 0
    %5808 = vmatprep.subr.bf16.mxu0 0
    %5809 = vmatpush2.bf16.msra.mxu0 0
    %5810 = vmatprep.subr.bf16.mxu0 0
    %5811 = vmatpush2.bf16.msra.mxu0 0
    %5812 = vmatprep.subr.bf16.mxu0 0
    %5813 = vmatpush2.bf16.msra.mxu0 0
    %5814 = vmatprep.subr.bf16.mxu0 0
    %5815 = vmatpush2.bf16.msra.mxu0 0
    %5816 = vmatprep.subr.bf16.mxu0 0
    %5817 = vmatpush2.bf16.msra.mxu0 0
    %5818 = vmatprep.subr.bf16.mxu0 0
    %5819 = vmatpush2.bf16.msra.mxu0 0
    %5820 = vmatprep.mubr.bf16.mxu0 0
    %5821 = vmatmul.mubr.bf16.gmra.mxu0 %v5786
    %v5822 = vpop.f32.mrf.mxu0
    %v5823 = vadd.f32 %v5772, %v5822
    %v5824 = vpop.f32.mrf.mxu0
    %v5825 = vpop.f32.mrf.mxu0
    %v5826 = vadd.f32 %v5772, %v5825
    %v5827 = vpop.f32.mrf.mxu0
    %5828 = vdwg.mxu0
    %v5829 = vadd.f32 %v4702, %v5823
    %v5830 = vadd.f32 %v4703, %v5826
    %5831 = vadd.xlane.f32.xlu0 %v5829
    %v5832 = vpop.xlane.xlu0 %5831
    %5833 = vadd.xlane.f32.xlu0 %v5830
    %v5834 = vpop.xlane.xlu0 %5833
    %v5835 = vmul.f32 %v5832, 0.03125
    %v5836 = vmul.f32 %v5834, 0.03125
    %v5837 = vmul.f32 %v5829, %v5829
    %v5838 = vmul.f32 %v5830, %v5830
    %5839 = vadd.xlane.f32.xlu0 %v5837
    %v5840 = vpop.xlane.xlu0 %5839
    %5841 = vadd.xlane.f32.xlu0 %v5838
    %v5842 = vpop.xlane.xlu0 %5841
    %v5843 = vmul.f32 %v5840, 0.03125
    %v5844 = vmul.f32 %v5842, 0.03125
    %v5845 = vmul.f32 %v5835, %v5835
    %v5846 = vmul.f32 %v5836, %v5836
    %v5847 = vsub.f32 %v5843, %v5845
    %v5848 = vsub.f32 %v5844, %v5846
    %v5849 = vmax.f32 %v5847, 0.0
    %v5850 = vmax.f32 %v5848, 0.0
    %v5851 = vsub.f32 %v5829, %v5835
    %v5852 = vsub.f32 %v5830, %v5836
    %v5853 = vadd.f32 %v5849, 1e-12
    %v5854 = vadd.f32 %v5850, 1e-12
    %v5855 = vrsqrt.pop %v5853
    %v5856 = vrsqrt.pop %v5854
    %v5857 = vmul.f32 %v5851, %v5855
    %v5858 = vmul.f32 %v5852, %v5856
    %v5859 = vlaneseq
    %v5860 = vshrl.u32 %v5859, 7
    %v5861 = vsub.s32 4, %v5860
    %v5862 = vrot.slane %v4763, %v5861
    %v5863 = vmul.f32 %v5857, %v5862
    %v5864 = vmul.f32 %v5858, %v5862
    %v5865 = vlaneseq
    %v5866 = vshrl.u32 %v5865, 7
    %v5867 = vsub.s32 5, %v5866
    %v5868 = vrot.slane %v4763, %v5867
    %v5869 = vadd.f32 %v5863, %v5868
    %v5870 = vadd.f32 %v5864, %v5868
    %v5871 = vpack.c.bf16 %v5870, %v5869
    %v5872 = vlaneseq
    %v5873 = vshrl.u32 %v5872, 7
    %v5874 = vsub.s32 2, %v5873
    %v5875 = vrot.slane %v4763, %v5874
    %v5892 = vunpack.c.l.b16 %v4729
    %v5893 = vunpack.c.l.b16 %v4730
    %v5894 = vunpack.c.l.b16 %v4731
    %v5895 = vunpack.c.l.b16 %v4732
    %v5896 = vunpack.c.l.b16 %v4733
    %v5897 = vunpack.c.l.b16 %v4734
    %v5898 = vunpack.c.l.b16 %v4735
    %v5899 = vunpack.c.l.b16 %v4736
    %v5900 = vunpack.c.l.b16 %v4737
    %v5901 = vunpack.c.l.b16 %v4738
    %v5902 = vunpack.c.l.b16 %v4739
    %v5903 = vunpack.c.l.b16 %v4740
    %v5904 = vunpack.c.l.b16 %v4741
    %v5905 = vunpack.c.l.b16 %v4742
    %v5906 = vunpack.c.l.b16 %v4743
    %v5907 = vunpack.c.l.b16 %v4744
    %v5908 = vpack.c.b16 %v5893, %v5892
    %v5909 = vpack.c.b16 %v5895, %v5894
    %v5910 = vpack.c.b16 %v5897, %v5896
    %v5911 = vpack.c.b16 %v5899, %v5898
    %v5912 = vpack.c.b16 %v5901, %v5900
    %v5913 = vpack.c.b16 %v5903, %v5902
    %v5914 = vpack.c.b16 %v5905, %v5904
    %v5915 = vpack.c.b16 %v5907, %v5906
    %5924 = vmatprep.subr.bf16.mxu0 0
    %5925 = vmatpush1.bf16.msra.mxu0 %v5915
    %5926 = vmatprep.subr.bf16.mxu0 0
    %5927 = vmatpush1.bf16.msra.mxu0 %v5914
    %5928 = vmatprep.subr.bf16.mxu0 0
    %5929 = vmatpush1.bf16.msra.mxu0 %v5913
    %5930 = vmatprep.subr.bf16.mxu0 0
    %5931 = vmatpush1.bf16.msra.mxu0 %v5912
    %5932 = vmatprep.subr.bf16.mxu0 0
    %5933 = vmatpush1.bf16.msra.mxu0 %v5911
    %5934 = vmatprep.subr.bf16.mxu0 0
    %5935 = vmatpush1.bf16.msra.mxu0 %v5910
    %5936 = vmatprep.subr.bf16.mxu0 0
    %5937 = vmatpush1.bf16.msra.mxu0 %v5909
    %5938 = vmatprep.subr.bf16.mxu0 0
    %5939 = vmatpush1.bf16.msra.mxu0 %v5908
    %5940 = vmatprep.subr.bf16.mxu0 0
    %5941 = vmatpush2.bf16.msra.mxu0 0
    %5942 = vmatprep.subr.bf16.mxu0 0
    %5943 = vmatpush2.bf16.msra.mxu0 0
    %5944 = vmatprep.subr.bf16.mxu0 0
    %5945 = vmatpush2.bf16.msra.mxu0 0
    %5946 = vmatprep.subr.bf16.mxu0 0
    %5947 = vmatpush2.bf16.msra.mxu0 0
    %5948 = vmatprep.subr.bf16.mxu0 0
    %5949 = vmatpush2.bf16.msra.mxu0 0
    %5950 = vmatprep.subr.bf16.mxu0 0
    %5951 = vmatpush2.bf16.msra.mxu0 0
    %5952 = vmatprep.subr.bf16.mxu0 0
    %5953 = vmatpush2.bf16.msra.mxu0 0
    %5954 = vmatprep.subr.bf16.mxu0 0
    %5955 = vmatpush2.bf16.msra.mxu0 0
    %5956 = vmatprep.mubr.bf16.mxu0 0
    %5957 = vmatmul.mubr.bf16.gmra.mxu0 %v5871
    %v5958 = vpop.f32.mrf.mxu0
    %v5959 = vadd.f32 %v5875, %v5958
    %v5960 = vpop.f32.mrf.mxu0
    %v5961 = vpop.f32.mrf.mxu0
    %v5962 = vadd.f32 %v5875, %v5961
    %v5963 = vpop.f32.mrf.mxu0
    %5964 = vdwg.mxu0
    %v5965 = vmul.f32 %v5959, 0.5
    %v5966 = vmul.f32 %v5962, 0.5
    %v5967 = vmul.f32 %v5959, 0.70710677
    %v5968 = vmul.f32 %v5962, 0.70710677
    %vm5969 = vcmp.lt.f32.partialorder %v5967, 0.0
    %vm5970 = vcmp.lt.f32.partialorder %v5968, 0.0
    %v5971 = vsel %vm5969, -1.0, 1.0
    %v5972 = vsel %vm5970, -1.0, 1.0
    %v5973 = vand.u32 2147483647, %v5967
    %v5974 = vand.u32 2147483647, %v5968
    %v5975 = vmul.f32 %v5973, 0.3275911
    %v5976 = vmul.f32 %v5974, 0.3275911
    %v5977 = vadd.f32 %v5975, 1.0
    %v5978 = vadd.f32 %v5976, 1.0
    %v5979 = vrcp.pop %v5977
    %v5980 = vrcp.pop %v5978
    %v5981 = vmul.f32 %v5979, 1.0614054
    %v5982 = vmul.f32 %v5980, 1.0614054
    %v5983 = vadd.f32 %v5981, -1.4531521
    %v5984 = vadd.f32 %v5982, -1.4531521
    %v5985 = vmul.f32 %v5983, %v5979
    %v5986 = vmul.f32 %v5984, %v5980
    %v5987 = vadd.f32 %v5985, 1.4214138
    %v5988 = vadd.f32 %v5986, 1.4214138
    %v5989 = vmul.f32 %v5987, %v5979
    %v5990 = vmul.f32 %v5988, %v5980
    %v5991 = vadd.f32 %v5989, -0.28449672
    %v5992 = vadd.f32 %v5990, -0.28449672
    %v5993 = vmul.f32 %v5991, %v5979
    %v5994 = vmul.f32 %v5992, %v5980
    %v5995 = vadd.f32 %v5993, 0.2548296
    %v5996 = vadd.f32 %v5994, 0.2548296
    %v5997 = vmul.f32 %v5995, %v5979
    %v5998 = vmul.f32 %v5996, %v5980
    %v5999 = vsub.f32 0.0, %v5973
    %v6000 = vsub.f32 0.0, %v5974
    %v6001 = vmul.f32 %v5999, %v5973
    %v6002 = vmul.f32 %v6000, %v5974
    %v6003 = vmul.f32 %v6001, 1.442695
    %v6004 = vpow.pop %v6003
    %v6005 = vmul.f32 %v6002, 1.442695
    %v6006 = vpow.pop %v6005
    %v6007 = vmul.f32 %v5997, %v6004
    %v6008 = vmul.f32 %v5998, %v6006
    %v6009 = vsub.f32 1.0, %v6007
    %v6010 = vsub.f32 1.0, %v6008
    %v6011 = vmul.f32 %v5971, %v6009
    %v6012 = vmul.f32 %v5972, %v6010
    %v6013 = vadd.f32 %v6011, 1.0
    %v6014 = vadd.f32 %v6012, 1.0
    %v6015 = vmul.f32 %v5965, %v6013
    %v6016 = vmul.f32 %v5966, %v6014
    %v6017 = vpack.c.bf16 %v6016, %v6015
    %v6018 = vlaneseq
    %v6019 = vshrl.u32 %v6018, 7
    %v6020 = vsub.s32 3, %v6019
    %v6021 = vrot.slane %v4763, %v6020
    %v6038 = vunpack.c.l.b16 %v4746
    %v6039 = vunpack.c.l.b16 %v4747
    %v6040 = vunpack.c.l.b16 %v4748
    %v6041 = vunpack.c.l.b16 %v4749
    %v6042 = vunpack.c.l.b16 %v4750
    %v6043 = vunpack.c.l.b16 %v4751
    %v6044 = vunpack.c.l.b16 %v4752
    %v6045 = vunpack.c.l.b16 %v4753
    %v6046 = vunpack.c.l.b16 %v4754
    %v6047 = vunpack.c.l.b16 %v4755
    %v6048 = vunpack.c.l.b16 %v4756
    %v6049 = vunpack.c.l.b16 %v4757
    %v6050 = vunpack.c.l.b16 %v4758
    %v6051 = vunpack.c.l.b16 %v4759
    %v6052 = vunpack.c.l.b16 %v4760
    %v6053 = vunpack.c.l.b16 %v4761
    %v6054 = vpack.c.b16 %v6039, %v6038
    %v6055 = vpack.c.b16 %v6041, %v6040
    %v6056 = vpack.c.b16 %v6043, %v6042
    %v6057 = vpack.c.b16 %v6045, %v6044
    %v6058 = vpack.c.b16 %v6047, %v6046
    %v6059 = vpack.c.b16 %v6049, %v6048
    %v6060 = vpack.c.b16 %v6051, %v6050
    %v6061 = vpack.c.b16 %v6053, %v6052
    %6070 = vmatprep.subr.bf16.mxu0 0
    %6071 = vmatpush1.bf16.msra.mxu0 %v6061
    %6072 = vmatprep.subr.bf16.mxu0 0
    %6073 = vmatpush1.bf16.msra.mxu0 %v6060
    %6074 = vmatprep.subr.bf16.mxu0 0
    %6075 = vmatpush1.bf16.msra.mxu0 %v6059
    %6076 = vmatprep.subr.bf16.mxu0 0
    %6077 = vmatpush1.bf16.msra.mxu0 %v6058
    %6078 = vmatprep.subr.bf16.mxu0 0
    %6079 = vmatpush1.bf16.msra.mxu0 %v6057
    %6080 = vmatprep.subr.bf16.mxu0 0
    %6081 = vmatpush1.bf16.msra.mxu0 %v6056
    %6082 = vmatprep.subr.bf16.mxu0 0
    %6083 = vmatpush1.bf16.msra.mxu0 %v6055
    %6084 = vmatprep.subr.bf16.mxu0 0
    %6085 = vmatpush1.bf16.msra.mxu0 %v6054
    %6086 = vmatprep.subr.bf16.mxu0 0
    %6087 = vmatpush2.bf16.msra.mxu0 0
    %6088 = vmatprep.subr.bf16.mxu0 0
    %6089 = vmatpush2.bf16.msra.mxu0 0
    %6090 = vmatprep.subr.bf16.mxu0 0
    %6091 = vmatpush2.bf16.msra.mxu0 0
    %6092 = vmatprep.subr.bf16.mxu0 0
    %6093 = vmatpush2.bf16.msra.mxu0 0
    %6094 = vmatprep.subr.bf16.mxu0 0
    %6095 = vmatpush2.bf16.msra.mxu0 0
    %6096 = vmatprep.subr.bf16.mxu0 0
    %6097 = vmatpush2.bf16.msra.mxu0 0
    %6098 = vmatprep.subr.bf16.mxu0 0
    %6099 = vmatpush2.bf16.msra.mxu0 0
    %6100 = vmatprep.subr.bf16.mxu0 0
    %6101 = vmatpush2.bf16.msra.mxu0 0
    %6102 = vmatprep.mubr.bf16.mxu0 0
    %6103 = vmatmul.mubr.bf16.gmra.mxu0 %v6017
    %v6104 = vpop.f32.mrf.mxu0
    %v6105 = vadd.f32 %v6021, %v6104
    %v6106 = vpop.f32.mrf.mxu0
    %v6107 = vpop.f32.mrf.mxu0
    %v6108 = vadd.f32 %v6021, %v6107
    %v6109 = vpop.f32.mrf.mxu0
    %6110 = vdwg.mxu0
    %v6111 = vadd.f32 %v5869, %v6105
    %v6112 = vadd.f32 %v5870, %v6108
    %6113 = vadd.xlane.f32.xlu0 %v6111
    %v6114 = vpop.xlane.xlu0 %6113
    %6115 = vadd.xlane.f32.xlu0 %v6112
    %v6116 = vpop.xlane.xlu0 %6115
    %v6117 = vmul.f32 %v6114, 0.03125
    %v6118 = vmul.f32 %v6116, 0.03125
    %v6119 = vmul.f32 %v6111, %v6111
    %v6120 = vmul.f32 %v6112, %v6112
    %6121 = vadd.xlane.f32.xlu0 %v6119
    %v6122 = vpop.xlane.xlu0 %6121
    %6123 = vadd.xlane.f32.xlu0 %v6120
    %v6124 = vpop.xlane.xlu0 %6123
    %v6125 = vmul.f32 %v6122, 0.03125
    %v6126 = vmul.f32 %v6124, 0.03125
    %v6127 = vmul.f32 %v6117, %v6117
    %v6128 = vmul.f32 %v6118, %v6118
    %v6129 = vsub.f32 %v6125, %v6127
    %v6130 = vsub.f32 %v6126, %v6128
    %v6131 = vmax.f32 %v6129, 0.0
    %v6132 = vmax.f32 %v6130, 0.0
    %v6133 = vsub.f32 %v6111, %v6117
    %v6134 = vsub.f32 %v6112, %v6118
    %v6135 = vadd.f32 %v6131, 1e-12
    %v6136 = vadd.f32 %v6132, 1e-12
    %v6137 = vrsqrt.pop %v6135
    %v6138 = vrsqrt.pop %v6136
    %v6139 = vmul.f32 %v6133, %v6137
    %v6140 = vmul.f32 %v6134, %v6138
    %v6141 = vlaneseq
    %v6142 = vshrl.u32 %v6141, 7
    %v6143 = vsub.s32 6, %v6142
    %v6144 = vrot.slane %v4763, %v6143
    %v6145 = vmul.f32 %v6139, %v6144
    %v6146 = vmul.f32 %v6140, %v6144
    %v6147 = vlaneseq
    %v6148 = vshrl.u32 %v6147, 7
    %v6149 = vsub.s32 7, %v6148
    %v6150 = vrot.slane %v4763, %v6149
    %v6151 = vadd.f32 %v6145, %v6150
    %v6152 = vadd.f32 %v6146, %v6150
    %v6153 = vadd.f32 %v4704, %v6151
    %v6154 = vadd.f32 %v4705, %v6152
    %v6155 = vmul.f32 %v6153, 0.25
    %v6156 = vmul.f32 %v6154, 0.25
    %6157 = vst [vmem:[#allocation19] sm:$0xff] %v6155
    %6158 = vst [vmem:[#allocation19 + $0x8] sm:$0xff] %v6156
    // Predicated region
    $region82: #{tpu_custom_call.1} parent=1 // pred_check
      _
    $region83: #{tpu_custom_call.1} parent=1 // pred_check_branch
      %6160 = sbr.rel (0) target = $region85
    $region84: #{tpu_custom_call.1} parent=1 // pred_region
      %s6162 = ssub.s32 256, 256
      %6163 = vsyncadd [#allocation4], %s6162
      %s6164 = sshll.u32 [#allocation19], 4
      %s6165 = int_to_ptr.vmem [resolvable:$true] %s6164
      %6170 = dma.vmem_to_hbm [thread:$0]  %s6165, 256, %s10, [#allocation4], 128, 128, 8
    $region85: #{tpu_custom_call.1} parent=1 // pred_fallthru
      _
    // Predicated region
    $region86: #{tpu_custom_call.1} parent=1 // pred_check
      _
    $region87: #{tpu_custom_call.1} parent=1 // pred_check_branch
      %6172 = sbr.rel (0) target = $region89
    $region88: #{tpu_custom_call.1} parent=1 // pred_region
      %6173 = dma.done [#allocation4], 256
    $region89: #{tpu_custom_call.1} parent=1 // pred_fallthru
      _
    %6174 = vsyncpa [#allocation3], 1
    %6175 = vsyncpa [#allocation6], 1
    %6176 = vsyncpa [#allocation9], 1
    %6177 = vsyncpa [#allocation12], 1
    %6178 = vsyncpa [#allocation15], 1
    %6179 = vsyncpa [#allocation18], 1
    %6180 = vsyncpa [#allocation4], 1

</llo_original>
